<compile_context>
chip_gen: v5e
topology: v5e:2x2
jax: 0.10.0
libtpu: 0.0.40
codegen_flags: <defaults>
</compile_context>

<pallas_src>
import numpy as np
import jax
import jax.numpy as jnp
from jax import lax
from jax.experimental import pallas as pl
from jax.experimental.pallas import tpu as pltpu

SMEM_SPEC = pl.BlockSpec(memory_space=pltpu.MemorySpace.SMEM)


def _compiler_params(dims):
    kw = {}
    try:
        cap = int(pltpu.get_tpu_info().vmem_capacity_bytes)
        # Leave ~25% headroom for compiler internal scratch / double buffers:
        # ~48 MiB on v7x (64 MiB physical), ~96 MiB on v5e/v6e (128 MiB).
        kw["vmem_limit_bytes"] = (cap * 3) // 4
    except Exception:
        pass
    return pltpu.CompilerParams(dimension_semantics=dims, **kw)


# ---------------------------------------------------------------------------
# Kernel 1: fused contrast block + attention maps + 8x8 max pool (grid over B).
# ---------------------------------------------------------------------------
def _contrast_pool_kernel(wm_ref, wb_ref, x_ref, cmap_ref, att_ref, pool_ref,
                          pad_ref, col_ref):
    _, C, H, W = x_ref.shape
    hs, ws = pool_ref.shape[2], pool_ref.shape[3]
    K = col_ref.shape[0]                                  # 18 * C

    x = x_ref[0]                                          # (C, H, W)

    # Zero only the thin pad borders (redone every step so the batch axis has
    # no cross-step dependence and stays "parallel"); interior = x each step.
    pad_ref[:, 0:5, :] = jnp.zeros((C, 5, W + 10), jnp.float32)
    pad_ref[:, 5 + H:H + 10, :] = jnp.zeros((C, 5, W + 10), jnp.float32)
    pad_ref[:, 5:5 + H, 0:5] = jnp.zeros((C, H, 5), jnp.float32)
    pad_ref[:, 5:5 + H, 5 + W:W + 10] = jnp.zeros((C, H, 5), jnp.float32)
    pad_ref[:, 5:5 + H, 5:5 + W] = x

    # im2col: one shifted-window copy per (conv, tap, in-channel).  The
    # tap x channel reduction then runs on the MXU as a single matmul instead
    # of 180 VALU slab-FMAs re-loading/storing (H, W) accumulators.
    r = 0
    for ki in range(3):
        for kj in range(3):
            for ci in range(C):
                # d1: 3x3, dilation 1, padding 1  (1-pad window inside the
                # 5-pad frame -- offsets 4+ki, 4+kj).
                col_ref[r] = pad_ref[ci, 4 + ki:4 + ki + H, 4 + kj:4 + kj + W]
                # d2: 3x3, dilation 5, padding 5.
                col_ref[9 * C + r] = pad_ref[ci, 5 * ki:5 * ki + H,
                                             5 * kj:5 * kj + W]
                r += 1

    col = col_ref[...].reshape(K, H * W)                  # (18C, H*W)
    y = lax.dot_general(wm_ref[...], col, (((1,), (0,)), ((), ())),
                        preferred_element_type=jnp.float32) + wb_ref[...]
    y = y.reshape(2 * C, H, W)                            # rows [0:C]=d1, [C:2C]=d2

    for c in range(C):
        y1 = y[c]
        y2 = y[C + c]
        a1 = jnp.where(y1 > 0, y1, 0.2 * y1)              # LeakyReLU(0.2)
        a2 = jnp.where(y2 > 0, y2, 0.2 * y2)
        df = jnp.abs(a1 - a2)
        cm = 1.0 / (1.0 + jnp.exp(-df))                   # exact sigmoid (output)
        cmap_ref[0, c] = cm
        xc = x[c]
        att_ref[0, c] = cm * xc
        rva = (1.0 - cm) * xc                             # reverse-attention feat.
        # Fused 3x MaxPool2d(2,2,ceil) == one 8x8/stride-8 max pool (H, W are
        # multiples of 8): sublane-group reduce, lane-group reduce, one dense
        # (hs, ws) store per channel.
        rp = jnp.max(rva.reshape(hs, 8, W), axis=1)               # (hs, W)
        pool_ref[0, c] = jnp.max(rp.reshape(hs, ws, 8), axis=2)   # (hs, ws)


def contrast_pool_forward(x, params):
    """x: (B, C, H, W) -> (cmap, att, pooled) with pooled (B, C, H/8, W/8)."""
    B, C, H, W = x.shape
    hs, ws = H // 8, W // 8
    K = 18 * C
    # TODO(synk): for large images, tile this kernel over H with a 5-row halo
    # so the pad/col scratch stays under v7x's 64 MiB VMEM and a v7x megacore
    # has >= 2 parallel steps even when B == 1.
    return pl.pallas_call(
        _contrast_pool_kernel,
        out_shape=(
            jax.ShapeDtypeStruct((B, C, H, W), jnp.float32),
            jax.ShapeDtypeStruct((B, C, H, W), jnp.float32),
            jax.ShapeDtypeStruct((B, C, hs, ws), jnp.float32),
        ),
        grid=(B,),
        in_specs=[
            pl.BlockSpec((2 * C, K), lambda b: (0, 0)),
            pl.BlockSpec((2 * C, 1), lambda b: (0, 0)),
            pl.BlockSpec((1, C, H, W), lambda b: (b, 0, 0, 0)),
        ],
        out_specs=(
            pl.BlockSpec((1, C, H, W), lambda b: (b, 0, 0, 0)),
            pl.BlockSpec((1, C, H, W), lambda b: (b, 0, 0, 0)),
            pl.BlockSpec((1, C, hs, ws), lambda b: (b, 0, 0, 0)),
        ),
        scratch_shapes=[
            pltpu.VMEM((C, H + 10, W + 10), jnp.float32),   # zero-padded frame
            pltpu.VMEM((K, H, W), jnp.float32),             # im2col buffer
        ],
        compiler_params=_compiler_params(("parallel",)),
    )(params["wm"], params["wb"], x)


# ---------------------------------------------------------------------------
# Kernel 2: non-local attention with fused theta/phi/g projections and the
# final 1x1 conv W folded in; j (contraction axis) is grid-blocked.
# ---------------------------------------------------------------------------
def _attn_kernel(s_full_ref, s_blk_ref, wqkv_ref, bqkv_ref, ww_ref, z_ref):
    I = wqkv_ref.shape[0] // 3

    @pl.when(pl.program_id(1) == 0)
    def _():
        z_ref[...] = jnp.zeros_like(z_ref)

    s_full = s_full_ref[0]                                # (C, N)
    s_blk = s_blk_ref[0]                                  # (C, TJ)
    wqkv = wqkv_ref[...]                                  # (3I, C)
    bqkv = bqkv_ref[...]                                  # (3I, 1)

    # theta over all pixels (lane-dense (I, N)); phi / g only for this j block.
    th = jnp.dot(wqkv[0:I], s_full,
                 preferred_element_type=jnp.float32) + bqkv[0:I]      # (I, N)
    pg = jnp.dot(wqkv[I:3 * I], s_blk,
                 preferred_element_type=jnp.float32) + bqkv[I:3 * I]  # (2I, TJ)
    ph = pg[0:I]                                          # (I, TJ)
    g = pg[I:2 * I]                                       # (I, TJ)

    # f[i, j] = <theta(:, i), phi(:, j)>  (contract over the channel axis 0).
    f = lax.dot_general(th, ph, (((0,), (0,)), ((), ())),
                        preferred_element_type=jnp.float32)           # (N, TJ)
    # torch softmax(dim=1) on (B, N, N) normalizes over i per column j, so each
    # column block is self-contained -> single-pass j-blocking, no flash scheme.
    m = jnp.max(f, axis=0, keepdims=True)
    e = jnp.exp(f - m)
    p = e * pl.reciprocal(jnp.sum(e, axis=0, keepdims=True), approx=True)
    # y^T[k, i] = sum_j g[k, j] * p[i, j]; accumulate over j blocks.
    yt = lax.dot_general(g, p, (((1,), (1,)), ((), ())),
                         preferred_element_type=jnp.float32)          # (I, N)
    # Fused 1x1 conv W on the small map (commutes with the bilinear upsample);
    # its bias is added after the upsample in kernel 3.
    z_ref[0] += jnp.dot(ww_ref[...], yt, preferred_element_type=jnp.float32)


def attention_forward(pooled_flat, params):
    """pooled_flat: (B, C, N) -> z_small (B, C, N) = W(non-local(pooled))."""
    B, C, N = pooled_flat.shape
    I3 = params["wqkv"].shape[0]
    # j-block the contraction so live intermediates are O(N*TJ), not O(N^2).
    tj = N if (N <= 2048 or N % 2048 != 0) else 2048
    # TODO(synk): for huge N not divisible by 2048 this falls back to a single
    # (N, N) block; pad N or pick another 128-multiple divisor in that case.
    nj = N // tj
    return pl.pallas_call(
        _attn_kernel,
        out_shape=jax.ShapeDtypeStruct((B, C, N), jnp.float32),
        grid=(B, nj),
        in_specs=[
            pl.BlockSpec((1, C, N), lambda b, j: (b, 0, 0)),
            pl.BlockSpec((1, C, tj), lambda b, j: (b, 0, j)),
            pl.BlockSpec((I3, C), lambda b, j: (0, 0)),
            pl.BlockSpec((I3, 1), lambda b, j: (0, 0)),
            pl.BlockSpec((C, I3 // 3), lambda b, j: (0, 0)),
        ],
        out_specs=pl.BlockSpec((1, C, N), lambda b, j: (b, 0, 0)),
        compiler_params=_compiler_params(("parallel", "arbitrary")),
    )(pooled_flat, pooled_flat, params["wqkv"], params["bqkv"], params["ww"])


# ---------------------------------------------------------------------------
# Kernel 3: x8 bilinear upsample (2 matmuls, W-pass first and lane-dense),
# fused with the W-conv bias and the residual add.
# ---------------------------------------------------------------------------
def _up_res_kernel(bw_ref, z_ref, uh_ref, uw_ref, x_ref, o_ref):
    _, C, H, W = x_ref.shape
    hs = uh_ref.shape[1]
    # Column (W) pass first: ONE lane-dense (C*hs, ws) @ (ws, W) matmul.
    v = jnp.dot(z_ref[0], uw_ref[...],
                preferred_element_type=jnp.float32)            # (C*hs, W)
    uh = uh_ref[...]                                            # (H, hs)
    for c in range(C):
        up = jnp.dot(uh, v[c * hs:(c + 1) * hs, :],
                     preferred_element_type=jnp.float32)        # (H, W)
        o_ref[0, c] = up + bw_ref[c] + x_ref[0, c]


def _bilinear_up2_matrix(n_in):
    # matches nn.Upsample(scale_factor=2, mode='bilinear', align_corners=False)
    n_out = 2 * n_in
    U = np.zeros((n_out, n_in), np.float32)
    for d in range(n_out):
        src = max((d + 0.5) / 2.0 - 0.5, 0.0)
        i0 = min(int(np.floor(src)), n_in - 1)
        i1 = min(i0 + 1, n_in - 1)
        w1 = src - i0
        U[d, i0] += 1.0 - w1
        U[d, i1] += w1
    return U


def _bilinear_up8_matrix(n_in):
    u1 = _bilinear_up2_matrix(n_in)
    u2 = _bilinear_up2_matrix(2 * n_in)
    u3 = _bilinear_up2_matrix(4 * n_in)
    return (u3 @ u2 @ u1).astype(np.float32)                   # (8*n_in, n_in)


def upsample_residual(z_small, bw, x):
    """z_small: (B, C*hs, ws) small map (contiguous reshape of (B, C, N))."""
    B, C, H, W = x.shape
    hs, ws = H // 8, W // 8
    uh8 = jnp.asarray(_bilinear_up8_matrix(hs))                # (H, hs)
    uw8 = jnp.asarray(_bilinear_up8_matrix(ws).T)              # (ws, W)
    return pl.pallas_call(
        _up_res_kernel,
        out_shape=jax.ShapeDtypeStruct((B, C, H, W), jnp.float32),
        grid=(B,),
        in_specs=[
            SMEM_SPEC,
            pl.BlockSpec((1, C * hs, ws), lambda b: (b, 0, 0)),
            pl.BlockSpec((H, hs), lambda b: (0, 0)),
            pl.BlockSpec((ws, W), lambda b: (0, 0)),
            pl.BlockSpec((1, C, H, W), lambda b: (b, 0, 0, 0)),
        ],
        out_specs=pl.BlockSpec((1, C, H, W), lambda b: (b, 0, 0, 0)),
        compiler_params=_compiler_params(("parallel",)),
    )(bw, z_small, uh8, uw8, x)


# ---------------------------------------------------------------------------
# Parameter init (deterministic, shapes follow the PyTorch module __init__),
# converted to the layouts the kernels expect.
# ---------------------------------------------------------------------------
def init_params(key, in_channels, inter_channels):
    C, I = in_channels, inter_channels
    ks = jax.random.split(key, 12)
    nrm = lambda k, shape: 0.1 * jax.random.normal(k, shape, jnp.float32)

    d1_w = nrm(ks[0], (C, 1, 3, 3)); d1_b = nrm(ks[1], (C,))     # contrast.d1
    d2_w = nrm(ks[2], (C, C, 3, 3)); d2_b = nrm(ks[3], (C,))     # contrast.d2
    th_w = nrm(ks[4], (I, C, 1, 1)); th_b = nrm(ks[5], (I,))
    ph_w = nrm(ks[6], (I, C, 1, 1)); ph_b = nrm(ks[7], (I,))
    g_w = nrm(ks[8], (I, C, 1, 1)); g_b = nrm(ks[9], (I,))
    W_w = nrm(ks[10], (C, I, 1, 1)); W_b = nrm(ks[11], (C,))

    # Combined im2col conv weight for kernel 1:
    #   col row r = (ki*3 + kj)*C + ci  -> d1 window (dil 1, pad 1)
    #   col row 9*C + r                 -> d2 window (dil 5, pad 5)
    #   output rows [0:C] = d1 (depthwise), rows [C:2C] = d2 (dense).
    d1n, d2n = np.asarray(d1_w), np.asarray(d2_w)
    wm = np.zeros((2 * C, 18 * C), np.float32)
    for ki in range(3):
        for kj in range(3):
            t = ki * 3 + kj
            for ci in range(C):
                wm[ci, t * C + ci] = d1n[ci, 0, ki, kj]
                for co in range(C):
                    wm[C + co, 9 * C + t * C + ci] = d2n[co, ci, ki, kj]
    wb = np.concatenate([np.asarray(d1_b), np.asarray(d2_b)]).reshape(2 * C, 1)

    wqkv = jnp.concatenate(
        [th_w[:, :, 0, 0], ph_w[:, :, 0, 0], g_w[:, :, 0, 0]], axis=0)  # (3I, C)
    bqkv = jnp.concatenate([th_b, ph_b, g_b]).reshape(3 * I, 1)

    return {
        "wm": jnp.asarray(wm),
        "wb": jnp.asarray(wb.astype(np.float32)),
        "wqkv": wqkv,
        "bqkv": bqkv,
        "ww": W_w[:, :, 0, 0],
        "bw": W_b,
    }


# ---------------------------------------------------------------------------
# Full enBlock forward (NCHW in / NCHW out, like PyTorch).
# ---------------------------------------------------------------------------
def en_block_forward(x_nchw, params, inter_channels):
    B, C, H, W = x_nchw.shape
    if H % 8 != 0 or W % 8 != 0:
        # ceil pooling 3x then upsample 8x reproduces (H, W) exactly only for
        # multiples of 8 (the PyTorch residual add also requires this).
        raise ValueError("enBlock requires H and W to be multiples of 8.")
    hs, ws = H // 8, W // 8
    N = hs * ws
    x = x_nchw.astype(jnp.float32)

    # contrast map, attention map, and the 8x-pooled reverse-attention feature.
    cmap, att, pooled = contrast_pool_forward(x, params)

    # Non-local attention (with fused theta/phi/g and folded 1x1 conv W).
    z_small = attention_forward(pooled.reshape(B, C, N), params)    # (B, C, N)

    # x8 bilinear upsample (2 matmuls) + W bias + residual add.
    z = upsample_residual(z_small.reshape(B, C * hs, ws), params["bw"], x)
    return z, cmap, att


if __name__ == "__main__":
    B, C, H, W = 2, 4, 16, 16
    INTER = 2
    key = jax.random.PRNGKey(0)
    kx, kp = jax.random.split(key)
    x = jax.random.normal(kx, (B, C, H, W), jnp.float32)
    params = init_params(kp, C, INTER)

    fwd = jax.jit(en_block_forward, static_argnums=(2,))
    z, cmap, att = fwd(x, params, INTER)
    jax.block_until_ready((z, cmap, att))

    assert z.shape == (B, C, H, W)
    assert cmap.shape == (B, C, H, W)
    assert att.shape == (B, C, H, W)
    assert bool(jnp.isfinite(z).all() & jnp.isfinite(cmap).all()
                & jnp.isfinite(att).all())
    print("KERNEL_OK")
</pallas_src>

<mosaic_0001>
module attributes {stable_mosaic.version = 11 : i64} {
  func.func @_attn_kernel(%arg0: i32, %arg1: i32, %arg2: memref<1x4x4xf32, #tpu.memory_space<vmem>>, %arg3: memref<1x4x4xf32, #tpu.memory_space<vmem>>, %arg4: memref<6x4xf32, #tpu.memory_space<vmem>>, %arg5: memref<6x1xf32, #tpu.memory_space<vmem>>, %arg6: memref<4x2xf32, #tpu.memory_space<vmem>>, %arg7: memref<1x4x4xf32, #tpu.memory_space<vmem>>) attributes {dimension_semantics = [#tpu.dimension_semantics<parallel>, #tpu.dimension_semantics<arbitrary>], iteration_bounds = array<i64: 2, 1>, scalar_prefetch = 0 : i64, scratch_operands = 0 : i64, tpu.core_type = #tpu.core_type<tc>, window_params = [{transform_indices = @transform_0, window_bounds = array<i64: 1, 4, 4>}, {transform_indices = @transform_1, window_bounds = array<i64: 1, 4, 4>}, {pipeline_mode = #tpu.pipeline_mode<synchronous>, transform_indices = @transform_2, window_bounds = array<i64: 6, 4>}, {pipeline_mode = #tpu.pipeline_mode<synchronous>, transform_indices = @transform_3, window_bounds = array<i64: 6, 1>}, {pipeline_mode = #tpu.pipeline_mode<synchronous>, transform_indices = @transform_4, window_bounds = array<i64: 4, 2>}, {transform_indices = @transform_5, window_bounds = array<i64: 1, 4, 4>}]} {
    %c0_i32 = arith.constant 0 : i32
    %0 = arith.cmpi eq, %arg1, %c0_i32 : i32
    %1 = arith.extui %0 : i1 to i32
    %c0_i32_0 = arith.constant 0 : i32
    %2 = arith.cmpi ne, %1, %c0_i32_0 : i32
    scf.if %2 {
      %cst_24 = arith.constant 0.000000e+00 : f32
      %41 = vector.broadcast %cst_24 : f32 to vector<1x4x4xf32>
      %c0_25 = arith.constant 0 : index
      %c0_26 = arith.constant 0 : index
      %c0_27 = arith.constant 0 : index
      %42 = vector.load %arg7[%c0_25, %c0_26, %c0_27] : memref<1x4x4xf32, #tpu.memory_space<vmem>>, vector<1x4x4xf32>
      tpu.vector_store %arg7[%c0_25, %c0_26, %c0_27], %41 {strides = array<i32>} : memref<1x4x4xf32, #tpu.memory_space<vmem>>, vector<1x4x4xf32>,
    } else {
    }
    %c0 = arith.constant 0 : index
    %c0_1 = arith.constant 0 : index
    %c0_2 = arith.constant 0 : index
    %3 = vector.load %arg2[%c0, %c0_1, %c0_2] : memref<1x4x4xf32, #tpu.memory_space<vmem>>, vector<1x4x4xf32>
    %4 = vector.shape_cast %3 : vector<1x4x4xf32> to vector<4x4xf32>
    %c0_3 = arith.constant 0 : index
    %c0_4 = arith.constant 0 : index
    %c0_5 = arith.constant 0 : index
    %5 = vector.load %arg3[%c0_3, %c0_4, %c0_5] : memref<1x4x4xf32, #tpu.memory_space<vmem>>, vector<1x4x4xf32>
    %6 = vector.shape_cast %5 : vector<1x4x4xf32> to vector<4x4xf32>
    %c0_6 = arith.constant 0 : index
    %c0_7 = arith.constant 0 : index
    %7 = vector.load %arg4[%c0_6, %c0_7] : memref<6x4xf32, #tpu.memory_space<vmem>>, vector<6x4xf32>
    %c0_8 = arith.constant 0 : index
    %c0_9 = arith.constant 0 : index
    %8 = vector.load %arg5[%c0_8, %c0_9] : memref<6x1xf32, #tpu.memory_space<vmem>>, vector<6x1xf32>
    %9 = vector.extract_strided_slice %7 {offsets = [0, 0], sizes = [2, 4], strides = [1, 1]} : vector<6x4xf32> to vector<2x4xf32>
    %cst = arith.constant dense<0.000000e+00> : vector<2x4xf32>
    %10 = tpu.matmul %9, %4, %cst {dimension_numbers = #tpu.dot_dimension_numbers<[1], [0], [0], [1], [0, 0, 1, 1], [], []>} : vector<2x4xf32>, vector<4x4xf32>, vector<2x4xf32> -> vector<2x4xf32>
    %11 = vector.extract_strided_slice %8 {offsets = [0, 0], sizes = [2, 1], strides = [1, 1]} : vector<6x1xf32> to vector<2x1xf32>
    %12 = vector.broadcast %11 : vector<2x1xf32> to vector<2x4xf32>
    %13 = arith.addf %10, %12 : vector<2x4xf32>
    %14 = vector.extract_strided_slice %7 {offsets = [2, 0], sizes = [4, 4], strides = [1, 1]} : vector<6x4xf32> to vector<4x4xf32>
    %cst_10 = arith.constant dense<0.000000e+00> : vector<4x4xf32>
    %15 = tpu.matmul %14, %6, %cst_10 {dimension_numbers = #tpu.dot_dimension_numbers<[1], [0], [0], [1], [0, 0, 1, 1], [], []>} : vector<4x4xf32>, vector<4x4xf32>, vector<4x4xf32> -> vector<4x4xf32>
    %16 = vector.extract_strided_slice %8 {offsets = [2, 0], sizes = [4, 1], strides = [1, 1]} : vector<6x1xf32> to vector<4x1xf32>
    %17 = vector.broadcast %16 : vector<4x1xf32> to vector<4x4xf32>
    %18 = arith.addf %15, %17 : vector<4x4xf32>
    %19 = vector.extract_strided_slice %18 {offsets = [0, 0], sizes = [2, 4], strides = [1, 1]} : vector<4x4xf32> to vector<2x4xf32>
    %20 = vector.extract_strided_slice %18 {offsets = [2, 0], sizes = [2, 4], strides = [1, 1]} : vector<4x4xf32> to vector<2x4xf32>
    %cst_11 = arith.constant dense<0.000000e+00> : vector<4x4xf32>
    %21 = tpu.matmul %13, %19, %cst_11 {dimension_numbers = #tpu.dot_dimension_numbers<[0], [0], [1], [1], [0, 1, 1, 1], [], []>} : vector<2x4xf32>, vector<2x4xf32>, vector<4x4xf32> -> vector<4x4xf32>
    %cst_12 = arith.constant dense<0xFF800000> : vector<4xf32>
    %22 = vector.multi_reduction <maximumf>, %21, %cst_12 [0] : vector<4x4xf32> to vector<4xf32>
    %23 = vector.shape_cast %22 : vector<4xf32> to vector<1x4xf32>
    %24 = vector.broadcast %23 : vector<1x4xf32> to vector<4x4xf32>
    %25 = arith.subf %21, %24 : vector<4x4xf32>
    %26 = math.exp %25 : vector<4x4xf32>
    %cst_13 = arith.constant dense<0.000000e+00> : vector<4xf32>
    %27 = vector.multi_reduction <add>, %26, %cst_13 [0] : vector<4x4xf32> to vector<4xf32>
    %28 = vector.shape_cast %27 : vector<4xf32> to vector<1x4xf32>
    %29 = tpu.reciprocal %28 {approx = true} : vector<1x4xf32> -> vector<1x4xf32>
    %30 = vector.broadcast %29 : vector<1x4xf32> to vector<4x4xf32>
    %31 = arith.mulf %26, %30 : vector<4x4xf32>
    %cst_14 = arith.constant dense<0.000000e+00> : vector<2x4xf32>
    %32 = tpu.matmul %20, %31, %cst_14 {dimension_numbers = #tpu.dot_dimension_numbers<[1], [1], [0], [0], [0, 0, 1, 0], [], []>} : vector<2x4xf32>, vector<4x4xf32>, vector<2x4xf32> -> vector<2x4xf32>
    %c0_15 = arith.constant 0 : index
    %c0_16 = arith.constant 0 : index
    %c0_17 = arith.constant 0 : index
    %33 = vector.load %arg7[%c0_15, %c0_16, %c0_17] : memref<1x4x4xf32, #tpu.memory_space<vmem>>, vector<1x4x4xf32>
    %34 = vector.shape_cast %33 : vector<1x4x4xf32> to vector<4x4xf32>
    %c0_18 = arith.constant 0 : index
    %c0_19 = arith.constant 0 : index
    %35 = vector.load %arg6[%c0_18, %c0_19] : memref<4x2xf32, #tpu.memory_space<vmem>>, vector<4x2xf32>
    %cst_20 = arith.constant dense<0.000000e+00> : vector<4x4xf32>
    %36 = tpu.matmul %35, %32, %cst_20 {dimension_numbers = #tpu.dot_dimension_numbers<[1], [0], [0], [1], [0, 0, 1, 1], [], []>} : vector<4x2xf32>, vector<2x4xf32>, vector<4x4xf32> -> vector<4x4xf32>
    %37 = arith.addf %34, %36 : vector<4x4xf32>
    %c0_21 = arith.constant 0 : index
    %c0_22 = arith.constant 0 : index
    %c0_23 = arith.constant 0 : index
    %38 = vector.load %arg7[%c0_21, %c0_22, %c0_23] : memref<1x4x4xf32, #tpu.memory_space<vmem>>, vector<1x4x4xf32>
    %39 = vector.shape_cast %38 : vector<1x4x4xf32> to vector<4x4xf32>
    %40 = vector.shape_cast %37 : vector<4x4xf32> to vector<1x4x4xf32>
    tpu.vector_store %arg7[%c0_21, %c0_22, %c0_23], %40 {strides = array<i32>} : memref<1x4x4xf32, #tpu.memory_space<vmem>>, vector<1x4x4xf32>,
    return
  }
  func.func @transform_0(%arg0: i32, %arg1: i32) -> (i32, i32, i32) {
    %c0_i32 = arith.constant 0 : i32
    %c0_i32_0 = arith.constant 0 : i32
    %c0_i32_1 = arith.constant 0 : i32
    return %arg0, %c0_i32, %c0_i32_0 : i32, i32, i32
  }
  func.func @transform_1(%arg0: i32, %arg1: i32) -> (i32, i32, i32) {
    %c0_i32 = arith.constant 0 : i32
    %c0_i32_0 = arith.constant 0 : i32
    return %arg0, %c0_i32, %arg1 : i32, i32, i32
  }
  func.func @transform_2(%arg0: i32, %arg1: i32) -> (i32, i32) {
    %c0_i32 = arith.constant 0 : i32
    %c0_i32_0 = arith.constant 0 : i32
    %c0_i32_1 = arith.constant 0 : i32
    return %c0_i32, %c0_i32_0 : i32, i32
  }
  func.func @transform_3(%arg0: i32, %arg1: i32) -> (i32, i32) {
    %c0_i32 = arith.constant 0 : i32
    %c0_i32_0 = arith.constant 0 : i32
    %c0_i32_1 = arith.constant 0 : i32
    return %c0_i32, %c0_i32_0 : i32, i32
  }
  func.func @transform_4(%arg0: i32, %arg1: i32) -> (i32, i32) {
    %c0_i32 = arith.constant 0 : i32
    %c0_i32_0 = arith.constant 0 : i32
    %c0_i32_1 = arith.constant 0 : i32
    return %c0_i32, %c0_i32_0 : i32, i32
  }
  func.func @transform_5(%arg0: i32, %arg1: i32) -> (i32, i32, i32) {
    %c0_i32 = arith.constant 0 : i32
    %c0_i32_0 = arith.constant 0 : i32
    %c0_i32_1 = arith.constant 0 : i32
    return %arg0, %c0_i32, %c0_i32_0 : i32, i32, i32
  }
}

module attributes {stable_mosaic.version = 11 : i64} {
  func.func @_up_res_kernel(%arg0: i32, %arg1: memref<4xf32, #tpu.memory_space<smem>>, %arg2: memref<1x8x2xf32, #tpu.memory_space<vmem>>, %arg3: memref<16x2xf32, #tpu.memory_space<vmem>>, %arg4: memref<2x16xf32, #tpu.memory_space<vmem>>, %arg5: memref<1x4x16x16xf32, #tpu.memory_space<vmem>>, %arg6: memref<1x4x16x16xf32, #tpu.memory_space<vmem>>) attributes {dimension_semantics = [#tpu.dimension_semantics<parallel>], iteration_bounds = array<i64: 2>, scalar_prefetch = 0 : i64, scratch_operands = 0 : i64, tpu.core_type = #tpu.core_type<tc>, window_params = [{transform_indices = @transform_0, window_bounds = array<i64: 4>}, {transform_indices = @transform_1, window_bounds = array<i64: 1, 8, 2>}, {pipeline_mode = #tpu.pipeline_mode<synchronous>, transform_indices = @transform_2, window_bounds = array<i64: 16, 2>}, {pipeline_mode = #tpu.pipeline_mode<synchronous>, transform_indices = @transform_3, window_bounds = array<i64: 2, 16>}, {transform_indices = @transform_4, window_bounds = array<i64: 1, 4, 16, 16>}, {transform_indices = @transform_5, window_bounds = array<i64: 1, 4, 16, 16>}]} {
    %c0 = arith.constant 0 : index
    %c0_0 = arith.constant 0 : index
    %c0_1 = arith.constant 0 : index
    %0 = vector.load %arg2[%c0, %c0_0, %c0_1] : memref<1x8x2xf32, #tpu.memory_space<vmem>>, vector<1x8x2xf32>
    %1 = vector.shape_cast %0 : vector<1x8x2xf32> to vector<8x2xf32>
    %c0_2 = arith.constant 0 : index
    %c0_3 = arith.constant 0 : index
    %2 = vector.load %arg4[%c0_2, %c0_3] : memref<2x16xf32, #tpu.memory_space<vmem>>, vector<2x16xf32>
    %cst = arith.constant dense<0.000000e+00> : vector<8x16xf32>
    %3 = tpu.matmul %1, %2, %cst {dimension_numbers = #tpu.dot_dimension_numbers<[1], [0], [0], [1], [0, 0, 1, 1], [], []>} : vector<8x2xf32>, vector<2x16xf32>, vector<8x16xf32> -> vector<8x16xf32>
    %c0_4 = arith.constant 0 : index
    %c0_5 = arith.constant 0 : index
    %4 = vector.load %arg3[%c0_4, %c0_5] : memref<16x2xf32, #tpu.memory_space<vmem>>, vector<16x2xf32>
    %5 = vector.extract_strided_slice %3 {offsets = [0, 0], sizes = [2, 16], strides = [1, 1]} : vector<8x16xf32> to vector<2x16xf32>
    %cst_6 = arith.constant dense<0.000000e+00> : vector<16x16xf32>
    %6 = tpu.matmul %4, %5, %cst_6 {dimension_numbers = #tpu.dot_dimension_numbers<[1], [0], [0], [1], [0, 0, 1, 1], [], []>} : vector<16x2xf32>, vector<2x16xf32>, vector<16x16xf32> -> vector<16x16xf32>
    %c0_7 = arith.constant 0 : index
    %7 = memref.load %arg1[%c0_7] : memref<4xf32, #tpu.memory_space<smem>>
    %8 = vector.broadcast %7 : f32 to vector<16x16xf32>
    %9 = arith.addf %6, %8 : vector<16x16xf32>
    %c0_8 = arith.constant 0 : index
    %c0_9 = arith.constant 0 : index
    %c0_10 = arith.constant 0 : index
    %c0_11 = arith.constant 0 : index
    %10 = vector.load %arg5[%c0_8, %c0_9, %c0_10, %c0_11] : memref<1x4x16x16xf32, #tpu.memory_space<vmem>>, vector<1x1x16x16xf32>
    %11 = vector.shape_cast %10 : vector<1x1x16x16xf32> to vector<16x16xf32>
    %12 = arith.addf %9, %11 : vector<16x16xf32>
    %c0_12 = arith.constant 0 : index
    %c0_13 = arith.constant 0 : index
    %c0_14 = arith.constant 0 : index
    %c0_15 = arith.constant 0 : index
    %13 = vector.load %arg6[%c0_12, %c0_13, %c0_14, %c0_15] : memref<1x4x16x16xf32, #tpu.memory_space<vmem>>, vector<1x1x16x16xf32>
    %14 = vector.shape_cast %13 : vector<1x1x16x16xf32> to vector<16x16xf32>
    %15 = vector.shape_cast %12 : vector<16x16xf32> to vector<1x1x16x16xf32>
    tpu.vector_store %arg6[%c0_12, %c0_13, %c0_14, %c0_15], %15 {strides = array<i32>} : memref<1x4x16x16xf32, #tpu.memory_space<vmem>>, vector<1x1x16x16xf32>,
    %16 = vector.extract_strided_slice %3 {offsets = [2, 0], sizes = [2, 16], strides = [1, 1]} : vector<8x16xf32> to vector<2x16xf32>
    %cst_16 = arith.constant dense<0.000000e+00> : vector<16x16xf32>
    %17 = tpu.matmul %4, %16, %cst_16 {dimension_numbers = #tpu.dot_dimension_numbers<[1], [0], [0], [1], [0, 0, 1, 1], [], []>} : vector<16x2xf32>, vector<2x16xf32>, vector<16x16xf32> -> vector<16x16xf32>
    %c1 = arith.constant 1 : index
    %18 = memref.load %arg1[%c1] : memref<4xf32, #tpu.memory_space<smem>>
    %19 = vector.broadcast %18 : f32 to vector<16x16xf32>
    %20 = arith.addf %17, %19 : vector<16x16xf32>
    %c0_17 = arith.constant 0 : index
    %c1_18 = arith.constant 1 : index
    %c0_19 = arith.constant 0 : index
    %c0_20 = arith.constant 0 : index
    %21 = vector.load %arg5[%c0_17, %c1_18, %c0_19, %c0_20] : memref<1x4x16x16xf32, #tpu.memory_space<vmem>>, vector<1x1x16x16xf32>
    %22 = vector.shape_cast %21 : vector<1x1x16x16xf32> to vector<16x16xf32>
    %23 = arith.addf %20, %22 : vector<16x16xf32>
    %c0_21 = arith.constant 0 : index
    %c1_22 = arith.constant 1 : index
    %c0_23 = arith.constant 0 : index
    %c0_24 = arith.constant 0 : index
    %24 = vector.load %arg6[%c0_21, %c1_22, %c0_23, %c0_24] : memref<1x4x16x16xf32, #tpu.memory_space<vmem>>, vector<1x1x16x16xf32>
    %25 = vector.shape_cast %24 : vector<1x1x16x16xf32> to vector<16x16xf32>
    %26 = vector.shape_cast %23 : vector<16x16xf32> to vector<1x1x16x16xf32>
    tpu.vector_store %arg6[%c0_21, %c1_22, %c0_23, %c0_24], %26 {strides = array<i32>} : memref<1x4x16x16xf32, #tpu.memory_space<vmem>>, vector<1x1x16x16xf32>,
    %27 = vector.extract_strided_slice %3 {offsets = [4, 0], sizes = [2, 16], strides = [1, 1]} : vector<8x16xf32> to vector<2x16xf32>
    %cst_25 = arith.constant dense<0.000000e+00> : vector<16x16xf32>
    %28 = tpu.matmul %4, %27, %cst_25 {dimension_numbers = #tpu.dot_dimension_numbers<[1], [0], [0], [1], [0, 0, 1, 1], [], []>} : vector<16x2xf32>, vector<2x16xf32>, vector<16x16xf32> -> vector<16x16xf32>
    %c2 = arith.constant 2 : index
    %29 = memref.load %arg1[%c2] : memref<4xf32, #tpu.memory_space<smem>>
    %30 = vector.broadcast %29 : f32 to vector<16x16xf32>
    %31 = arith.addf %28, %30 : vector<16x16xf32>
    %c0_26 = arith.constant 0 : index
    %c2_27 = arith.constant 2 : index
    %c0_28 = arith.constant 0 : index
    %c0_29 = arith.constant 0 : index
    %32 = vector.load %arg5[%c0_26, %c2_27, %c0_28, %c0_29] : memref<1x4x16x16xf32, #tpu.memory_space<vmem>>, vector<1x1x16x16xf32>
    %33 = vector.shape_cast %32 : vector<1x1x16x16xf32> to vector<16x16xf32>
    %34 = arith.addf %31, %33 : vector<16x16xf32>
    %c0_30 = arith.constant 0 : index
    %c2_31 = arith.constant 2 : index
    %c0_32 = arith.constant 0 : index
    %c0_33 = arith.constant 0 : index
    %35 = vector.load %arg6[%c0_30, %c2_31, %c0_32, %c0_33] : memref<1x4x16x16xf32, #tpu.memory_space<vmem>>, vector<1x1x16x16xf32>
    %36 = vector.shape_cast %35 : vector<1x1x16x16xf32> to vector<16x16xf32>
    %37 = vector.shape_cast %34 : vector<16x16xf32> to vector<1x1x16x16xf32>
    tpu.vector_store %arg6[%c0_30, %c2_31, %c0_32, %c0_33], %37 {strides = array<i32>} : memref<1x4x16x16xf32, #tpu.memory_space<vmem>>, vector<1x1x16x16xf32>,
    %38 = vector.extract_strided_slice %3 {offsets = [6, 0], sizes = [2, 16], strides = [1, 1]} : vector<8x16xf32> to vector<2x16xf32>
    %cst_34 = arith.constant dense<0.000000e+00> : vector<16x16xf32>
    %39 = tpu.matmul %4, %38, %cst_34 {dimension_numbers = #tpu.dot_dimension_numbers<[1], [0], [0], [1], [0, 0, 1, 1], [], []>} : vector<16x2xf32>, vector<2x16xf32>, vector<16x16xf32> -> vector<16x16xf32>
    %c3 = arith.constant 3 : index
    %40 = memref.load %arg1[%c3] : memref<4xf32, #tpu.memory_space<smem>>
    %41 = vector.broadcast %40 : f32 to vector<16x16xf32>
    %42 = arith.addf %39, %41 : vector<16x16xf32>
    %c0_35 = arith.constant 0 : index
    %c3_36 = arith.constant 3 : index
    %c0_37 = arith.constant 0 : index
    %c0_38 = arith.constant 0 : index
    %43 = vector.load %arg5[%c0_35, %c3_36, %c0_37, %c0_38] : memref<1x4x16x16xf32, #tpu.memory_space<vmem>>, vector<1x1x16x16xf32>
    %44 = vector.shape_cast %43 : vector<1x1x16x16xf32> to vector<16x16xf32>
    %45 = arith.addf %42, %44 : vector<16x16xf32>
    %c0_39 = arith.constant 0 : index
    %c3_40 = arith.constant 3 : index
    %c0_41 = arith.constant 0 : index
    %c0_42 = arith.constant 0 : index
    %46 = vector.load %arg6[%c0_39, %c3_40, %c0_41, %c0_42] : memref<1x4x16x16xf32, #tpu.memory_space<vmem>>, vector<1x1x16x16xf32>
    %47 = vector.shape_cast %46 : vector<1x1x16x16xf32> to vector<16x16xf32>
    %48 = vector.shape_cast %45 : vector<16x16xf32> to vector<1x1x16x16xf32>
    tpu.vector_store %arg6[%c0_39, %c3_40, %c0_41, %c0_42], %48 {strides = array<i32>} : memref<1x4x16x16xf32, #tpu.memory_space<vmem>>, vector<1x1x16x16xf32>,
    return
  }
  func.func @transform_0(%arg0: i32) -> i32 {
    %c0_i32 = arith.constant 0 : i32
    %c0_i32_0 = arith.constant 0 : i32
    return %c0_i32 : i32
  }
  func.func @transform_1(%arg0: i32) -> (i32, i32, i32) {
    %c0_i32 = arith.constant 0 : i32
    %c0_i32_0 = arith.constant 0 : i32
    %c0_i32_1 = arith.constant 0 : i32
    return %arg0, %c0_i32, %c0_i32_0 : i32, i32, i32
  }
  func.func @transform_2(%arg0: i32) -> (i32, i32) {
    %c0_i32 = arith.constant 0 : i32
    %c0_i32_0 = arith.constant 0 : i32
    %c0_i32_1 = arith.constant 0 : i32
    return %c0_i32, %c0_i32_0 : i32, i32
  }
  func.func @transform_3(%arg0: i32) -> (i32, i32) {
    %c0_i32 = arith.constant 0 : i32
    %c0_i32_0 = arith.constant 0 : i32
    %c0_i32_1 = arith.constant 0 : i32
    return %c0_i32, %c0_i32_0 : i32, i32
  }
  func.func @transform_4(%arg0: i32) -> (i32, i32, i32, i32) {
    %c0_i32 = arith.constant 0 : i32
    %c0_i32_0 = arith.constant 0 : i32
    %c0_i32_1 = arith.constant 0 : i32
    %c0_i32_2 = arith.constant 0 : i32
    return %arg0, %c0_i32, %c0_i32_0, %c0_i32_1 : i32, i32, i32, i32
  }
  func.func @transform_5(%arg0: i32) -> (i32, i32, i32, i32) {
    %c0_i32 = arith.constant 0 : i32
    %c0_i32_0 = arith.constant 0 : i32
    %c0_i32_1 = arith.constant 0 : i32
    %c0_i32_2 = arith.constant 0 : i32
    return %arg0, %c0_i32, %c0_i32_0, %c0_i32_1 : i32, i32, i32, i32
  }
}

module attributes {stable_mosaic.version = 11 : i64} {
  func.func @_contrast_pool_kernel(%arg0: i32, %arg1: memref<8x72xf32, #tpu.memory_space<vmem>>, %arg2: memref<8x1xf32, #tpu.memory_space<vmem>>, %arg3: memref<1x4x16x16xf32, #tpu.memory_space<vmem>>, %arg4: memref<1x4x16x16xf32, #tpu.memory_space<vmem>>, %arg5: memref<1x4x16x16xf32, #tpu.memory_space<vmem>>, %arg6: memref<1x4x2x2xf32, #tpu.memory_space<vmem>>, %arg7: memref<4x26x26xf32, #tpu.memory_space<vmem>>, %arg8: memref<72x16x16xf32, #tpu.memory_space<vmem>>) attributes {dimension_semantics = [#tpu.dimension_semantics<parallel>], iteration_bounds = array<i64: 2>, scalar_prefetch = 0 : i64, scratch_operands = 2 : i64, tpu.core_type = #tpu.core_type<tc>, window_params = [{pipeline_mode = #tpu.pipeline_mode<synchronous>, transform_indices = @transform_0, window_bounds = array<i64: 8, 72>}, {pipeline_mode = #tpu.pipeline_mode<synchronous>, transform_indices = @transform_1, window_bounds = array<i64: 8, 1>}, {transform_indices = @transform_2, window_bounds = array<i64: 1, 4, 16, 16>}, {transform_indices = @transform_3, window_bounds = array<i64: 1, 4, 16, 16>}, {transform_indices = @transform_4, window_bounds = array<i64: 1, 4, 16, 16>}, {transform_indices = @transform_5, window_bounds = array<i64: 1, 4, 2, 2>}]} {
    %c0 = arith.constant 0 : index
    %c0_0 = arith.constant 0 : index
    %c0_1 = arith.constant 0 : index
    %c0_2 = arith.constant 0 : index
    %0 = vector.load %arg3[%c0, %c0_0, %c0_1, %c0_2] : memref<1x4x16x16xf32, #tpu.memory_space<vmem>>, vector<1x4x16x16xf32>
    %1 = vector.shape_cast %0 : vector<1x4x16x16xf32> to vector<4x16x16xf32>
    %cst = arith.constant 0.000000e+00 : f32
    %2 = vector.broadcast %cst : f32 to vector<4x5x26xf32>
    %c0_3 = arith.constant 0 : index
    %c0_4 = arith.constant 0 : index
    %c0_5 = arith.constant 0 : index
    %3 = vector.load %arg7[%c0_3, %c0_4, %c0_5] : memref<4x26x26xf32, #tpu.memory_space<vmem>>, vector<4x5x26xf32>
    tpu.vector_store %arg7[%c0_3, %c0_4, %c0_5], %2 {strides = array<i32>} : memref<4x26x26xf32, #tpu.memory_space<vmem>>, vector<4x5x26xf32>,
    %cst_6 = arith.constant 0.000000e+00 : f32
    %4 = vector.broadcast %cst_6 : f32 to vector<4x5x26xf32>
    %c0_7 = arith.constant 0 : index
    %c21 = arith.constant 21 : index
    %c0_8 = arith.constant 0 : index
    %5 = vector.load %arg7[%c0_7, %c21, %c0_8] : memref<4x26x26xf32, #tpu.memory_space<vmem>>, vector<4x5x26xf32>
    tpu.vector_store %arg7[%c0_7, %c21, %c0_8], %4 {strides = array<i32>} : memref<4x26x26xf32, #tpu.memory_space<vmem>>, vector<4x5x26xf32>,
    %cst_9 = arith.constant 0.000000e+00 : f32
    %6 = vector.broadcast %cst_9 : f32 to vector<4x16x5xf32>
    %c0_10 = arith.constant 0 : index
    %c5 = arith.constant 5 : index
    %c0_11 = arith.constant 0 : index
    %7 = vector.load %arg7[%c0_10, %c5, %c0_11] : memref<4x26x26xf32, #tpu.memory_space<vmem>>, vector<4x16x5xf32>
    tpu.vector_store %arg7[%c0_10, %c5, %c0_11], %6 {strides = array<i32>} : memref<4x26x26xf32, #tpu.memory_space<vmem>>, vector<4x16x5xf32>,
    %cst_12 = arith.constant 0.000000e+00 : f32
    %8 = vector.broadcast %cst_12 : f32 to vector<4x16x5xf32>
    %c0_13 = arith.constant 0 : index
    %c5_14 = arith.constant 5 : index
    %c21_15 = arith.constant 21 : index
    %9 = vector.load %arg7[%c0_13, %c5_14, %c21_15] : memref<4x26x26xf32, #tpu.memory_space<vmem>>, vector<4x16x5xf32>
    tpu.vector_store %arg7[%c0_13, %c5_14, %c21_15], %8 {strides = array<i32>} : memref<4x26x26xf32, #tpu.memory_space<vmem>>, vector<4x16x5xf32>,
    %c0_16 = arith.constant 0 : index
    %c5_17 = arith.constant 5 : index
    %c5_18 = arith.constant 5 : index
    %10 = vector.load %arg7[%c0_16, %c5_17, %c5_18] : memref<4x26x26xf32, #tpu.memory_space<vmem>>, vector<4x16x16xf32>
    tpu.vector_store %arg7[%c0_16, %c5_17, %c5_18], %1 {strides = array<i32>} : memref<4x26x26xf32, #tpu.memory_space<vmem>>, vector<4x16x16xf32>,
    %c0_19 = arith.constant 0 : index
    %c4 = arith.constant 4 : index
    %c4_20 = arith.constant 4 : index
    %11 = vector.load %arg7[%c0_19, %c4, %c4_20] : memref<4x26x26xf32, #tpu.memory_space<vmem>>, vector<1x16x16xf32>
    %12 = vector.shape_cast %11 : vector<1x16x16xf32> to vector<16x16xf32>
    %c0_21 = arith.constant 0 : index
    %c0_22 = arith.constant 0 : index
    %c0_23 = arith.constant 0 : index
    %13 = vector.load %arg8[%c0_21, %c0_22, %c0_23] : memref<72x16x16xf32, #tpu.memory_space<vmem>>, vector<1x16x16xf32>
    %14 = vector.shape_cast %13 : vector<1x16x16xf32> to vector<16x16xf32>
    %15 = vector.shape_cast %12 : vector<16x16xf32> to vector<1x16x16xf32>
    tpu.vector_store %arg8[%c0_21, %c0_22, %c0_23], %15 {strides = array<i32>} : memref<72x16x16xf32, #tpu.memory_space<vmem>>, vector<1x16x16xf32>,
    %c0_24 = arith.constant 0 : index
    %c0_25 = arith.constant 0 : index
    %c0_26 = arith.constant 0 : index
    %16 = vector.load %arg7[%c0_24, %c0_25, %c0_26] : memref<4x26x26xf32, #tpu.memory_space<vmem>>, vector<1x16x16xf32>
    %17 = vector.shape_cast %16 : vector<1x16x16xf32> to vector<16x16xf32>
    %c36 = arith.constant 36 : index
    %c0_27 = arith.constant 0 : index
    %c0_28 = arith.constant 0 : index
    %18 = vector.load %arg8[%c36, %c0_27, %c0_28] : memref<72x16x16xf32, #tpu.memory_space<vmem>>, vector<1x16x16xf32>
    %19 = vector.shape_cast %18 : vector<1x16x16xf32> to vector<16x16xf32>
    %20 = vector.shape_cast %17 : vector<16x16xf32> to vector<1x16x16xf32>
    tpu.vector_store %arg8[%c36, %c0_27, %c0_28], %20 {strides = array<i32>} : memref<72x16x16xf32, #tpu.memory_space<vmem>>, vector<1x16x16xf32>,
    %c1 = arith.constant 1 : index
    %c4_29 = arith.constant 4 : index
    %c4_30 = arith.constant 4 : index
    %21 = vector.load %arg7[%c1, %c4_29, %c4_30] : memref<4x26x26xf32, #tpu.memory_space<vmem>>, vector<1x16x16xf32>
    %22 = vector.shape_cast %21 : vector<1x16x16xf32> to vector<16x16xf32>
    %c1_31 = arith.constant 1 : index
    %c0_32 = arith.constant 0 : index
    %c0_33 = arith.constant 0 : index
    %23 = vector.load %arg8[%c1_31, %c0_32, %c0_33] : memref<72x16x16xf32, #tpu.memory_space<vmem>>, vector<1x16x16xf32>
    %24 = vector.shape_cast %23 : vector<1x16x16xf32> to vector<16x16xf32>
    %25 = vector.shape_cast %22 : vector<16x16xf32> to vector<1x16x16xf32>
    tpu.vector_store %arg8[%c1_31, %c0_32, %c0_33], %25 {strides = array<i32>} : memref<72x16x16xf32, #tpu.memory_space<vmem>>, vector<1x16x16xf32>,
    %c1_34 = arith.constant 1 : index
    %c0_35 = arith.constant 0 : index
    %c0_36 = arith.constant 0 : index
    %26 = vector.load %arg7[%c1_34, %c0_35, %c0_36] : memref<4x26x26xf32, #tpu.memory_space<vmem>>, vector<1x16x16xf32>
    %27 = vector.shape_cast %26 : vector<1x16x16xf32> to vector<16x16xf32>
    %c37 = arith.constant 37 : index
    %c0_37 = arith.constant 0 : index
    %c0_38 = arith.constant 0 : index
    %28 = vector.load %arg8[%c37, %c0_37, %c0_38] : memref<72x16x16xf32, #tpu.memory_space<vmem>>, vector<1x16x16xf32>
    %29 = vector.shape_cast %28 : vector<1x16x16xf32> to vector<16x16xf32>
    %30 = vector.shape_cast %27 : vector<16x16xf32> to vector<1x16x16xf32>
    tpu.vector_store %arg8[%c37, %c0_37, %c0_38], %30 {strides = array<i32>} : memref<72x16x16xf32, #tpu.memory_space<vmem>>, vector<1x16x16xf32>,
    %c2 = arith.constant 2 : index
    %c4_39 = arith.constant 4 : index
    %c4_40 = arith.constant 4 : index
    %31 = vector.load %arg7[%c2, %c4_39, %c4_40] : memref<4x26x26xf32, #tpu.memory_space<vmem>>, vector<1x16x16xf32>
    %32 = vector.shape_cast %31 : vector<1x16x16xf32> to vector<16x16xf32>
    %c2_41 = arith.constant 2 : index
    %c0_42 = arith.constant 0 : index
    %c0_43 = arith.constant 0 : index
    %33 = vector.load %arg8[%c2_41, %c0_42, %c0_43] : memref<72x16x16xf32, #tpu.memory_space<vmem>>, vector<1x16x16xf32>
    %34 = vector.shape_cast %33 : vector<1x16x16xf32> to vector<16x16xf32>
    %35 = vector.shape_cast %32 : vector<16x16xf32> to vector<1x16x16xf32>
    tpu.vector_store %arg8[%c2_41, %c0_42, %c0_43], %35 {strides = array<i32>} : memref<72x16x16xf32, #tpu.memory_space<vmem>>, vector<1x16x16xf32>,
    %c2_44 = arith.constant 2 : index
    %c0_45 = arith.constant 0 : index
    %c0_46 = arith.constant 0 : index
    %36 = vector.load %arg7[%c2_44, %c0_45, %c0_46] : memref<4x26x26xf32, #tpu.memory_space<vmem>>, vector<1x16x16xf32>
    %37 = vector.shape_cast %36 : vector<1x16x16xf32> to vector<16x16xf32>
    %c38 = arith.constant 38 : index
    %c0_47 = arith.constant 0 : index
    %c0_48 = arith.constant 0 : index
    %38 = vector.load %arg8[%c38, %c0_47, %c0_48] : memref<72x16x16xf32, #tpu.memory_space<vmem>>, vector<1x16x16xf32>
    %39 = vector.shape_cast %38 : vector<1x16x16xf32> to vector<16x16xf32>
    %40 = vector.shape_cast %37 : vector<16x16xf32> to vector<1x16x16xf32>
    tpu.vector_store %arg8[%c38, %c0_47, %c0_48], %40 {strides = array<i32>} : memref<72x16x16xf32, #tpu.memory_space<vmem>>, vector<1x16x16xf32>,
    %c3 = arith.constant 3 : index
    %c4_49 = arith.constant 4 : index
    %c4_50 = arith.constant 4 : index
    %41 = vector.load %arg7[%c3, %c4_49, %c4_50] : memref<4x26x26xf32, #tpu.memory_space<vmem>>, vector<1x16x16xf32>
    %42 = vector.shape_cast %41 : vector<1x16x16xf32> to vector<16x16xf32>
    %c3_51 = arith.constant 3 : index
    %c0_52 = arith.constant 0 : index
    %c0_53 = arith.constant 0 : index
    %43 = vector.load %arg8[%c3_51, %c0_52, %c0_53] : memref<72x16x16xf32, #tpu.memory_space<vmem>>, vector<1x16x16xf32>
    %44 = vector.shape_cast %43 : vector<1x16x16xf32> to vector<16x16xf32>
    %45 = vector.shape_cast %42 : vector<16x16xf32> to vector<1x16x16xf32>
    tpu.vector_store %arg8[%c3_51, %c0_52, %c0_53], %45 {strides = array<i32>} : memref<72x16x16xf32, #tpu.memory_space<vmem>>, vector<1x16x16xf32>,
    %c3_54 = arith.constant 3 : index
    %c0_55 = arith.constant 0 : index
    %c0_56 = arith.constant 0 : index
    %46 = vector.load %arg7[%c3_54, %c0_55, %c0_56] : memref<4x26x26xf32, #tpu.memory_space<vmem>>, vector<1x16x16xf32>
    %47 = vector.shape_cast %46 : vector<1x16x16xf32> to vector<16x16xf32>
    %c39 = arith.constant 39 : index
    %c0_57 = arith.constant 0 : index
    %c0_58 = arith.constant 0 : index
    %48 = vector.load %arg8[%c39, %c0_57, %c0_58] : memref<72x16x16xf32, #tpu.memory_space<vmem>>, vector<1x16x16xf32>
    %49 = vector.shape_cast %48 : vector<1x16x16xf32> to vector<16x16xf32>
    %50 = vector.shape_cast %47 : vector<16x16xf32> to vector<1x16x16xf32>
    tpu.vector_store %arg8[%c39, %c0_57, %c0_58], %50 {strides = array<i32>} : memref<72x16x16xf32, #tpu.memory_space<vmem>>, vector<1x16x16xf32>,
    %c0_59 = arith.constant 0 : index
    %c4_60 = arith.constant 4 : index
    %c5_61 = arith.constant 5 : index
    %51 = vector.load %arg7[%c0_59, %c4_60, %c5_61] : memref<4x26x26xf32, #tpu.memory_space<vmem>>, vector<1x16x16xf32>
    %52 = vector.shape_cast %51 : vector<1x16x16xf32> to vector<16x16xf32>
    %c4_62 = arith.constant 4 : index
    %c0_63 = arith.constant 0 : index
    %c0_64 = arith.constant 0 : index
    %53 = vector.load %arg8[%c4_62, %c0_63, %c0_64] : memref<72x16x16xf32, #tpu.memory_space<vmem>>, vector<1x16x16xf32>
    %54 = vector.shape_cast %53 : vector<1x16x16xf32> to vector<16x16xf32>
    %55 = vector.shape_cast %52 : vector<16x16xf32> to vector<1x16x16xf32>
    tpu.vector_store %arg8[%c4_62, %c0_63, %c0_64], %55 {strides = array<i32>} : memref<72x16x16xf32, #tpu.memory_space<vmem>>, vector<1x16x16xf32>,
    %c0_65 = arith.constant 0 : index
    %c0_66 = arith.constant 0 : index
    %c5_67 = arith.constant 5 : index
    %56 = vector.load %arg7[%c0_65, %c0_66, %c5_67] : memref<4x26x26xf32, #tpu.memory_space<vmem>>, vector<1x16x16xf32>
    %57 = vector.shape_cast %56 : vector<1x16x16xf32> to vector<16x16xf32>
    %c40 = arith.constant 40 : index
    %c0_68 = arith.constant 0 : index
    %c0_69 = arith.constant 0 : index
    %58 = vector.load %arg8[%c40, %c0_68, %c0_69] : memref<72x16x16xf32, #tpu.memory_space<vmem>>, vector<1x16x16xf32>
    %59 = vector.shape_cast %58 : vector<1x16x16xf32> to vector<16x16xf32>
    %60 = vector.shape_cast %57 : vector<16x16xf32> to vector<1x16x16xf32>
    tpu.vector_store %arg8[%c40, %c0_68, %c0_69], %60 {strides = array<i32>} : memref<72x16x16xf32, #tpu.memory_space<vmem>>, vector<1x16x16xf32>,
    %c1_70 = arith.constant 1 : index
    %c4_71 = arith.constant 4 : index
    %c5_72 = arith.constant 5 : index
    %61 = vector.load %arg7[%c1_70, %c4_71, %c5_72] : memref<4x26x26xf32, #tpu.memory_space<vmem>>, vector<1x16x16xf32>
    %62 = vector.shape_cast %61 : vector<1x16x16xf32> to vector<16x16xf32>
    %c5_73 = arith.constant 5 : index
    %c0_74 = arith.constant 0 : index
    %c0_75 = arith.constant 0 : index
    %63 = vector.load %arg8[%c5_73, %c0_74, %c0_75] : memref<72x16x16xf32, #tpu.memory_space<vmem>>, vector<1x16x16xf32>
    %64 = vector.shape_cast %63 : vector<1x16x16xf32> to vector<16x16xf32>
    %65 = vector.shape_cast %62 : vector<16x16xf32> to vector<1x16x16xf32>
    tpu.vector_store %arg8[%c5_73, %c0_74, %c0_75], %65 {strides = array<i32>} : memref<72x16x16xf32, #tpu.memory_space<vmem>>, vector<1x16x16xf32>,
    %c1_76 = arith.constant 1 : index
    %c0_77 = arith.constant 0 : index
    %c5_78 = arith.constant 5 : index
    %66 = vector.load %arg7[%c1_76, %c0_77, %c5_78] : memref<4x26x26xf32, #tpu.memory_space<vmem>>, vector<1x16x16xf32>
    %67 = vector.shape_cast %66 : vector<1x16x16xf32> to vector<16x16xf32>
    %c41 = arith.constant 41 : index
    %c0_79 = arith.constant 0 : index
    %c0_80 = arith.constant 0 : index
    %68 = vector.load %arg8[%c41, %c0_79, %c0_80] : memref<72x16x16xf32, #tpu.memory_space<vmem>>, vector<1x16x16xf32>
    %69 = vector.shape_cast %68 : vector<1x16x16xf32> to vector<16x16xf32>
    %70 = vector.shape_cast %67 : vector<16x16xf32> to vector<1x16x16xf32>
    tpu.vector_store %arg8[%c41, %c0_79, %c0_80], %70 {strides = array<i32>} : memref<72x16x16xf32, #tpu.memory_space<vmem>>, vector<1x16x16xf32>,
    %c2_81 = arith.constant 2 : index
    %c4_82 = arith.constant 4 : index
    %c5_83 = arith.constant 5 : index
    %71 = vector.load %arg7[%c2_81, %c4_82, %c5_83] : memref<4x26x26xf32, #tpu.memory_space<vmem>>, vector<1x16x16xf32>
    %72 = vector.shape_cast %71 : vector<1x16x16xf32> to vector<16x16xf32>
    %c6 = arith.constant 6 : index
    %c0_84 = arith.constant 0 : index
    %c0_85 = arith.constant 0 : index
    %73 = vector.load %arg8[%c6, %c0_84, %c0_85] : memref<72x16x16xf32, #tpu.memory_space<vmem>>, vector<1x16x16xf32>
    %74 = vector.shape_cast %73 : vector<1x16x16xf32> to vector<16x16xf32>
    %75 = vector.shape_cast %72 : vector<16x16xf32> to vector<1x16x16xf32>
    tpu.vector_store %arg8[%c6, %c0_84, %c0_85], %75 {strides = array<i32>} : memref<72x16x16xf32, #tpu.memory_space<vmem>>, vector<1x16x16xf32>,
    %c2_86 = arith.constant 2 : index
    %c0_87 = arith.constant 0 : index
    %c5_88 = arith.constant 5 : index
    %76 = vector.load %arg7[%c2_86, %c0_87, %c5_88] : memref<4x26x26xf32, #tpu.memory_space<vmem>>, vector<1x16x16xf32>
    %77 = vector.shape_cast %76 : vector<1x16x16xf32> to vector<16x16xf32>
    %c42 = arith.constant 42 : index
    %c0_89 = arith.constant 0 : index
    %c0_90 = arith.constant 0 : index
    %78 = vector.load %arg8[%c42, %c0_89, %c0_90] : memref<72x16x16xf32, #tpu.memory_space<vmem>>, vector<1x16x16xf32>
    %79 = vector.shape_cast %78 : vector<1x16x16xf32> to vector<16x16xf32>
    %80 = vector.shape_cast %77 : vector<16x16xf32> to vector<1x16x16xf32>
    tpu.vector_store %arg8[%c42, %c0_89, %c0_90], %80 {strides = array<i32>} : memref<72x16x16xf32, #tpu.memory_space<vmem>>, vector<1x16x16xf32>,
    %c3_91 = arith.constant 3 : index
    %c4_92 = arith.constant 4 : index
    %c5_93 = arith.constant 5 : index
    %81 = vector.load %arg7[%c3_91, %c4_92, %c5_93] : memref<4x26x26xf32, #tpu.memory_space<vmem>>, vector<1x16x16xf32>
    %82 = vector.shape_cast %81 : vector<1x16x16xf32> to vector<16x16xf32>
    %c7 = arith.constant 7 : index
    %c0_94 = arith.constant 0 : index
    %c0_95 = arith.constant 0 : index
    %83 = vector.load %arg8[%c7, %c0_94, %c0_95] : memref<72x16x16xf32, #tpu.memory_space<vmem>>, vector<1x16x16xf32>
    %84 = vector.shape_cast %83 : vector<1x16x16xf32> to vector<16x16xf32>
    %85 = vector.shape_cast %82 : vector<16x16xf32> to vector<1x16x16xf32>
    tpu.vector_store %arg8[%c7, %c0_94, %c0_95], %85 {strides = array<i32>} : memref<72x16x16xf32, #tpu.memory_space<vmem>>, vector<1x16x16xf32>,
    %c3_96 = arith.constant 3 : index
    %c0_97 = arith.constant 0 : index
    %c5_98 = arith.constant 5 : index
    %86 = vector.load %arg7[%c3_96, %c0_97, %c5_98] : memref<4x26x26xf32, #tpu.memory_space<vmem>>, vector<1x16x16xf32>
    %87 = vector.shape_cast %86 : vector<1x16x16xf32> to vector<16x16xf32>
    %c43 = arith.constant 43 : index
    %c0_99 = arith.constant 0 : index
    %c0_100 = arith.constant 0 : index
    %88 = vector.load %arg8[%c43, %c0_99, %c0_100] : memref<72x16x16xf32, #tpu.memory_space<vmem>>, vector<1x16x16xf32>
    %89 = vector.shape_cast %88 : vector<1x16x16xf32> to vector<16x16xf32>
    %90 = vector.shape_cast %87 : vector<16x16xf32> to vector<1x16x16xf32>
    tpu.vector_store %arg8[%c43, %c0_99, %c0_100], %90 {strides = array<i32>} : memref<72x16x16xf32, #tpu.memory_space<vmem>>, vector<1x16x16xf32>,
    %c0_101 = arith.constant 0 : index
    %c4_102 = arith.constant 4 : index
    %c6_103 = arith.constant 6 : index
    %91 = vector.load %arg7[%c0_101, %c4_102, %c6_103] : memref<4x26x26xf32, #tpu.memory_space<vmem>>, vector<1x16x16xf32>
    %92 = vector.shape_cast %91 : vector<1x16x16xf32> to vector<16x16xf32>
    %c8 = arith.constant 8 : index
    %c0_104 = arith.constant 0 : index
    %c0_105 = arith.constant 0 : index
    %93 = vector.load %arg8[%c8, %c0_104, %c0_105] : memref<72x16x16xf32, #tpu.memory_space<vmem>>, vector<1x16x16xf32>
    %94 = vector.shape_cast %93 : vector<1x16x16xf32> to vector<16x16xf32>
    %95 = vector.shape_cast %92 : vector<16x16xf32> to vector<1x16x16xf32>
    tpu.vector_store %arg8[%c8, %c0_104, %c0_105], %95 {strides = array<i32>} : memref<72x16x16xf32, #tpu.memory_space<vmem>>, vector<1x16x16xf32>,
    %c0_106 = arith.constant 0 : index
    %c0_107 = arith.constant 0 : index
    %c10 = arith.constant 10 : index
    %96 = vector.load %arg7[%c0_106, %c0_107, %c10] : memref<4x26x26xf32, #tpu.memory_space<vmem>>, vector<1x16x16xf32>
    %97 = vector.shape_cast %96 : vector<1x16x16xf32> to vector<16x16xf32>
    %c44 = arith.constant 44 : index
    %c0_108 = arith.constant 0 : index
    %c0_109 = arith.constant 0 : index
    %98 = vector.load %arg8[%c44, %c0_108, %c0_109] : memref<72x16x16xf32, #tpu.memory_space<vmem>>, vector<1x16x16xf32>
    %99 = vector.shape_cast %98 : vector<1x16x16xf32> to vector<16x16xf32>
    %100 = vector.shape_cast %97 : vector<16x16xf32> to vector<1x16x16xf32>
    tpu.vector_store %arg8[%c44, %c0_108, %c0_109], %100 {strides = array<i32>} : memref<72x16x16xf32, #tpu.memory_space<vmem>>, vector<1x16x16xf32>,
    %c1_110 = arith.constant 1 : index
    %c4_111 = arith.constant 4 : index
    %c6_112 = arith.constant 6 : index
    %101 = vector.load %arg7[%c1_110, %c4_111, %c6_112] : memref<4x26x26xf32, #tpu.memory_space<vmem>>, vector<1x16x16xf32>
    %102 = vector.shape_cast %101 : vector<1x16x16xf32> to vector<16x16xf32>
    %c9 = arith.constant 9 : index
    %c0_113 = arith.constant 0 : index
    %c0_114 = arith.constant 0 : index
    %103 = vector.load %arg8[%c9, %c0_113, %c0_114] : memref<72x16x16xf32, #tpu.memory_space<vmem>>, vector<1x16x16xf32>
    %104 = vector.shape_cast %103 : vector<1x16x16xf32> to vector<16x16xf32>
    %105 = vector.shape_cast %102 : vector<16x16xf32> to vector<1x16x16xf32>
    tpu.vector_store %arg8[%c9, %c0_113, %c0_114], %105 {strides = array<i32>} : memref<72x16x16xf32, #tpu.memory_space<vmem>>, vector<1x16x16xf32>,
    %c1_115 = arith.constant 1 : index
    %c0_116 = arith.constant 0 : index
    %c10_117 = arith.constant 10 : index
    %106 = vector.load %arg7[%c1_115, %c0_116, %c10_117] : memref<4x26x26xf32, #tpu.memory_space<vmem>>, vector<1x16x16xf32>
    %107 = vector.shape_cast %106 : vector<1x16x16xf32> to vector<16x16xf32>
    %c45 = arith.constant 45 : index
    %c0_118 = arith.constant 0 : index
    %c0_119 = arith.constant 0 : index
    %108 = vector.load %arg8[%c45, %c0_118, %c0_119] : memref<72x16x16xf32, #tpu.memory_space<vmem>>, vector<1x16x16xf32>
    %109 = vector.shape_cast %108 : vector<1x16x16xf32> to vector<16x16xf32>
    %110 = vector.shape_cast %107 : vector<16x16xf32> to vector<1x16x16xf32>
    tpu.vector_store %arg8[%c45, %c0_118, %c0_119], %110 {strides = array<i32>} : memref<72x16x16xf32, #tpu.memory_space<vmem>>, vector<1x16x16xf32>,
    %c2_120 = arith.constant 2 : index
    %c4_121 = arith.constant 4 : index
    %c6_122 = arith.constant 6 : index
    %111 = vector.load %arg7[%c2_120, %c4_121, %c6_122] : memref<4x26x26xf32, #tpu.memory_space<vmem>>, vector<1x16x16xf32>
    %112 = vector.shape_cast %111 : vector<1x16x16xf32> to vector<16x16xf32>
    %c10_123 = arith.constant 10 : index
    %c0_124 = arith.constant 0 : index
    %c0_125 = arith.constant 0 : index
    %113 = vector.load %arg8[%c10_123, %c0_124, %c0_125] : memref<72x16x16xf32, #tpu.memory_space<vmem>>, vector<1x16x16xf32>
    %114 = vector.shape_cast %113 : vector<1x16x16xf32> to vector<16x16xf32>
    %115 = vector.shape_cast %112 : vector<16x16xf32> to vector<1x16x16xf32>
    tpu.vector_store %arg8[%c10_123, %c0_124, %c0_125], %115 {strides = array<i32>} : memref<72x16x16xf32, #tpu.memory_space<vmem>>, vector<1x16x16xf32>,
    %c2_126 = arith.constant 2 : index
    %c0_127 = arith.constant 0 : index
    %c10_128 = arith.constant 10 : index
    %116 = vector.load %arg7[%c2_126, %c0_127, %c10_128] : memref<4x26x26xf32, #tpu.memory_space<vmem>>, vector<1x16x16xf32>
    %117 = vector.shape_cast %116 : vector<1x16x16xf32> to vector<16x16xf32>
    %c46 = arith.constant 46 : index
    %c0_129 = arith.constant 0 : index
    %c0_130 = arith.constant 0 : index
    %118 = vector.load %arg8[%c46, %c0_129, %c0_130] : memref<72x16x16xf32, #tpu.memory_space<vmem>>, vector<1x16x16xf32>
    %119 = vector.shape_cast %118 : vector<1x16x16xf32> to vector<16x16xf32>
    %120 = vector.shape_cast %117 : vector<16x16xf32> to vector<1x16x16xf32>
    tpu.vector_store %arg8[%c46, %c0_129, %c0_130], %120 {strides = array<i32>} : memref<72x16x16xf32, #tpu.memory_space<vmem>>, vector<1x16x16xf32>,
    %c3_131 = arith.constant 3 : index
    %c4_132 = arith.constant 4 : index
    %c6_133 = arith.constant 6 : index
    %121 = vector.load %arg7[%c3_131, %c4_132, %c6_133] : memref<4x26x26xf32, #tpu.memory_space<vmem>>, vector<1x16x16xf32>
    %122 = vector.shape_cast %121 : vector<1x16x16xf32> to vector<16x16xf32>
    %c11 = arith.constant 11 : index
    %c0_134 = arith.constant 0 : index
    %c0_135 = arith.constant 0 : index
    %123 = vector.load %arg8[%c11, %c0_134, %c0_135] : memref<72x16x16xf32, #tpu.memory_space<vmem>>, vector<1x16x16xf32>
    %124 = vector.shape_cast %123 : vector<1x16x16xf32> to vector<16x16xf32>
    %125 = vector.shape_cast %122 : vector<16x16xf32> to vector<1x16x16xf32>
    tpu.vector_store %arg8[%c11, %c0_134, %c0_135], %125 {strides = array<i32>} : memref<72x16x16xf32, #tpu.memory_space<vmem>>, vector<1x16x16xf32>,
    %c3_136 = arith.constant 3 : index
    %c0_137 = arith.constant 0 : index
    %c10_138 = arith.constant 10 : index
    %126 = vector.load %arg7[%c3_136, %c0_137, %c10_138] : memref<4x26x26xf32, #tpu.memory_space<vmem>>, vector<1x16x16xf32>
    %127 = vector.shape_cast %126 : vector<1x16x16xf32> to vector<16x16xf32>
    %c47 = arith.constant 47 : index
    %c0_139 = arith.constant 0 : index
    %c0_140 = arith.constant 0 : index
    %128 = vector.load %arg8[%c47, %c0_139, %c0_140] : memref<72x16x16xf32, #tpu.memory_space<vmem>>, vector<1x16x16xf32>
    %129 = vector.shape_cast %128 : vector<1x16x16xf32> to vector<16x16xf32>
    %130 = vector.shape_cast %127 : vector<16x16xf32> to vector<1x16x16xf32>
    tpu.vector_store %arg8[%c47, %c0_139, %c0_140], %130 {strides = array<i32>} : memref<72x16x16xf32, #tpu.memory_space<vmem>>, vector<1x16x16xf32>,
    %c0_141 = arith.constant 0 : index
    %c5_142 = arith.constant 5 : index
    %c4_143 = arith.constant 4 : index
    %131 = vector.load %arg7[%c0_141, %c5_142, %c4_143] : memref<4x26x26xf32, #tpu.memory_space<vmem>>, vector<1x16x16xf32>
    %132 = vector.shape_cast %131 : vector<1x16x16xf32> to vector<16x16xf32>
    %c12 = arith.constant 12 : index
    %c0_144 = arith.constant 0 : index
    %c0_145 = arith.constant 0 : index
    %133 = vector.load %arg8[%c12, %c0_144, %c0_145] : memref<72x16x16xf32, #tpu.memory_space<vmem>>, vector<1x16x16xf32>
    %134 = vector.shape_cast %133 : vector<1x16x16xf32> to vector<16x16xf32>
    %135 = vector.shape_cast %132 : vector<16x16xf32> to vector<1x16x16xf32>
    tpu.vector_store %arg8[%c12, %c0_144, %c0_145], %135 {strides = array<i32>} : memref<72x16x16xf32, #tpu.memory_space<vmem>>, vector<1x16x16xf32>,
    %c0_146 = arith.constant 0 : index
    %c5_147 = arith.constant 5 : index
    %c0_148 = arith.constant 0 : index
    %136 = vector.load %arg7[%c0_146, %c5_147, %c0_148] : memref<4x26x26xf32, #tpu.memory_space<vmem>>, vector<1x16x16xf32>
    %137 = vector.shape_cast %136 : vector<1x16x16xf32> to vector<16x16xf32>
    %c48 = arith.constant 48 : index
    %c0_149 = arith.constant 0 : index
    %c0_150 = arith.constant 0 : index
    %138 = vector.load %arg8[%c48, %c0_149, %c0_150] : memref<72x16x16xf32, #tpu.memory_space<vmem>>, vector<1x16x16xf32>
    %139 = vector.shape_cast %138 : vector<1x16x16xf32> to vector<16x16xf32>
    %140 = vector.shape_cast %137 : vector<16x16xf32> to vector<1x16x16xf32>
    tpu.vector_store %arg8[%c48, %c0_149, %c0_150], %140 {strides = array<i32>} : memref<72x16x16xf32, #tpu.memory_space<vmem>>, vector<1x16x16xf32>,
    %c1_151 = arith.constant 1 : index
    %c5_152 = arith.constant 5 : index
    %c4_153 = arith.constant 4 : index
    %141 = vector.load %arg7[%c1_151, %c5_152, %c4_153] : memref<4x26x26xf32, #tpu.memory_space<vmem>>, vector<1x16x16xf32>
    %142 = vector.shape_cast %141 : vector<1x16x16xf32> to vector<16x16xf32>
    %c13 = arith.constant 13 : index
    %c0_154 = arith.constant 0 : index
    %c0_155 = arith.constant 0 : index
    %143 = vector.load %arg8[%c13, %c0_154, %c0_155] : memref<72x16x16xf32, #tpu.memory_space<vmem>>, vector<1x16x16xf32>
    %144 = vector.shape_cast %143 : vector<1x16x16xf32> to vector<16x16xf32>
    %145 = vector.shape_cast %142 : vector<16x16xf32> to vector<1x16x16xf32>
    tpu.vector_store %arg8[%c13, %c0_154, %c0_155], %145 {strides = array<i32>} : memref<72x16x16xf32, #tpu.memory_space<vmem>>, vector<1x16x16xf32>,
    %c1_156 = arith.constant 1 : index
    %c5_157 = arith.constant 5 : index
    %c0_158 = arith.constant 0 : index
    %146 = vector.load %arg7[%c1_156, %c5_157, %c0_158] : memref<4x26x26xf32, #tpu.memory_space<vmem>>, vector<1x16x16xf32>
    %147 = vector.shape_cast %146 : vector<1x16x16xf32> to vector<16x16xf32>
    %c49 = arith.constant 49 : index
    %c0_159 = arith.constant 0 : index
    %c0_160 = arith.constant 0 : index
    %148 = vector.load %arg8[%c49, %c0_159, %c0_160] : memref<72x16x16xf32, #tpu.memory_space<vmem>>, vector<1x16x16xf32>
    %149 = vector.shape_cast %148 : vector<1x16x16xf32> to vector<16x16xf32>
    %150 = vector.shape_cast %147 : vector<16x16xf32> to vector<1x16x16xf32>
    tpu.vector_store %arg8[%c49, %c0_159, %c0_160], %150 {strides = array<i32>} : memref<72x16x16xf32, #tpu.memory_space<vmem>>, vector<1x16x16xf32>,
    %c2_161 = arith.constant 2 : index
    %c5_162 = arith.constant 5 : index
    %c4_163 = arith.constant 4 : index
    %151 = vector.load %arg7[%c2_161, %c5_162, %c4_163] : memref<4x26x26xf32, #tpu.memory_space<vmem>>, vector<1x16x16xf32>
    %152 = vector.shape_cast %151 : vector<1x16x16xf32> to vector<16x16xf32>
    %c14 = arith.constant 14 : index
    %c0_164 = arith.constant 0 : index
    %c0_165 = arith.constant 0 : index
    %153 = vector.load %arg8[%c14, %c0_164, %c0_165] : memref<72x16x16xf32, #tpu.memory_space<vmem>>, vector<1x16x16xf32>
    %154 = vector.shape_cast %153 : vector<1x16x16xf32> to vector<16x16xf32>
    %155 = vector.shape_cast %152 : vector<16x16xf32> to vector<1x16x16xf32>
    tpu.vector_store %arg8[%c14, %c0_164, %c0_165], %155 {strides = array<i32>} : memref<72x16x16xf32, #tpu.memory_space<vmem>>, vector<1x16x16xf32>,
    %c2_166 = arith.constant 2 : index
    %c5_167 = arith.constant 5 : index
    %c0_168 = arith.constant 0 : index
    %156 = vector.load %arg7[%c2_166, %c5_167, %c0_168] : memref<4x26x26xf32, #tpu.memory_space<vmem>>, vector<1x16x16xf32>
    %157 = vector.shape_cast %156 : vector<1x16x16xf32> to vector<16x16xf32>
    %c50 = arith.constant 50 : index
    %c0_169 = arith.constant 0 : index
    %c0_170 = arith.constant 0 : index
    %158 = vector.load %arg8[%c50, %c0_169, %c0_170] : memref<72x16x16xf32, #tpu.memory_space<vmem>>, vector<1x16x16xf32>
    %159 = vector.shape_cast %158 : vector<1x16x16xf32> to vector<16x16xf32>
    %160 = vector.shape_cast %157 : vector<16x16xf32> to vector<1x16x16xf32>
    tpu.vector_store %arg8[%c50, %c0_169, %c0_170], %160 {strides = array<i32>} : memref<72x16x16xf32, #tpu.memory_space<vmem>>, vector<1x16x16xf32>,
    %c3_171 = arith.constant 3 : index
    %c5_172 = arith.constant 5 : index
    %c4_173 = arith.constant 4 : index
    %161 = vector.load %arg7[%c3_171, %c5_172, %c4_173] : memref<4x26x26xf32, #tpu.memory_space<vmem>>, vector<1x16x16xf32>
    %162 = vector.shape_cast %161 : vector<1x16x16xf32> to vector<16x16xf32>
    %c15 = arith.constant 15 : index
    %c0_174 = arith.constant 0 : index
    %c0_175 = arith.constant 0 : index
    %163 = vector.load %arg8[%c15, %c0_174, %c0_175] : memref<72x16x16xf32, #tpu.memory_space<vmem>>, vector<1x16x16xf32>
    %164 = vector.shape_cast %163 : vector<1x16x16xf32> to vector<16x16xf32>
    %165 = vector.shape_cast %162 : vector<16x16xf32> to vector<1x16x16xf32>
    tpu.vector_store %arg8[%c15, %c0_174, %c0_175], %165 {strides = array<i32>} : memref<72x16x16xf32, #tpu.memory_space<vmem>>, vector<1x16x16xf32>,
    %c3_176 = arith.constant 3 : index
    %c5_177 = arith.constant 5 : index
    %c0_178 = arith.constant 0 : index
    %166 = vector.load %arg7[%c3_176, %c5_177, %c0_178] : memref<4x26x26xf32, #tpu.memory_space<vmem>>, vector<1x16x16xf32>
    %167 = vector.shape_cast %166 : vector<1x16x16xf32> to vector<16x16xf32>
    %c51 = arith.constant 51 : index
    %c0_179 = arith.constant 0 : index
    %c0_180 = arith.constant 0 : index
    %168 = vector.load %arg8[%c51, %c0_179, %c0_180] : memref<72x16x16xf32, #tpu.memory_space<vmem>>, vector<1x16x16xf32>
    %169 = vector.shape_cast %168 : vector<1x16x16xf32> to vector<16x16xf32>
    %170 = vector.shape_cast %167 : vector<16x16xf32> to vector<1x16x16xf32>
    tpu.vector_store %arg8[%c51, %c0_179, %c0_180], %170 {strides = array<i32>} : memref<72x16x16xf32, #tpu.memory_space<vmem>>, vector<1x16x16xf32>,
    %c0_181 = arith.constant 0 : index
    %c5_182 = arith.constant 5 : index
    %c5_183 = arith.constant 5 : index
    %171 = vector.load %arg7[%c0_181, %c5_182, %c5_183] : memref<4x26x26xf32, #tpu.memory_space<vmem>>, vector<1x16x16xf32>
    %172 = vector.shape_cast %171 : vector<1x16x16xf32> to vector<16x16xf32>
    %c16 = arith.constant 16 : index
    %c0_184 = arith.constant 0 : index
    %c0_185 = arith.constant 0 : index
    %173 = vector.load %arg8[%c16, %c0_184, %c0_185] : memref<72x16x16xf32, #tpu.memory_space<vmem>>, vector<1x16x16xf32>
    %174 = vector.shape_cast %173 : vector<1x16x16xf32> to vector<16x16xf32>
    %175 = vector.shape_cast %172 : vector<16x16xf32> to vector<1x16x16xf32>
    tpu.vector_store %arg8[%c16, %c0_184, %c0_185], %175 {strides = array<i32>} : memref<72x16x16xf32, #tpu.memory_space<vmem>>, vector<1x16x16xf32>,
    %c0_186 = arith.constant 0 : index
    %c5_187 = arith.constant 5 : index
    %c5_188 = arith.constant 5 : index
    %176 = vector.load %arg7[%c0_186, %c5_187, %c5_188] : memref<4x26x26xf32, #tpu.memory_space<vmem>>, vector<1x16x16xf32>
    %177 = vector.shape_cast %176 : vector<1x16x16xf32> to vector<16x16xf32>
    %c52 = arith.constant 52 : index
    %c0_189 = arith.constant 0 : index
    %c0_190 = arith.constant 0 : index
    %178 = vector.load %arg8[%c52, %c0_189, %c0_190] : memref<72x16x16xf32, #tpu.memory_space<vmem>>, vector<1x16x16xf32>
    %179 = vector.shape_cast %178 : vector<1x16x16xf32> to vector<16x16xf32>
    %180 = vector.shape_cast %177 : vector<16x16xf32> to vector<1x16x16xf32>
    tpu.vector_store %arg8[%c52, %c0_189, %c0_190], %180 {strides = array<i32>} : memref<72x16x16xf32, #tpu.memory_space<vmem>>, vector<1x16x16xf32>,
    %c1_191 = arith.constant 1 : index
    %c5_192 = arith.constant 5 : index
    %c5_193 = arith.constant 5 : index
    %181 = vector.load %arg7[%c1_191, %c5_192, %c5_193] : memref<4x26x26xf32, #tpu.memory_space<vmem>>, vector<1x16x16xf32>
    %182 = vector.shape_cast %181 : vector<1x16x16xf32> to vector<16x16xf32>
    %c17 = arith.constant 17 : index
    %c0_194 = arith.constant 0 : index
    %c0_195 = arith.constant 0 : index
    %183 = vector.load %arg8[%c17, %c0_194, %c0_195] : memref<72x16x16xf32, #tpu.memory_space<vmem>>, vector<1x16x16xf32>
    %184 = vector.shape_cast %183 : vector<1x16x16xf32> to vector<16x16xf32>
    %185 = vector.shape_cast %182 : vector<16x16xf32> to vector<1x16x16xf32>
    tpu.vector_store %arg8[%c17, %c0_194, %c0_195], %185 {strides = array<i32>} : memref<72x16x16xf32, #tpu.memory_space<vmem>>, vector<1x16x16xf32>,
    %c1_196 = arith.constant 1 : index
    %c5_197 = arith.constant 5 : index
    %c5_198 = arith.constant 5 : index
    %186 = vector.load %arg7[%c1_196, %c5_197, %c5_198] : memref<4x26x26xf32, #tpu.memory_space<vmem>>, vector<1x16x16xf32>
    %187 = vector.shape_cast %186 : vector<1x16x16xf32> to vector<16x16xf32>
    %c53 = arith.constant 53 : index
    %c0_199 = arith.constant 0 : index
    %c0_200 = arith.constant 0 : index
    %188 = vector.load %arg8[%c53, %c0_199, %c0_200] : memref<72x16x16xf32, #tpu.memory_space<vmem>>, vector<1x16x16xf32>
    %189 = vector.shape_cast %188 : vector<1x16x16xf32> to vector<16x16xf32>
    %190 = vector.shape_cast %187 : vector<16x16xf32> to vector<1x16x16xf32>
    tpu.vector_store %arg8[%c53, %c0_199, %c0_200], %190 {strides = array<i32>} : memref<72x16x16xf32, #tpu.memory_space<vmem>>, vector<1x16x16xf32>,
    %c2_201 = arith.constant 2 : index
    %c5_202 = arith.constant 5 : index
    %c5_203 = arith.constant 5 : index
    %191 = vector.load %arg7[%c2_201, %c5_202, %c5_203] : memref<4x26x26xf32, #tpu.memory_space<vmem>>, vector<1x16x16xf32>
    %192 = vector.shape_cast %191 : vector<1x16x16xf32> to vector<16x16xf32>
    %c18 = arith.constant 18 : index
    %c0_204 = arith.constant 0 : index
    %c0_205 = arith.constant 0 : index
    %193 = vector.load %arg8[%c18, %c0_204, %c0_205] : memref<72x16x16xf32, #tpu.memory_space<vmem>>, vector<1x16x16xf32>
    %194 = vector.shape_cast %193 : vector<1x16x16xf32> to vector<16x16xf32>
    %195 = vector.shape_cast %192 : vector<16x16xf32> to vector<1x16x16xf32>
    tpu.vector_store %arg8[%c18, %c0_204, %c0_205], %195 {strides = array<i32>} : memref<72x16x16xf32, #tpu.memory_space<vmem>>, vector<1x16x16xf32>,
    %c2_206 = arith.constant 2 : index
    %c5_207 = arith.constant 5 : index
    %c5_208 = arith.constant 5 : index
    %196 = vector.load %arg7[%c2_206, %c5_207, %c5_208] : memref<4x26x26xf32, #tpu.memory_space<vmem>>, vector<1x16x16xf32>
    %197 = vector.shape_cast %196 : vector<1x16x16xf32> to vector<16x16xf32>
    %c54 = arith.constant 54 : index
    %c0_209 = arith.constant 0 : index
    %c0_210 = arith.constant 0 : index
    %198 = vector.load %arg8[%c54, %c0_209, %c0_210] : memref<72x16x16xf32, #tpu.memory_space<vmem>>, vector<1x16x16xf32>
    %199 = vector.shape_cast %198 : vector<1x16x16xf32> to vector<16x16xf32>
    %200 = vector.shape_cast %197 : vector<16x16xf32> to vector<1x16x16xf32>
    tpu.vector_store %arg8[%c54, %c0_209, %c0_210], %200 {strides = array<i32>} : memref<72x16x16xf32, #tpu.memory_space<vmem>>, vector<1x16x16xf32>,
    %c3_211 = arith.constant 3 : index
    %c5_212 = arith.constant 5 : index
    %c5_213 = arith.constant 5 : index
    %201 = vector.load %arg7[%c3_211, %c5_212, %c5_213] : memref<4x26x26xf32, #tpu.memory_space<vmem>>, vector<1x16x16xf32>
    %202 = vector.shape_cast %201 : vector<1x16x16xf32> to vector<16x16xf32>
    %c19 = arith.constant 19 : index
    %c0_214 = arith.constant 0 : index
    %c0_215 = arith.constant 0 : index
    %203 = vector.load %arg8[%c19, %c0_214, %c0_215] : memref<72x16x16xf32, #tpu.memory_space<vmem>>, vector<1x16x16xf32>
    %204 = vector.shape_cast %203 : vector<1x16x16xf32> to vector<16x16xf32>
    %205 = vector.shape_cast %202 : vector<16x16xf32> to vector<1x16x16xf32>
    tpu.vector_store %arg8[%c19, %c0_214, %c0_215], %205 {strides = array<i32>} : memref<72x16x16xf32, #tpu.memory_space<vmem>>, vector<1x16x16xf32>,
    %c3_216 = arith.constant 3 : index
    %c5_217 = arith.constant 5 : index
    %c5_218 = arith.constant 5 : index
    %206 = vector.load %arg7[%c3_216, %c5_217, %c5_218] : memref<4x26x26xf32, #tpu.memory_space<vmem>>, vector<1x16x16xf32>
    %207 = vector.shape_cast %206 : vector<1x16x16xf32> to vector<16x16xf32>
    %c55 = arith.constant 55 : index
    %c0_219 = arith.constant 0 : index
    %c0_220 = arith.constant 0 : index
    %208 = vector.load %arg8[%c55, %c0_219, %c0_220] : memref<72x16x16xf32, #tpu.memory_space<vmem>>, vector<1x16x16xf32>
    %209 = vector.shape_cast %208 : vector<1x16x16xf32> to vector<16x16xf32>
    %210 = vector.shape_cast %207 : vector<16x16xf32> to vector<1x16x16xf32>
    tpu.vector_store %arg8[%c55, %c0_219, %c0_220], %210 {strides = array<i32>} : memref<72x16x16xf32, #tpu.memory_space<vmem>>, vector<1x16x16xf32>,
    %c0_221 = arith.constant 0 : index
    %c5_222 = arith.constant 5 : index
    %c6_223 = arith.constant 6 : index
    %211 = vector.load %arg7[%c0_221, %c5_222, %c6_223] : memref<4x26x26xf32, #tpu.memory_space<vmem>>, vector<1x16x16xf32>
    %212 = vector.shape_cast %211 : vector<1x16x16xf32> to vector<16x16xf32>
    %c20 = arith.constant 20 : index
    %c0_224 = arith.constant 0 : index
    %c0_225 = arith.constant 0 : index
    %213 = vector.load %arg8[%c20, %c0_224, %c0_225] : memref<72x16x16xf32, #tpu.memory_space<vmem>>, vector<1x16x16xf32>
    %214 = vector.shape_cast %213 : vector<1x16x16xf32> to vector<16x16xf32>
    %215 = vector.shape_cast %212 : vector<16x16xf32> to vector<1x16x16xf32>
    tpu.vector_store %arg8[%c20, %c0_224, %c0_225], %215 {strides = array<i32>} : memref<72x16x16xf32, #tpu.memory_space<vmem>>, vector<1x16x16xf32>,
    %c0_226 = arith.constant 0 : index
    %c5_227 = arith.constant 5 : index
    %c10_228 = arith.constant 10 : index
    %216 = vector.load %arg7[%c0_226, %c5_227, %c10_228] : memref<4x26x26xf32, #tpu.memory_space<vmem>>, vector<1x16x16xf32>
    %217 = vector.shape_cast %216 : vector<1x16x16xf32> to vector<16x16xf32>
    %c56 = arith.constant 56 : index
    %c0_229 = arith.constant 0 : index
    %c0_230 = arith.constant 0 : index
    %218 = vector.load %arg8[%c56, %c0_229, %c0_230] : memref<72x16x16xf32, #tpu.memory_space<vmem>>, vector<1x16x16xf32>
    %219 = vector.shape_cast %218 : vector<1x16x16xf32> to vector<16x16xf32>
    %220 = vector.shape_cast %217 : vector<16x16xf32> to vector<1x16x16xf32>
    tpu.vector_store %arg8[%c56, %c0_229, %c0_230], %220 {strides = array<i32>} : memref<72x16x16xf32, #tpu.memory_space<vmem>>, vector<1x16x16xf32>,
    %c1_231 = arith.constant 1 : index
    %c5_232 = arith.constant 5 : index
    %c6_233 = arith.constant 6 : index
    %221 = vector.load %arg7[%c1_231, %c5_232, %c6_233] : memref<4x26x26xf32, #tpu.memory_space<vmem>>, vector<1x16x16xf32>
    %222 = vector.shape_cast %221 : vector<1x16x16xf32> to vector<16x16xf32>
    %c21_234 = arith.constant 21 : index
    %c0_235 = arith.constant 0 : index
    %c0_236 = arith.constant 0 : index
    %223 = vector.load %arg8[%c21_234, %c0_235, %c0_236] : memref<72x16x16xf32, #tpu.memory_space<vmem>>, vector<1x16x16xf32>
    %224 = vector.shape_cast %223 : vector<1x16x16xf32> to vector<16x16xf32>
    %225 = vector.shape_cast %222 : vector<16x16xf32> to vector<1x16x16xf32>
    tpu.vector_store %arg8[%c21_234, %c0_235, %c0_236], %225 {strides = array<i32>} : memref<72x16x16xf32, #tpu.memory_space<vmem>>, vector<1x16x16xf32>,
    %c1_237 = arith.constant 1 : index
    %c5_238 = arith.constant 5 : index
    %c10_239 = arith.constant 10 : index
    %226 = vector.load %arg7[%c1_237, %c5_238, %c10_239] : memref<4x26x26xf32, #tpu.memory_space<vmem>>, vector<1x16x16xf32>
    %227 = vector.shape_cast %226 : vector<1x16x16xf32> to vector<16x16xf32>
    %c57 = arith.constant 57 : index
    %c0_240 = arith.constant 0 : index
    %c0_241 = arith.constant 0 : index
    %228 = vector.load %arg8[%c57, %c0_240, %c0_241] : memref<72x16x16xf32, #tpu.memory_space<vmem>>, vector<1x16x16xf32>
    %229 = vector.shape_cast %228 : vector<1x16x16xf32> to vector<16x16xf32>
    %230 = vector.shape_cast %227 : vector<16x16xf32> to vector<1x16x16xf32>
    tpu.vector_store %arg8[%c57, %c0_240, %c0_241], %230 {strides = array<i32>} : memref<72x16x16xf32, #tpu.memory_space<vmem>>, vector<1x16x16xf32>,
    %c2_242 = arith.constant 2 : index
    %c5_243 = arith.constant 5 : index
    %c6_244 = arith.constant 6 : index
    %231 = vector.load %arg7[%c2_242, %c5_243, %c6_244] : memref<4x26x26xf32, #tpu.memory_space<vmem>>, vector<1x16x16xf32>
    %232 = vector.shape_cast %231 : vector<1x16x16xf32> to vector<16x16xf32>
    %c22 = arith.constant 22 : index
    %c0_245 = arith.constant 0 : index
    %c0_246 = arith.constant 0 : index
    %233 = vector.load %arg8[%c22, %c0_245, %c0_246] : memref<72x16x16xf32, #tpu.memory_space<vmem>>, vector<1x16x16xf32>
    %234 = vector.shape_cast %233 : vector<1x16x16xf32> to vector<16x16xf32>
    %235 = vector.shape_cast %232 : vector<16x16xf32> to vector<1x16x16xf32>
    tpu.vector_store %arg8[%c22, %c0_245, %c0_246], %235 {strides = array<i32>} : memref<72x16x16xf32, #tpu.memory_space<vmem>>, vector<1x16x16xf32>,
    %c2_247 = arith.constant 2 : index
    %c5_248 = arith.constant 5 : index
    %c10_249 = arith.constant 10 : index
    %236 = vector.load %arg7[%c2_247, %c5_248, %c10_249] : memref<4x26x26xf32, #tpu.memory_space<vmem>>, vector<1x16x16xf32>
    %237 = vector.shape_cast %236 : vector<1x16x16xf32> to vector<16x16xf32>
    %c58 = arith.constant 58 : index
    %c0_250 = arith.constant 0 : index
    %c0_251 = arith.constant 0 : index
    %238 = vector.load %arg8[%c58, %c0_250, %c0_251] : memref<72x16x16xf32, #tpu.memory_space<vmem>>, vector<1x16x16xf32>
    %239 = vector.shape_cast %238 : vector<1x16x16xf32> to vector<16x16xf32>
    %240 = vector.shape_cast %237 : vector<16x16xf32> to vector<1x16x16xf32>
    tpu.vector_store %arg8[%c58, %c0_250, %c0_251], %240 {strides = array<i32>} : memref<72x16x16xf32, #tpu.memory_space<vmem>>, vector<1x16x16xf32>,
    %c3_252 = arith.constant 3 : index
    %c5_253 = arith.constant 5 : index
    %c6_254 = arith.constant 6 : index
    %241 = vector.load %arg7[%c3_252, %c5_253, %c6_254] : memref<4x26x26xf32, #tpu.memory_space<vmem>>, vector<1x16x16xf32>
    %242 = vector.shape_cast %241 : vector<1x16x16xf32> to vector<16x16xf32>
    %c23 = arith.constant 23 : index
    %c0_255 = arith.constant 0 : index
    %c0_256 = arith.constant 0 : index
    %243 = vector.load %arg8[%c23, %c0_255, %c0_256] : memref<72x16x16xf32, #tpu.memory_space<vmem>>, vector<1x16x16xf32>
    %244 = vector.shape_cast %243 : vector<1x16x16xf32> to vector<16x16xf32>
    %245 = vector.shape_cast %242 : vector<16x16xf32> to vector<1x16x16xf32>
    tpu.vector_store %arg8[%c23, %c0_255, %c0_256], %245 {strides = array<i32>} : memref<72x16x16xf32, #tpu.memory_space<vmem>>, vector<1x16x16xf32>,
    %c3_257 = arith.constant 3 : index
    %c5_258 = arith.constant 5 : index
    %c10_259 = arith.constant 10 : index
    %246 = vector.load %arg7[%c3_257, %c5_258, %c10_259] : memref<4x26x26xf32, #tpu.memory_space<vmem>>, vector<1x16x16xf32>
    %247 = vector.shape_cast %246 : vector<1x16x16xf32> to vector<16x16xf32>
    %c59 = arith.constant 59 : index
    %c0_260 = arith.constant 0 : index
    %c0_261 = arith.constant 0 : index
    %248 = vector.load %arg8[%c59, %c0_260, %c0_261] : memref<72x16x16xf32, #tpu.memory_space<vmem>>, vector<1x16x16xf32>
    %249 = vector.shape_cast %248 : vector<1x16x16xf32> to vector<16x16xf32>
    %250 = vector.shape_cast %247 : vector<16x16xf32> to vector<1x16x16xf32>
    tpu.vector_store %arg8[%c59, %c0_260, %c0_261], %250 {strides = array<i32>} : memref<72x16x16xf32, #tpu.memory_space<vmem>>, vector<1x16x16xf32>,
    %c0_262 = arith.constant 0 : index
    %c6_263 = arith.constant 6 : index
    %c4_264 = arith.constant 4 : index
    %251 = vector.load %arg7[%c0_262, %c6_263, %c4_264] : memref<4x26x26xf32, #tpu.memory_space<vmem>>, vector<1x16x16xf32>
    %252 = vector.shape_cast %251 : vector<1x16x16xf32> to vector<16x16xf32>
    %c24 = arith.constant 24 : index
    %c0_265 = arith.constant 0 : index
    %c0_266 = arith.constant 0 : index
    %253 = vector.load %arg8[%c24, %c0_265, %c0_266] : memref<72x16x16xf32, #tpu.memory_space<vmem>>, vector<1x16x16xf32>
    %254 = vector.shape_cast %253 : vector<1x16x16xf32> to vector<16x16xf32>
    %255 = vector.shape_cast %252 : vector<16x16xf32> to vector<1x16x16xf32>
    tpu.vector_store %arg8[%c24, %c0_265, %c0_266], %255 {strides = array<i32>} : memref<72x16x16xf32, #tpu.memory_space<vmem>>, vector<1x16x16xf32>,
    %c0_267 = arith.constant 0 : index
    %c10_268 = arith.constant 10 : index
    %c0_269 = arith.constant 0 : index
    %256 = vector.load %arg7[%c0_267, %c10_268, %c0_269] : memref<4x26x26xf32, #tpu.memory_space<vmem>>, vector<1x16x16xf32>
    %257 = vector.shape_cast %256 : vector<1x16x16xf32> to vector<16x16xf32>
    %c60 = arith.constant 60 : index
    %c0_270 = arith.constant 0 : index
    %c0_271 = arith.constant 0 : index
    %258 = vector.load %arg8[%c60, %c0_270, %c0_271] : memref<72x16x16xf32, #tpu.memory_space<vmem>>, vector<1x16x16xf32>
    %259 = vector.shape_cast %258 : vector<1x16x16xf32> to vector<16x16xf32>
    %260 = vector.shape_cast %257 : vector<16x16xf32> to vector<1x16x16xf32>
    tpu.vector_store %arg8[%c60, %c0_270, %c0_271], %260 {strides = array<i32>} : memref<72x16x16xf32, #tpu.memory_space<vmem>>, vector<1x16x16xf32>,
    %c1_272 = arith.constant 1 : index
    %c6_273 = arith.constant 6 : index
    %c4_274 = arith.constant 4 : index
    %261 = vector.load %arg7[%c1_272, %c6_273, %c4_274] : memref<4x26x26xf32, #tpu.memory_space<vmem>>, vector<1x16x16xf32>
    %262 = vector.shape_cast %261 : vector<1x16x16xf32> to vector<16x16xf32>
    %c25 = arith.constant 25 : index
    %c0_275 = arith.constant 0 : index
    %c0_276 = arith.constant 0 : index
    %263 = vector.load %arg8[%c25, %c0_275, %c0_276] : memref<72x16x16xf32, #tpu.memory_space<vmem>>, vector<1x16x16xf32>
    %264 = vector.shape_cast %263 : vector<1x16x16xf32> to vector<16x16xf32>
    %265 = vector.shape_cast %262 : vector<16x16xf32> to vector<1x16x16xf32>
    tpu.vector_store %arg8[%c25, %c0_275, %c0_276], %265 {strides = array<i32>} : memref<72x16x16xf32, #tpu.memory_space<vmem>>, vector<1x16x16xf32>,
    %c1_277 = arith.constant 1 : index
    %c10_278 = arith.constant 10 : index
    %c0_279 = arith.constant 0 : index
    %266 = vector.load %arg7[%c1_277, %c10_278, %c0_279] : memref<4x26x26xf32, #tpu.memory_space<vmem>>, vector<1x16x16xf32>
    %267 = vector.shape_cast %266 : vector<1x16x16xf32> to vector<16x16xf32>
    %c61 = arith.constant 61 : index
    %c0_280 = arith.constant 0 : index
    %c0_281 = arith.constant 0 : index
    %268 = vector.load %arg8[%c61, %c0_280, %c0_281] : memref<72x16x16xf32, #tpu.memory_space<vmem>>, vector<1x16x16xf32>
    %269 = vector.shape_cast %268 : vector<1x16x16xf32> to vector<16x16xf32>
    %270 = vector.shape_cast %267 : vector<16x16xf32> to vector<1x16x16xf32>
    tpu.vector_store %arg8[%c61, %c0_280, %c0_281], %270 {strides = array<i32>} : memref<72x16x16xf32, #tpu.memory_space<vmem>>, vector<1x16x16xf32>,
    %c2_282 = arith.constant 2 : index
    %c6_283 = arith.constant 6 : index
    %c4_284 = arith.constant 4 : index
    %271 = vector.load %arg7[%c2_282, %c6_283, %c4_284] : memref<4x26x26xf32, #tpu.memory_space<vmem>>, vector<1x16x16xf32>
    %272 = vector.shape_cast %271 : vector<1x16x16xf32> to vector<16x16xf32>
    %c26 = arith.constant 26 : index
    %c0_285 = arith.constant 0 : index
    %c0_286 = arith.constant 0 : index
    %273 = vector.load %arg8[%c26, %c0_285, %c0_286] : memref<72x16x16xf32, #tpu.memory_space<vmem>>, vector<1x16x16xf32>
    %274 = vector.shape_cast %273 : vector<1x16x16xf32> to vector<16x16xf32>
    %275 = vector.shape_cast %272 : vector<16x16xf32> to vector<1x16x16xf32>
    tpu.vector_store %arg8[%c26, %c0_285, %c0_286], %275 {strides = array<i32>} : memref<72x16x16xf32, #tpu.memory_space<vmem>>, vector<1x16x16xf32>,
    %c2_287 = arith.constant 2 : index
    %c10_288 = arith.constant 10 : index
    %c0_289 = arith.constant 0 : index
    %276 = vector.load %arg7[%c2_287, %c10_288, %c0_289] : memref<4x26x26xf32, #tpu.memory_space<vmem>>, vector<1x16x16xf32>
    %277 = vector.shape_cast %276 : vector<1x16x16xf32> to vector<16x16xf32>
    %c62 = arith.constant 62 : index
    %c0_290 = arith.constant 0 : index
    %c0_291 = arith.constant 0 : index
    %278 = vector.load %arg8[%c62, %c0_290, %c0_291] : memref<72x16x16xf32, #tpu.memory_space<vmem>>, vector<1x16x16xf32>
    %279 = vector.shape_cast %278 : vector<1x16x16xf32> to vector<16x16xf32>
    %280 = vector.shape_cast %277 : vector<16x16xf32> to vector<1x16x16xf32>
    tpu.vector_store %arg8[%c62, %c0_290, %c0_291], %280 {strides = array<i32>} : memref<72x16x16xf32, #tpu.memory_space<vmem>>, vector<1x16x16xf32>,
    %c3_292 = arith.constant 3 : index
    %c6_293 = arith.constant 6 : index
    %c4_294 = arith.constant 4 : index
    %281 = vector.load %arg7[%c3_292, %c6_293, %c4_294] : memref<4x26x26xf32, #tpu.memory_space<vmem>>, vector<1x16x16xf32>
    %282 = vector.shape_cast %281 : vector<1x16x16xf32> to vector<16x16xf32>
    %c27 = arith.constant 27 : index
    %c0_295 = arith.constant 0 : index
    %c0_296 = arith.constant 0 : index
    %283 = vector.load %arg8[%c27, %c0_295, %c0_296] : memref<72x16x16xf32, #tpu.memory_space<vmem>>, vector<1x16x16xf32>
    %284 = vector.shape_cast %283 : vector<1x16x16xf32> to vector<16x16xf32>
    %285 = vector.shape_cast %282 : vector<16x16xf32> to vector<1x16x16xf32>
    tpu.vector_store %arg8[%c27, %c0_295, %c0_296], %285 {strides = array<i32>} : memref<72x16x16xf32, #tpu.memory_space<vmem>>, vector<1x16x16xf32>,
    %c3_297 = arith.constant 3 : index
    %c10_298 = arith.constant 10 : index
    %c0_299 = arith.constant 0 : index
    %286 = vector.load %arg7[%c3_297, %c10_298, %c0_299] : memref<4x26x26xf32, #tpu.memory_space<vmem>>, vector<1x16x16xf32>
    %287 = vector.shape_cast %286 : vector<1x16x16xf32> to vector<16x16xf32>
    %c63 = arith.constant 63 : index
    %c0_300 = arith.constant 0 : index
    %c0_301 = arith.constant 0 : index
    %288 = vector.load %arg8[%c63, %c0_300, %c0_301] : memref<72x16x16xf32, #tpu.memory_space<vmem>>, vector<1x16x16xf32>
    %289 = vector.shape_cast %288 : vector<1x16x16xf32> to vector<16x16xf32>
    %290 = vector.shape_cast %287 : vector<16x16xf32> to vector<1x16x16xf32>
    tpu.vector_store %arg8[%c63, %c0_300, %c0_301], %290 {strides = array<i32>} : memref<72x16x16xf32, #tpu.memory_space<vmem>>, vector<1x16x16xf32>,
    %c0_302 = arith.constant 0 : index
    %c6_303 = arith.constant 6 : index
    %c5_304 = arith.constant 5 : index
    %291 = vector.load %arg7[%c0_302, %c6_303, %c5_304] : memref<4x26x26xf32, #tpu.memory_space<vmem>>, vector<1x16x16xf32>
    %292 = vector.shape_cast %291 : vector<1x16x16xf32> to vector<16x16xf32>
    %c28 = arith.constant 28 : index
    %c0_305 = arith.constant 0 : index
    %c0_306 = arith.constant 0 : index
    %293 = vector.load %arg8[%c28, %c0_305, %c0_306] : memref<72x16x16xf32, #tpu.memory_space<vmem>>, vector<1x16x16xf32>
    %294 = vector.shape_cast %293 : vector<1x16x16xf32> to vector<16x16xf32>
    %295 = vector.shape_cast %292 : vector<16x16xf32> to vector<1x16x16xf32>
    tpu.vector_store %arg8[%c28, %c0_305, %c0_306], %295 {strides = array<i32>} : memref<72x16x16xf32, #tpu.memory_space<vmem>>, vector<1x16x16xf32>,
    %c0_307 = arith.constant 0 : index
    %c10_308 = arith.constant 10 : index
    %c5_309 = arith.constant 5 : index
    %296 = vector.load %arg7[%c0_307, %c10_308, %c5_309] : memref<4x26x26xf32, #tpu.memory_space<vmem>>, vector<1x16x16xf32>
    %297 = vector.shape_cast %296 : vector<1x16x16xf32> to vector<16x16xf32>
    %c64 = arith.constant 64 : index
    %c0_310 = arith.constant 0 : index
    %c0_311 = arith.constant 0 : index
    %298 = vector.load %arg8[%c64, %c0_310, %c0_311] : memref<72x16x16xf32, #tpu.memory_space<vmem>>, vector<1x16x16xf32>
    %299 = vector.shape_cast %298 : vector<1x16x16xf32> to vector<16x16xf32>
    %300 = vector.shape_cast %297 : vector<16x16xf32> to vector<1x16x16xf32>
    tpu.vector_store %arg8[%c64, %c0_310, %c0_311], %300 {strides = array<i32>} : memref<72x16x16xf32, #tpu.memory_space<vmem>>, vector<1x16x16xf32>,
    %c1_312 = arith.constant 1 : index
    %c6_313 = arith.constant 6 : index
    %c5_314 = arith.constant 5 : index
    %301 = vector.load %arg7[%c1_312, %c6_313, %c5_314] : memref<4x26x26xf32, #tpu.memory_space<vmem>>, vector<1x16x16xf32>
    %302 = vector.shape_cast %301 : vector<1x16x16xf32> to vector<16x16xf32>
    %c29 = arith.constant 29 : index
    %c0_315 = arith.constant 0 : index
    %c0_316 = arith.constant 0 : index
    %303 = vector.load %arg8[%c29, %c0_315, %c0_316] : memref<72x16x16xf32, #tpu.memory_space<vmem>>, vector<1x16x16xf32>
    %304 = vector.shape_cast %303 : vector<1x16x16xf32> to vector<16x16xf32>
    %305 = vector.shape_cast %302 : vector<16x16xf32> to vector<1x16x16xf32>
    tpu.vector_store %arg8[%c29, %c0_315, %c0_316], %305 {strides = array<i32>} : memref<72x16x16xf32, #tpu.memory_space<vmem>>, vector<1x16x16xf32>,
    %c1_317 = arith.constant 1 : index
    %c10_318 = arith.constant 10 : index
    %c5_319 = arith.constant 5 : index
    %306 = vector.load %arg7[%c1_317, %c10_318, %c5_319] : memref<4x26x26xf32, #tpu.memory_space<vmem>>, vector<1x16x16xf32>
    %307 = vector.shape_cast %306 : vector<1x16x16xf32> to vector<16x16xf32>
    %c65 = arith.constant 65 : index
    %c0_320 = arith.constant 0 : index
    %c0_321 = arith.constant 0 : index
    %308 = vector.load %arg8[%c65, %c0_320, %c0_321] : memref<72x16x16xf32, #tpu.memory_space<vmem>>, vector<1x16x16xf32>
    %309 = vector.shape_cast %308 : vector<1x16x16xf32> to vector<16x16xf32>
    %310 = vector.shape_cast %307 : vector<16x16xf32> to vector<1x16x16xf32>
    tpu.vector_store %arg8[%c65, %c0_320, %c0_321], %310 {strides = array<i32>} : memref<72x16x16xf32, #tpu.memory_space<vmem>>, vector<1x16x16xf32>,
    %c2_322 = arith.constant 2 : index
    %c6_323 = arith.constant 6 : index
    %c5_324 = arith.constant 5 : index
    %311 = vector.load %arg7[%c2_322, %c6_323, %c5_324] : memref<4x26x26xf32, #tpu.memory_space<vmem>>, vector<1x16x16xf32>
    %312 = vector.shape_cast %311 : vector<1x16x16xf32> to vector<16x16xf32>
    %c30 = arith.constant 30 : index
    %c0_325 = arith.constant 0 : index
    %c0_326 = arith.constant 0 : index
    %313 = vector.load %arg8[%c30, %c0_325, %c0_326] : memref<72x16x16xf32, #tpu.memory_space<vmem>>, vector<1x16x16xf32>
    %314 = vector.shape_cast %313 : vector<1x16x16xf32> to vector<16x16xf32>
    %315 = vector.shape_cast %312 : vector<16x16xf32> to vector<1x16x16xf32>
    tpu.vector_store %arg8[%c30, %c0_325, %c0_326], %315 {strides = array<i32>} : memref<72x16x16xf32, #tpu.memory_space<vmem>>, vector<1x16x16xf32>,
    %c2_327 = arith.constant 2 : index
    %c10_328 = arith.constant 10 : index
    %c5_329 = arith.constant 5 : index
    %316 = vector.load %arg7[%c2_327, %c10_328, %c5_329] : memref<4x26x26xf32, #tpu.memory_space<vmem>>, vector<1x16x16xf32>
    %317 = vector.shape_cast %316 : vector<1x16x16xf32> to vector<16x16xf32>
    %c66 = arith.constant 66 : index
    %c0_330 = arith.constant 0 : index
    %c0_331 = arith.constant 0 : index
    %318 = vector.load %arg8[%c66, %c0_330, %c0_331] : memref<72x16x16xf32, #tpu.memory_space<vmem>>, vector<1x16x16xf32>
    %319 = vector.shape_cast %318 : vector<1x16x16xf32> to vector<16x16xf32>
    %320 = vector.shape_cast %317 : vector<16x16xf32> to vector<1x16x16xf32>
    tpu.vector_store %arg8[%c66, %c0_330, %c0_331], %320 {strides = array<i32>} : memref<72x16x16xf32, #tpu.memory_space<vmem>>, vector<1x16x16xf32>,
    %c3_332 = arith.constant 3 : index
    %c6_333 = arith.constant 6 : index
    %c5_334 = arith.constant 5 : index
    %321 = vector.load %arg7[%c3_332, %c6_333, %c5_334] : memref<4x26x26xf32, #tpu.memory_space<vmem>>, vector<1x16x16xf32>
    %322 = vector.shape_cast %321 : vector<1x16x16xf32> to vector<16x16xf32>
    %c31 = arith.constant 31 : index
    %c0_335 = arith.constant 0 : index
    %c0_336 = arith.constant 0 : index
    %323 = vector.load %arg8[%c31, %c0_335, %c0_336] : memref<72x16x16xf32, #tpu.memory_space<vmem>>, vector<1x16x16xf32>
    %324 = vector.shape_cast %323 : vector<1x16x16xf32> to vector<16x16xf32>
    %325 = vector.shape_cast %322 : vector<16x16xf32> to vector<1x16x16xf32>
    tpu.vector_store %arg8[%c31, %c0_335, %c0_336], %325 {strides = array<i32>} : memref<72x16x16xf32, #tpu.memory_space<vmem>>, vector<1x16x16xf32>,
    %c3_337 = arith.constant 3 : index
    %c10_338 = arith.constant 10 : index
    %c5_339 = arith.constant 5 : index
    %326 = vector.load %arg7[%c3_337, %c10_338, %c5_339] : memref<4x26x26xf32, #tpu.memory_space<vmem>>, vector<1x16x16xf32>
    %327 = vector.shape_cast %326 : vector<1x16x16xf32> to vector<16x16xf32>
    %c67 = arith.constant 67 : index
    %c0_340 = arith.constant 0 : index
    %c0_341 = arith.constant 0 : index
    %328 = vector.load %arg8[%c67, %c0_340, %c0_341] : memref<72x16x16xf32, #tpu.memory_space<vmem>>, vector<1x16x16xf32>
    %329 = vector.shape_cast %328 : vector<1x16x16xf32> to vector<16x16xf32>
    %330 = vector.shape_cast %327 : vector<16x16xf32> to vector<1x16x16xf32>
    tpu.vector_store %arg8[%c67, %c0_340, %c0_341], %330 {strides = array<i32>} : memref<72x16x16xf32, #tpu.memory_space<vmem>>, vector<1x16x16xf32>,
    %c0_342 = arith.constant 0 : index
    %c6_343 = arith.constant 6 : index
    %c6_344 = arith.constant 6 : index
    %331 = vector.load %arg7[%c0_342, %c6_343, %c6_344] : memref<4x26x26xf32, #tpu.memory_space<vmem>>, vector<1x16x16xf32>
    %332 = vector.shape_cast %331 : vector<1x16x16xf32> to vector<16x16xf32>
    %c32 = arith.constant 32 : index
    %c0_345 = arith.constant 0 : index
    %c0_346 = arith.constant 0 : index
    %333 = vector.load %arg8[%c32, %c0_345, %c0_346] : memref<72x16x16xf32, #tpu.memory_space<vmem>>, vector<1x16x16xf32>
    %334 = vector.shape_cast %333 : vector<1x16x16xf32> to vector<16x16xf32>
    %335 = vector.shape_cast %332 : vector<16x16xf32> to vector<1x16x16xf32>
    tpu.vector_store %arg8[%c32, %c0_345, %c0_346], %335 {strides = array<i32>} : memref<72x16x16xf32, #tpu.memory_space<vmem>>, vector<1x16x16xf32>,
    %c0_347 = arith.constant 0 : index
    %c10_348 = arith.constant 10 : index
    %c10_349 = arith.constant 10 : index
    %336 = vector.load %arg7[%c0_347, %c10_348, %c10_349] : memref<4x26x26xf32, #tpu.memory_space<vmem>>, vector<1x16x16xf32>
    %337 = vector.shape_cast %336 : vector<1x16x16xf32> to vector<16x16xf32>
    %c68 = arith.constant 68 : index
    %c0_350 = arith.constant 0 : index
    %c0_351 = arith.constant 0 : index
    %338 = vector.load %arg8[%c68, %c0_350, %c0_351] : memref<72x16x16xf32, #tpu.memory_space<vmem>>, vector<1x16x16xf32>
    %339 = vector.shape_cast %338 : vector<1x16x16xf32> to vector<16x16xf32>
    %340 = vector.shape_cast %337 : vector<16x16xf32> to vector<1x16x16xf32>
    tpu.vector_store %arg8[%c68, %c0_350, %c0_351], %340 {strides = array<i32>} : memref<72x16x16xf32, #tpu.memory_space<vmem>>, vector<1x16x16xf32>,
    %c1_352 = arith.constant 1 : index
    %c6_353 = arith.constant 6 : index
    %c6_354 = arith.constant 6 : index
    %341 = vector.load %arg7[%c1_352, %c6_353, %c6_354] : memref<4x26x26xf32, #tpu.memory_space<vmem>>, vector<1x16x16xf32>
    %342 = vector.shape_cast %341 : vector<1x16x16xf32> to vector<16x16xf32>
    %c33 = arith.constant 33 : index
    %c0_355 = arith.constant 0 : index
    %c0_356 = arith.constant 0 : index
    %343 = vector.load %arg8[%c33, %c0_355, %c0_356] : memref<72x16x16xf32, #tpu.memory_space<vmem>>, vector<1x16x16xf32>
    %344 = vector.shape_cast %343 : vector<1x16x16xf32> to vector<16x16xf32>
    %345 = vector.shape_cast %342 : vector<16x16xf32> to vector<1x16x16xf32>
    tpu.vector_store %arg8[%c33, %c0_355, %c0_356], %345 {strides = array<i32>} : memref<72x16x16xf32, #tpu.memory_space<vmem>>, vector<1x16x16xf32>,
    %c1_357 = arith.constant 1 : index
    %c10_358 = arith.constant 10 : index
    %c10_359 = arith.constant 10 : index
    %346 = vector.load %arg7[%c1_357, %c10_358, %c10_359] : memref<4x26x26xf32, #tpu.memory_space<vmem>>, vector<1x16x16xf32>
    %347 = vector.shape_cast %346 : vector<1x16x16xf32> to vector<16x16xf32>
    %c69 = arith.constant 69 : index
    %c0_360 = arith.constant 0 : index
    %c0_361 = arith.constant 0 : index
    %348 = vector.load %arg8[%c69, %c0_360, %c0_361] : memref<72x16x16xf32, #tpu.memory_space<vmem>>, vector<1x16x16xf32>
    %349 = vector.shape_cast %348 : vector<1x16x16xf32> to vector<16x16xf32>
    %350 = vector.shape_cast %347 : vector<16x16xf32> to vector<1x16x16xf32>
    tpu.vector_store %arg8[%c69, %c0_360, %c0_361], %350 {strides = array<i32>} : memref<72x16x16xf32, #tpu.memory_space<vmem>>, vector<1x16x16xf32>,
    %c2_362 = arith.constant 2 : index
    %c6_363 = arith.constant 6 : index
    %c6_364 = arith.constant 6 : index
    %351 = vector.load %arg7[%c2_362, %c6_363, %c6_364] : memref<4x26x26xf32, #tpu.memory_space<vmem>>, vector<1x16x16xf32>
    %352 = vector.shape_cast %351 : vector<1x16x16xf32> to vector<16x16xf32>
    %c34 = arith.constant 34 : index
    %c0_365 = arith.constant 0 : index
    %c0_366 = arith.constant 0 : index
    %353 = vector.load %arg8[%c34, %c0_365, %c0_366] : memref<72x16x16xf32, #tpu.memory_space<vmem>>, vector<1x16x16xf32>
    %354 = vector.shape_cast %353 : vector<1x16x16xf32> to vector<16x16xf32>
    %355 = vector.shape_cast %352 : vector<16x16xf32> to vector<1x16x16xf32>
    tpu.vector_store %arg8[%c34, %c0_365, %c0_366], %355 {strides = array<i32>} : memref<72x16x16xf32, #tpu.memory_space<vmem>>, vector<1x16x16xf32>,
    %c2_367 = arith.constant 2 : index
    %c10_368 = arith.constant 10 : index
    %c10_369 = arith.constant 10 : index
    %356 = vector.load %arg7[%c2_367, %c10_368, %c10_369] : memref<4x26x26xf32, #tpu.memory_space<vmem>>, vector<1x16x16xf32>
    %357 = vector.shape_cast %356 : vector<1x16x16xf32> to vector<16x16xf32>
    %c70 = arith.constant 70 : index
    %c0_370 = arith.constant 0 : index
    %c0_371 = arith.constant 0 : index
    %358 = vector.load %arg8[%c70, %c0_370, %c0_371] : memref<72x16x16xf32, #tpu.memory_space<vmem>>, vector<1x16x16xf32>
    %359 = vector.shape_cast %358 : vector<1x16x16xf32> to vector<16x16xf32>
    %360 = vector.shape_cast %357 : vector<16x16xf32> to vector<1x16x16xf32>
    tpu.vector_store %arg8[%c70, %c0_370, %c0_371], %360 {strides = array<i32>} : memref<72x16x16xf32, #tpu.memory_space<vmem>>, vector<1x16x16xf32>,
    %c3_372 = arith.constant 3 : index
    %c6_373 = arith.constant 6 : index
    %c6_374 = arith.constant 6 : index
    %361 = vector.load %arg7[%c3_372, %c6_373, %c6_374] : memref<4x26x26xf32, #tpu.memory_space<vmem>>, vector<1x16x16xf32>
    %362 = vector.shape_cast %361 : vector<1x16x16xf32> to vector<16x16xf32>
    %c35 = arith.constant 35 : index
    %c0_375 = arith.constant 0 : index
    %c0_376 = arith.constant 0 : index
    %363 = vector.load %arg8[%c35, %c0_375, %c0_376] : memref<72x16x16xf32, #tpu.memory_space<vmem>>, vector<1x16x16xf32>
    %364 = vector.shape_cast %363 : vector<1x16x16xf32> to vector<16x16xf32>
    %365 = vector.shape_cast %362 : vector<16x16xf32> to vector<1x16x16xf32>
    tpu.vector_store %arg8[%c35, %c0_375, %c0_376], %365 {strides = array<i32>} : memref<72x16x16xf32, #tpu.memory_space<vmem>>, vector<1x16x16xf32>,
    %c3_377 = arith.constant 3 : index
    %c10_378 = arith.constant 10 : index
    %c10_379 = arith.constant 10 : index
    %366 = vector.load %arg7[%c3_377, %c10_378, %c10_379] : memref<4x26x26xf32, #tpu.memory_space<vmem>>, vector<1x16x16xf32>
    %367 = vector.shape_cast %366 : vector<1x16x16xf32> to vector<16x16xf32>
    %c71 = arith.constant 71 : index
    %c0_380 = arith.constant 0 : index
    %c0_381 = arith.constant 0 : index
    %368 = vector.load %arg8[%c71, %c0_380, %c0_381] : memref<72x16x16xf32, #tpu.memory_space<vmem>>, vector<1x16x16xf32>
    %369 = vector.shape_cast %368 : vector<1x16x16xf32> to vector<16x16xf32>
    %370 = vector.shape_cast %367 : vector<16x16xf32> to vector<1x16x16xf32>
    tpu.vector_store %arg8[%c71, %c0_380, %c0_381], %370 {strides = array<i32>} : memref<72x16x16xf32, #tpu.memory_space<vmem>>, vector<1x16x16xf32>,
    %c0_382 = arith.constant 0 : index
    %c0_383 = arith.constant 0 : index
    %c0_384 = arith.constant 0 : index
    %371 = vector.load %arg8[%c0_382, %c0_383, %c0_384] : memref<72x16x16xf32, #tpu.memory_space<vmem>>, vector<72x16x16xf32>
    %372 = vector.shape_cast %371 : vector<72x16x16xf32> to vector<72x256xf32>
    %c0_385 = arith.constant 0 : index
    %c0_386 = arith.constant 0 : index
    %373 = vector.load %arg1[%c0_385, %c0_386] : memref<8x72xf32, #tpu.memory_space<vmem>>, vector<8x72xf32>
    %cst_387 = arith.constant dense<0.000000e+00> : vector<8x256xf32>
    %374 = tpu.matmul %373, %372, %cst_387 {dimension_numbers = #tpu.dot_dimension_numbers<[1], [0], [0], [1], [0, 0, 1, 1], [], []>} : vector<8x72xf32>, vector<72x256xf32>, vector<8x256xf32> -> vector<8x256xf32>
    %c0_388 = arith.constant 0 : index
    %c0_389 = arith.constant 0 : index
    %375 = vector.load %arg2[%c0_388, %c0_389] : memref<8x1xf32, #tpu.memory_space<vmem>>, vector<8x1xf32>
    %376 = vector.broadcast %375 : vector<8x1xf32> to vector<8x256xf32>
    %377 = arith.addf %374, %376 : vector<8x256xf32>
    %378 = vector.shape_cast %377 : vector<8x256xf32> to vector<8x16x16xf32>
    %379 = vector.extract_strided_slice %378 {offsets = [0, 0, 0], sizes = [1, 16, 16], strides = [1, 1, 1]} : vector<8x16x16xf32> to vector<1x16x16xf32>
    %380 = vector.shape_cast %379 : vector<1x16x16xf32> to vector<16x16xf32>
    %381 = vector.extract_strided_slice %378 {offsets = [4, 0, 0], sizes = [1, 16, 16], strides = [1, 1, 1]} : vector<8x16x16xf32> to vector<1x16x16xf32>
    %382 = vector.shape_cast %381 : vector<1x16x16xf32> to vector<16x16xf32>
    %cst_390 = arith.constant 0.000000e+00 : f32
    %383 = vector.broadcast %cst_390 : f32 to vector<16x16xf32>
    %384 = arith.cmpf ogt, %380, %383 : vector<16x16xf32>
    %cst_391 = arith.constant 2.000000e-01 : f32
    %385 = vector.broadcast %cst_391 : f32 to vector<16x16xf32>
    %386 = arith.mulf %385, %380 : vector<16x16xf32>
    %387 = arith.select %384, %380, %386 : vector<16x16xi1>, vector<16x16xf32>
    %cst_392 = arith.constant 0.000000e+00 : f32
    %388 = vector.broadcast %cst_392 : f32 to vector<16x16xf32>
    %389 = arith.cmpf ogt, %382, %388 : vector<16x16xf32>
    %cst_393 = arith.constant 2.000000e-01 : f32
    %390 = vector.broadcast %cst_393 : f32 to vector<16x16xf32>
    %391 = arith.mulf %390, %382 : vector<16x16xf32>
    %392 = arith.select %389, %382, %391 : vector<16x16xi1>, vector<16x16xf32>
    %393 = arith.subf %387, %392 : vector<16x16xf32>
    %394 = math.absf %393 : vector<16x16xf32>
    %cst_394 = arith.constant 0.000000e+00 : f32
    %395 = vector.broadcast %cst_394 : f32 to vector<16x16xf32>
    %396 = arith.subf %395, %394 : vector<16x16xf32>
    %397 = math.exp %396 : vector<16x16xf32>
    %cst_395 = arith.constant 1.000000e+00 : f32
    %398 = vector.broadcast %cst_395 : f32 to vector<16x16xf32>
    %399 = arith.addf %398, %397 : vector<16x16xf32>
    %cst_396 = arith.constant 1.000000e+00 : f32
    %400 = vector.broadcast %cst_396 : f32 to vector<16x16xf32>
    %401 = arith.divf %400, %399 : vector<16x16xf32>
    %c0_397 = arith.constant 0 : index
    %c0_398 = arith.constant 0 : index
    %c0_399 = arith.constant 0 : index
    %c0_400 = arith.constant 0 : index
    %402 = vector.load %arg4[%c0_397, %c0_398, %c0_399, %c0_400] : memref<1x4x16x16xf32, #tpu.memory_space<vmem>>, vector<1x1x16x16xf32>
    %403 = vector.shape_cast %402 : vector<1x1x16x16xf32> to vector<16x16xf32>
    %404 = vector.shape_cast %401 : vector<16x16xf32> to vector<1x1x16x16xf32>
    tpu.vector_store %arg4[%c0_397, %c0_398, %c0_399, %c0_400], %404 {strides = array<i32>} : memref<1x4x16x16xf32, #tpu.memory_space<vmem>>, vector<1x1x16x16xf32>,
    %405 = vector.extract_strided_slice %1 {offsets = [0, 0, 0], sizes = [1, 16, 16], strides = [1, 1, 1]} : vector<4x16x16xf32> to vector<1x16x16xf32>
    %406 = vector.shape_cast %405 : vector<1x16x16xf32> to vector<16x16xf32>
    %407 = arith.mulf %401, %406 : vector<16x16xf32>
    %c0_401 = arith.constant 0 : index
    %c0_402 = arith.constant 0 : index
    %c0_403 = arith.constant 0 : index
    %c0_404 = arith.constant 0 : index
    %408 = vector.load %arg5[%c0_401, %c0_402, %c0_403, %c0_404] : memref<1x4x16x16xf32, #tpu.memory_space<vmem>>, vector<1x1x16x16xf32>
    %409 = vector.shape_cast %408 : vector<1x1x16x16xf32> to vector<16x16xf32>
    %410 = vector.shape_cast %407 : vector<16x16xf32> to vector<1x1x16x16xf32>
    tpu.vector_store %arg5[%c0_401, %c0_402, %c0_403, %c0_404], %410 {strides = array<i32>} : memref<1x4x16x16xf32, #tpu.memory_space<vmem>>, vector<1x1x16x16xf32>,
    %cst_405 = arith.constant 1.000000e+00 : f32
    %411 = vector.broadcast %cst_405 : f32 to vector<16x16xf32>
    %412 = arith.subf %411, %401 : vector<16x16xf32>
    %413 = arith.mulf %412, %406 : vector<16x16xf32>
    %414 = vector.shape_cast %413 : vector<16x16xf32> to vector<2x8x16xf32>
    %cst_406 = arith.constant dense<0xFF800000> : vector<2x16xf32>
    %415 = vector.multi_reduction <maximumf>, %414, %cst_406 [1] : vector<2x8x16xf32> to vector<2x16xf32>
    %416 = vector.shape_cast %415 : vector<2x16xf32> to vector<2x2x8xf32>
    %cst_407 = arith.constant dense<0xFF800000> : vector<2x2xf32>
    %417 = vector.multi_reduction <maximumf>, %416, %cst_407 [2] : vector<2x2x8xf32> to vector<2x2xf32>
    %c0_408 = arith.constant 0 : index
    %c0_409 = arith.constant 0 : index
    %c0_410 = arith.constant 0 : index
    %c0_411 = arith.constant 0 : index
    %418 = vector.load %arg6[%c0_408, %c0_409, %c0_410, %c0_411] : memref<1x4x2x2xf32, #tpu.memory_space<vmem>>, vector<1x1x2x2xf32>
    %419 = vector.shape_cast %418 : vector<1x1x2x2xf32> to vector<2x2xf32>
    %420 = vector.shape_cast %417 : vector<2x2xf32> to vector<1x1x2x2xf32>
    tpu.vector_store %arg6[%c0_408, %c0_409, %c0_410, %c0_411], %420 {strides = array<i32>} : memref<1x4x2x2xf32, #tpu.memory_space<vmem>>, vector<1x1x2x2xf32>,
    %421 = vector.extract_strided_slice %378 {offsets = [1, 0, 0], sizes = [1, 16, 16], strides = [1, 1, 1]} : vector<8x16x16xf32> to vector<1x16x16xf32>
    %422 = vector.shape_cast %421 : vector<1x16x16xf32> to vector<16x16xf32>
    %423 = vector.extract_strided_slice %378 {offsets = [5, 0, 0], sizes = [1, 16, 16], strides = [1, 1, 1]} : vector<8x16x16xf32> to vector<1x16x16xf32>
    %424 = vector.shape_cast %423 : vector<1x16x16xf32> to vector<16x16xf32>
    %cst_412 = arith.constant 0.000000e+00 : f32
    %425 = vector.broadcast %cst_412 : f32 to vector<16x16xf32>
    %426 = arith.cmpf ogt, %422, %425 : vector<16x16xf32>
    %cst_413 = arith.constant 2.000000e-01 : f32
    %427 = vector.broadcast %cst_413 : f32 to vector<16x16xf32>
    %428 = arith.mulf %427, %422 : vector<16x16xf32>
    %429 = arith.select %426, %422, %428 : vector<16x16xi1>, vector<16x16xf32>
    %cst_414 = arith.constant 0.000000e+00 : f32
    %430 = vector.broadcast %cst_414 : f32 to vector<16x16xf32>
    %431 = arith.cmpf ogt, %424, %430 : vector<16x16xf32>
    %cst_415 = arith.constant 2.000000e-01 : f32
    %432 = vector.broadcast %cst_415 : f32 to vector<16x16xf32>
    %433 = arith.mulf %432, %424 : vector<16x16xf32>
    %434 = arith.select %431, %424, %433 : vector<16x16xi1>, vector<16x16xf32>
    %435 = arith.subf %429, %434 : vector<16x16xf32>
    %436 = math.absf %435 : vector<16x16xf32>
    %cst_416 = arith.constant 0.000000e+00 : f32
    %437 = vector.broadcast %cst_416 : f32 to vector<16x16xf32>
    %438 = arith.subf %437, %436 : vector<16x16xf32>
    %439 = math.exp %438 : vector<16x16xf32>
    %cst_417 = arith.constant 1.000000e+00 : f32
    %440 = vector.broadcast %cst_417 : f32 to vector<16x16xf32>
    %441 = arith.addf %440, %439 : vector<16x16xf32>
    %cst_418 = arith.constant 1.000000e+00 : f32
    %442 = vector.broadcast %cst_418 : f32 to vector<16x16xf32>
    %443 = arith.divf %442, %441 : vector<16x16xf32>
    %c0_419 = arith.constant 0 : index
    %c1_420 = arith.constant 1 : index
    %c0_421 = arith.constant 0 : index
    %c0_422 = arith.constant 0 : index
    %444 = vector.load %arg4[%c0_419, %c1_420, %c0_421, %c0_422] : memref<1x4x16x16xf32, #tpu.memory_space<vmem>>, vector<1x1x16x16xf32>
    %445 = vector.shape_cast %444 : vector<1x1x16x16xf32> to vector<16x16xf32>
    %446 = vector.shape_cast %443 : vector<16x16xf32> to vector<1x1x16x16xf32>
    tpu.vector_store %arg4[%c0_419, %c1_420, %c0_421, %c0_422], %446 {strides = array<i32>} : memref<1x4x16x16xf32, #tpu.memory_space<vmem>>, vector<1x1x16x16xf32>,
    %447 = vector.extract_strided_slice %1 {offsets = [1, 0, 0], sizes = [1, 16, 16], strides = [1, 1, 1]} : vector<4x16x16xf32> to vector<1x16x16xf32>
    %448 = vector.shape_cast %447 : vector<1x16x16xf32> to vector<16x16xf32>
    %449 = arith.mulf %443, %448 : vector<16x16xf32>
    %c0_423 = arith.constant 0 : index
    %c1_424 = arith.constant 1 : index
    %c0_425 = arith.constant 0 : index
    %c0_426 = arith.constant 0 : index
    %450 = vector.load %arg5[%c0_423, %c1_424, %c0_425, %c0_426] : memref<1x4x16x16xf32, #tpu.memory_space<vmem>>, vector<1x1x16x16xf32>
    %451 = vector.shape_cast %450 : vector<1x1x16x16xf32> to vector<16x16xf32>
    %452 = vector.shape_cast %449 : vector<16x16xf32> to vector<1x1x16x16xf32>
    tpu.vector_store %arg5[%c0_423, %c1_424, %c0_425, %c0_426], %452 {strides = array<i32>} : memref<1x4x16x16xf32, #tpu.memory_space<vmem>>, vector<1x1x16x16xf32>,
    %cst_427 = arith.constant 1.000000e+00 : f32
    %453 = vector.broadcast %cst_427 : f32 to vector<16x16xf32>
    %454 = arith.subf %453, %443 : vector<16x16xf32>
    %455 = arith.mulf %454, %448 : vector<16x16xf32>
    %456 = vector.shape_cast %455 : vector<16x16xf32> to vector<2x8x16xf32>
    %cst_428 = arith.constant dense<0xFF800000> : vector<2x16xf32>
    %457 = vector.multi_reduction <maximumf>, %456, %cst_428 [1] : vector<2x8x16xf32> to vector<2x16xf32>
    %458 = vector.shape_cast %457 : vector<2x16xf32> to vector<2x2x8xf32>
    %cst_429 = arith.constant dense<0xFF800000> : vector<2x2xf32>
    %459 = vector.multi_reduction <maximumf>, %458, %cst_429 [2] : vector<2x2x8xf32> to vector<2x2xf32>
    %c0_430 = arith.constant 0 : index
    %c1_431 = arith.constant 1 : index
    %c0_432 = arith.constant 0 : index
    %c0_433 = arith.constant 0 : index
    %460 = vector.load %arg6[%c0_430, %c1_431, %c0_432, %c0_433] : memref<1x4x2x2xf32, #tpu.memory_space<vmem>>, vector<1x1x2x2xf32>
    %461 = vector.shape_cast %460 : vector<1x1x2x2xf32> to vector<2x2xf32>
    %462 = vector.shape_cast %459 : vector<2x2xf32> to vector<1x1x2x2xf32>
    tpu.vector_store %arg6[%c0_430, %c1_431, %c0_432, %c0_433], %462 {strides = array<i32>} : memref<1x4x2x2xf32, #tpu.memory_space<vmem>>, vector<1x1x2x2xf32>,
    %463 = vector.extract_strided_slice %378 {offsets = [2, 0, 0], sizes = [1, 16, 16], strides = [1, 1, 1]} : vector<8x16x16xf32> to vector<1x16x16xf32>
    %464 = vector.shape_cast %463 : vector<1x16x16xf32> to vector<16x16xf32>
    %465 = vector.extract_strided_slice %378 {offsets = [6, 0, 0], sizes = [1, 16, 16], strides = [1, 1, 1]} : vector<8x16x16xf32> to vector<1x16x16xf32>
    %466 = vector.shape_cast %465 : vector<1x16x16xf32> to vector<16x16xf32>
    %cst_434 = arith.constant 0.000000e+00 : f32
    %467 = vector.broadcast %cst_434 : f32 to vector<16x16xf32>
    %468 = arith.cmpf ogt, %464, %467 : vector<16x16xf32>
    %cst_435 = arith.constant 2.000000e-01 : f32
    %469 = vector.broadcast %cst_435 : f32 to vector<16x16xf32>
    %470 = arith.mulf %469, %464 : vector<16x16xf32>
    %471 = arith.select %468, %464, %470 : vector<16x16xi1>, vector<16x16xf32>
    %cst_436 = arith.constant 0.000000e+00 : f32
    %472 = vector.broadcast %cst_436 : f32 to vector<16x16xf32>
    %473 = arith.cmpf ogt, %466, %472 : vector<16x16xf32>
    %cst_437 = arith.constant 2.000000e-01 : f32
    %474 = vector.broadcast %cst_437 : f32 to vector<16x16xf32>
    %475 = arith.mulf %474, %466 : vector<16x16xf32>
    %476 = arith.select %473, %466, %475 : vector<16x16xi1>, vector<16x16xf32>
    %477 = arith.subf %471, %476 : vector<16x16xf32>
    %478 = math.absf %477 : vector<16x16xf32>
    %cst_438 = arith.constant 0.000000e+00 : f32
    %479 = vector.broadcast %cst_438 : f32 to vector<16x16xf32>
    %480 = arith.subf %479, %478 : vector<16x16xf32>
    %481 = math.exp %480 : vector<16x16xf32>
    %cst_439 = arith.constant 1.000000e+00 : f32
    %482 = vector.broadcast %cst_439 : f32 to vector<16x16xf32>
    %483 = arith.addf %482, %481 : vector<16x16xf32>
    %cst_440 = arith.constant 1.000000e+00 : f32
    %484 = vector.broadcast %cst_440 : f32 to vector<16x16xf32>
    %485 = arith.divf %484, %483 : vector<16x16xf32>
    %c0_441 = arith.constant 0 : index
    %c2_442 = arith.constant 2 : index
    %c0_443 = arith.constant 0 : index
    %c0_444 = arith.constant 0 : index
    %486 = vector.load %arg4[%c0_441, %c2_442, %c0_443, %c0_444] : memref<1x4x16x16xf32, #tpu.memory_space<vmem>>, vector<1x1x16x16xf32>
    %487 = vector.shape_cast %486 : vector<1x1x16x16xf32> to vector<16x16xf32>
    %488 = vector.shape_cast %485 : vector<16x16xf32> to vector<1x1x16x16xf32>
    tpu.vector_store %arg4[%c0_441, %c2_442, %c0_443, %c0_444], %488 {strides = array<i32>} : memref<1x4x16x16xf32, #tpu.memory_space<vmem>>, vector<1x1x16x16xf32>,
    %489 = vector.extract_strided_slice %1 {offsets = [2, 0, 0], sizes = [1, 16, 16], strides = [1, 1, 1]} : vector<4x16x16xf32> to vector<1x16x16xf32>
    %490 = vector.shape_cast %489 : vector<1x16x16xf32> to vector<16x16xf32>
    %491 = arith.mulf %485, %490 : vector<16x16xf32>
    %c0_445 = arith.constant 0 : index
    %c2_446 = arith.constant 2 : index
    %c0_447 = arith.constant 0 : index
    %c0_448 = arith.constant 0 : index
    %492 = vector.load %arg5[%c0_445, %c2_446, %c0_447, %c0_448] : memref<1x4x16x16xf32, #tpu.memory_space<vmem>>, vector<1x1x16x16xf32>
    %493 = vector.shape_cast %492 : vector<1x1x16x16xf32> to vector<16x16xf32>
    %494 = vector.shape_cast %491 : vector<16x16xf32> to vector<1x1x16x16xf32>
    tpu.vector_store %arg5[%c0_445, %c2_446, %c0_447, %c0_448], %494 {strides = array<i32>} : memref<1x4x16x16xf32, #tpu.memory_space<vmem>>, vector<1x1x16x16xf32>,
    %cst_449 = arith.constant 1.000000e+00 : f32
    %495 = vector.broadcast %cst_449 : f32 to vector<16x16xf32>
    %496 = arith.subf %495, %485 : vector<16x16xf32>
    %497 = arith.mulf %496, %490 : vector<16x16xf32>
    %498 = vector.shape_cast %497 : vector<16x16xf32> to vector<2x8x16xf32>
    %cst_450 = arith.constant dense<0xFF800000> : vector<2x16xf32>
    %499 = vector.multi_reduction <maximumf>, %498, %cst_450 [1] : vector<2x8x16xf32> to vector<2x16xf32>
    %500 = vector.shape_cast %499 : vector<2x16xf32> to vector<2x2x8xf32>
    %cst_451 = arith.constant dense<0xFF800000> : vector<2x2xf32>
    %501 = vector.multi_reduction <maximumf>, %500, %cst_451 [2] : vector<2x2x8xf32> to vector<2x2xf32>
    %c0_452 = arith.constant 0 : index
    %c2_453 = arith.constant 2 : index
    %c0_454 = arith.constant 0 : index
    %c0_455 = arith.constant 0 : index
    %502 = vector.load %arg6[%c0_452, %c2_453, %c0_454, %c0_455] : memref<1x4x2x2xf32, #tpu.memory_space<vmem>>, vector<1x1x2x2xf32>
    %503 = vector.shape_cast %502 : vector<1x1x2x2xf32> to vector<2x2xf32>
    %504 = vector.shape_cast %501 : vector<2x2xf32> to vector<1x1x2x2xf32>
    tpu.vector_store %arg6[%c0_452, %c2_453, %c0_454, %c0_455], %504 {strides = array<i32>} : memref<1x4x2x2xf32, #tpu.memory_space<vmem>>, vector<1x1x2x2xf32>,
    %505 = vector.extract_strided_slice %378 {offsets = [3, 0, 0], sizes = [1, 16, 16], strides = [1, 1, 1]} : vector<8x16x16xf32> to vector<1x16x16xf32>
    %506 = vector.shape_cast %505 : vector<1x16x16xf32> to vector<16x16xf32>
    %507 = vector.extract_strided_slice %378 {offsets = [7, 0, 0], sizes = [1, 16, 16], strides = [1, 1, 1]} : vector<8x16x16xf32> to vector<1x16x16xf32>
    %508 = vector.shape_cast %507 : vector<1x16x16xf32> to vector<16x16xf32>
    %cst_456 = arith.constant 0.000000e+00 : f32
    %509 = vector.broadcast %cst_456 : f32 to vector<16x16xf32>
    %510 = arith.cmpf ogt, %506, %509 : vector<16x16xf32>
    %cst_457 = arith.constant 2.000000e-01 : f32
    %511 = vector.broadcast %cst_457 : f32 to vector<16x16xf32>
    %512 = arith.mulf %511, %506 : vector<16x16xf32>
    %513 = arith.select %510, %506, %512 : vector<16x16xi1>, vector<16x16xf32>
    %cst_458 = arith.constant 0.000000e+00 : f32
    %514 = vector.broadcast %cst_458 : f32 to vector<16x16xf32>
    %515 = arith.cmpf ogt, %508, %514 : vector<16x16xf32>
    %cst_459 = arith.constant 2.000000e-01 : f32
    %516 = vector.broadcast %cst_459 : f32 to vector<16x16xf32>
    %517 = arith.mulf %516, %508 : vector<16x16xf32>
    %518 = arith.select %515, %508, %517 : vector<16x16xi1>, vector<16x16xf32>
    %519 = arith.subf %513, %518 : vector<16x16xf32>
    %520 = math.absf %519 : vector<16x16xf32>
    %cst_460 = arith.constant 0.000000e+00 : f32
    %521 = vector.broadcast %cst_460 : f32 to vector<16x16xf32>
    %522 = arith.subf %521, %520 : vector<16x16xf32>
    %523 = math.exp %522 : vector<16x16xf32>
    %cst_461 = arith.constant 1.000000e+00 : f32
    %524 = vector.broadcast %cst_461 : f32 to vector<16x16xf32>
    %525 = arith.addf %524, %523 : vector<16x16xf32>
    %cst_462 = arith.constant 1.000000e+00 : f32
    %526 = vector.broadcast %cst_462 : f32 to vector<16x16xf32>
    %527 = arith.divf %526, %525 : vector<16x16xf32>
    %c0_463 = arith.constant 0 : index
    %c3_464 = arith.constant 3 : index
    %c0_465 = arith.constant 0 : index
    %c0_466 = arith.constant 0 : index
    %528 = vector.load %arg4[%c0_463, %c3_464, %c0_465, %c0_466] : memref<1x4x16x16xf32, #tpu.memory_space<vmem>>, vector<1x1x16x16xf32>
    %529 = vector.shape_cast %528 : vector<1x1x16x16xf32> to vector<16x16xf32>
    %530 = vector.shape_cast %527 : vector<16x16xf32> to vector<1x1x16x16xf32>
    tpu.vector_store %arg4[%c0_463, %c3_464, %c0_465, %c0_466], %530 {strides = array<i32>} : memref<1x4x16x16xf32, #tpu.memory_space<vmem>>, vector<1x1x16x16xf32>,
    %531 = vector.extract_strided_slice %1 {offsets = [3, 0, 0], sizes = [1, 16, 16], strides = [1, 1, 1]} : vector<4x16x16xf32> to vector<1x16x16xf32>
    %532 = vector.shape_cast %531 : vector<1x16x16xf32> to vector<16x16xf32>
    %533 = arith.mulf %527, %532 : vector<16x16xf32>
    %c0_467 = arith.constant 0 : index
    %c3_468 = arith.constant 3 : index
    %c0_469 = arith.constant 0 : index
    %c0_470 = arith.constant 0 : index
    %534 = vector.load %arg5[%c0_467, %c3_468, %c0_469, %c0_470] : memref<1x4x16x16xf32, #tpu.memory_space<vmem>>, vector<1x1x16x16xf32>
    %535 = vector.shape_cast %534 : vector<1x1x16x16xf32> to vector<16x16xf32>
    %536 = vector.shape_cast %533 : vector<16x16xf32> to vector<1x1x16x16xf32>
    tpu.vector_store %arg5[%c0_467, %c3_468, %c0_469, %c0_470], %536 {strides = array<i32>} : memref<1x4x16x16xf32, #tpu.memory_space<vmem>>, vector<1x1x16x16xf32>,
    %cst_471 = arith.constant 1.000000e+00 : f32
    %537 = vector.broadcast %cst_471 : f32 to vector<16x16xf32>
    %538 = arith.subf %537, %527 : vector<16x16xf32>
    %539 = arith.mulf %538, %532 : vector<16x16xf32>
    %540 = vector.shape_cast %539 : vector<16x16xf32> to vector<2x8x16xf32>
    %cst_472 = arith.constant dense<0xFF800000> : vector<2x16xf32>
    %541 = vector.multi_reduction <maximumf>, %540, %cst_472 [1] : vector<2x8x16xf32> to vector<2x16xf32>
    %542 = vector.shape_cast %541 : vector<2x16xf32> to vector<2x2x8xf32>
    %cst_473 = arith.constant dense<0xFF800000> : vector<2x2xf32>
    %543 = vector.multi_reduction <maximumf>, %542, %cst_473 [2] : vector<2x2x8xf32> to vector<2x2xf32>
    %c0_474 = arith.constant 0 : index
    %c3_475 = arith.constant 3 : index
    %c0_476 = arith.constant 0 : index
    %c0_477 = arith.constant 0 : index
    %544 = vector.load %arg6[%c0_474, %c3_475, %c0_476, %c0_477] : memref<1x4x2x2xf32, #tpu.memory_space<vmem>>, vector<1x1x2x2xf32>
    %545 = vector.shape_cast %544 : vector<1x1x2x2xf32> to vector<2x2xf32>
    %546 = vector.shape_cast %543 : vector<2x2xf32> to vector<1x1x2x2xf32>
    tpu.vector_store %arg6[%c0_474, %c3_475, %c0_476, %c0_477], %546 {strides = array<i32>} : memref<1x4x2x2xf32, #tpu.memory_space<vmem>>, vector<1x1x2x2xf32>,
    return
  }
  func.func @transform_0(%arg0: i32) -> (i32, i32) {
    %c0_i32 = arith.constant 0 : i32
    %c0_i32_0 = arith.constant 0 : i32
    %c0_i32_1 = arith.constant 0 : i32
    return %c0_i32, %c0_i32_0 : i32, i32
  }
  func.func @transform_1(%arg0: i32) -> (i32, i32) {
    %c0_i32 = arith.constant 0 : i32
    %c0_i32_0 = arith.constant 0 : i32
    %c0_i32_1 = arith.constant 0 : i32
    return %c0_i32, %c0_i32_0 : i32, i32
  }
  func.func @transform_2(%arg0: i32) -> (i32, i32, i32, i32) {
    %c0_i32 = arith.constant 0 : i32
    %c0_i32_0 = arith.constant 0 : i32
    %c0_i32_1 = arith.constant 0 : i32
    %c0_i32_2 = arith.constant 0 : i32
    return %arg0, %c0_i32, %c0_i32_0, %c0_i32_1 : i32, i32, i32, i32
  }
  func.func @transform_3(%arg0: i32) -> (i32, i32, i32, i32) {
    %c0_i32 = arith.constant 0 : i32
    %c0_i32_0 = arith.constant 0 : i32
    %c0_i32_1 = arith.constant 0 : i32
    %c0_i32_2 = arith.constant 0 : i32
    return %arg0, %c0_i32, %c0_i32_0, %c0_i32_1 : i32, i32, i32, i32
  }
  func.func @transform_4(%arg0: i32) -> (i32, i32, i32, i32) {
    %c0_i32 = arith.constant 0 : i32
    %c0_i32_0 = arith.constant 0 : i32
    %c0_i32_1 = arith.constant 0 : i32
    %c0_i32_2 = arith.constant 0 : i32
    return %arg0, %c0_i32, %c0_i32_0, %c0_i32_1 : i32, i32, i32, i32
  }
  func.func @transform_5(%arg0: i32) -> (i32, i32, i32, i32) {
    %c0_i32 = arith.constant 0 : i32
    %c0_i32_0 = arith.constant 0 : i32
    %c0_i32_1 = arith.constant 0 : i32
    %c0_i32_2 = arith.constant 0 : i32
    return %arg0, %c0_i32, %c0_i32_0, %c0_i32_1 : i32, i32, i32, i32
  }
}

</mosaic_0001>

<llo_original>
// kernel: en_block_forward.5
$region0: #{en_block_forward.5}
  #allocation0 [shape = 'u32[]', space=smem, size = 0x4, offset = 0x4, fixed_abs, tag = 'smem constant byte address 0x4 - core index']
  #allocation1 [shape = 'u32[72,128]{1,0:T(1,128)}', space=vmem, size = 0x9000, scoped, tag = 'internal scratch']
  %s0 = inlined_call_operand.vmem [shape: f32[4], index: 0, kind: input, shape index: {}]
  %s1 = inlined_call_operand.vmem [shape: f32[2,8,2], index: 1, kind: input, shape index: {}]
  %s2 = inlined_call_operand.vmem [shape: f32[16,2], index: 2, kind: input, shape index: {}]
  %s3 = inlined_call_operand.vmem [shape: f32[2,16], index: 3, kind: input, shape index: {}]
  %s4 = inlined_call_operand.hbm [shape: f32[2,4,16,16], index: 4, kind: input, shape index: {}]
  %s5 = inlined_call_operand.hbm [shape: f32[2,4,16,16], index: 5, kind: output, shape index: {}]
  %s6 = sld [smem:[#allocation0]]
  $region61: #{en_block_forward.5} parent=0
    _
  %s8 = ssub.s32 1, %s6
  %s9 = scalar_select 0, %s8, %s6
  $region1: #{en_block_forward.5} parent=0
    #allocation2 [shape = 'u8[512]{0}', space=smem, size = 0x200, scoped, tag = 'input window, operand 0, single buffered']
    #allocation3 [shape = 's32[2]{0}', space=sflag, size = 0x8, scoped, tag = 'scoped memory for en_block_forward.5']
    #allocation4 [shape = 's32[2]{0}', space=sflag, size = 0x8, scoped, tag = 'scoped memory for en_block_forward.5']
    #allocation5 [shape = 's32[2]{0}', space=sflag, size = 0x8, scoped, tag = 'scoped memory for en_block_forward.5']
    #allocation6 [shape = 'u8[65536]{0}', space=vmem, size = 0x10000, scoped, tag = 'input window, operand 4']
    #allocation7 [shape = 'u8[65536]{0}', space=vmem, size = 0x10000, scoped, tag = 'output window, operand 0']
    %10 = vsyncpa [#allocation5], 0
    %11 = vsyncpa [#allocation3], 0
    %s12 = scalar_lea.sflag [#allocation3], 1
    %13 = vsyncpa %s12, 0
    %14 = vsyncpa [#allocation4], 0
    %s15 = scalar_lea.sflag [#allocation4], 1
    %16 = vsyncpa %s15, 0
    loop: start=0, step=1, limit=4
    $region2: #{en_block_forward.5} parent=1 // loop_pre_header
      _
    $region3: #{en_block_forward.5} parent=1 // loop_header
      %s18 = sphi 0, %s22
      %p19 = scmp.ge.s32.totalorder %s18, 4
      %s26 = sphi 0, %s26
      %s28 = sphi 0, %s26
      %s29 = sphi 0, %s28
      %s43 = sphi 0, %s29
      %s49 = sphi 0, %s51
      %s52 = sphi 0, %s49
      %s53 = sphi 0, %s52
      %s69 = sphi 0, %s53
      %s73 = sphi 0, %s73
      %s75 = sphi 0, %s73
      %s76 = sphi 0, %s75
      %s90 = sphi 0, %s76
      %s94 = sphi 0, %s94
      %s96 = sphi 0, %s94
      %s97 = sphi 0, %s96
      %s111 = sphi 0, %s97
      %s117 = sphi 0, %s119
      %s120 = sphi 0, %s117
      %s121 = sphi 0, %s120
      %s137 = sphi 0, %s121
      %s143 = sphi 0, %s145
      %s146 = sphi 0, %s143
      %s147 = sphi 0, %s146
      %s163 = sphi 0, %s147
    $region4: #{en_block_forward.5} parent=1 // loop_header_branch
      %21 = sbr.rel (%p19) target = $region8
    $region5: #{en_block_forward.5} parent=1 // loop_body
      %s23 = ssub.s32 %s18, 1
      %s24 = ssub.s32 %s18, 2
      %s25 = sadd.s32 %s18, 1
      %s27 = sadd.s32 %s26, 1
      %p30 = scmp.eq.s32.totalorder %s18, 1
      %p31 = scmp.ne.s32.totalorder %s26, %s28
      %p32 = scmp.eq.s32.totalorder %s18, 0
      %p33 = por %p31, %p32
      %p34 = scmp.ne.s32.totalorder %s26, %s28
      %p35 = scmp.eq.s32.totalorder %s23, 1
      %p36 = por %p34, %p35
      %p37 = scmp.ne.s32.totalorder %s28, %s29
      %p38 = scmp.eq.s32.totalorder %s23, 0
      %p39 = por %p37, %p38
      %p40 = scmp.ne.s32.totalorder %s28, %s29
      %p41 = scmp.eq.s32.totalorder %s24, 1
      %p42 = por %p40, %p41
      %p44 = scmp.ne.s32.totalorder %s29, %s43
      %p45 = scmp.eq.s32.totalorder %s24, 0
      %p46 = por %p44, %p45
      %s47 = ssub.s32 %s18, %s25
      %p48 = scmp.eq.s32.totalorder %s47, 0
      %s50 = sadd.s32 %s49, 1
      %s51 = scalar_select %p48, %s49, %s50
      %p54 = pneg %p48
      %p55 = scmp.eq.s32.totalorder %s18, 1
      %p56 = por %p54, %p55
      %p57 = scmp.ne.s32.totalorder %s49, %s52
      %p58 = scmp.eq.s32.totalorder %s18, 0
      %p59 = por %p57, %p58
      %p60 = scmp.ne.s32.totalorder %s49, %s52
      %p61 = scmp.eq.s32.totalorder %s23, 1
      %p62 = por %p60, %p61
      %p63 = scmp.ne.s32.totalorder %s52, %s53
      %p64 = scmp.eq.s32.totalorder %s23, 0
      %p65 = por %p63, %p64
      %p66 = scmp.ne.s32.totalorder %s52, %s53
      %p67 = scmp.eq.s32.totalorder %s24, 1
      %p68 = por %p66, %p67
      %p70 = scmp.ne.s32.totalorder %s53, %s69
      %p71 = scmp.eq.s32.totalorder %s24, 0
      %p72 = por %p70, %p71
      %s74 = sadd.s32 %s73, 1
      %p77 = scmp.eq.s32.totalorder %s18, 1
      %p78 = scmp.ne.s32.totalorder %s73, %s75
      %p79 = scmp.eq.s32.totalorder %s18, 0
      %p80 = por %p78, %p79
      %p81 = scmp.ne.s32.totalorder %s73, %s75
      %p82 = scmp.eq.s32.totalorder %s23, 1
      %p83 = por %p81, %p82
      %p84 = scmp.ne.s32.totalorder %s75, %s76
      %p85 = scmp.eq.s32.totalorder %s23, 0
      %p86 = por %p84, %p85
      %p87 = scmp.ne.s32.totalorder %s75, %s76
      %p88 = scmp.eq.s32.totalorder %s24, 1
      %p89 = por %p87, %p88
      %p91 = scmp.ne.s32.totalorder %s76, %s90
      %p92 = scmp.eq.s32.totalorder %s24, 0
      %p93 = por %p91, %p92
      %s95 = sadd.s32 %s94, 1
      %p98 = scmp.eq.s32.totalorder %s18, 1
      %p99 = scmp.ne.s32.totalorder %s94, %s96
      %p100 = scmp.eq.s32.totalorder %s18, 0
      %p101 = por %p99, %p100
      %p102 = scmp.ne.s32.totalorder %s94, %s96
      %p103 = scmp.eq.s32.totalorder %s23, 1
      %p104 = por %p102, %p103
      %p105 = scmp.ne.s32.totalorder %s96, %s97
      %p106 = scmp.eq.s32.totalorder %s23, 0
      %p107 = por %p105, %p106
      %p108 = scmp.ne.s32.totalorder %s96, %s97
      %p109 = scmp.eq.s32.totalorder %s24, 1
      %p110 = por %p108, %p109
      %p112 = scmp.ne.s32.totalorder %s97, %s111
      %p113 = scmp.eq.s32.totalorder %s24, 0
      %p114 = por %p112, %p113
      %s115 = ssub.s32 %s18, %s25
      %p116 = scmp.eq.s32.totalorder %s115, 0
      %s118 = sadd.s32 %s117, 1
      %s119 = scalar_select %p116, %s117, %s118
      %p122 = pneg %p116
      %p123 = scmp.eq.s32.totalorder %s18, 1
      %p124 = por %p122, %p123
      %p125 = scmp.ne.s32.totalorder %s117, %s120
      %p126 = scmp.eq.s32.totalorder %s18, 0
      %p127 = por %p125, %p126
      %p128 = scmp.ne.s32.totalorder %s117, %s120
      %p129 = scmp.eq.s32.totalorder %s23, 1
      %p130 = por %p128, %p129
      %p131 = scmp.ne.s32.totalorder %s120, %s121
      %p132 = scmp.eq.s32.totalorder %s23, 0
      %p133 = por %p131, %p132
      %p134 = scmp.ne.s32.totalorder %s120, %s121
      %p135 = scmp.eq.s32.totalorder %s24, 1
      %p136 = por %p134, %p135
      %p138 = scmp.ne.s32.totalorder %s121, %s137
      %p139 = scmp.eq.s32.totalorder %s24, 0
      %p140 = por %p138, %p139
      %s141 = ssub.s32 %s18, %s25
      %p142 = scmp.eq.s32.totalorder %s141, 0
      %s144 = sadd.s32 %s143, 1
      %s145 = scalar_select %p142, %s143, %s144
      %p148 = pneg %p142
      %p149 = scmp.eq.s32.totalorder %s18, 1
      %p150 = por %p148, %p149
      %p151 = scmp.ne.s32.totalorder %s143, %s146
      %p152 = scmp.eq.s32.totalorder %s18, 0
      %p153 = por %p151, %p152
      %p154 = scmp.ne.s32.totalorder %s143, %s146
      %p155 = scmp.eq.s32.totalorder %s23, 1
      %p156 = por %p154, %p155
      %p157 = scmp.ne.s32.totalorder %s146, %s147
      %p158 = scmp.eq.s32.totalorder %s23, 0
      %p159 = por %p157, %p158
      %p160 = scmp.ne.s32.totalorder %s146, %s147
      %p161 = scmp.eq.s32.totalorder %s24, 1
      %p162 = por %p160, %p161
      %p164 = scmp.ne.s32.totalorder %s147, %s163
      %p165 = scmp.eq.s32.totalorder %s24, 0
      %p166 = por %p164, %p165
      %p167 = scmp.le.s32.totalorder 1, %s18
      %p168 = scmp.lt.s32.totalorder %s18, 3
      %p169 = pnand %p167, %p168
      %p170 = pneg %p169
      // Predicated region
      $region9: #{en_block_forward.5} parent=5 // pred_check
        _
      $region10: #{en_block_forward.5} parent=5 // pred_check_branch
        %172 = sbr.rel (%p169) target = $region12
      $region11: #{en_block_forward.5} parent=5 // pred_region
        %s173 = ssub.s32 %s18, 1
        // Predicated region
        $region13: #{en_block_forward.5} parent=11 // pred_check
          %p174 = pneg %p39
        $region14: #{en_block_forward.5} parent=11 // pred_check_branch
          %176 = sbr.rel (%p174) target = $region16
        $region15: #{en_block_forward.5} parent=11 // pred_region
          %178 = vsyncadd [#allocation5], 0
          %s180 = sshll.u32 %s0, 4
          %s181 = int_to_ptr.vmem [resolvable:$true] %s180
          %183 = dma.vmem_to_smem %s181, 16, [#allocation2], [#allocation5]
        $region16: #{en_block_forward.5} parent=11 // pred_fallthru
          _
        // Predicated region
        $region17: #{en_block_forward.5} parent=11 // pred_check
          %p184 = pneg %p86
        $region18: #{en_block_forward.5} parent=11 // pred_check_branch
          %186 = sbr.rel (%p184) target = $region20
        $region19: #{en_block_forward.5} parent=11 // pred_region
          _
        $region20: #{en_block_forward.5} parent=11 // pred_fallthru
          _
        // Predicated region
        $region21: #{en_block_forward.5} parent=11 // pred_check
          %p187 = pneg %p107
        $region22: #{en_block_forward.5} parent=11 // pred_check_branch
          %189 = sbr.rel (%p187) target = $region24
        $region23: #{en_block_forward.5} parent=11 // pred_region
          _
        $region24: #{en_block_forward.5} parent=11 // pred_fallthru
          _
      $region12: #{en_block_forward.5} parent=5 // pred_fallthru
        _
      %p190 = scmp.lt.s32.totalorder %s18, 2
      // Predicated region
      $region25: #{en_block_forward.5} parent=5 // pred_check
        %p191 = pneg %p190
      $region26: #{en_block_forward.5} parent=5 // pred_check_branch
        %193 = sbr.rel (%p191) target = $region28
      $region27: #{en_block_forward.5} parent=5 // pred_region
        // Predicated region
        $region29: #{en_block_forward.5} parent=27 // pred_check
          %p194 = pneg %p59
        $region30: #{en_block_forward.5} parent=27 // pred_check_branch
          %196 = sbr.rel (%p194) target = $region32
        $region31: #{en_block_forward.5} parent=27 // pred_region
          %p197 = scmp.lt.s32.totalorder %s18, 1
          %s198 = scalar_select %p197, %s18, 1
          %s199 = smul.addr %s198, 8
          %s200 = scalar_lea.vmem %s1, %s199
        $region32: #{en_block_forward.5} parent=27 // pred_fallthru
          _
        // Predicated region
        $region33: #{en_block_forward.5} parent=27 // pred_check
          %p201 = pneg %p127
        $region34: #{en_block_forward.5} parent=27 // pred_check_branch
          %203 = sbr.rel (%p201) target = $region36
        $region35: #{en_block_forward.5} parent=27 // pred_region
          %s204 = sand.u32 %s117, 1
          %s205 = scalar_lea.sflag [#allocation3], %s204
          %s206 = sand.u32 %s117, 1
          %s207 = smul.addr %s206, 64
          %s208 = scalar_lea.vmem [#allocation6], %s207
          %210 = vsyncadd %s205, 0
          %s211 = smul.addr %s18, 8
          %s212 = smul.addr %s211, 8
          %s213 = scalar_lea.hbm %s4, %s212
          %s214 = sshll.u32 %s213, 4
          %s215 = int_to_ptr.hbm [resolvable:$true] %s214
          %s216 = sshll.u32 %s208, 4
          %s217 = int_to_ptr.vmem [resolvable:$true] %s216
          %222 = dma.hbm_to_vmem [thread:$0]  %s215, 1024, %s217, %s205, 128, 128, 8
        $region36: #{en_block_forward.5} parent=27 // pred_fallthru
          _
      $region28: #{en_block_forward.5} parent=5 // pred_fallthru
        _
      %p223 = scmp.le.s32.totalorder 1, %s18
      %p224 = scmp.lt.s32.totalorder %s18, 3
      %p225 = pnand %p223, %p224
      %p226 = pneg %p225
      // Predicated region
      $region37: #{en_block_forward.5} parent=5 // pred_check
        _
      $region38: #{en_block_forward.5} parent=5 // pred_check_branch
        %228 = sbr.rel (%p225) target = $region40
      $region39: #{en_block_forward.5} parent=5 // pred_region
        %s229 = ssub.s32 %s18, 1
        // Predicated region
        $region41: #{en_block_forward.5} parent=39 // pred_check
          %p230 = pneg %p39
        $region42: #{en_block_forward.5} parent=39 // pred_check_branch
          %232 = sbr.rel (%p230) target = $region44
        $region43: #{en_block_forward.5} parent=39 // pred_region
          %234 = dma.done [#allocation5], 16
        $region44: #{en_block_forward.5} parent=39 // pred_fallthru
          _
        %s235 = sand.u32 %s120, 1
        %s236 = scalar_lea.sflag [#allocation3], %s235
        %s237 = sand.u32 %s120, 1
        %s238 = smul.addr %s237, 64
        %s239 = scalar_lea.vmem [#allocation6], %s238
        // Predicated region
        $region45: #{en_block_forward.5} parent=39 // pred_check
          %p240 = pneg %p133
        $region46: #{en_block_forward.5} parent=39 // pred_check_branch
          %242 = sbr.rel (%p240) target = $region48
        $region47: #{en_block_forward.5} parent=39 // pred_region
          %244 = dma.done %s236, 1024
        $region48: #{en_block_forward.5} parent=39 // pred_fallthru
          _
        %245 = sfence
        %p246 = pneg %p39
        %p247 = pneg %p36
        %p248 = scmp.lt.s32.totalorder %s23, 1
        %s249 = scalar_select %p248, %s23, 1
        %s250 = smul.addr %s249, 8
        %s251 = scalar_lea.vmem %s1, %s250
        %p252 = pneg %p65
        %p253 = pneg %p62
        %p254 = pneg %p86
        %p255 = pneg %p83
        %p256 = pneg %p107
        %p257 = pneg %p104
        %s258 = sand.u32 %s120, 1
        %s259 = scalar_lea.sflag [#allocation3], %s258
        %s260 = sand.u32 %s120, 1
        %s261 = smul.addr %s260, 64
        %s262 = scalar_lea.vmem [#allocation6], %s261
        %p263 = pneg %p133
        %p264 = pneg %p130
        %p265 = pneg %p159
        %p266 = pneg %p156
        %s267 = sand.u32 %s146, 1
        %s268 = scalar_lea.sflag [#allocation4], %s267
        %s269 = sand.u32 %s146, 1
        %s270 = smul.addr %s269, 64
        %s271 = scalar_lea.vmem [#allocation7], %s270
        %p272 = scmp.lt.s32.totalorder %s23, 1
        %s273 = scalar_select %p272, %s23, 1
        %s274 = smul.addr %s273, 8
        %s275 = scalar_lea.vmem %s1, %s274
        %v276 = vld [vmem:[%s275] sm:$0xff]
        %v277 = vld [vmem:[%s3] sm:$0x3]
        %vm278 = vcmask 15360
        %v280 = vsel %vm278, %v276, 0
        %vm282 = vcmask 1041408
        %v284 = vsel %vm282, %v277, 0
        %286 = vmatpush.msra.mxu0 0.0
        %287 = vmatpush.msra.mxu0 0.0
        %288 = vmatpush.msra.mxu0 0.0
        %289 = vmatpush.msra.mxu0 0.0
        %290 = vmatpush.msra.mxu0 0.0
        %291 = vmatpush.msra.mxu0 0.0
        %292 = vmatpush.msra.mxu0 0.0
        %293 = vmatpush.msra.mxu0 0.0
        %294 = vmatpush.msra.mxu0 0.0
        %295 = vmatpush.msra.mxu0 0.0
        %296 = vmatpush.msra.mxu0 0.0
        %297 = vmatpush.msra.mxu0 0.0
        %298 = vmatpush.msra.mxu0 0.0
        %299 = vmatpush.msra.mxu0 0.0
        %300 = vmatpush.msra.mxu0 0.0
        %301 = vmatpush.msra.mxu0 %v284
        %302 = vmatmul.f32.gmra.mxu0 %v280
        %v303 = vpop.f32.mrf.mxu0
        %v304 = vadd.f32 0.0, %v303
        %305 = vdwg.mxu0
        %v306 = vld [vmem:[%s2] sm:$0xff]
        %v307 = vld [vmem:[%s2 + $0x8] sm:$0xff]
        %s308 = sld [smem:[#allocation2]]
        %v309 = vstv %s308
        %v311 = vsel %vm278, %v306, 0
        %v314 = vsel %vm278, %v307, 0
        %v317 = vsel %vm282, %v304, 0
        %319 = vmatpush.msra.mxu0 0.0
        %320 = vmatpush.msra.mxu0 0.0
        %321 = vmatpush.msra.mxu0 0.0
        %322 = vmatpush.msra.mxu0 0.0
        %323 = vmatpush.msra.mxu0 0.0
        %324 = vmatpush.msra.mxu0 0.0
        %325 = vmatpush.msra.mxu0 0.0
        %326 = vmatpush.msra.mxu0 0.0
        %327 = vmatpush.msra.mxu0 0.0
        %328 = vmatpush.msra.mxu0 0.0
        %329 = vmatpush.msra.mxu0 0.0
        %330 = vmatpush.msra.mxu0 0.0
        %331 = vmatpush.msra.mxu0 0.0
        %332 = vmatpush.msra.mxu0 0.0
        %333 = vmatpush.msra.mxu0 0.0
        %334 = vmatpush.msra.mxu0 %v317
        %335 = vmatmul.f32.gmra.mxu0 %v311
        %v336 = vpop.f32.mrf.mxu0
        %v337 = vadd.f32 %v309, %v336
        %338 = vmatmul.f32.gmra.mxu0 %v314
        %v339 = vpop.f32.mrf.mxu0
        %v340 = vadd.f32 %v309, %v339
        %341 = vdwg.mxu0
        %v342 = vld [vmem:[%s239] sm:$0xff]
        %v343 = vld [vmem:[%s239 + $0x8] sm:$0xff]
        %v344 = vadd.f32 %v337, %v342
        %v345 = vadd.f32 %v340, %v343
        %vm346 = vcmask 130048
        %347 = vst.msk [vmem:[%s271] sm:$0xff] %vm346, %v344
        %348 = vst.msk [vmem:[%s271 + $0x8] sm:$0xff] %vm346, %v345
        %s349 = sld [smem:[#allocation2 + $0x1]]
        %v350 = vstv %s349
        %v351 = vrot.slane %v304, 2
        %v352 = vsel %vm282, %v351, 0
        %354 = vmatpush.msra.mxu0 0.0
        %355 = vmatpush.msra.mxu0 0.0
        %356 = vmatpush.msra.mxu0 0.0
        %357 = vmatpush.msra.mxu0 0.0
        %358 = vmatpush.msra.mxu0 0.0
        %359 = vmatpush.msra.mxu0 0.0
        %360 = vmatpush.msra.mxu0 0.0
        %361 = vmatpush.msra.mxu0 0.0
        %362 = vmatpush.msra.mxu0 0.0
        %363 = vmatpush.msra.mxu0 0.0
        %364 = vmatpush.msra.mxu0 0.0
        %365 = vmatpush.msra.mxu0 0.0
        %366 = vmatpush.msra.mxu0 0.0
        %367 = vmatpush.msra.mxu0 0.0
        %368 = vmatpush.msra.mxu0 0.0
        %369 = vmatpush.msra.mxu0 %v352
        %370 = vmatmul.f32.gmra.mxu0 %v311
        %v371 = vpop.f32.mrf.mxu0
        %v372 = vadd.f32 %v350, %v371
        %373 = vmatmul.f32.gmra.mxu0 %v314
        %v374 = vpop.f32.mrf.mxu0
        %v375 = vadd.f32 %v350, %v374
        %376 = vdwg.mxu0
        %s377 = scalar_lea.vmem %s239, 16 [#allocation6]
        %v378 = vld [vmem:[%s377] sm:$0xff]
        %v379 = vld [vmem:[%s377 + $0x8] sm:$0xff]
        %v380 = vadd.f32 %v372, %v378
        %v381 = vadd.f32 %v375, %v379
        %s382 = scalar_lea.vmem %s271, 16 [#allocation7]
        %383 = vst.msk [vmem:[%s382] sm:$0xff] %vm346, %v380
        %384 = vst.msk [vmem:[%s382 + $0x8] sm:$0xff] %vm346, %v381
        %s385 = sld [smem:[#allocation2 + $0x2]]
        %v386 = vstv %s385
        %v387 = vrot.slane %v304, 4
        %v388 = vsel %vm282, %v387, 0
        %390 = vmatpush.msra.mxu0 0.0
        %391 = vmatpush.msra.mxu0 0.0
        %392 = vmatpush.msra.mxu0 0.0
        %393 = vmatpush.msra.mxu0 0.0
        %394 = vmatpush.msra.mxu0 0.0
        %395 = vmatpush.msra.mxu0 0.0
        %396 = vmatpush.msra.mxu0 0.0
        %397 = vmatpush.msra.mxu0 0.0
        %398 = vmatpush.msra.mxu0 0.0
        %399 = vmatpush.msra.mxu0 0.0
        %400 = vmatpush.msra.mxu0 0.0
        %401 = vmatpush.msra.mxu0 0.0
        %402 = vmatpush.msra.mxu0 0.0
        %403 = vmatpush.msra.mxu0 0.0
        %404 = vmatpush.msra.mxu0 0.0
        %405 = vmatpush.msra.mxu0 %v388
        %406 = vmatmul.f32.gmra.mxu0 %v311
        %v407 = vpop.f32.mrf.mxu0
        %v408 = vadd.f32 %v386, %v407
        %409 = vmatmul.f32.gmra.mxu0 %v314
        %v410 = vpop.f32.mrf.mxu0
        %v411 = vadd.f32 %v386, %v410
        %412 = vdwg.mxu0
        %s413 = scalar_lea.vmem %s239, 32 [#allocation6]
        %v414 = vld [vmem:[%s413] sm:$0xff]
        %v415 = vld [vmem:[%s413 + $0x8] sm:$0xff]
        %v416 = vadd.f32 %v408, %v414
        %v417 = vadd.f32 %v411, %v415
        %s418 = scalar_lea.vmem %s271, 32 [#allocation7]
        %419 = vst.msk [vmem:[%s418] sm:$0xff] %vm346, %v416
        %420 = vst.msk [vmem:[%s418 + $0x8] sm:$0xff] %vm346, %v417
        %s421 = sld [smem:[#allocation2 + $0x3]]
        %v422 = vstv %s421
        %v423 = vrot.slane %v304, 6
        %v424 = vsel %vm282, %v423, 0
        %426 = vmatpush.msra.mxu0 0.0
        %427 = vmatpush.msra.mxu0 0.0
        %428 = vmatpush.msra.mxu0 0.0
        %429 = vmatpush.msra.mxu0 0.0
        %430 = vmatpush.msra.mxu0 0.0
        %431 = vmatpush.msra.mxu0 0.0
        %432 = vmatpush.msra.mxu0 0.0
        %433 = vmatpush.msra.mxu0 0.0
        %434 = vmatpush.msra.mxu0 0.0
        %435 = vmatpush.msra.mxu0 0.0
        %436 = vmatpush.msra.mxu0 0.0
        %437 = vmatpush.msra.mxu0 0.0
        %438 = vmatpush.msra.mxu0 0.0
        %439 = vmatpush.msra.mxu0 0.0
        %440 = vmatpush.msra.mxu0 0.0
        %441 = vmatpush.msra.mxu0 %v424
        %442 = vmatmul.f32.gmra.mxu0 %v311
        %v443 = vpop.f32.mrf.mxu0
        %v444 = vadd.f32 %v422, %v443
        %445 = vmatmul.f32.gmra.mxu0 %v314
        %v446 = vpop.f32.mrf.mxu0
        %v447 = vadd.f32 %v422, %v446
        %448 = vdwg.mxu0
        %s449 = scalar_lea.vmem %s239, 48 [#allocation6]
        %v450 = vld [vmem:[%s449] sm:$0xff]
        %v451 = vld [vmem:[%s449 + $0x8] sm:$0xff]
        %v452 = vadd.f32 %v444, %v450
        %v453 = vadd.f32 %v447, %v451
        %s454 = scalar_lea.vmem %s271, 48 [#allocation7]
        %455 = vst.msk [vmem:[%s454] sm:$0xff] %vm346, %v452
        %456 = vst.msk [vmem:[%s454 + $0x8] sm:$0xff] %vm346, %v453
        %s457 = sand.u32 %s146, 1
        %s458 = scalar_lea.sflag [#allocation4], %s457
        %s459 = sand.u32 %s146, 1
        %s460 = smul.addr %s459, 64
        %s461 = scalar_lea.vmem [#allocation7], %s460
        // Predicated region
        $region49: #{en_block_forward.5} parent=39 // pred_check
          %p462 = pneg %p156
        $region50: #{en_block_forward.5} parent=39 // pred_check_branch
          %464 = sbr.rel (%p462) target = $region52
        $region51: #{en_block_forward.5} parent=39 // pred_region
          %466 = vsyncadd %s458, 0
          %s467 = smul.addr %s23, 8
          %s468 = smul.addr %s467, 8
          %s469 = scalar_lea.hbm %s5, %s468
          %s470 = sshll.u32 %s461, 4
          %s471 = int_to_ptr.vmem [resolvable:$true] %s470
          %s472 = sshll.u32 %s469, 4
          %s473 = int_to_ptr.hbm [resolvable:$true] %s472
          %478 = dma.vmem_to_hbm [thread:$0]  %s471, 1024, %s473, %s458, 128, 128, 8
        $region52: #{en_block_forward.5} parent=39 // pred_fallthru
          _
      $region40: #{en_block_forward.5} parent=5 // pred_fallthru
        _
      %p479 = scmp.le.s32.totalorder 2, %s18
      // Predicated region
      $region53: #{en_block_forward.5} parent=5 // pred_check
        %p480 = pneg %p479
      $region54: #{en_block_forward.5} parent=5 // pred_check_branch
        %482 = sbr.rel (%p480) target = $region56
      $region55: #{en_block_forward.5} parent=5 // pred_region
        %s483 = ssub.s32 %s18, 2
        // Predicated region
        $region57: #{en_block_forward.5} parent=55 // pred_check
          %p484 = pneg %p162
        $region58: #{en_block_forward.5} parent=55 // pred_check_branch
          %486 = sbr.rel (%p484) target = $region60
        $region59: #{en_block_forward.5} parent=55 // pred_region
          %s487 = sand.u32 %s147, 1
          %s488 = scalar_lea.sflag [#allocation4], %s487
          %s489 = sand.u32 %s147, 1
          %s490 = smul.addr %s489, 64
          %s491 = scalar_lea.vmem [#allocation7], %s490
          %493 = dma.done %s488, 1024
        $region60: #{en_block_forward.5} parent=55 // pred_fallthru
          _
      $region56: #{en_block_forward.5} parent=5 // pred_fallthru
        _
    $region6: #{en_block_forward.5} parent=1 // loop_footer
      %s22 = sadd.s32 1, %s18
    $region7: #{en_block_forward.5} parent=1 // loop_footer_branch
      %17 = sbr.rel target = $region3
    $region8: #{en_block_forward.5} parent=1 // loop_exit
      _
    %494 = vsyncpa [#allocation3], 1
    %s495 = scalar_lea.sflag [#allocation3], 1
    %496 = vsyncpa %s495, 1
    %497 = vsyncpa [#allocation4], 1
    %s498 = scalar_lea.sflag [#allocation4], 1
    %499 = vsyncpa %s498, 1
    %500 = vsyncpa [#allocation5], 1
    %s501 = scalar_lea.sflag [#allocation5], 1
    %502 = vsyncpa %s501, 1

// kernel: en_block_forward.4
$region0: #{en_block_forward.4}
  #allocation0 [shape = 'u32[]', space=smem, size = 0x4, offset = 0x4, fixed_abs, tag = 'smem constant byte address 0x4 - core index']
  #allocation1 [shape = 'u32[72,128]{1,0:T(1,128)}', space=vmem, size = 0x9000, scoped, tag = 'internal scratch']
  %s0 = inlined_call_operand.vmem [shape: f32[2,4,4], index: 0, kind: input, shape index: {}, may-alias: {0,1}]
  %s1 = inlined_call_operand.vmem [shape: f32[2,4,4], index: 1, kind: input, shape index: {}, may-alias: {0,1}]
  %s2 = inlined_call_operand.vmem [shape: f32[6,4], index: 2, kind: input, shape index: {}]
  %s3 = inlined_call_operand.vmem [shape: f32[6,1], index: 3, kind: input, shape index: {}]
  %s4 = inlined_call_operand.vmem [shape: f32[4,2], index: 4, kind: input, shape index: {}]
  %s5 = inlined_call_operand.vmem [shape: f32[2,4,4], index: 5, kind: output, shape index: {}]
  %s6 = sld [smem:[#allocation0]]
  $region57: #{en_block_forward.4} parent=0
    _
  %s8 = ssub.s32 1, %s6
  %s9 = scalar_select 0, %s8, %s6
  loop: start=0, step=1, limit=4
  $region2: #{en_block_forward.4} parent=0 // loop_pre_header
    _
  $region3: #{en_block_forward.4} parent=0 // loop_header
    %s11 = sphi 0, %s15
    %p12 = scmp.ge.s32.totalorder %s11, 4
    %s18 = sphi 0, %s30
    %s19 = sphi 0, %s26
    %s20 = sphi 0, %s18
    %s21 = sphi 0, %s19
    %s22 = sphi 0, %s20
    %s23 = sphi 0, %s21
    %s33 = sphi 0, %s35
    %s36 = sphi 0, %s33
    %s37 = sphi 0, %s36
    %s53 = sphi 0, %s37
    %s61 = sphi 0, %s63
    %s64 = sphi 0, %s61
    %s65 = sphi 0, %s64
    %s81 = sphi 0, %s65
    %s85 = sphi 0, %s85
    %s87 = sphi 0, %s85
    %s88 = sphi 0, %s87
    %s102 = sphi 0, %s88
    %s106 = sphi 0, %s106
    %s108 = sphi 0, %s106
    %s109 = sphi 0, %s108
    %s123 = sphi 0, %s109
    %s127 = sphi 0, %s127
    %s129 = sphi 0, %s127
    %s130 = sphi 0, %s129
    %s144 = sphi 0, %s130
    %s150 = sphi 0, %s152
    %s153 = sphi 0, %s150
    %s154 = sphi 0, %s153
    %s170 = sphi 0, %s154
  $region4: #{en_block_forward.4} parent=0 // loop_header_branch
    %14 = sbr.rel (%p12) target = $region8
  $region5: #{en_block_forward.4} parent=0 // loop_body
    %s16 = ssub.s32 %s11, 1
    %s17 = ssub.s32 %s11, 2
    %s24 = sadd.s32 1, %s19
    %p25 = scmp.ge.s32.totalorder %s24, 1
    %s26 = scalar_select %p25, 0, %s24
    %s27 = sadd.s32 1, %s18
    %s28 = scalar_select %p25, %s27, %s18
    %p29 = scmp.ge.s32.totalorder %s28, 2
    %s30 = scalar_select %p29, 0, %s28
    %s31 = ssub.s32 %s18, %s30
    %p32 = scmp.eq.s32.totalorder %s31, 0
    %s34 = sadd.s32 %s33, 1
    %s35 = scalar_select %p32, %s33, %s34
    %p38 = pneg %p32
    %p39 = scmp.eq.s32.totalorder %s11, 1
    %p40 = por %p38, %p39
    %p41 = scmp.ne.s32.totalorder %s33, %s36
    %p42 = scmp.eq.s32.totalorder %s11, 0
    %p43 = por %p41, %p42
    %p44 = scmp.ne.s32.totalorder %s33, %s36
    %p45 = scmp.eq.s32.totalorder %s16, 1
    %p46 = por %p44, %p45
    %p47 = scmp.ne.s32.totalorder %s36, %s37
    %p48 = scmp.eq.s32.totalorder %s16, 0
    %p49 = por %p47, %p48
    %p50 = scmp.ne.s32.totalorder %s36, %s37
    %p51 = scmp.eq.s32.totalorder %s17, 1
    %p52 = por %p50, %p51
    %p54 = scmp.ne.s32.totalorder %s37, %s53
    %p55 = scmp.eq.s32.totalorder %s17, 0
    %p56 = por %p54, %p55
    %s57 = ssub.s32 %s18, %s30
    %s58 = ssub.s32 %s19, %s26
    %s59 = sor.u32 %s57, %s58
    %p60 = scmp.eq.s32.totalorder %s59, 0
    %s62 = sadd.s32 %s61, 1
    %s63 = scalar_select %p60, %s61, %s62
    %p66 = pneg %p60
    %p67 = scmp.eq.s32.totalorder %s11, 1
    %p68 = por %p66, %p67
    %p69 = scmp.ne.s32.totalorder %s61, %s64
    %p70 = scmp.eq.s32.totalorder %s11, 0
    %p71 = por %p69, %p70
    %p72 = scmp.ne.s32.totalorder %s61, %s64
    %p73 = scmp.eq.s32.totalorder %s16, 1
    %p74 = por %p72, %p73
    %p75 = scmp.ne.s32.totalorder %s64, %s65
    %p76 = scmp.eq.s32.totalorder %s16, 0
    %p77 = por %p75, %p76
    %p78 = scmp.ne.s32.totalorder %s64, %s65
    %p79 = scmp.eq.s32.totalorder %s17, 1
    %p80 = por %p78, %p79
    %p82 = scmp.ne.s32.totalorder %s65, %s81
    %p83 = scmp.eq.s32.totalorder %s17, 0
    %p84 = por %p82, %p83
    %s86 = sadd.s32 %s85, 1
    %p89 = scmp.eq.s32.totalorder %s11, 1
    %p90 = scmp.ne.s32.totalorder %s85, %s87
    %p91 = scmp.eq.s32.totalorder %s11, 0
    %p92 = por %p90, %p91
    %p93 = scmp.ne.s32.totalorder %s85, %s87
    %p94 = scmp.eq.s32.totalorder %s16, 1
    %p95 = por %p93, %p94
    %p96 = scmp.ne.s32.totalorder %s87, %s88
    %p97 = scmp.eq.s32.totalorder %s16, 0
    %p98 = por %p96, %p97
    %p99 = scmp.ne.s32.totalorder %s87, %s88
    %p100 = scmp.eq.s32.totalorder %s17, 1
    %p101 = por %p99, %p100
    %p103 = scmp.ne.s32.totalorder %s88, %s102
    %p104 = scmp.eq.s32.totalorder %s17, 0
    %p105 = por %p103, %p104
    %s107 = sadd.s32 %s106, 1
    %p110 = scmp.eq.s32.totalorder %s11, 1
    %p111 = scmp.ne.s32.totalorder %s106, %s108
    %p112 = scmp.eq.s32.totalorder %s11, 0
    %p113 = por %p111, %p112
    %p114 = scmp.ne.s32.totalorder %s106, %s108
    %p115 = scmp.eq.s32.totalorder %s16, 1
    %p116 = por %p114, %p115
    %p117 = scmp.ne.s32.totalorder %s108, %s109
    %p118 = scmp.eq.s32.totalorder %s16, 0
    %p119 = por %p117, %p118
    %p120 = scmp.ne.s32.totalorder %s108, %s109
    %p121 = scmp.eq.s32.totalorder %s17, 1
    %p122 = por %p120, %p121
    %p124 = scmp.ne.s32.totalorder %s109, %s123
    %p125 = scmp.eq.s32.totalorder %s17, 0
    %p126 = por %p124, %p125
    %s128 = sadd.s32 %s127, 1
    %p131 = scmp.eq.s32.totalorder %s11, 1
    %p132 = scmp.ne.s32.totalorder %s127, %s129
    %p133 = scmp.eq.s32.totalorder %s11, 0
    %p134 = por %p132, %p133
    %p135 = scmp.ne.s32.totalorder %s127, %s129
    %p136 = scmp.eq.s32.totalorder %s16, 1
    %p137 = por %p135, %p136
    %p138 = scmp.ne.s32.totalorder %s129, %s130
    %p139 = scmp.eq.s32.totalorder %s16, 0
    %p140 = por %p138, %p139
    %p141 = scmp.ne.s32.totalorder %s129, %s130
    %p142 = scmp.eq.s32.totalorder %s17, 1
    %p143 = por %p141, %p142
    %p145 = scmp.ne.s32.totalorder %s130, %s144
    %p146 = scmp.eq.s32.totalorder %s17, 0
    %p147 = por %p145, %p146
    %s148 = ssub.s32 %s18, %s30
    %p149 = scmp.eq.s32.totalorder %s148, 0
    %s151 = sadd.s32 %s150, 1
    %s152 = scalar_select %p149, %s150, %s151
    %p155 = pneg %p149
    %p156 = scmp.eq.s32.totalorder %s11, 1
    %p157 = por %p155, %p156
    %p158 = scmp.ne.s32.totalorder %s150, %s153
    %p159 = scmp.eq.s32.totalorder %s11, 0
    %p160 = por %p158, %p159
    %p161 = scmp.ne.s32.totalorder %s150, %s153
    %p162 = scmp.eq.s32.totalorder %s16, 1
    %p163 = por %p161, %p162
    %p164 = scmp.ne.s32.totalorder %s153, %s154
    %p165 = scmp.eq.s32.totalorder %s16, 0
    %p166 = por %p164, %p165
    %p167 = scmp.ne.s32.totalorder %s153, %s154
    %p168 = scmp.eq.s32.totalorder %s17, 1
    %p169 = por %p167, %p168
    %p171 = scmp.ne.s32.totalorder %s154, %s170
    %p172 = scmp.eq.s32.totalorder %s17, 0
    %p173 = por %p171, %p172
    %p174 = scmp.le.s32.totalorder 1, %s11
    %p175 = scmp.lt.s32.totalorder %s11, 3
    %p176 = pnand %p174, %p175
    %p177 = pneg %p176
    // Predicated region
    $region9: #{en_block_forward.4} parent=5 // pred_check
      _
    $region10: #{en_block_forward.4} parent=5 // pred_check_branch
      %179 = sbr.rel (%p176) target = $region12
    $region11: #{en_block_forward.4} parent=5 // pred_region
      %s180 = ssub.s32 %s11, 1
      // Predicated region
      $region13: #{en_block_forward.4} parent=11 // pred_check
        %p181 = pneg %p98
      $region14: #{en_block_forward.4} parent=11 // pred_check_branch
        %183 = sbr.rel (%p181) target = $region16
      $region15: #{en_block_forward.4} parent=11 // pred_region
        _
      $region16: #{en_block_forward.4} parent=11 // pred_fallthru
        _
      // Predicated region
      $region17: #{en_block_forward.4} parent=11 // pred_check
        %p184 = pneg %p119
      $region18: #{en_block_forward.4} parent=11 // pred_check_branch
        %186 = sbr.rel (%p184) target = $region20
      $region19: #{en_block_forward.4} parent=11 // pred_region
        _
      $region20: #{en_block_forward.4} parent=11 // pred_fallthru
        _
      // Predicated region
      $region21: #{en_block_forward.4} parent=11 // pred_check
        %p187 = pneg %p140
      $region22: #{en_block_forward.4} parent=11 // pred_check_branch
        %189 = sbr.rel (%p187) target = $region24
      $region23: #{en_block_forward.4} parent=11 // pred_region
        _
      $region24: #{en_block_forward.4} parent=11 // pred_fallthru
        _
    $region12: #{en_block_forward.4} parent=5 // pred_fallthru
      _
    %p190 = scmp.lt.s32.totalorder %s11, 2
    // Predicated region
    $region25: #{en_block_forward.4} parent=5 // pred_check
      %p191 = pneg %p190
    $region26: #{en_block_forward.4} parent=5 // pred_check_branch
      %193 = sbr.rel (%p191) target = $region28
    $region27: #{en_block_forward.4} parent=5 // pred_region
      // Predicated region
      $region29: #{en_block_forward.4} parent=27 // pred_check
        %p194 = pneg %p43
      $region30: #{en_block_forward.4} parent=27 // pred_check_branch
        %196 = sbr.rel (%p194) target = $region32
      $region31: #{en_block_forward.4} parent=27 // pred_region
        %p197 = scmp.lt.s32.totalorder %s18, 1
        %s198 = scalar_select %p197, %s18, 1
        %s199 = smul.addr %s198, 4
        %s200 = scalar_lea.vmem %s0, %s199
      $region32: #{en_block_forward.4} parent=27 // pred_fallthru
        _
      // Predicated region
      $region33: #{en_block_forward.4} parent=27 // pred_check
        %p201 = pneg %p71
      $region34: #{en_block_forward.4} parent=27 // pred_check_branch
        %203 = sbr.rel (%p201) target = $region36
      $region35: #{en_block_forward.4} parent=27 // pred_region
        %p204 = scmp.lt.s32.totalorder %s18, 1
        %s205 = scalar_select %p204, %s18, 1
        %p206 = scmp.lt.s32.totalorder %s19, 0
        %s207 = scalar_select %p206, %s19, 0
        %s208 = sadd.s32 %s207, %s205
        %s209 = smul.addr %s208, 4
        %s210 = scalar_lea.vmem %s1, %s209
      $region36: #{en_block_forward.4} parent=27 // pred_fallthru
        _
    $region28: #{en_block_forward.4} parent=5 // pred_fallthru
      _
    %p211 = scmp.le.s32.totalorder 1, %s11
    %p212 = scmp.lt.s32.totalorder %s11, 3
    %p213 = pnand %p211, %p212
    %p214 = pneg %p213
    // Predicated region
    $region37: #{en_block_forward.4} parent=5 // pred_check
      _
    $region38: #{en_block_forward.4} parent=5 // pred_check_branch
      %216 = sbr.rel (%p213) target = $region40
    $region39: #{en_block_forward.4} parent=5 // pred_region
      %s217 = ssub.s32 %s11, 1
      %p218 = scmp.lt.s32.totalorder %s20, 1
      %s219 = scalar_select %p218, %s20, 1
      %s220 = smul.addr %s219, 4
      %s221 = scalar_lea.vmem %s0, %s220
      %p222 = pneg %p49
      %p223 = pneg %p46
      %p224 = scmp.lt.s32.totalorder %s20, 1
      %s225 = scalar_select %p224, %s20, 1
      %p226 = scmp.lt.s32.totalorder %s21, 0
      %s227 = scalar_select %p226, %s21, 0
      %s228 = sadd.s32 %s227, %s225
      %s229 = smul.addr %s228, 4
      %s230 = scalar_lea.vmem %s1, %s229
      %p231 = pneg %p77
      %p232 = pneg %p74
      %p233 = pneg %p98
      %p234 = pneg %p95
      %p235 = pneg %p119
      %p236 = pneg %p116
      %p237 = pneg %p140
      %p238 = pneg %p137
      %p239 = pneg %p166
      %p240 = pneg %p163
      %p241 = scmp.lt.s32.totalorder %s20, 1
      %s242 = scalar_select %p241, %s20, 1
      %s243 = smul.addr %s242, 4
      %s244 = scalar_lea.vmem %s5, %s243
      %p245 = scmp.lt.s32.totalorder %s20, 1
      %s246 = scalar_select %p245, %s20, 1
      %s247 = smul.addr %s246, 4
      %s248 = scalar_lea.vmem %s0, %s247
      %p249 = scmp.lt.s32.totalorder %s20, 1
      %s250 = scalar_select %p249, %s20, 1
      %p251 = scmp.lt.s32.totalorder %s21, 0
      %s252 = scalar_select %p251, %s21, 0
      %s253 = sadd.s32 %s252, %s250
      %s254 = smul.addr %s253, 4
      %s255 = scalar_lea.vmem %s1, %s254
      %p256 = scmp.lt.s32.totalorder %s20, 1
      %s257 = scalar_select %p256, %s20, 1
      %s258 = smul.addr %s257, 4
      %s259 = scalar_lea.vmem %s5, %s258
      %p260 = scmp.eq.s32.totalorder %s21, 0
      // Predicated region
      $region41: #{en_block_forward.4} parent=39 // pred_check
        %p261 = pneg %p260
      $region42: #{en_block_forward.4} parent=39 // pred_check_branch
        %263 = sbr.rel (%p261) target = $region44
      $region43: #{en_block_forward.4} parent=39 // pred_region
        %vm264 = vcmask 27648
        %265 = vst.msk [vmem:[%s259] sm:$0xf] %vm264, 0.0
      $region44: #{en_block_forward.4} parent=39 // pred_fallthru
        _
      %v266 = vld [vmem:[%s248] sm:$0xf]
      %v267 = vld [vmem:[%s255] sm:$0xf]
      %v268 = vld [vmem:[%s2] sm:$0x3f]
      %v269 = vld [vmem:[%s3] sm:$0x3f]
      %271 = vset.pattern.permute.xlu0 0
      %272 = vperm.xlu0 %271, %v269
      %v273 = vpop.permute.xlu0 %272
      %vm275 = vcmask 31744
      %v277 = vsel %vm275, %v268, 0
      %vm279 = vcmask 1043456
      %v281 = vsel %vm279, %v266, 0
      %283 = vmatpush.msra.mxu0 0.0
      %284 = vmatpush.msra.mxu0 0.0
      %285 = vmatpush.msra.mxu0 0.0
      %286 = vmatpush.msra.mxu0 0.0
      %287 = vmatpush.msra.mxu0 0.0
      %288 = vmatpush.msra.mxu0 0.0
      %289 = vmatpush.msra.mxu0 0.0
      %290 = vmatpush.msra.mxu0 0.0
      %291 = vmatpush.msra.mxu0 0.0
      %292 = vmatpush.msra.mxu0 0.0
      %293 = vmatpush.msra.mxu0 0.0
      %294 = vmatpush.msra.mxu0 0.0
      %295 = vmatpush.msra.mxu0 0.0
      %296 = vmatpush.msra.mxu0 0.0
      %297 = vmatpush.msra.mxu0 0.0
      %298 = vmatpush.msra.mxu0 %v281
      %299 = vmatmul.f32.gmra.mxu0 %v277
      %v300 = vpop.f32.mrf.mxu0
      %v301 = vadd.f32 %v273, %v300
      %302 = vdwg.mxu0
      %v303 = vrot.slane %v268, 2
      %v304 = vrot.slane %v273, 2
      %v306 = vsel %vm275, %v303, 0
      %v309 = vsel %vm279, %v267, 0
      %311 = vmatpush.msra.mxu0 0.0
      %312 = vmatpush.msra.mxu0 0.0
      %313 = vmatpush.msra.mxu0 0.0
      %314 = vmatpush.msra.mxu0 0.0
      %315 = vmatpush.msra.mxu0 0.0
      %316 = vmatpush.msra.mxu0 0.0
      %317 = vmatpush.msra.mxu0 0.0
      %318 = vmatpush.msra.mxu0 0.0
      %319 = vmatpush.msra.mxu0 0.0
      %320 = vmatpush.msra.mxu0 0.0
      %321 = vmatpush.msra.mxu0 0.0
      %322 = vmatpush.msra.mxu0 0.0
      %323 = vmatpush.msra.mxu0 0.0
      %324 = vmatpush.msra.mxu0 0.0
      %325 = vmatpush.msra.mxu0 0.0
      %326 = vmatpush.msra.mxu0 %v309
      %327 = vmatmul.f32.gmra.mxu0 %v306
      %v328 = vpop.f32.mrf.mxu0
      %v329 = vadd.f32 %v304, %v328
      %330 = vdwg.mxu0
      %331 = vxpose.xlu0.b32.start [1/16] %v301, 128
      %332 = vxpose.xlu0.b32.cont [2/16] 0.0, 128
      %333 = vxpose.xlu0.b32.cont [3/16] 0.0, 128
      %334 = vxpose.xlu0.b32.cont [4/16] 0.0, 128
      %335 = vxpose.xlu0.b32.cont [5/16] 0.0, 128
      %336 = vxpose.xlu0.b32.cont [6/16] 0.0, 128
      %337 = vxpose.xlu0.b32.cont [7/16] 0.0, 128
      %338 = vxpose.xlu0.b32.cont [8/16] 0.0, 128
      %339 = vxpose.xlu0.b32.cont [9/16] 0.0, 128
      %340 = vxpose.xlu0.b32.cont [10/16] 0.0, 128
      %341 = vxpose.xlu0.b32.cont [11/16] 0.0, 128
      %342 = vxpose.xlu0.b32.cont [12/16] 0.0, 128
      %343 = vxpose.xlu0.b32.cont [13/16] 0.0, 128
      %344 = vxpose.xlu0.b32.cont [14/16] 0.0, 128
      %345 = vxpose.xlu0.b32.cont [15/16] 0.0, 128
      %346 = vxpose.xlu0.b32.end [16/16] 0.0, 128
      %v347 = vpop.trf.xlu0
      %v348 = vpop.trf.xlu0
      %v349 = vpop.trf.xlu0
      %v350 = vpop.trf.xlu0
      %v351 = vpop.trf.xlu0
      %v352 = vpop.trf.xlu0
      %v353 = vpop.trf.xlu0
      %v354 = vpop.trf.xlu0
      %v355 = vpop.trf.xlu0
      %v356 = vpop.trf.xlu0
      %v357 = vpop.trf.xlu0
      %v358 = vpop.trf.xlu0
      %v359 = vpop.trf.xlu0
      %v360 = vpop.trf.xlu0
      %v361 = vpop.trf.xlu0
      %v362 = vpop.trf.xlu0
      %vm363 = vcmask 15360
      %v365 = vsel %vm363, %v347, 0
      %vm367 = vcmask 1041408
      %v369 = vsel %vm367, %v329, 0
      %371 = vmatpush.msra.mxu0 0.0
      %372 = vmatpush.msra.mxu0 0.0
      %373 = vmatpush.msra.mxu0 0.0
      %374 = vmatpush.msra.mxu0 0.0
      %375 = vmatpush.msra.mxu0 0.0
      %376 = vmatpush.msra.mxu0 0.0
      %377 = vmatpush.msra.mxu0 0.0
      %378 = vmatpush.msra.mxu0 0.0
      %379 = vmatpush.msra.mxu0 0.0
      %380 = vmatpush.msra.mxu0 0.0
      %381 = vmatpush.msra.mxu0 0.0
      %382 = vmatpush.msra.mxu0 0.0
      %383 = vmatpush.msra.mxu0 0.0
      %384 = vmatpush.msra.mxu0 0.0
      %385 = vmatpush.msra.mxu0 0.0
      %386 = vmatpush.msra.mxu0 %v369
      %387 = vmatmul.f32.gmra.mxu0 %v365
      %v388 = vpop.f32.mrf.mxu0
      %v389 = vadd.f32 0.0, %v388
      %390 = vdwg.mxu0
      %vm391 = vcmask 27648
      %v392 = vsel %vm391, %v389, -inf
      %v393 = vrot.slane %v392, 4
      %v394 = vmax.f32 %v392, %v393
      %v395 = vrot.slane %v394, 2
      %v396 = vmax.f32 %v394, %v395
      %v397 = vrot.slane %v396, 1
      %v398 = vmax.f32 %v396, %v397
      %v399 = vsub.f32 %v389, %v398
      %v400 = vmul.f32 %v399, 1.442695
      %v401 = vpow.pop %v400
      %v402 = vsel %vm391, %v401, 0.0
      %v403 = vrot.slane %v402, 4
      %v404 = vadd.f32 %v402, %v403
      %v405 = vrot.slane %v404, 2
      %v406 = vadd.f32 %v404, %v405
      %v407 = vrot.slane %v406, 1
      %v408 = vadd.f32 %v406, %v407
      %v409 = vrcp.pop %v408
      %v410 = vmul.f32 %v401, %v409
      %v411 = vrot.slane %v329, 2
      %v412 = vsel %vm275, %v411, 0
      %v415 = vsel %vm275, %v410, 0
      %417 = vmatpush.xpose.msra.mxu0 0.0
      %418 = vmatpush.xpose.msra.mxu0 0.0
      %419 = vmatpush.xpose.msra.mxu0 0.0
      %420 = vmatpush.xpose.msra.mxu0 0.0
      %421 = vmatpush.xpose.msra.mxu0 0.0
      %422 = vmatpush.xpose.msra.mxu0 0.0
      %423 = vmatpush.xpose.msra.mxu0 0.0
      %424 = vmatpush.xpose.msra.mxu0 0.0
      %425 = vmatpush.xpose.msra.mxu0 0.0
      %426 = vmatpush.xpose.msra.mxu0 0.0
      %427 = vmatpush.xpose.msra.mxu0 0.0
      %428 = vmatpush.xpose.msra.mxu0 0.0
      %429 = vmatpush.xpose.msra.mxu0 0.0
      %430 = vmatpush.xpose.msra.mxu0 0.0
      %431 = vmatpush.xpose.msra.mxu0 0.0
      %432 = vmatpush.xpose.msra.mxu0 %v415
      %433 = vmatmul.f32.gmra.mxu0 %v412
      %v434 = vpop.f32.mrf.mxu0
      %v435 = vadd.f32 0.0, %v434
      %436 = vdwg.mxu0
      %v437 = vld [vmem:[%s259] sm:$0xf]
      %v438 = vld [vmem:[%s4] sm:$0xf]
      %v440 = vsel %vm363, %v438, 0
      %v443 = vsel %vm367, %v435, 0
      %445 = vmatpush.msra.mxu0 0.0
      %446 = vmatpush.msra.mxu0 0.0
      %447 = vmatpush.msra.mxu0 0.0
      %448 = vmatpush.msra.mxu0 0.0
      %449 = vmatpush.msra.mxu0 0.0
      %450 = vmatpush.msra.mxu0 0.0
      %451 = vmatpush.msra.mxu0 0.0
      %452 = vmatpush.msra.mxu0 0.0
      %453 = vmatpush.msra.mxu0 0.0
      %454 = vmatpush.msra.mxu0 0.0
      %455 = vmatpush.msra.mxu0 0.0
      %456 = vmatpush.msra.mxu0 0.0
      %457 = vmatpush.msra.mxu0 0.0
      %458 = vmatpush.msra.mxu0 0.0
      %459 = vmatpush.msra.mxu0 0.0
      %460 = vmatpush.msra.mxu0 %v443
      %461 = vmatmul.f32.gmra.mxu0 %v440
      %v462 = vpop.f32.mrf.mxu0
      %v463 = vadd.f32 0.0, %v462
      %464 = vdwg.mxu0
      %v465 = vadd.f32 %v437, %v463
      %466 = vst.msk [vmem:[%s259] sm:$0xf] %vm391, %v465
      %p467 = scmp.lt.s32.totalorder %s20, 1
      %s468 = scalar_select %p467, %s20, 1
      %s469 = smul.addr %s468, 4
      %s470 = scalar_lea.vmem %s5, %s469
      // Predicated region
      $region45: #{en_block_forward.4} parent=39 // pred_check
        %p471 = pneg %p163
      $region46: #{en_block_forward.4} parent=39 // pred_check_branch
        %473 = sbr.rel (%p471) target = $region48
      $region47: #{en_block_forward.4} parent=39 // pred_region
        _
      $region48: #{en_block_forward.4} parent=39 // pred_fallthru
        _
    $region40: #{en_block_forward.4} parent=5 // pred_fallthru
      _
    %p474 = scmp.le.s32.totalorder 2, %s11
    // Predicated region
    $region49: #{en_block_forward.4} parent=5 // pred_check
      %p475 = pneg %p474
    $region50: #{en_block_forward.4} parent=5 // pred_check_branch
      %477 = sbr.rel (%p475) target = $region52
    $region51: #{en_block_forward.4} parent=5 // pred_region
      %s478 = ssub.s32 %s11, 2
      // Predicated region
      $region53: #{en_block_forward.4} parent=51 // pred_check
        %p479 = pneg %p169
      $region54: #{en_block_forward.4} parent=51 // pred_check_branch
        %481 = sbr.rel (%p479) target = $region56
      $region55: #{en_block_forward.4} parent=51 // pred_region
        %p482 = scmp.lt.s32.totalorder %s22, 1
        %s483 = scalar_select %p482, %s22, 1
        %s484 = smul.addr %s483, 4
        %s485 = scalar_lea.vmem %s5, %s484
      $region56: #{en_block_forward.4} parent=51 // pred_fallthru
        _
    $region52: #{en_block_forward.4} parent=5 // pred_fallthru
      _
  $region6: #{en_block_forward.4} parent=0 // loop_footer
    %s15 = sadd.s32 1, %s11
  $region7: #{en_block_forward.4} parent=0 // loop_footer_branch
    %10 = sbr.rel target = $region3
  $region8: #{en_block_forward.4} parent=0 // loop_exit
    _

// kernel: en_block_forward.3
$region0: #{en_block_forward.3}
  #allocation0 [shape = 'u32[]', space=smem, size = 0x4, offset = 0x4, fixed_abs, tag = 'smem constant byte address 0x4 - core index']
  #allocation1 [shape = 'u32[72,128]{1,0:T(1,128)}', space=vmem, size = 0x9000, scoped, tag = 'internal scratch']
  #allocation2 [shape = 'f32[4,26,26]{2,1,0:T(8,128)}', space=vmem, size = 0x10000, scoped, tag = 'scratch operand']
  #allocation3 [shape = 'f32[72,16,16]{2,1,0:T(8,128)}', space=vmem, size = 0x90000, scoped, tag = 'scratch operand']
  %s0 = inlined_call_operand.vmem [shape: f32[8,72], index: 0, kind: input, shape index: {}]
  %s1 = inlined_call_operand.vmem [shape: f32[8,1], index: 1, kind: input, shape index: {}]
  %s2 = inlined_call_operand.hbm [shape: f32[2,4,16,16], index: 2, kind: input, shape index: {}]
  %s3 = inlined_call_operand.hbm [shape: f32[2,4,16,16], index: 3, kind: output, shape index: {0}]
  %s4 = inlined_call_operand.hbm [shape: f32[2,4,16,16], index: 4, kind: output, shape index: {1}]
  %s5 = inlined_call_operand.vmem [shape: f32[2,4,2,2], index: 5, kind: output, shape index: {2}]
  %6 = xla_tuple %s3, %s4, %s5
  %s7 = sld [smem:[#allocation0]]
  $region65: #{en_block_forward.3} parent=0
    _
  %s9 = ssub.s32 1, %s7
  %s10 = scalar_select 0, %s9, %s7
  $region1: #{en_block_forward.3} parent=0
    #allocation4 [shape = 'u8[65536]{0}', space=vmem, size = 0x10000, scoped, tag = 'input window, operand 2']
    #allocation5 [shape = 's32[2]{0}', space=sflag, size = 0x8, scoped, tag = 'scoped memory for en_block_forward.3']
    #allocation6 [shape = 's32[2]{0}', space=sflag, size = 0x8, scoped, tag = 'scoped memory for en_block_forward.3']
    #allocation7 [shape = 'u8[65536]{0}', space=vmem, size = 0x10000, scoped, tag = 'output window, operand 0']
    #allocation8 [shape = 'u8[65536]{0}', space=vmem, size = 0x10000, scoped, tag = 'output window, operand 1']
    #allocation9 [shape = 's32[2]{0}', space=sflag, size = 0x8, scoped, tag = 'scoped memory for en_block_forward.3']
    %11 = vsyncpa [#allocation5], 0
    %s12 = scalar_lea.sflag [#allocation5], 1
    %13 = vsyncpa %s12, 0
    %14 = vsyncpa [#allocation6], 0
    %s15 = scalar_lea.sflag [#allocation6], 1
    %16 = vsyncpa %s15, 0
    %17 = vsyncpa [#allocation9], 0
    %s18 = scalar_lea.sflag [#allocation9], 1
    %19 = vsyncpa %s18, 0
    loop: start=0, step=1, limit=4
    $region2: #{en_block_forward.3} parent=1 // loop_pre_header
      _
    $region3: #{en_block_forward.3} parent=1 // loop_header
      %s21 = sphi 0, %s25
      %p22 = scmp.ge.s32.totalorder %s21, 4
      %s29 = sphi 0, %s29
      %s31 = sphi 0, %s29
      %s32 = sphi 0, %s31
      %s46 = sphi 0, %s32
      %s50 = sphi 0, %s50
      %s52 = sphi 0, %s50
      %s53 = sphi 0, %s52
      %s67 = sphi 0, %s53
      %s73 = sphi 0, %s75
      %s76 = sphi 0, %s73
      %s77 = sphi 0, %s76
      %s93 = sphi 0, %s77
      %s99 = sphi 0, %s101
      %s102 = sphi 0, %s99
      %s103 = sphi 0, %s102
      %s119 = sphi 0, %s103
      %s125 = sphi 0, %s127
      %s128 = sphi 0, %s125
      %s129 = sphi 0, %s128
      %s145 = sphi 0, %s129
      %s151 = sphi 0, %s153
      %s154 = sphi 0, %s151
      %s155 = sphi 0, %s154
      %s171 = sphi 0, %s155
    $region4: #{en_block_forward.3} parent=1 // loop_header_branch
      %24 = sbr.rel (%p22) target = $region8
    $region5: #{en_block_forward.3} parent=1 // loop_body
      %s26 = ssub.s32 %s21, 1
      %s27 = ssub.s32 %s21, 2
      %s28 = sadd.s32 %s21, 1
      %s30 = sadd.s32 %s29, 1
      %p33 = scmp.eq.s32.totalorder %s21, 1
      %p34 = scmp.ne.s32.totalorder %s29, %s31
      %p35 = scmp.eq.s32.totalorder %s21, 0
      %p36 = por %p34, %p35
      %p37 = scmp.ne.s32.totalorder %s29, %s31
      %p38 = scmp.eq.s32.totalorder %s26, 1
      %p39 = por %p37, %p38
      %p40 = scmp.ne.s32.totalorder %s31, %s32
      %p41 = scmp.eq.s32.totalorder %s26, 0
      %p42 = por %p40, %p41
      %p43 = scmp.ne.s32.totalorder %s31, %s32
      %p44 = scmp.eq.s32.totalorder %s27, 1
      %p45 = por %p43, %p44
      %p47 = scmp.ne.s32.totalorder %s32, %s46
      %p48 = scmp.eq.s32.totalorder %s27, 0
      %p49 = por %p47, %p48
      %s51 = sadd.s32 %s50, 1
      %p54 = scmp.eq.s32.totalorder %s21, 1
      %p55 = scmp.ne.s32.totalorder %s50, %s52
      %p56 = scmp.eq.s32.totalorder %s21, 0
      %p57 = por %p55, %p56
      %p58 = scmp.ne.s32.totalorder %s50, %s52
      %p59 = scmp.eq.s32.totalorder %s26, 1
      %p60 = por %p58, %p59
      %p61 = scmp.ne.s32.totalorder %s52, %s53
      %p62 = scmp.eq.s32.totalorder %s26, 0
      %p63 = por %p61, %p62
      %p64 = scmp.ne.s32.totalorder %s52, %s53
      %p65 = scmp.eq.s32.totalorder %s27, 1
      %p66 = por %p64, %p65
      %p68 = scmp.ne.s32.totalorder %s53, %s67
      %p69 = scmp.eq.s32.totalorder %s27, 0
      %p70 = por %p68, %p69
      %s71 = ssub.s32 %s21, %s28
      %p72 = scmp.eq.s32.totalorder %s71, 0
      %s74 = sadd.s32 %s73, 1
      %s75 = scalar_select %p72, %s73, %s74
      %p78 = pneg %p72
      %p79 = scmp.eq.s32.totalorder %s21, 1
      %p80 = por %p78, %p79
      %p81 = scmp.ne.s32.totalorder %s73, %s76
      %p82 = scmp.eq.s32.totalorder %s21, 0
      %p83 = por %p81, %p82
      %p84 = scmp.ne.s32.totalorder %s73, %s76
      %p85 = scmp.eq.s32.totalorder %s26, 1
      %p86 = por %p84, %p85
      %p87 = scmp.ne.s32.totalorder %s76, %s77
      %p88 = scmp.eq.s32.totalorder %s26, 0
      %p89 = por %p87, %p88
      %p90 = scmp.ne.s32.totalorder %s76, %s77
      %p91 = scmp.eq.s32.totalorder %s27, 1
      %p92 = por %p90, %p91
      %p94 = scmp.ne.s32.totalorder %s77, %s93
      %p95 = scmp.eq.s32.totalorder %s27, 0
      %p96 = por %p94, %p95
      %s97 = ssub.s32 %s21, %s28
      %p98 = scmp.eq.s32.totalorder %s97, 0
      %s100 = sadd.s32 %s99, 1
      %s101 = scalar_select %p98, %s99, %s100
      %p104 = pneg %p98
      %p105 = scmp.eq.s32.totalorder %s21, 1
      %p106 = por %p104, %p105
      %p107 = scmp.ne.s32.totalorder %s99, %s102
      %p108 = scmp.eq.s32.totalorder %s21, 0
      %p109 = por %p107, %p108
      %p110 = scmp.ne.s32.totalorder %s99, %s102
      %p111 = scmp.eq.s32.totalorder %s26, 1
      %p112 = por %p110, %p111
      %p113 = scmp.ne.s32.totalorder %s102, %s103
      %p114 = scmp.eq.s32.totalorder %s26, 0
      %p115 = por %p113, %p114
      %p116 = scmp.ne.s32.totalorder %s102, %s103
      %p117 = scmp.eq.s32.totalorder %s27, 1
      %p118 = por %p116, %p117
      %p120 = scmp.ne.s32.totalorder %s103, %s119
      %p121 = scmp.eq.s32.totalorder %s27, 0
      %p122 = por %p120, %p121
      %s123 = ssub.s32 %s21, %s28
      %p124 = scmp.eq.s32.totalorder %s123, 0
      %s126 = sadd.s32 %s125, 1
      %s127 = scalar_select %p124, %s125, %s126
      %p130 = pneg %p124
      %p131 = scmp.eq.s32.totalorder %s21, 1
      %p132 = por %p130, %p131
      %p133 = scmp.ne.s32.totalorder %s125, %s128
      %p134 = scmp.eq.s32.totalorder %s21, 0
      %p135 = por %p133, %p134
      %p136 = scmp.ne.s32.totalorder %s125, %s128
      %p137 = scmp.eq.s32.totalorder %s26, 1
      %p138 = por %p136, %p137
      %p139 = scmp.ne.s32.totalorder %s128, %s129
      %p140 = scmp.eq.s32.totalorder %s26, 0
      %p141 = por %p139, %p140
      %p142 = scmp.ne.s32.totalorder %s128, %s129
      %p143 = scmp.eq.s32.totalorder %s27, 1
      %p144 = por %p142, %p143
      %p146 = scmp.ne.s32.totalorder %s129, %s145
      %p147 = scmp.eq.s32.totalorder %s27, 0
      %p148 = por %p146, %p147
      %s149 = ssub.s32 %s21, %s28
      %p150 = scmp.eq.s32.totalorder %s149, 0
      %s152 = sadd.s32 %s151, 1
      %s153 = scalar_select %p150, %s151, %s152
      %p156 = pneg %p150
      %p157 = scmp.eq.s32.totalorder %s21, 1
      %p158 = por %p156, %p157
      %p159 = scmp.ne.s32.totalorder %s151, %s154
      %p160 = scmp.eq.s32.totalorder %s21, 0
      %p161 = por %p159, %p160
      %p162 = scmp.ne.s32.totalorder %s151, %s154
      %p163 = scmp.eq.s32.totalorder %s26, 1
      %p164 = por %p162, %p163
      %p165 = scmp.ne.s32.totalorder %s154, %s155
      %p166 = scmp.eq.s32.totalorder %s26, 0
      %p167 = por %p165, %p166
      %p168 = scmp.ne.s32.totalorder %s154, %s155
      %p169 = scmp.eq.s32.totalorder %s27, 1
      %p170 = por %p168, %p169
      %p172 = scmp.ne.s32.totalorder %s155, %s171
      %p173 = scmp.eq.s32.totalorder %s27, 0
      %p174 = por %p172, %p173
      %p175 = scmp.le.s32.totalorder 1, %s21
      %p176 = scmp.lt.s32.totalorder %s21, 3
      %p177 = pnand %p175, %p176
      %p178 = pneg %p177
      // Predicated region
      $region9: #{en_block_forward.3} parent=5 // pred_check
        _
      $region10: #{en_block_forward.3} parent=5 // pred_check_branch
        %180 = sbr.rel (%p177) target = $region12
      $region11: #{en_block_forward.3} parent=5 // pred_region
        %s181 = ssub.s32 %s21, 1
        // Predicated region
        $region13: #{en_block_forward.3} parent=11 // pred_check
          %p182 = pneg %p42
        $region14: #{en_block_forward.3} parent=11 // pred_check_branch
          %184 = sbr.rel (%p182) target = $region16
        $region15: #{en_block_forward.3} parent=11 // pred_region
          _
        $region16: #{en_block_forward.3} parent=11 // pred_fallthru
          _
        // Predicated region
        $region17: #{en_block_forward.3} parent=11 // pred_check
          %p185 = pneg %p63
        $region18: #{en_block_forward.3} parent=11 // pred_check_branch
          %187 = sbr.rel (%p185) target = $region20
        $region19: #{en_block_forward.3} parent=11 // pred_region
          _
        $region20: #{en_block_forward.3} parent=11 // pred_fallthru
          _
      $region12: #{en_block_forward.3} parent=5 // pred_fallthru
        _
      %p188 = scmp.lt.s32.totalorder %s21, 2
      // Predicated region
      $region21: #{en_block_forward.3} parent=5 // pred_check
        %p189 = pneg %p188
      $region22: #{en_block_forward.3} parent=5 // pred_check_branch
        %191 = sbr.rel (%p189) target = $region24
      $region23: #{en_block_forward.3} parent=5 // pred_region
        // Predicated region
        $region25: #{en_block_forward.3} parent=23 // pred_check
          %p192 = pneg %p83
        $region26: #{en_block_forward.3} parent=23 // pred_check_branch
          %194 = sbr.rel (%p192) target = $region28
        $region27: #{en_block_forward.3} parent=23 // pred_region
          %s195 = sand.u32 %s73, 1
          %s196 = scalar_lea.sflag [#allocation5], %s195
          %s197 = sand.u32 %s73, 1
          %s198 = smul.addr %s197, 64
          %s199 = scalar_lea.vmem [#allocation4], %s198
          %201 = vsyncadd %s196, 0
          %s202 = smul.addr %s21, 8
          %s203 = smul.addr %s202, 8
          %s204 = scalar_lea.hbm %s2, %s203
          %s205 = sshll.u32 %s204, 4
          %s206 = int_to_ptr.hbm [resolvable:$true] %s205
          %s207 = sshll.u32 %s199, 4
          %s208 = int_to_ptr.vmem [resolvable:$true] %s207
          %213 = dma.hbm_to_vmem [thread:$0]  %s206, 1024, %s208, %s196, 128, 128, 8
        $region28: #{en_block_forward.3} parent=23 // pred_fallthru
          _
      $region24: #{en_block_forward.3} parent=5 // pred_fallthru
        _
      %p214 = scmp.le.s32.totalorder 1, %s21
      %p215 = scmp.lt.s32.totalorder %s21, 3
      %p216 = pnand %p214, %p215
      %p217 = pneg %p216
      // Predicated region
      $region29: #{en_block_forward.3} parent=5 // pred_check
        _
      $region30: #{en_block_forward.3} parent=5 // pred_check_branch
        %219 = sbr.rel (%p216) target = $region32
      $region31: #{en_block_forward.3} parent=5 // pred_region
        %s220 = ssub.s32 %s21, 1
        %s221 = sand.u32 %s76, 1
        %s222 = scalar_lea.sflag [#allocation5], %s221
        %s223 = sand.u32 %s76, 1
        %s224 = smul.addr %s223, 64
        %s225 = scalar_lea.vmem [#allocation4], %s224
        // Predicated region
        $region33: #{en_block_forward.3} parent=31 // pred_check
          %p226 = pneg %p89
        $region34: #{en_block_forward.3} parent=31 // pred_check_branch
          %228 = sbr.rel (%p226) target = $region36
        $region35: #{en_block_forward.3} parent=31 // pred_region
          %230 = dma.done %s222, 1024
        $region36: #{en_block_forward.3} parent=31 // pred_fallthru
          _
        %p231 = pneg %p42
        %p232 = pneg %p39
        %p233 = pneg %p63
        %p234 = pneg %p60
        %s235 = sand.u32 %s76, 1
        %s236 = scalar_lea.sflag [#allocation5], %s235
        %s237 = sand.u32 %s76, 1
        %s238 = smul.addr %s237, 64
        %s239 = scalar_lea.vmem [#allocation4], %s238
        %p240 = pneg %p89
        %p241 = pneg %p86
        %p242 = pneg %p115
        %p243 = pneg %p112
        %s244 = sand.u32 %s102, 1
        %s245 = scalar_lea.sflag [#allocation6], %s244
        %s246 = sand.u32 %s102, 1
        %s247 = smul.addr %s246, 64
        %s248 = scalar_lea.vmem [#allocation7], %s247
        %p249 = pneg %p141
        %p250 = pneg %p138
        %s251 = sand.u32 %s128, 1
        %s252 = scalar_lea.sflag [#allocation9], %s251
        %s253 = sand.u32 %s128, 1
        %s254 = smul.addr %s253, 64
        %s255 = scalar_lea.vmem [#allocation8], %s254
        %p256 = pneg %p167
        %p257 = pneg %p164
        %p258 = scmp.lt.s32.totalorder %s26, 1
        %s259 = scalar_select %p258, %s26, 1
        %s260 = smul.addr %s259, 4
        %s261 = smul.addr %s260, 2
        %s262 = scalar_lea.vmem %s5, %s261
        %p263 = scmp.lt.s32.totalorder %s26, 1
        %s264 = scalar_select %p263, %s26, 1
        %s265 = smul.addr %s264, 4
        %s266 = smul.addr %s265, 2
        %s267 = scalar_lea.vmem %s5, %s266
        %v268 = vld [vmem:[%s225] sm:$0xff]
        %v269 = vld [vmem:[%s225 + $0x8] sm:$0xff]
        %v270 = vld [vmem:[%s225 + $0x10] sm:$0xff]
        %v271 = vld [vmem:[%s225 + $0x18] sm:$0xff]
        %v272 = vld [vmem:[%s225 + $0x20] sm:$0xff]
        %v273 = vld [vmem:[%s225 + $0x28] sm:$0xff]
        %v274 = vld [vmem:[%s225 + $0x30] sm:$0xff]
        %v275 = vld [vmem:[%s225 + $0x38] sm:$0xff]
        %vm276 = vcmask 208896
        %277 = vst.msk [vmem:[#allocation2] sm:$0x1f] %vm276, 0.0
        %278 = vst.msk [vmem:[#allocation2 + $0x20] sm:$0x1f] %vm276, 0.0
        %279 = vst.msk [vmem:[#allocation2 + $0x40] sm:$0x1f] %vm276, 0.0
        %280 = vst.msk [vmem:[#allocation2 + $0x60] sm:$0x1f] %vm276, 0.0
        %281 = vst.msk [vmem:[#allocation2 + $0x15] sm:$0x1f] %vm276, 0.0
        %282 = vst.msk [vmem:[#allocation2 + $0x35] sm:$0x1f] %vm276, 0.0
        %283 = vst.msk [vmem:[#allocation2 + $0x55] sm:$0x1f] %vm276, 0.0
        %284 = vst.msk [vmem:[#allocation2 + $0x75] sm:$0x1f] %vm276, 0.0
        %vm285 = vcmask 39936
        %286 = vst.msk [vmem:[#allocation2 + $0x5] sm:$0xff] %vm285, 0.0
        %287 = vst.msk [vmem:[#allocation2 + $0xd] sm:$0xff] %vm285, 0.0
        %288 = vst.msk [vmem:[#allocation2 + $0x25] sm:$0xff] %vm285, 0.0
        %289 = vst.msk [vmem:[#allocation2 + $0x2d] sm:$0xff] %vm285, 0.0
        %290 = vst.msk [vmem:[#allocation2 + $0x45] sm:$0xff] %vm285, 0.0
        %291 = vst.msk [vmem:[#allocation2 + $0x4d] sm:$0xff] %vm285, 0.0
        %292 = vst.msk [vmem:[#allocation2 + $0x65] sm:$0xff] %vm285, 0.0
        %293 = vst.msk [vmem:[#allocation2 + $0x6d] sm:$0xff] %vm285, 0.0
        %vm294 = vcmask 212136
        %295 = vst.msk [vmem:[#allocation2 + $0x5] sm:$0xff] %vm294, 0.0
        %296 = vst.msk [vmem:[#allocation2 + $0xd] sm:$0xff] %vm294, 0.0
        %297 = vst.msk [vmem:[#allocation2 + $0x25] sm:$0xff] %vm294, 0.0
        %298 = vst.msk [vmem:[#allocation2 + $0x2d] sm:$0xff] %vm294, 0.0
        %299 = vst.msk [vmem:[#allocation2 + $0x45] sm:$0xff] %vm294, 0.0
        %300 = vst.msk [vmem:[#allocation2 + $0x4d] sm:$0xff] %vm294, 0.0
        %301 = vst.msk [vmem:[#allocation2 + $0x65] sm:$0xff] %vm294, 0.0
        %302 = vst.msk [vmem:[#allocation2 + $0x6d] sm:$0xff] %vm294, 0.0
        %311 = vrot.lane.b32.xlu0 %v268, 5
        %v312 = vpop.permute.xlu0 %311
        %313 = vrot.lane.b32.xlu0 %v269, 5
        %v314 = vpop.permute.xlu0 %313
        %315 = vrot.lane.b32.xlu0 %v270, 5
        %v316 = vpop.permute.xlu0 %315
        %317 = vrot.lane.b32.xlu0 %v271, 5
        %v318 = vpop.permute.xlu0 %317
        %319 = vrot.lane.b32.xlu0 %v272, 5
        %v320 = vpop.permute.xlu0 %319
        %321 = vrot.lane.b32.xlu0 %v273, 5
        %v322 = vpop.permute.xlu0 %321
        %323 = vrot.lane.b32.xlu0 %v274, 5
        %v324 = vpop.permute.xlu0 %323
        %325 = vrot.lane.b32.xlu0 %v275, 5
        %v326 = vpop.permute.xlu0 %325
        %vm335 = vcmask 171048
        %336 = vst.msk [vmem:[#allocation2 + $0x5] sm:$0xff] %vm335, %v312
        %337 = vst.msk [vmem:[#allocation2 + $0xd] sm:$0xff] %vm335, %v314
        %338 = vst.msk [vmem:[#allocation2 + $0x25] sm:$0xff] %vm335, %v316
        %339 = vst.msk [vmem:[#allocation2 + $0x2d] sm:$0xff] %vm335, %v318
        %340 = vst.msk [vmem:[#allocation2 + $0x45] sm:$0xff] %vm335, %v320
        %341 = vst.msk [vmem:[#allocation2 + $0x4d] sm:$0xff] %vm335, %v322
        %342 = vst.msk [vmem:[#allocation2 + $0x65] sm:$0xff] %vm335, %v324
        %343 = vst.msk [vmem:[#allocation2 + $0x6d] sm:$0xff] %vm335, %v326
        %v344 = vld [vmem:[#allocation2 + $0x4] sm:$0xff]
        %v345 = vld [vmem:[#allocation2 + $0xc] sm:$0xff]
        %348 = vrot.lane.b32.xlu0 %v344, 124
        %v349 = vpop.permute.xlu0 %348
        %350 = vrot.lane.b32.xlu0 %v345, 124
        %v351 = vpop.permute.xlu0 %350
        %vm354 = vcmask 130048
        %355 = vst.msk [vmem:[#allocation3] sm:$0xff] %vm354, %v349
        %356 = vst.msk [vmem:[#allocation3 + $0x8] sm:$0xff] %vm354, %v351
        %v357 = vld [vmem:[#allocation2] sm:$0xff]
        %v358 = vld [vmem:[#allocation2 + $0x8] sm:$0xff]
        %s359 = scalar_lea.vmem [#allocation3], 576
        %360 = vst.msk [vmem:[%s359] sm:$0xff] %vm354, %v357
        %361 = vst.msk [vmem:[%s359 + $0x8] sm:$0xff] %vm354, %v358
        %s362 = scalar_lea.vmem [#allocation2], 32
        %v363 = vld [vmem:[%s362 + $0x4] sm:$0xff]
        %v364 = vld [vmem:[%s362 + $0xc] sm:$0xff]
        %367 = vrot.lane.b32.xlu0 %v363, 124
        %v368 = vpop.permute.xlu0 %367
        %369 = vrot.lane.b32.xlu0 %v364, 124
        %v370 = vpop.permute.xlu0 %369
        %s373 = scalar_lea.vmem [#allocation3], 16
        %374 = vst.msk [vmem:[%s373] sm:$0xff] %vm354, %v368
        %375 = vst.msk [vmem:[%s373 + $0x8] sm:$0xff] %vm354, %v370
        %v376 = vld [vmem:[%s362] sm:$0xff]
        %v377 = vld [vmem:[%s362 + $0x8] sm:$0xff]
        %s378 = scalar_lea.vmem [#allocation3], 592
        %379 = vst.msk [vmem:[%s378] sm:$0xff] %vm354, %v376
        %380 = vst.msk [vmem:[%s378 + $0x8] sm:$0xff] %vm354, %v377
        %s381 = scalar_lea.vmem [#allocation2], 64
        %v382 = vld [vmem:[%s381 + $0x4] sm:$0xff]
        %v383 = vld [vmem:[%s381 + $0xc] sm:$0xff]
        %386 = vrot.lane.b32.xlu0 %v382, 124
        %v387 = vpop.permute.xlu0 %386
        %388 = vrot.lane.b32.xlu0 %v383, 124
        %v389 = vpop.permute.xlu0 %388
        %s392 = scalar_lea.vmem [#allocation3], 32
        %393 = vst.msk [vmem:[%s392] sm:$0xff] %vm354, %v387
        %394 = vst.msk [vmem:[%s392 + $0x8] sm:$0xff] %vm354, %v389
        %v395 = vld [vmem:[%s381] sm:$0xff]
        %v396 = vld [vmem:[%s381 + $0x8] sm:$0xff]
        %s397 = scalar_lea.vmem [#allocation3], 608
        %398 = vst.msk [vmem:[%s397] sm:$0xff] %vm354, %v395
        %399 = vst.msk [vmem:[%s397 + $0x8] sm:$0xff] %vm354, %v396
        %s400 = scalar_lea.vmem [#allocation2], 96
        %v401 = vld [vmem:[%s400 + $0x4] sm:$0xff]
        %v402 = vld [vmem:[%s400 + $0xc] sm:$0xff]
        %405 = vrot.lane.b32.xlu0 %v401, 124
        %v406 = vpop.permute.xlu0 %405
        %407 = vrot.lane.b32.xlu0 %v402, 124
        %v408 = vpop.permute.xlu0 %407
        %s411 = scalar_lea.vmem [#allocation3], 48
        %412 = vst.msk [vmem:[%s411] sm:$0xff] %vm354, %v406
        %413 = vst.msk [vmem:[%s411 + $0x8] sm:$0xff] %vm354, %v408
        %v414 = vld [vmem:[%s400] sm:$0xff]
        %v415 = vld [vmem:[%s400 + $0x8] sm:$0xff]
        %s416 = scalar_lea.vmem [#allocation3], 624
        %417 = vst.msk [vmem:[%s416] sm:$0xff] %vm354, %v414
        %418 = vst.msk [vmem:[%s416 + $0x8] sm:$0xff] %vm354, %v415
        %v419 = vld [vmem:[#allocation2 + $0x4] sm:$0xff]
        %v420 = vld [vmem:[#allocation2 + $0xc] sm:$0xff]
        %423 = vrot.lane.b32.xlu0 %v419, 123
        %v424 = vpop.permute.xlu0 %423
        %425 = vrot.lane.b32.xlu0 %v420, 123
        %v426 = vpop.permute.xlu0 %425
        %s429 = scalar_lea.vmem [#allocation3], 64
        %430 = vst.msk [vmem:[%s429] sm:$0xff] %vm354, %v424
        %431 = vst.msk [vmem:[%s429 + $0x8] sm:$0xff] %vm354, %v426
        %v432 = vld [vmem:[#allocation2] sm:$0xff]
        %v433 = vld [vmem:[#allocation2 + $0x8] sm:$0xff]
        %436 = vrot.lane.b32.xlu0 %v432, 123
        %v437 = vpop.permute.xlu0 %436
        %438 = vrot.lane.b32.xlu0 %v433, 123
        %v439 = vpop.permute.xlu0 %438
        %s442 = scalar_lea.vmem [#allocation3], 640
        %443 = vst.msk [vmem:[%s442] sm:$0xff] %vm354, %v437
        %444 = vst.msk [vmem:[%s442 + $0x8] sm:$0xff] %vm354, %v439
        %v445 = vld [vmem:[%s362 + $0x4] sm:$0xff]
        %v446 = vld [vmem:[%s362 + $0xc] sm:$0xff]
        %449 = vrot.lane.b32.xlu0 %v445, 123
        %v450 = vpop.permute.xlu0 %449
        %451 = vrot.lane.b32.xlu0 %v446, 123
        %v452 = vpop.permute.xlu0 %451
        %s455 = scalar_lea.vmem [#allocation3], 80
        %456 = vst.msk [vmem:[%s455] sm:$0xff] %vm354, %v450
        %457 = vst.msk [vmem:[%s455 + $0x8] sm:$0xff] %vm354, %v452
        %v458 = vld [vmem:[%s362] sm:$0xff]
        %v459 = vld [vmem:[%s362 + $0x8] sm:$0xff]
        %462 = vrot.lane.b32.xlu0 %v458, 123
        %v463 = vpop.permute.xlu0 %462
        %464 = vrot.lane.b32.xlu0 %v459, 123
        %v465 = vpop.permute.xlu0 %464
        %s468 = scalar_lea.vmem [#allocation3], 656
        %469 = vst.msk [vmem:[%s468] sm:$0xff] %vm354, %v463
        %470 = vst.msk [vmem:[%s468 + $0x8] sm:$0xff] %vm354, %v465
        %v471 = vld [vmem:[%s381 + $0x4] sm:$0xff]
        %v472 = vld [vmem:[%s381 + $0xc] sm:$0xff]
        %475 = vrot.lane.b32.xlu0 %v471, 123
        %v476 = vpop.permute.xlu0 %475
        %477 = vrot.lane.b32.xlu0 %v472, 123
        %v478 = vpop.permute.xlu0 %477
        %s481 = scalar_lea.vmem [#allocation3], 96
        %482 = vst.msk [vmem:[%s481] sm:$0xff] %vm354, %v476
        %483 = vst.msk [vmem:[%s481 + $0x8] sm:$0xff] %vm354, %v478
        %v484 = vld [vmem:[%s381] sm:$0xff]
        %v485 = vld [vmem:[%s381 + $0x8] sm:$0xff]
        %488 = vrot.lane.b32.xlu0 %v484, 123
        %v489 = vpop.permute.xlu0 %488
        %490 = vrot.lane.b32.xlu0 %v485, 123
        %v491 = vpop.permute.xlu0 %490
        %s494 = scalar_lea.vmem [#allocation3], 672
        %495 = vst.msk [vmem:[%s494] sm:$0xff] %vm354, %v489
        %496 = vst.msk [vmem:[%s494 + $0x8] sm:$0xff] %vm354, %v491
        %v497 = vld [vmem:[%s400 + $0x4] sm:$0xff]
        %v498 = vld [vmem:[%s400 + $0xc] sm:$0xff]
        %501 = vrot.lane.b32.xlu0 %v497, 123
        %v502 = vpop.permute.xlu0 %501
        %503 = vrot.lane.b32.xlu0 %v498, 123
        %v504 = vpop.permute.xlu0 %503
        %s507 = scalar_lea.vmem [#allocation3], 112
        %508 = vst.msk [vmem:[%s507] sm:$0xff] %vm354, %v502
        %509 = vst.msk [vmem:[%s507 + $0x8] sm:$0xff] %vm354, %v504
        %v510 = vld [vmem:[%s400] sm:$0xff]
        %v511 = vld [vmem:[%s400 + $0x8] sm:$0xff]
        %514 = vrot.lane.b32.xlu0 %v510, 123
        %v515 = vpop.permute.xlu0 %514
        %516 = vrot.lane.b32.xlu0 %v511, 123
        %v517 = vpop.permute.xlu0 %516
        %s520 = scalar_lea.vmem [#allocation3], 688
        %521 = vst.msk [vmem:[%s520] sm:$0xff] %vm354, %v515
        %522 = vst.msk [vmem:[%s520 + $0x8] sm:$0xff] %vm354, %v517
        %v523 = vld [vmem:[#allocation2 + $0x4] sm:$0xff]
        %v524 = vld [vmem:[#allocation2 + $0xc] sm:$0xff]
        %527 = vrot.lane.b32.xlu0 %v523, 122
        %v528 = vpop.permute.xlu0 %527
        %529 = vrot.lane.b32.xlu0 %v524, 122
        %v530 = vpop.permute.xlu0 %529
        %s533 = scalar_lea.vmem [#allocation3], 128
        %534 = vst.msk [vmem:[%s533] sm:$0xff] %vm354, %v528
        %535 = vst.msk [vmem:[%s533 + $0x8] sm:$0xff] %vm354, %v530
        %v536 = vld [vmem:[#allocation2] sm:$0xff]
        %v537 = vld [vmem:[#allocation2 + $0x8] sm:$0xff]
        %540 = vrot.lane.b32.xlu0 %v536, 118
        %v541 = vpop.permute.xlu0 %540
        %542 = vrot.lane.b32.xlu0 %v537, 118
        %v543 = vpop.permute.xlu0 %542
        %s546 = scalar_lea.vmem [#allocation3], 704
        %547 = vst.msk [vmem:[%s546] sm:$0xff] %vm354, %v541
        %548 = vst.msk [vmem:[%s546 + $0x8] sm:$0xff] %vm354, %v543
        %v549 = vld [vmem:[%s362 + $0x4] sm:$0xff]
        %v550 = vld [vmem:[%s362 + $0xc] sm:$0xff]
        %553 = vrot.lane.b32.xlu0 %v549, 122
        %v554 = vpop.permute.xlu0 %553
        %555 = vrot.lane.b32.xlu0 %v550, 122
        %v556 = vpop.permute.xlu0 %555
        %s559 = scalar_lea.vmem [#allocation3], 144
        %560 = vst.msk [vmem:[%s559] sm:$0xff] %vm354, %v554
        %561 = vst.msk [vmem:[%s559 + $0x8] sm:$0xff] %vm354, %v556
        %v562 = vld [vmem:[%s362] sm:$0xff]
        %v563 = vld [vmem:[%s362 + $0x8] sm:$0xff]
        %566 = vrot.lane.b32.xlu0 %v562, 118
        %v567 = vpop.permute.xlu0 %566
        %568 = vrot.lane.b32.xlu0 %v563, 118
        %v569 = vpop.permute.xlu0 %568
        %s572 = scalar_lea.vmem [#allocation3], 720
        %573 = vst.msk [vmem:[%s572] sm:$0xff] %vm354, %v567
        %574 = vst.msk [vmem:[%s572 + $0x8] sm:$0xff] %vm354, %v569
        %v575 = vld [vmem:[%s381 + $0x4] sm:$0xff]
        %v576 = vld [vmem:[%s381 + $0xc] sm:$0xff]
        %579 = vrot.lane.b32.xlu0 %v575, 122
        %v580 = vpop.permute.xlu0 %579
        %581 = vrot.lane.b32.xlu0 %v576, 122
        %v582 = vpop.permute.xlu0 %581
        %s585 = scalar_lea.vmem [#allocation3], 160
        %586 = vst.msk [vmem:[%s585] sm:$0xff] %vm354, %v580
        %587 = vst.msk [vmem:[%s585 + $0x8] sm:$0xff] %vm354, %v582
        %v588 = vld [vmem:[%s381] sm:$0xff]
        %v589 = vld [vmem:[%s381 + $0x8] sm:$0xff]
        %592 = vrot.lane.b32.xlu0 %v588, 118
        %v593 = vpop.permute.xlu0 %592
        %594 = vrot.lane.b32.xlu0 %v589, 118
        %v595 = vpop.permute.xlu0 %594
        %s598 = scalar_lea.vmem [#allocation3], 736
        %599 = vst.msk [vmem:[%s598] sm:$0xff] %vm354, %v593
        %600 = vst.msk [vmem:[%s598 + $0x8] sm:$0xff] %vm354, %v595
        %v601 = vld [vmem:[%s400 + $0x4] sm:$0xff]
        %v602 = vld [vmem:[%s400 + $0xc] sm:$0xff]
        %605 = vrot.lane.b32.xlu0 %v601, 122
        %v606 = vpop.permute.xlu0 %605
        %607 = vrot.lane.b32.xlu0 %v602, 122
        %v608 = vpop.permute.xlu0 %607
        %s611 = scalar_lea.vmem [#allocation3], 176
        %612 = vst.msk [vmem:[%s611] sm:$0xff] %vm354, %v606
        %613 = vst.msk [vmem:[%s611 + $0x8] sm:$0xff] %vm354, %v608
        %v614 = vld [vmem:[%s400] sm:$0xff]
        %v615 = vld [vmem:[%s400 + $0x8] sm:$0xff]
        %618 = vrot.lane.b32.xlu0 %v614, 118
        %v619 = vpop.permute.xlu0 %618
        %620 = vrot.lane.b32.xlu0 %v615, 118
        %v621 = vpop.permute.xlu0 %620
        %s624 = scalar_lea.vmem [#allocation3], 752
        %625 = vst.msk [vmem:[%s624] sm:$0xff] %vm354, %v619
        %626 = vst.msk [vmem:[%s624 + $0x8] sm:$0xff] %vm354, %v621
        %v627 = vld [vmem:[#allocation2 + $0x5] sm:$0xff]
        %v628 = vld [vmem:[#allocation2 + $0xd] sm:$0xff]
        %631 = vrot.lane.b32.xlu0 %v627, 124
        %v632 = vpop.permute.xlu0 %631
        %633 = vrot.lane.b32.xlu0 %v628, 124
        %v634 = vpop.permute.xlu0 %633
        %s637 = scalar_lea.vmem [#allocation3], 192
        %638 = vst.msk [vmem:[%s637] sm:$0xff] %vm354, %v632
        %639 = vst.msk [vmem:[%s637 + $0x8] sm:$0xff] %vm354, %v634
        %v640 = vld [vmem:[#allocation2 + $0x5] sm:$0xff]
        %v641 = vld [vmem:[#allocation2 + $0xd] sm:$0xff]
        %s642 = scalar_lea.vmem [#allocation3], 768
        %643 = vst.msk [vmem:[%s642] sm:$0xff] %vm354, %v640
        %644 = vst.msk [vmem:[%s642 + $0x8] sm:$0xff] %vm354, %v641
        %v645 = vld [vmem:[%s362 + $0x5] sm:$0xff]
        %v646 = vld [vmem:[%s362 + $0xd] sm:$0xff]
        %649 = vrot.lane.b32.xlu0 %v645, 124
        %v650 = vpop.permute.xlu0 %649
        %651 = vrot.lane.b32.xlu0 %v646, 124
        %v652 = vpop.permute.xlu0 %651
        %s655 = scalar_lea.vmem [#allocation3], 208
        %656 = vst.msk [vmem:[%s655] sm:$0xff] %vm354, %v650
        %657 = vst.msk [vmem:[%s655 + $0x8] sm:$0xff] %vm354, %v652
        %v658 = vld [vmem:[%s362 + $0x5] sm:$0xff]
        %v659 = vld [vmem:[%s362 + $0xd] sm:$0xff]
        %s660 = scalar_lea.vmem [#allocation3], 784
        %661 = vst.msk [vmem:[%s660] sm:$0xff] %vm354, %v658
        %662 = vst.msk [vmem:[%s660 + $0x8] sm:$0xff] %vm354, %v659
        %v663 = vld [vmem:[%s381 + $0x5] sm:$0xff]
        %v664 = vld [vmem:[%s381 + $0xd] sm:$0xff]
        %667 = vrot.lane.b32.xlu0 %v663, 124
        %v668 = vpop.permute.xlu0 %667
        %669 = vrot.lane.b32.xlu0 %v664, 124
        %v670 = vpop.permute.xlu0 %669
        %s673 = scalar_lea.vmem [#allocation3], 224
        %674 = vst.msk [vmem:[%s673] sm:$0xff] %vm354, %v668
        %675 = vst.msk [vmem:[%s673 + $0x8] sm:$0xff] %vm354, %v670
        %v676 = vld [vmem:[%s381 + $0x5] sm:$0xff]
        %v677 = vld [vmem:[%s381 + $0xd] sm:$0xff]
        %s678 = scalar_lea.vmem [#allocation3], 800
        %679 = vst.msk [vmem:[%s678] sm:$0xff] %vm354, %v676
        %680 = vst.msk [vmem:[%s678 + $0x8] sm:$0xff] %vm354, %v677
        %v681 = vld [vmem:[%s400 + $0x5] sm:$0xff]
        %v682 = vld [vmem:[%s400 + $0xd] sm:$0xff]
        %685 = vrot.lane.b32.xlu0 %v681, 124
        %v686 = vpop.permute.xlu0 %685
        %687 = vrot.lane.b32.xlu0 %v682, 124
        %v688 = vpop.permute.xlu0 %687
        %s691 = scalar_lea.vmem [#allocation3], 240
        %692 = vst.msk [vmem:[%s691] sm:$0xff] %vm354, %v686
        %693 = vst.msk [vmem:[%s691 + $0x8] sm:$0xff] %vm354, %v688
        %v694 = vld [vmem:[%s400 + $0x5] sm:$0xff]
        %v695 = vld [vmem:[%s400 + $0xd] sm:$0xff]
        %s696 = scalar_lea.vmem [#allocation3], 816
        %697 = vst.msk [vmem:[%s696] sm:$0xff] %vm354, %v694
        %698 = vst.msk [vmem:[%s696 + $0x8] sm:$0xff] %vm354, %v695
        %v699 = vld [vmem:[#allocation2 + $0x5] sm:$0xff]
        %v700 = vld [vmem:[#allocation2 + $0xd] sm:$0xff]
        %703 = vrot.lane.b32.xlu0 %v699, 123
        %v704 = vpop.permute.xlu0 %703
        %705 = vrot.lane.b32.xlu0 %v700, 123
        %v706 = vpop.permute.xlu0 %705
        %s709 = scalar_lea.vmem [#allocation3], 256
        %710 = vst.msk [vmem:[%s709] sm:$0xff] %vm354, %v704
        %711 = vst.msk [vmem:[%s709 + $0x8] sm:$0xff] %vm354, %v706
        %v712 = vld [vmem:[#allocation2 + $0x5] sm:$0xff]
        %v713 = vld [vmem:[#allocation2 + $0xd] sm:$0xff]
        %716 = vrot.lane.b32.xlu0 %v712, 123
        %v717 = vpop.permute.xlu0 %716
        %718 = vrot.lane.b32.xlu0 %v713, 123
        %v719 = vpop.permute.xlu0 %718
        %s722 = scalar_lea.vmem [#allocation3], 832
        %723 = vst.msk [vmem:[%s722] sm:$0xff] %vm354, %v717
        %724 = vst.msk [vmem:[%s722 + $0x8] sm:$0xff] %vm354, %v719
        %v725 = vld [vmem:[%s362 + $0x5] sm:$0xff]
        %v726 = vld [vmem:[%s362 + $0xd] sm:$0xff]
        %729 = vrot.lane.b32.xlu0 %v725, 123
        %v730 = vpop.permute.xlu0 %729
        %731 = vrot.lane.b32.xlu0 %v726, 123
        %v732 = vpop.permute.xlu0 %731
        %s735 = scalar_lea.vmem [#allocation3], 272
        %736 = vst.msk [vmem:[%s735] sm:$0xff] %vm354, %v730
        %737 = vst.msk [vmem:[%s735 + $0x8] sm:$0xff] %vm354, %v732
        %v738 = vld [vmem:[%s362 + $0x5] sm:$0xff]
        %v739 = vld [vmem:[%s362 + $0xd] sm:$0xff]
        %742 = vrot.lane.b32.xlu0 %v738, 123
        %v743 = vpop.permute.xlu0 %742
        %744 = vrot.lane.b32.xlu0 %v739, 123
        %v745 = vpop.permute.xlu0 %744
        %s748 = scalar_lea.vmem [#allocation3], 848
        %749 = vst.msk [vmem:[%s748] sm:$0xff] %vm354, %v743
        %750 = vst.msk [vmem:[%s748 + $0x8] sm:$0xff] %vm354, %v745
        %v751 = vld [vmem:[%s381 + $0x5] sm:$0xff]
        %v752 = vld [vmem:[%s381 + $0xd] sm:$0xff]
        %755 = vrot.lane.b32.xlu0 %v751, 123
        %v756 = vpop.permute.xlu0 %755
        %757 = vrot.lane.b32.xlu0 %v752, 123
        %v758 = vpop.permute.xlu0 %757
        %s761 = scalar_lea.vmem [#allocation3], 288
        %762 = vst.msk [vmem:[%s761] sm:$0xff] %vm354, %v756
        %763 = vst.msk [vmem:[%s761 + $0x8] sm:$0xff] %vm354, %v758
        %v764 = vld [vmem:[%s381 + $0x5] sm:$0xff]
        %v765 = vld [vmem:[%s381 + $0xd] sm:$0xff]
        %768 = vrot.lane.b32.xlu0 %v764, 123
        %v769 = vpop.permute.xlu0 %768
        %770 = vrot.lane.b32.xlu0 %v765, 123
        %v771 = vpop.permute.xlu0 %770
        %s774 = scalar_lea.vmem [#allocation3], 864
        %775 = vst.msk [vmem:[%s774] sm:$0xff] %vm354, %v769
        %776 = vst.msk [vmem:[%s774 + $0x8] sm:$0xff] %vm354, %v771
        %v777 = vld [vmem:[%s400 + $0x5] sm:$0xff]
        %v778 = vld [vmem:[%s400 + $0xd] sm:$0xff]
        %781 = vrot.lane.b32.xlu0 %v777, 123
        %v782 = vpop.permute.xlu0 %781
        %783 = vrot.lane.b32.xlu0 %v778, 123
        %v784 = vpop.permute.xlu0 %783
        %s787 = scalar_lea.vmem [#allocation3], 304
        %788 = vst.msk [vmem:[%s787] sm:$0xff] %vm354, %v782
        %789 = vst.msk [vmem:[%s787 + $0x8] sm:$0xff] %vm354, %v784
        %v790 = vld [vmem:[%s400 + $0x5] sm:$0xff]
        %v791 = vld [vmem:[%s400 + $0xd] sm:$0xff]
        %794 = vrot.lane.b32.xlu0 %v790, 123
        %v795 = vpop.permute.xlu0 %794
        %796 = vrot.lane.b32.xlu0 %v791, 123
        %v797 = vpop.permute.xlu0 %796
        %s800 = scalar_lea.vmem [#allocation3], 880
        %801 = vst.msk [vmem:[%s800] sm:$0xff] %vm354, %v795
        %802 = vst.msk [vmem:[%s800 + $0x8] sm:$0xff] %vm354, %v797
        %v803 = vld [vmem:[#allocation2 + $0x5] sm:$0xff]
        %v804 = vld [vmem:[#allocation2 + $0xd] sm:$0xff]
        %807 = vrot.lane.b32.xlu0 %v803, 122
        %v808 = vpop.permute.xlu0 %807
        %809 = vrot.lane.b32.xlu0 %v804, 122
        %v810 = vpop.permute.xlu0 %809
        %s813 = scalar_lea.vmem [#allocation3], 320
        %814 = vst.msk [vmem:[%s813] sm:$0xff] %vm354, %v808
        %815 = vst.msk [vmem:[%s813 + $0x8] sm:$0xff] %vm354, %v810
        %v816 = vld [vmem:[#allocation2 + $0x5] sm:$0xff]
        %v817 = vld [vmem:[#allocation2 + $0xd] sm:$0xff]
        %820 = vrot.lane.b32.xlu0 %v816, 118
        %v821 = vpop.permute.xlu0 %820
        %822 = vrot.lane.b32.xlu0 %v817, 118
        %v823 = vpop.permute.xlu0 %822
        %s826 = scalar_lea.vmem [#allocation3], 896
        %827 = vst.msk [vmem:[%s826] sm:$0xff] %vm354, %v821
        %828 = vst.msk [vmem:[%s826 + $0x8] sm:$0xff] %vm354, %v823
        %v829 = vld [vmem:[%s362 + $0x5] sm:$0xff]
        %v830 = vld [vmem:[%s362 + $0xd] sm:$0xff]
        %833 = vrot.lane.b32.xlu0 %v829, 122
        %v834 = vpop.permute.xlu0 %833
        %835 = vrot.lane.b32.xlu0 %v830, 122
        %v836 = vpop.permute.xlu0 %835
        %s839 = scalar_lea.vmem [#allocation3], 336
        %840 = vst.msk [vmem:[%s839] sm:$0xff] %vm354, %v834
        %841 = vst.msk [vmem:[%s839 + $0x8] sm:$0xff] %vm354, %v836
        %v842 = vld [vmem:[%s362 + $0x5] sm:$0xff]
        %v843 = vld [vmem:[%s362 + $0xd] sm:$0xff]
        %846 = vrot.lane.b32.xlu0 %v842, 118
        %v847 = vpop.permute.xlu0 %846
        %848 = vrot.lane.b32.xlu0 %v843, 118
        %v849 = vpop.permute.xlu0 %848
        %s852 = scalar_lea.vmem [#allocation3], 912
        %853 = vst.msk [vmem:[%s852] sm:$0xff] %vm354, %v847
        %854 = vst.msk [vmem:[%s852 + $0x8] sm:$0xff] %vm354, %v849
        %v855 = vld [vmem:[%s381 + $0x5] sm:$0xff]
        %v856 = vld [vmem:[%s381 + $0xd] sm:$0xff]
        %859 = vrot.lane.b32.xlu0 %v855, 122
        %v860 = vpop.permute.xlu0 %859
        %861 = vrot.lane.b32.xlu0 %v856, 122
        %v862 = vpop.permute.xlu0 %861
        %s865 = scalar_lea.vmem [#allocation3], 352
        %866 = vst.msk [vmem:[%s865] sm:$0xff] %vm354, %v860
        %867 = vst.msk [vmem:[%s865 + $0x8] sm:$0xff] %vm354, %v862
        %v868 = vld [vmem:[%s381 + $0x5] sm:$0xff]
        %v869 = vld [vmem:[%s381 + $0xd] sm:$0xff]
        %872 = vrot.lane.b32.xlu0 %v868, 118
        %v873 = vpop.permute.xlu0 %872
        %874 = vrot.lane.b32.xlu0 %v869, 118
        %v875 = vpop.permute.xlu0 %874
        %s878 = scalar_lea.vmem [#allocation3], 928
        %879 = vst.msk [vmem:[%s878] sm:$0xff] %vm354, %v873
        %880 = vst.msk [vmem:[%s878 + $0x8] sm:$0xff] %vm354, %v875
        %v881 = vld [vmem:[%s400 + $0x5] sm:$0xff]
        %v882 = vld [vmem:[%s400 + $0xd] sm:$0xff]
        %885 = vrot.lane.b32.xlu0 %v881, 122
        %v886 = vpop.permute.xlu0 %885
        %887 = vrot.lane.b32.xlu0 %v882, 122
        %v888 = vpop.permute.xlu0 %887
        %s891 = scalar_lea.vmem [#allocation3], 368
        %892 = vst.msk [vmem:[%s891] sm:$0xff] %vm354, %v886
        %893 = vst.msk [vmem:[%s891 + $0x8] sm:$0xff] %vm354, %v888
        %v894 = vld [vmem:[%s400 + $0x5] sm:$0xff]
        %v895 = vld [vmem:[%s400 + $0xd] sm:$0xff]
        %898 = vrot.lane.b32.xlu0 %v894, 118
        %v899 = vpop.permute.xlu0 %898
        %900 = vrot.lane.b32.xlu0 %v895, 118
        %v901 = vpop.permute.xlu0 %900
        %s904 = scalar_lea.vmem [#allocation3], 944
        %905 = vst.msk [vmem:[%s904] sm:$0xff] %vm354, %v899
        %906 = vst.msk [vmem:[%s904 + $0x8] sm:$0xff] %vm354, %v901
        %v907 = vld [vmem:[#allocation2 + $0x6] sm:$0xff]
        %v908 = vld [vmem:[#allocation2 + $0xe] sm:$0xff]
        %911 = vrot.lane.b32.xlu0 %v907, 124
        %v912 = vpop.permute.xlu0 %911
        %913 = vrot.lane.b32.xlu0 %v908, 124
        %v914 = vpop.permute.xlu0 %913
        %s917 = scalar_lea.vmem [#allocation3], 384
        %918 = vst.msk [vmem:[%s917] sm:$0xff] %vm354, %v912
        %919 = vst.msk [vmem:[%s917 + $0x8] sm:$0xff] %vm354, %v914
        %v920 = vld [vmem:[#allocation2 + $0xa] sm:$0xff]
        %v921 = vld [vmem:[#allocation2 + $0x12] sm:$0xff]
        %s922 = scalar_lea.vmem [#allocation3], 960
        %923 = vst.msk [vmem:[%s922] sm:$0xff] %vm354, %v920
        %924 = vst.msk [vmem:[%s922 + $0x8] sm:$0xff] %vm354, %v921
        %v925 = vld [vmem:[%s362 + $0x6] sm:$0xff]
        %v926 = vld [vmem:[%s362 + $0xe] sm:$0xff]
        %929 = vrot.lane.b32.xlu0 %v925, 124
        %v930 = vpop.permute.xlu0 %929
        %931 = vrot.lane.b32.xlu0 %v926, 124
        %v932 = vpop.permute.xlu0 %931
        %s935 = scalar_lea.vmem [#allocation3], 400
        %936 = vst.msk [vmem:[%s935] sm:$0xff] %vm354, %v930
        %937 = vst.msk [vmem:[%s935 + $0x8] sm:$0xff] %vm354, %v932
        %v938 = vld [vmem:[%s362 + $0xa] sm:$0xff]
        %v939 = vld [vmem:[%s362 + $0x12] sm:$0xff]
        %s940 = scalar_lea.vmem [#allocation3], 976
        %941 = vst.msk [vmem:[%s940] sm:$0xff] %vm354, %v938
        %942 = vst.msk [vmem:[%s940 + $0x8] sm:$0xff] %vm354, %v939
        %v943 = vld [vmem:[%s381 + $0x6] sm:$0xff]
        %v944 = vld [vmem:[%s381 + $0xe] sm:$0xff]
        %947 = vrot.lane.b32.xlu0 %v943, 124
        %v948 = vpop.permute.xlu0 %947
        %949 = vrot.lane.b32.xlu0 %v944, 124
        %v950 = vpop.permute.xlu0 %949
        %s953 = scalar_lea.vmem [#allocation3], 416
        %954 = vst.msk [vmem:[%s953] sm:$0xff] %vm354, %v948
        %955 = vst.msk [vmem:[%s953 + $0x8] sm:$0xff] %vm354, %v950
        %v956 = vld [vmem:[%s381 + $0xa] sm:$0xff]
        %v957 = vld [vmem:[%s381 + $0x12] sm:$0xff]
        %s958 = scalar_lea.vmem [#allocation3], 992
        %959 = vst.msk [vmem:[%s958] sm:$0xff] %vm354, %v956
        %960 = vst.msk [vmem:[%s958 + $0x8] sm:$0xff] %vm354, %v957
        %v961 = vld [vmem:[%s400 + $0x6] sm:$0xff]
        %v962 = vld [vmem:[%s400 + $0xe] sm:$0xff]
        %965 = vrot.lane.b32.xlu0 %v961, 124
        %v966 = vpop.permute.xlu0 %965
        %967 = vrot.lane.b32.xlu0 %v962, 124
        %v968 = vpop.permute.xlu0 %967
        %s971 = scalar_lea.vmem [#allocation3], 432
        %972 = vst.msk [vmem:[%s971] sm:$0xff] %vm354, %v966
        %973 = vst.msk [vmem:[%s971 + $0x8] sm:$0xff] %vm354, %v968
        %v974 = vld [vmem:[%s400 + $0xa] sm:$0xff]
        %v975 = vld [vmem:[%s400 + $0x12] sm:$0xff]
        %s976 = scalar_lea.vmem [#allocation3], 1008
        %977 = vst.msk [vmem:[%s976] sm:$0xff] %vm354, %v974
        %978 = vst.msk [vmem:[%s976 + $0x8] sm:$0xff] %vm354, %v975
        %v979 = vld [vmem:[#allocation2 + $0x6] sm:$0xff]
        %v980 = vld [vmem:[#allocation2 + $0xe] sm:$0xff]
        %983 = vrot.lane.b32.xlu0 %v979, 123
        %v984 = vpop.permute.xlu0 %983
        %985 = vrot.lane.b32.xlu0 %v980, 123
        %v986 = vpop.permute.xlu0 %985
        %s989 = scalar_lea.vmem [#allocation3], 448
        %990 = vst.msk [vmem:[%s989] sm:$0xff] %vm354, %v984
        %991 = vst.msk [vmem:[%s989 + $0x8] sm:$0xff] %vm354, %v986
        %v992 = vld [vmem:[#allocation2 + $0xa] sm:$0xff]
        %v993 = vld [vmem:[#allocation2 + $0x12] sm:$0xff]
        %996 = vrot.lane.b32.xlu0 %v992, 123
        %v997 = vpop.permute.xlu0 %996
        %998 = vrot.lane.b32.xlu0 %v993, 123
        %v999 = vpop.permute.xlu0 %998
        %s1002 = scalar_lea.vmem [#allocation3], 1024
        %1003 = vst.msk [vmem:[%s1002] sm:$0xff] %vm354, %v997
        %1004 = vst.msk [vmem:[%s1002 + $0x8] sm:$0xff] %vm354, %v999
        %v1005 = vld [vmem:[%s362 + $0x6] sm:$0xff]
        %v1006 = vld [vmem:[%s362 + $0xe] sm:$0xff]
        %1009 = vrot.lane.b32.xlu0 %v1005, 123
        %v1010 = vpop.permute.xlu0 %1009
        %1011 = vrot.lane.b32.xlu0 %v1006, 123
        %v1012 = vpop.permute.xlu0 %1011
        %s1015 = scalar_lea.vmem [#allocation3], 464
        %1016 = vst.msk [vmem:[%s1015] sm:$0xff] %vm354, %v1010
        %1017 = vst.msk [vmem:[%s1015 + $0x8] sm:$0xff] %vm354, %v1012
        %v1018 = vld [vmem:[%s362 + $0xa] sm:$0xff]
        %v1019 = vld [vmem:[%s362 + $0x12] sm:$0xff]
        %1022 = vrot.lane.b32.xlu0 %v1018, 123
        %v1023 = vpop.permute.xlu0 %1022
        %1024 = vrot.lane.b32.xlu0 %v1019, 123
        %v1025 = vpop.permute.xlu0 %1024
        %s1028 = scalar_lea.vmem [#allocation3], 1040
        %1029 = vst.msk [vmem:[%s1028] sm:$0xff] %vm354, %v1023
        %1030 = vst.msk [vmem:[%s1028 + $0x8] sm:$0xff] %vm354, %v1025
        %v1031 = vld [vmem:[%s381 + $0x6] sm:$0xff]
        %v1032 = vld [vmem:[%s381 + $0xe] sm:$0xff]
        %1035 = vrot.lane.b32.xlu0 %v1031, 123
        %v1036 = vpop.permute.xlu0 %1035
        %1037 = vrot.lane.b32.xlu0 %v1032, 123
        %v1038 = vpop.permute.xlu0 %1037
        %s1041 = scalar_lea.vmem [#allocation3], 480
        %1042 = vst.msk [vmem:[%s1041] sm:$0xff] %vm354, %v1036
        %1043 = vst.msk [vmem:[%s1041 + $0x8] sm:$0xff] %vm354, %v1038
        %v1044 = vld [vmem:[%s381 + $0xa] sm:$0xff]
        %v1045 = vld [vmem:[%s381 + $0x12] sm:$0xff]
        %1048 = vrot.lane.b32.xlu0 %v1044, 123
        %v1049 = vpop.permute.xlu0 %1048
        %1050 = vrot.lane.b32.xlu0 %v1045, 123
        %v1051 = vpop.permute.xlu0 %1050
        %s1054 = scalar_lea.vmem [#allocation3], 1056
        %1055 = vst.msk [vmem:[%s1054] sm:$0xff] %vm354, %v1049
        %1056 = vst.msk [vmem:[%s1054 + $0x8] sm:$0xff] %vm354, %v1051
        %v1057 = vld [vmem:[%s400 + $0x6] sm:$0xff]
        %v1058 = vld [vmem:[%s400 + $0xe] sm:$0xff]
        %1061 = vrot.lane.b32.xlu0 %v1057, 123
        %v1062 = vpop.permute.xlu0 %1061
        %1063 = vrot.lane.b32.xlu0 %v1058, 123
        %v1064 = vpop.permute.xlu0 %1063
        %s1067 = scalar_lea.vmem [#allocation3], 496
        %1068 = vst.msk [vmem:[%s1067] sm:$0xff] %vm354, %v1062
        %1069 = vst.msk [vmem:[%s1067 + $0x8] sm:$0xff] %vm354, %v1064
        %v1070 = vld [vmem:[%s400 + $0xa] sm:$0xff]
        %v1071 = vld [vmem:[%s400 + $0x12] sm:$0xff]
        %1074 = vrot.lane.b32.xlu0 %v1070, 123
        %v1075 = vpop.permute.xlu0 %1074
        %1076 = vrot.lane.b32.xlu0 %v1071, 123
        %v1077 = vpop.permute.xlu0 %1076
        %s1080 = scalar_lea.vmem [#allocation3], 1072
        %1081 = vst.msk [vmem:[%s1080] sm:$0xff] %vm354, %v1075
        %1082 = vst.msk [vmem:[%s1080 + $0x8] sm:$0xff] %vm354, %v1077
        %v1083 = vld [vmem:[#allocation2 + $0x6] sm:$0xff]
        %v1084 = vld [vmem:[#allocation2 + $0xe] sm:$0xff]
        %1087 = vrot.lane.b32.xlu0 %v1083, 122
        %v1088 = vpop.permute.xlu0 %1087
        %1089 = vrot.lane.b32.xlu0 %v1084, 122
        %v1090 = vpop.permute.xlu0 %1089
        %s1093 = scalar_lea.vmem [#allocation3], 512
        %1094 = vst.msk [vmem:[%s1093] sm:$0xff] %vm354, %v1088
        %1095 = vst.msk [vmem:[%s1093 + $0x8] sm:$0xff] %vm354, %v1090
        %v1096 = vld [vmem:[#allocation2 + $0xa] sm:$0xff]
        %v1097 = vld [vmem:[#allocation2 + $0x12] sm:$0xff]
        %1100 = vrot.lane.b32.xlu0 %v1096, 118
        %v1101 = vpop.permute.xlu0 %1100
        %1102 = vrot.lane.b32.xlu0 %v1097, 118
        %v1103 = vpop.permute.xlu0 %1102
        %s1106 = scalar_lea.vmem [#allocation3], 1088
        %1107 = vst.msk [vmem:[%s1106] sm:$0xff] %vm354, %v1101
        %1108 = vst.msk [vmem:[%s1106 + $0x8] sm:$0xff] %vm354, %v1103
        %v1109 = vld [vmem:[%s362 + $0x6] sm:$0xff]
        %v1110 = vld [vmem:[%s362 + $0xe] sm:$0xff]
        %1113 = vrot.lane.b32.xlu0 %v1109, 122
        %v1114 = vpop.permute.xlu0 %1113
        %1115 = vrot.lane.b32.xlu0 %v1110, 122
        %v1116 = vpop.permute.xlu0 %1115
        %s1119 = scalar_lea.vmem [#allocation3], 528
        %1120 = vst.msk [vmem:[%s1119] sm:$0xff] %vm354, %v1114
        %1121 = vst.msk [vmem:[%s1119 + $0x8] sm:$0xff] %vm354, %v1116
        %v1122 = vld [vmem:[%s362 + $0xa] sm:$0xff]
        %v1123 = vld [vmem:[%s362 + $0x12] sm:$0xff]
        %1126 = vrot.lane.b32.xlu0 %v1122, 118
        %v1127 = vpop.permute.xlu0 %1126
        %1128 = vrot.lane.b32.xlu0 %v1123, 118
        %v1129 = vpop.permute.xlu0 %1128
        %s1132 = scalar_lea.vmem [#allocation3], 1104
        %1133 = vst.msk [vmem:[%s1132] sm:$0xff] %vm354, %v1127
        %1134 = vst.msk [vmem:[%s1132 + $0x8] sm:$0xff] %vm354, %v1129
        %v1135 = vld [vmem:[%s381 + $0x6] sm:$0xff]
        %v1136 = vld [vmem:[%s381 + $0xe] sm:$0xff]
        %1139 = vrot.lane.b32.xlu0 %v1135, 122
        %v1140 = vpop.permute.xlu0 %1139
        %1141 = vrot.lane.b32.xlu0 %v1136, 122
        %v1142 = vpop.permute.xlu0 %1141
        %s1145 = scalar_lea.vmem [#allocation3], 544
        %1146 = vst.msk [vmem:[%s1145] sm:$0xff] %vm354, %v1140
        %1147 = vst.msk [vmem:[%s1145 + $0x8] sm:$0xff] %vm354, %v1142
        %v1148 = vld [vmem:[%s381 + $0xa] sm:$0xff]
        %v1149 = vld [vmem:[%s381 + $0x12] sm:$0xff]
        %1152 = vrot.lane.b32.xlu0 %v1148, 118
        %v1153 = vpop.permute.xlu0 %1152
        %1154 = vrot.lane.b32.xlu0 %v1149, 118
        %v1155 = vpop.permute.xlu0 %1154
        %s1158 = scalar_lea.vmem [#allocation3], 1120
        %1159 = vst.msk [vmem:[%s1158] sm:$0xff] %vm354, %v1153
        %1160 = vst.msk [vmem:[%s1158 + $0x8] sm:$0xff] %vm354, %v1155
        %v1161 = vld [vmem:[%s400 + $0x6] sm:$0xff]
        %v1162 = vld [vmem:[%s400 + $0xe] sm:$0xff]
        %1165 = vrot.lane.b32.xlu0 %v1161, 122
        %v1166 = vpop.permute.xlu0 %1165
        %1167 = vrot.lane.b32.xlu0 %v1162, 122
        %v1168 = vpop.permute.xlu0 %1167
        %s1171 = scalar_lea.vmem [#allocation3], 560
        %1172 = vst.msk [vmem:[%s1171] sm:$0xff] %vm354, %v1166
        %1173 = vst.msk [vmem:[%s1171 + $0x8] sm:$0xff] %vm354, %v1168
        %v1174 = vld [vmem:[%s400 + $0xa] sm:$0xff]
        %v1175 = vld [vmem:[%s400 + $0x12] sm:$0xff]
        %1178 = vrot.lane.b32.xlu0 %v1174, 118
        %v1179 = vpop.permute.xlu0 %1178
        %1180 = vrot.lane.b32.xlu0 %v1175, 118
        %v1181 = vpop.permute.xlu0 %1180
        %s1184 = scalar_lea.vmem [#allocation3], 1136
        %1185 = vst.msk [vmem:[%s1184] sm:$0xff] %vm354, %v1179
        %1186 = vst.msk [vmem:[%s1184 + $0x8] sm:$0xff] %vm354, %v1181
        %v1187 = vld [vmem:[#allocation3] sm:$0xff]
        %v1188 = vld [vmem:[#allocation3 + $0x8] sm:$0xff]
        %v1189 = vld [vmem:[#allocation3 + $0x10] sm:$0xff]
        %v1190 = vld [vmem:[#allocation3 + $0x18] sm:$0xff]
        %v1191 = vld [vmem:[#allocation3 + $0x20] sm:$0xff]
        %v1192 = vld [vmem:[#allocation3 + $0x28] sm:$0xff]
        %v1193 = vld [vmem:[#allocation3 + $0x30] sm:$0xff]
        %v1194 = vld [vmem:[#allocation3 + $0x38] sm:$0xff]
        %v1195 = vld [vmem:[#allocation3 + $0x40] sm:$0xff]
        %v1196 = vld [vmem:[#allocation3 + $0x48] sm:$0xff]
        %v1197 = vld [vmem:[#allocation3 + $0x50] sm:$0xff]
        %v1198 = vld [vmem:[#allocation3 + $0x58] sm:$0xff]
        %v1199 = vld [vmem:[#allocation3 + $0x60] sm:$0xff]
        %v1200 = vld [vmem:[#allocation3 + $0x68] sm:$0xff]
        %v1201 = vld [vmem:[#allocation3 + $0x70] sm:$0xff]
        %v1202 = vld [vmem:[#allocation3 + $0x78] sm:$0xff]
        %v1203 = vld [vmem:[#allocation3 + $0x80] sm:$0xff]
        %v1204 = vld [vmem:[#allocation3 + $0x88] sm:$0xff]
        %v1205 = vld [vmem:[#allocation3 + $0x90] sm:$0xff]
        %v1206 = vld [vmem:[#allocation3 + $0x98] sm:$0xff]
        %v1207 = vld [vmem:[#allocation3 + $0xa0] sm:$0xff]
        %v1208 = vld [vmem:[#allocation3 + $0xa8] sm:$0xff]
        %v1209 = vld [vmem:[#allocation3 + $0xb0] sm:$0xff]
        %v1210 = vld [vmem:[#allocation3 + $0xb8] sm:$0xff]
        %v1211 = vld [vmem:[#allocation3 + $0xc0] sm:$0xff]
        %v1212 = vld [vmem:[#allocation3 + $0xc8] sm:$0xff]
        %v1213 = vld [vmem:[#allocation3 + $0xd0] sm:$0xff]
        %v1214 = vld [vmem:[#allocation3 + $0xd8] sm:$0xff]
        %v1215 = vld [vmem:[#allocation3 + $0xe0] sm:$0xff]
        %v1216 = vld [vmem:[#allocation3 + $0xe8] sm:$0xff]
        %v1217 = vld [vmem:[#allocation3 + $0xf0] sm:$0xff]
        %v1218 = vld [vmem:[#allocation3 + $0xf8] sm:$0xff]
        %v1219 = vld [vmem:[#allocation3 + $0x100] sm:$0xff]
        %v1220 = vld [vmem:[#allocation3 + $0x108] sm:$0xff]
        %v1221 = vld [vmem:[#allocation3 + $0x110] sm:$0xff]
        %v1222 = vld [vmem:[#allocation3 + $0x118] sm:$0xff]
        %v1223 = vld [vmem:[#allocation3 + $0x120] sm:$0xff]
        %v1224 = vld [vmem:[#allocation3 + $0x128] sm:$0xff]
        %v1225 = vld [vmem:[#allocation3 + $0x130] sm:$0xff]
        %v1226 = vld [vmem:[#allocation3 + $0x138] sm:$0xff]
        %v1227 = vld [vmem:[#allocation3 + $0x140] sm:$0xff]
        %v1228 = vld [vmem:[#allocation3 + $0x148] sm:$0xff]
        %v1229 = vld [vmem:[#allocation3 + $0x150] sm:$0xff]
        %v1230 = vld [vmem:[#allocation3 + $0x158] sm:$0xff]
        %v1231 = vld [vmem:[#allocation3 + $0x160] sm:$0xff]
        %v1232 = vld [vmem:[#allocation3 + $0x168] sm:$0xff]
        %v1233 = vld [vmem:[#allocation3 + $0x170] sm:$0xff]
        %v1234 = vld [vmem:[#allocation3 + $0x178] sm:$0xff]
        %v1235 = vld [vmem:[#allocation3 + $0x180] sm:$0xff]
        %v1236 = vld [vmem:[#allocation3 + $0x188] sm:$0xff]
        %v1237 = vld [vmem:[#allocation3 + $0x190] sm:$0xff]
        %v1238 = vld [vmem:[#allocation3 + $0x198] sm:$0xff]
        %v1239 = vld [vmem:[#allocation3 + $0x1a0] sm:$0xff]
        %v1240 = vld [vmem:[#allocation3 + $0x1a8] sm:$0xff]
        %v1241 = vld [vmem:[#allocation3 + $0x1b0] sm:$0xff]
        %v1242 = vld [vmem:[#allocation3 + $0x1b8] sm:$0xff]
        %v1243 = vld [vmem:[#allocation3 + $0x1c0] sm:$0xff]
        %v1244 = vld [vmem:[#allocation3 + $0x1c8] sm:$0xff]
        %v1245 = vld [vmem:[#allocation3 + $0x1d0] sm:$0xff]
        %v1246 = vld [vmem:[#allocation3 + $0x1d8] sm:$0xff]
        %v1247 = vld [vmem:[#allocation3 + $0x1e0] sm:$0xff]
        %v1248 = vld [vmem:[#allocation3 + $0x1e8] sm:$0xff]
        %v1249 = vld [vmem:[#allocation3 + $0x1f0] sm:$0xff]
        %v1250 = vld [vmem:[#allocation3 + $0x1f8] sm:$0xff]
        %v1251 = vld [vmem:[#allocation3 + $0x200] sm:$0xff]
        %v1252 = vld [vmem:[#allocation3 + $0x208] sm:$0xff]
        %v1253 = vld [vmem:[#allocation3 + $0x210] sm:$0xff]
        %v1254 = vld [vmem:[#allocation3 + $0x218] sm:$0xff]
        %v1255 = vld [vmem:[#allocation3 + $0x220] sm:$0xff]
        %v1256 = vld [vmem:[#allocation3 + $0x228] sm:$0xff]
        %v1257 = vld [vmem:[#allocation3 + $0x230] sm:$0xff]
        %v1258 = vld [vmem:[#allocation3 + $0x238] sm:$0xff]
        %v1259 = vld [vmem:[#allocation3 + $0x240] sm:$0xff]
        %v1260 = vld [vmem:[#allocation3 + $0x248] sm:$0xff]
        %v1261 = vld [vmem:[#allocation3 + $0x250] sm:$0xff]
        %v1262 = vld [vmem:[#allocation3 + $0x258] sm:$0xff]
        %v1263 = vld [vmem:[#allocation3 + $0x260] sm:$0xff]
        %v1264 = vld [vmem:[#allocation3 + $0x268] sm:$0xff]
        %v1265 = vld [vmem:[#allocation3 + $0x270] sm:$0xff]
        %v1266 = vld [vmem:[#allocation3 + $0x278] sm:$0xff]
        %v1267 = vld [vmem:[#allocation3 + $0x280] sm:$0xff]
        %v1268 = vld [vmem:[#allocation3 + $0x288] sm:$0xff]
        %v1269 = vld [vmem:[#allocation3 + $0x290] sm:$0xff]
        %v1270 = vld [vmem:[#allocation3 + $0x298] sm:$0xff]
        %v1271 = vld [vmem:[#allocation3 + $0x2a0] sm:$0xff]
        %v1272 = vld [vmem:[#allocation3 + $0x2a8] sm:$0xff]
        %v1273 = vld [vmem:[#allocation3 + $0x2b0] sm:$0xff]
        %v1274 = vld [vmem:[#allocation3 + $0x2b8] sm:$0xff]
        %v1275 = vld [vmem:[#allocation3 + $0x2c0] sm:$0xff]
        %v1276 = vld [vmem:[#allocation3 + $0x2c8] sm:$0xff]
        %v1277 = vld [vmem:[#allocation3 + $0x2d0] sm:$0xff]
        %v1278 = vld [vmem:[#allocation3 + $0x2d8] sm:$0xff]
        %v1279 = vld [vmem:[#allocation3 + $0x2e0] sm:$0xff]
        %v1280 = vld [vmem:[#allocation3 + $0x2e8] sm:$0xff]
        %v1281 = vld [vmem:[#allocation3 + $0x2f0] sm:$0xff]
        %v1282 = vld [vmem:[#allocation3 + $0x2f8] sm:$0xff]
        %v1283 = vld [vmem:[#allocation3 + $0x300] sm:$0xff]
        %v1284 = vld [vmem:[#allocation3 + $0x308] sm:$0xff]
        %v1285 = vld [vmem:[#allocation3 + $0x310] sm:$0xff]
        %v1286 = vld [vmem:[#allocation3 + $0x318] sm:$0xff]
        %v1287 = vld [vmem:[#allocation3 + $0x320] sm:$0xff]
        %v1288 = vld [vmem:[#allocation3 + $0x328] sm:$0xff]
        %v1289 = vld [vmem:[#allocation3 + $0x330] sm:$0xff]
        %v1290 = vld [vmem:[#allocation3 + $0x338] sm:$0xff]
        %v1291 = vld [vmem:[#allocation3 + $0x340] sm:$0xff]
        %v1292 = vld [vmem:[#allocation3 + $0x348] sm:$0xff]
        %v1293 = vld [vmem:[#allocation3 + $0x350] sm:$0xff]
        %v1294 = vld [vmem:[#allocation3 + $0x358] sm:$0xff]
        %v1295 = vld [vmem:[#allocation3 + $0x360] sm:$0xff]
        %v1296 = vld [vmem:[#allocation3 + $0x368] sm:$0xff]
        %v1297 = vld [vmem:[#allocation3 + $0x370] sm:$0xff]
        %v1298 = vld [vmem:[#allocation3 + $0x378] sm:$0xff]
        %v1299 = vld [vmem:[#allocation3 + $0x380] sm:$0xff]
        %v1300 = vld [vmem:[#allocation3 + $0x388] sm:$0xff]
        %v1301 = vld [vmem:[#allocation3 + $0x390] sm:$0xff]
        %v1302 = vld [vmem:[#allocation3 + $0x398] sm:$0xff]
        %v1303 = vld [vmem:[#allocation3 + $0x3a0] sm:$0xff]
        %v1304 = vld [vmem:[#allocation3 + $0x3a8] sm:$0xff]
        %v1305 = vld [vmem:[#allocation3 + $0x3b0] sm:$0xff]
        %v1306 = vld [vmem:[#allocation3 + $0x3b8] sm:$0xff]
        %v1307 = vld [vmem:[#allocation3 + $0x3c0] sm:$0xff]
        %v1308 = vld [vmem:[#allocation3 + $0x3c8] sm:$0xff]
        %v1309 = vld [vmem:[#allocation3 + $0x3d0] sm:$0xff]
        %v1310 = vld [vmem:[#allocation3 + $0x3d8] sm:$0xff]
        %v1311 = vld [vmem:[#allocation3 + $0x3e0] sm:$0xff]
        %v1312 = vld [vmem:[#allocation3 + $0x3e8] sm:$0xff]
        %v1313 = vld [vmem:[#allocation3 + $0x3f0] sm:$0xff]
        %v1314 = vld [vmem:[#allocation3 + $0x3f8] sm:$0xff]
        %v1315 = vld [vmem:[#allocation3 + $0x400] sm:$0xff]
        %v1316 = vld [vmem:[#allocation3 + $0x408] sm:$0xff]
        %v1317 = vld [vmem:[#allocation3 + $0x410] sm:$0xff]
        %v1318 = vld [vmem:[#allocation3 + $0x418] sm:$0xff]
        %v1319 = vld [vmem:[#allocation3 + $0x420] sm:$0xff]
        %v1320 = vld [vmem:[#allocation3 + $0x428] sm:$0xff]
        %v1321 = vld [vmem:[#allocation3 + $0x430] sm:$0xff]
        %v1322 = vld [vmem:[#allocation3 + $0x438] sm:$0xff]
        %v1323 = vld [vmem:[#allocation3 + $0x440] sm:$0xff]
        %v1324 = vld [vmem:[#allocation3 + $0x448] sm:$0xff]
        %v1325 = vld [vmem:[#allocation3 + $0x450] sm:$0xff]
        %v1326 = vld [vmem:[#allocation3 + $0x458] sm:$0xff]
        %v1327 = vld [vmem:[#allocation3 + $0x460] sm:$0xff]
        %v1328 = vld [vmem:[#allocation3 + $0x468] sm:$0xff]
        %v1329 = vld [vmem:[#allocation3 + $0x470] sm:$0xff]
        %v1330 = vld [vmem:[#allocation3 + $0x478] sm:$0xff]
        %v1331 = vrot.slane %v1191, 4
        %vm1332 = vcmask 1047556
        %v1333 = vsel %vm1332, %v1331, %v1187
        %v1334 = vrot.slane %v1187, 4
        %v1335 = vsel %vm1332, %v1191, %v1334
        %v1337 = vunpack.c.l.s4 1983009808
        %v1338 = vunpack.c.0.s8 %v1337
        %v1339 = vperm.slane %v1333, %v1338
        %v1341 = vunpack.c.l.s4 1983009808
        %v1342 = vunpack.c.0.s8 %v1341
        %v1343 = vperm.slane %v1335, %v1342
        %v1344 = vrot.slane %v1193, 4
        %v1345 = vsel %vm1332, %v1344, %v1189
        %v1346 = vrot.slane %v1189, 4
        %v1347 = vsel %vm1332, %v1193, %v1346
        %v1349 = vunpack.c.l.s4 1983009808
        %v1350 = vunpack.c.0.s8 %v1349
        %v1351 = vperm.slane %v1345, %v1350
        %v1353 = vunpack.c.l.s4 1983009808
        %v1354 = vunpack.c.0.s8 %v1353
        %v1355 = vperm.slane %v1347, %v1354
        %v1356 = vrot.slane %v1199, 4
        %v1357 = vsel %vm1332, %v1356, %v1195
        %v1358 = vrot.slane %v1195, 4
        %v1359 = vsel %vm1332, %v1199, %v1358
        %v1361 = vunpack.c.l.s4 1983009808
        %v1362 = vunpack.c.0.s8 %v1361
        %v1363 = vperm.slane %v1357, %v1362
        %v1365 = vunpack.c.l.s4 1983009808
        %v1366 = vunpack.c.0.s8 %v1365
        %v1367 = vperm.slane %v1359, %v1366
        %v1368 = vrot.slane %v1201, 4
        %v1369 = vsel %vm1332, %v1368, %v1197
        %v1370 = vrot.slane %v1197, 4
        %v1371 = vsel %vm1332, %v1201, %v1370
        %v1373 = vunpack.c.l.s4 1983009808
        %v1374 = vunpack.c.0.s8 %v1373
        %v1375 = vperm.slane %v1369, %v1374
        %v1377 = vunpack.c.l.s4 1983009808
        %v1378 = vunpack.c.0.s8 %v1377
        %v1379 = vperm.slane %v1371, %v1378
        %v1380 = vrot.slane %v1351, 4
        %v1381 = vsel %vm1332, %v1380, %v1339
        %v1382 = vrot.slane %v1339, 4
        %v1383 = vsel %vm1332, %v1351, %v1382
        %v1385 = vunpack.c.l.s4 1934713408
        %v1386 = vunpack.c.0.s8 %v1385
        %v1387 = vperm.slane %v1381, %v1386
        %v1389 = vunpack.c.l.s4 1934713408
        %v1390 = vunpack.c.0.s8 %v1389
        %v1391 = vperm.slane %v1383, %v1390
        %v1392 = vrot.slane %v1355, 4
        %v1393 = vsel %vm1332, %v1392, %v1343
        %v1394 = vrot.slane %v1343, 4
        %v1395 = vsel %vm1332, %v1355, %v1394
        %v1397 = vunpack.c.l.s4 1934713408
        %v1398 = vunpack.c.0.s8 %v1397
        %v1399 = vperm.slane %v1393, %v1398
        %v1401 = vunpack.c.l.s4 1934713408
        %v1402 = vunpack.c.0.s8 %v1401
        %v1403 = vperm.slane %v1395, %v1402
        %v1404 = vrot.slane %v1375, 4
        %v1405 = vsel %vm1332, %v1404, %v1363
        %v1406 = vrot.slane %v1363, 4
        %v1407 = vsel %vm1332, %v1375, %v1406
        %v1409 = vunpack.c.l.s4 1934713408
        %v1410 = vunpack.c.0.s8 %v1409
        %v1411 = vperm.slane %v1405, %v1410
        %v1413 = vunpack.c.l.s4 1934713408
        %v1414 = vunpack.c.0.s8 %v1413
        %v1415 = vperm.slane %v1407, %v1414
        %v1416 = vrot.slane %v1379, 4
        %v1417 = vsel %vm1332, %v1416, %v1367
        %v1418 = vrot.slane %v1367, 4
        %v1419 = vsel %vm1332, %v1379, %v1418
        %v1421 = vunpack.c.l.s4 1934713408
        %v1422 = vunpack.c.0.s8 %v1421
        %v1423 = vperm.slane %v1417, %v1422
        %v1425 = vunpack.c.l.s4 1934713408
        %v1426 = vunpack.c.0.s8 %v1425
        %v1427 = vperm.slane %v1419, %v1426
        %v1428 = vrot.slane %v1411, 4
        %v1429 = vsel %vm1332, %v1428, %v1387
        %v1430 = vrot.slane %v1387, 4
        %v1431 = vsel %vm1332, %v1411, %v1430
        %v1432 = vrot.slane %v1415, 4
        %v1433 = vsel %vm1332, %v1432, %v1391
        %v1434 = vrot.slane %v1391, 4
        %v1435 = vsel %vm1332, %v1415, %v1434
        %v1436 = vrot.slane %v1423, 4
        %v1437 = vsel %vm1332, %v1436, %v1399
        %v1438 = vrot.slane %v1399, 4
        %v1439 = vsel %vm1332, %v1423, %v1438
        %v1440 = vrot.slane %v1427, 4
        %v1441 = vsel %vm1332, %v1440, %v1403
        %v1442 = vrot.slane %v1403, 4
        %v1443 = vsel %vm1332, %v1427, %v1442
        %v1444 = vrot.slane %v1207, 4
        %v1445 = vsel %vm1332, %v1444, %v1203
        %v1446 = vrot.slane %v1203, 4
        %v1447 = vsel %vm1332, %v1207, %v1446
        %v1449 = vunpack.c.l.s4 1983009808
        %v1450 = vunpack.c.0.s8 %v1449
        %v1451 = vperm.slane %v1445, %v1450
        %v1453 = vunpack.c.l.s4 1983009808
        %v1454 = vunpack.c.0.s8 %v1453
        %v1455 = vperm.slane %v1447, %v1454
        %v1456 = vrot.slane %v1209, 4
        %v1457 = vsel %vm1332, %v1456, %v1205
        %v1458 = vrot.slane %v1205, 4
        %v1459 = vsel %vm1332, %v1209, %v1458
        %v1461 = vunpack.c.l.s4 1983009808
        %v1462 = vunpack.c.0.s8 %v1461
        %v1463 = vperm.slane %v1457, %v1462
        %v1465 = vunpack.c.l.s4 1983009808
        %v1466 = vunpack.c.0.s8 %v1465
        %v1467 = vperm.slane %v1459, %v1466
        %v1468 = vrot.slane %v1215, 4
        %v1469 = vsel %vm1332, %v1468, %v1211
        %v1470 = vrot.slane %v1211, 4
        %v1471 = vsel %vm1332, %v1215, %v1470
        %v1473 = vunpack.c.l.s4 1983009808
        %v1474 = vunpack.c.0.s8 %v1473
        %v1475 = vperm.slane %v1469, %v1474
        %v1477 = vunpack.c.l.s4 1983009808
        %v1478 = vunpack.c.0.s8 %v1477
        %v1479 = vperm.slane %v1471, %v1478
        %v1480 = vrot.slane %v1217, 4
        %v1481 = vsel %vm1332, %v1480, %v1213
        %v1482 = vrot.slane %v1213, 4
        %v1483 = vsel %vm1332, %v1217, %v1482
        %v1485 = vunpack.c.l.s4 1983009808
        %v1486 = vunpack.c.0.s8 %v1485
        %v1487 = vperm.slane %v1481, %v1486
        %v1489 = vunpack.c.l.s4 1983009808
        %v1490 = vunpack.c.0.s8 %v1489
        %v1491 = vperm.slane %v1483, %v1490
        %v1492 = vrot.slane %v1463, 4
        %v1493 = vsel %vm1332, %v1492, %v1451
        %v1494 = vrot.slane %v1451, 4
        %v1495 = vsel %vm1332, %v1463, %v1494
        %v1497 = vunpack.c.l.s4 1934713408
        %v1498 = vunpack.c.0.s8 %v1497
        %v1499 = vperm.slane %v1493, %v1498
        %v1501 = vunpack.c.l.s4 1934713408
        %v1502 = vunpack.c.0.s8 %v1501
        %v1503 = vperm.slane %v1495, %v1502
        %v1504 = vrot.slane %v1467, 4
        %v1505 = vsel %vm1332, %v1504, %v1455
        %v1506 = vrot.slane %v1455, 4
        %v1507 = vsel %vm1332, %v1467, %v1506
        %v1509 = vunpack.c.l.s4 1934713408
        %v1510 = vunpack.c.0.s8 %v1509
        %v1511 = vperm.slane %v1505, %v1510
        %v1513 = vunpack.c.l.s4 1934713408
        %v1514 = vunpack.c.0.s8 %v1513
        %v1515 = vperm.slane %v1507, %v1514
        %v1516 = vrot.slane %v1487, 4
        %v1517 = vsel %vm1332, %v1516, %v1475
        %v1518 = vrot.slane %v1475, 4
        %v1519 = vsel %vm1332, %v1487, %v1518
        %v1521 = vunpack.c.l.s4 1934713408
        %v1522 = vunpack.c.0.s8 %v1521
        %v1523 = vperm.slane %v1517, %v1522
        %v1525 = vunpack.c.l.s4 1934713408
        %v1526 = vunpack.c.0.s8 %v1525
        %v1527 = vperm.slane %v1519, %v1526
        %v1528 = vrot.slane %v1491, 4
        %v1529 = vsel %vm1332, %v1528, %v1479
        %v1530 = vrot.slane %v1479, 4
        %v1531 = vsel %vm1332, %v1491, %v1530
        %v1533 = vunpack.c.l.s4 1934713408
        %v1534 = vunpack.c.0.s8 %v1533
        %v1535 = vperm.slane %v1529, %v1534
        %v1537 = vunpack.c.l.s4 1934713408
        %v1538 = vunpack.c.0.s8 %v1537
        %v1539 = vperm.slane %v1531, %v1538
        %v1540 = vrot.slane %v1523, 4
        %v1541 = vsel %vm1332, %v1540, %v1499
        %v1542 = vrot.slane %v1499, 4
        %v1543 = vsel %vm1332, %v1523, %v1542
        %v1544 = vrot.slane %v1527, 4
        %v1545 = vsel %vm1332, %v1544, %v1503
        %v1546 = vrot.slane %v1503, 4
        %v1547 = vsel %vm1332, %v1527, %v1546
        %v1548 = vrot.slane %v1535, 4
        %v1549 = vsel %vm1332, %v1548, %v1511
        %v1550 = vrot.slane %v1511, 4
        %v1551 = vsel %vm1332, %v1535, %v1550
        %v1552 = vrot.slane %v1539, 4
        %v1553 = vsel %vm1332, %v1552, %v1515
        %v1554 = vrot.slane %v1515, 4
        %v1555 = vsel %vm1332, %v1539, %v1554
        %v1556 = vrot.slane %v1223, 4
        %v1557 = vsel %vm1332, %v1556, %v1219
        %v1558 = vrot.slane %v1219, 4
        %v1559 = vsel %vm1332, %v1223, %v1558
        %v1561 = vunpack.c.l.s4 1983009808
        %v1562 = vunpack.c.0.s8 %v1561
        %v1563 = vperm.slane %v1557, %v1562
        %v1565 = vunpack.c.l.s4 1983009808
        %v1566 = vunpack.c.0.s8 %v1565
        %v1567 = vperm.slane %v1559, %v1566
        %v1568 = vrot.slane %v1225, 4
        %v1569 = vsel %vm1332, %v1568, %v1221
        %v1570 = vrot.slane %v1221, 4
        %v1571 = vsel %vm1332, %v1225, %v1570
        %v1573 = vunpack.c.l.s4 1983009808
        %v1574 = vunpack.c.0.s8 %v1573
        %v1575 = vperm.slane %v1569, %v1574
        %v1577 = vunpack.c.l.s4 1983009808
        %v1578 = vunpack.c.0.s8 %v1577
        %v1579 = vperm.slane %v1571, %v1578
        %v1580 = vrot.slane %v1231, 4
        %v1581 = vsel %vm1332, %v1580, %v1227
        %v1582 = vrot.slane %v1227, 4
        %v1583 = vsel %vm1332, %v1231, %v1582
        %v1585 = vunpack.c.l.s4 1983009808
        %v1586 = vunpack.c.0.s8 %v1585
        %v1587 = vperm.slane %v1581, %v1586
        %v1589 = vunpack.c.l.s4 1983009808
        %v1590 = vunpack.c.0.s8 %v1589
        %v1591 = vperm.slane %v1583, %v1590
        %v1592 = vrot.slane %v1233, 4
        %v1593 = vsel %vm1332, %v1592, %v1229
        %v1594 = vrot.slane %v1229, 4
        %v1595 = vsel %vm1332, %v1233, %v1594
        %v1597 = vunpack.c.l.s4 1983009808
        %v1598 = vunpack.c.0.s8 %v1597
        %v1599 = vperm.slane %v1593, %v1598
        %v1601 = vunpack.c.l.s4 1983009808
        %v1602 = vunpack.c.0.s8 %v1601
        %v1603 = vperm.slane %v1595, %v1602
        %v1604 = vrot.slane %v1575, 4
        %v1605 = vsel %vm1332, %v1604, %v1563
        %v1606 = vrot.slane %v1563, 4
        %v1607 = vsel %vm1332, %v1575, %v1606
        %v1609 = vunpack.c.l.s4 1934713408
        %v1610 = vunpack.c.0.s8 %v1609
        %v1611 = vperm.slane %v1605, %v1610
        %v1613 = vunpack.c.l.s4 1934713408
        %v1614 = vunpack.c.0.s8 %v1613
        %v1615 = vperm.slane %v1607, %v1614
        %v1616 = vrot.slane %v1579, 4
        %v1617 = vsel %vm1332, %v1616, %v1567
        %v1618 = vrot.slane %v1567, 4
        %v1619 = vsel %vm1332, %v1579, %v1618
        %v1621 = vunpack.c.l.s4 1934713408
        %v1622 = vunpack.c.0.s8 %v1621
        %v1623 = vperm.slane %v1617, %v1622
        %v1625 = vunpack.c.l.s4 1934713408
        %v1626 = vunpack.c.0.s8 %v1625
        %v1627 = vperm.slane %v1619, %v1626
        %v1628 = vrot.slane %v1599, 4
        %v1629 = vsel %vm1332, %v1628, %v1587
        %v1630 = vrot.slane %v1587, 4
        %v1631 = vsel %vm1332, %v1599, %v1630
        %v1633 = vunpack.c.l.s4 1934713408
        %v1634 = vunpack.c.0.s8 %v1633
        %v1635 = vperm.slane %v1629, %v1634
        %v1637 = vunpack.c.l.s4 1934713408
        %v1638 = vunpack.c.0.s8 %v1637
        %v1639 = vperm.slane %v1631, %v1638
        %v1640 = vrot.slane %v1603, 4
        %v1641 = vsel %vm1332, %v1640, %v1591
        %v1642 = vrot.slane %v1591, 4
        %v1643 = vsel %vm1332, %v1603, %v1642
        %v1645 = vunpack.c.l.s4 1934713408
        %v1646 = vunpack.c.0.s8 %v1645
        %v1647 = vperm.slane %v1641, %v1646
        %v1649 = vunpack.c.l.s4 1934713408
        %v1650 = vunpack.c.0.s8 %v1649
        %v1651 = vperm.slane %v1643, %v1650
        %v1652 = vrot.slane %v1635, 4
        %v1653 = vsel %vm1332, %v1652, %v1611
        %v1654 = vrot.slane %v1611, 4
        %v1655 = vsel %vm1332, %v1635, %v1654
        %v1656 = vrot.slane %v1639, 4
        %v1657 = vsel %vm1332, %v1656, %v1615
        %v1658 = vrot.slane %v1615, 4
        %v1659 = vsel %vm1332, %v1639, %v1658
        %v1660 = vrot.slane %v1647, 4
        %v1661 = vsel %vm1332, %v1660, %v1623
        %v1662 = vrot.slane %v1623, 4
        %v1663 = vsel %vm1332, %v1647, %v1662
        %v1664 = vrot.slane %v1651, 4
        %v1665 = vsel %vm1332, %v1664, %v1627
        %v1666 = vrot.slane %v1627, 4
        %v1667 = vsel %vm1332, %v1651, %v1666
        %v1668 = vrot.slane %v1239, 4
        %v1669 = vsel %vm1332, %v1668, %v1235
        %v1670 = vrot.slane %v1235, 4
        %v1671 = vsel %vm1332, %v1239, %v1670
        %v1673 = vunpack.c.l.s4 1983009808
        %v1674 = vunpack.c.0.s8 %v1673
        %v1675 = vperm.slane %v1669, %v1674
        %v1677 = vunpack.c.l.s4 1983009808
        %v1678 = vunpack.c.0.s8 %v1677
        %v1679 = vperm.slane %v1671, %v1678
        %v1680 = vrot.slane %v1241, 4
        %v1681 = vsel %vm1332, %v1680, %v1237
        %v1682 = vrot.slane %v1237, 4
        %v1683 = vsel %vm1332, %v1241, %v1682
        %v1685 = vunpack.c.l.s4 1983009808
        %v1686 = vunpack.c.0.s8 %v1685
        %v1687 = vperm.slane %v1681, %v1686
        %v1689 = vunpack.c.l.s4 1983009808
        %v1690 = vunpack.c.0.s8 %v1689
        %v1691 = vperm.slane %v1683, %v1690
        %v1692 = vrot.slane %v1247, 4
        %v1693 = vsel %vm1332, %v1692, %v1243
        %v1694 = vrot.slane %v1243, 4
        %v1695 = vsel %vm1332, %v1247, %v1694
        %v1697 = vunpack.c.l.s4 1983009808
        %v1698 = vunpack.c.0.s8 %v1697
        %v1699 = vperm.slane %v1693, %v1698
        %v1701 = vunpack.c.l.s4 1983009808
        %v1702 = vunpack.c.0.s8 %v1701
        %v1703 = vperm.slane %v1695, %v1702
        %v1704 = vrot.slane %v1249, 4
        %v1705 = vsel %vm1332, %v1704, %v1245
        %v1706 = vrot.slane %v1245, 4
        %v1707 = vsel %vm1332, %v1249, %v1706
        %v1709 = vunpack.c.l.s4 1983009808
        %v1710 = vunpack.c.0.s8 %v1709
        %v1711 = vperm.slane %v1705, %v1710
        %v1713 = vunpack.c.l.s4 1983009808
        %v1714 = vunpack.c.0.s8 %v1713
        %v1715 = vperm.slane %v1707, %v1714
        %v1716 = vrot.slane %v1687, 4
        %v1717 = vsel %vm1332, %v1716, %v1675
        %v1718 = vrot.slane %v1675, 4
        %v1719 = vsel %vm1332, %v1687, %v1718
        %v1721 = vunpack.c.l.s4 1934713408
        %v1722 = vunpack.c.0.s8 %v1721
        %v1723 = vperm.slane %v1717, %v1722
        %v1725 = vunpack.c.l.s4 1934713408
        %v1726 = vunpack.c.0.s8 %v1725
        %v1727 = vperm.slane %v1719, %v1726
        %v1728 = vrot.slane %v1691, 4
        %v1729 = vsel %vm1332, %v1728, %v1679
        %v1730 = vrot.slane %v1679, 4
        %v1731 = vsel %vm1332, %v1691, %v1730
        %v1733 = vunpack.c.l.s4 1934713408
        %v1734 = vunpack.c.0.s8 %v1733
        %v1735 = vperm.slane %v1729, %v1734
        %v1737 = vunpack.c.l.s4 1934713408
        %v1738 = vunpack.c.0.s8 %v1737
        %v1739 = vperm.slane %v1731, %v1738
        %v1740 = vrot.slane %v1711, 4
        %v1741 = vsel %vm1332, %v1740, %v1699
        %v1742 = vrot.slane %v1699, 4
        %v1743 = vsel %vm1332, %v1711, %v1742
        %v1745 = vunpack.c.l.s4 1934713408
        %v1746 = vunpack.c.0.s8 %v1745
        %v1747 = vperm.slane %v1741, %v1746
        %v1749 = vunpack.c.l.s4 1934713408
        %v1750 = vunpack.c.0.s8 %v1749
        %v1751 = vperm.slane %v1743, %v1750
        %v1752 = vrot.slane %v1715, 4
        %v1753 = vsel %vm1332, %v1752, %v1703
        %v1754 = vrot.slane %v1703, 4
        %v1755 = vsel %vm1332, %v1715, %v1754
        %v1757 = vunpack.c.l.s4 1934713408
        %v1758 = vunpack.c.0.s8 %v1757
        %v1759 = vperm.slane %v1753, %v1758
        %v1761 = vunpack.c.l.s4 1934713408
        %v1762 = vunpack.c.0.s8 %v1761
        %v1763 = vperm.slane %v1755, %v1762
        %v1764 = vrot.slane %v1747, 4
        %v1765 = vsel %vm1332, %v1764, %v1723
        %v1766 = vrot.slane %v1723, 4
        %v1767 = vsel %vm1332, %v1747, %v1766
        %v1768 = vrot.slane %v1751, 4
        %v1769 = vsel %vm1332, %v1768, %v1727
        %v1770 = vrot.slane %v1727, 4
        %v1771 = vsel %vm1332, %v1751, %v1770
        %v1772 = vrot.slane %v1759, 4
        %v1773 = vsel %vm1332, %v1772, %v1735
        %v1774 = vrot.slane %v1735, 4
        %v1775 = vsel %vm1332, %v1759, %v1774
        %v1776 = vrot.slane %v1763, 4
        %v1777 = vsel %vm1332, %v1776, %v1739
        %v1778 = vrot.slane %v1739, 4
        %v1779 = vsel %vm1332, %v1763, %v1778
        %v1780 = vrot.slane %v1255, 4
        %v1781 = vsel %vm1332, %v1780, %v1251
        %v1782 = vrot.slane %v1251, 4
        %v1783 = vsel %vm1332, %v1255, %v1782
        %v1785 = vunpack.c.l.s4 1983009808
        %v1786 = vunpack.c.0.s8 %v1785
        %v1787 = vperm.slane %v1781, %v1786
        %v1789 = vunpack.c.l.s4 1983009808
        %v1790 = vunpack.c.0.s8 %v1789
        %v1791 = vperm.slane %v1783, %v1790
        %v1792 = vrot.slane %v1257, 4
        %v1793 = vsel %vm1332, %v1792, %v1253
        %v1794 = vrot.slane %v1253, 4
        %v1795 = vsel %vm1332, %v1257, %v1794
        %v1797 = vunpack.c.l.s4 1983009808
        %v1798 = vunpack.c.0.s8 %v1797
        %v1799 = vperm.slane %v1793, %v1798
        %v1801 = vunpack.c.l.s4 1983009808
        %v1802 = vunpack.c.0.s8 %v1801
        %v1803 = vperm.slane %v1795, %v1802
        %v1804 = vrot.slane %v1263, 4
        %v1805 = vsel %vm1332, %v1804, %v1259
        %v1806 = vrot.slane %v1259, 4
        %v1807 = vsel %vm1332, %v1263, %v1806
        %v1809 = vunpack.c.l.s4 1983009808
        %v1810 = vunpack.c.0.s8 %v1809
        %v1811 = vperm.slane %v1805, %v1810
        %v1813 = vunpack.c.l.s4 1983009808
        %v1814 = vunpack.c.0.s8 %v1813
        %v1815 = vperm.slane %v1807, %v1814
        %v1816 = vrot.slane %v1265, 4
        %v1817 = vsel %vm1332, %v1816, %v1261
        %v1818 = vrot.slane %v1261, 4
        %v1819 = vsel %vm1332, %v1265, %v1818
        %v1821 = vunpack.c.l.s4 1983009808
        %v1822 = vunpack.c.0.s8 %v1821
        %v1823 = vperm.slane %v1817, %v1822
        %v1825 = vunpack.c.l.s4 1983009808
        %v1826 = vunpack.c.0.s8 %v1825
        %v1827 = vperm.slane %v1819, %v1826
        %v1828 = vrot.slane %v1799, 4
        %v1829 = vsel %vm1332, %v1828, %v1787
        %v1830 = vrot.slane %v1787, 4
        %v1831 = vsel %vm1332, %v1799, %v1830
        %v1833 = vunpack.c.l.s4 1934713408
        %v1834 = vunpack.c.0.s8 %v1833
        %v1835 = vperm.slane %v1829, %v1834
        %v1837 = vunpack.c.l.s4 1934713408
        %v1838 = vunpack.c.0.s8 %v1837
        %v1839 = vperm.slane %v1831, %v1838
        %v1840 = vrot.slane %v1803, 4
        %v1841 = vsel %vm1332, %v1840, %v1791
        %v1842 = vrot.slane %v1791, 4
        %v1843 = vsel %vm1332, %v1803, %v1842
        %v1845 = vunpack.c.l.s4 1934713408
        %v1846 = vunpack.c.0.s8 %v1845
        %v1847 = vperm.slane %v1841, %v1846
        %v1849 = vunpack.c.l.s4 1934713408
        %v1850 = vunpack.c.0.s8 %v1849
        %v1851 = vperm.slane %v1843, %v1850
        %v1852 = vrot.slane %v1823, 4
        %v1853 = vsel %vm1332, %v1852, %v1811
        %v1854 = vrot.slane %v1811, 4
        %v1855 = vsel %vm1332, %v1823, %v1854
        %v1857 = vunpack.c.l.s4 1934713408
        %v1858 = vunpack.c.0.s8 %v1857
        %v1859 = vperm.slane %v1853, %v1858
        %v1861 = vunpack.c.l.s4 1934713408
        %v1862 = vunpack.c.0.s8 %v1861
        %v1863 = vperm.slane %v1855, %v1862
        %v1864 = vrot.slane %v1827, 4
        %v1865 = vsel %vm1332, %v1864, %v1815
        %v1866 = vrot.slane %v1815, 4
        %v1867 = vsel %vm1332, %v1827, %v1866
        %v1869 = vunpack.c.l.s4 1934713408
        %v1870 = vunpack.c.0.s8 %v1869
        %v1871 = vperm.slane %v1865, %v1870
        %v1873 = vunpack.c.l.s4 1934713408
        %v1874 = vunpack.c.0.s8 %v1873
        %v1875 = vperm.slane %v1867, %v1874
        %v1876 = vrot.slane %v1859, 4
        %v1877 = vsel %vm1332, %v1876, %v1835
        %v1878 = vrot.slane %v1835, 4
        %v1879 = vsel %vm1332, %v1859, %v1878
        %v1880 = vrot.slane %v1863, 4
        %v1881 = vsel %vm1332, %v1880, %v1839
        %v1882 = vrot.slane %v1839, 4
        %v1883 = vsel %vm1332, %v1863, %v1882
        %v1884 = vrot.slane %v1871, 4
        %v1885 = vsel %vm1332, %v1884, %v1847
        %v1886 = vrot.slane %v1847, 4
        %v1887 = vsel %vm1332, %v1871, %v1886
        %v1888 = vrot.slane %v1875, 4
        %v1889 = vsel %vm1332, %v1888, %v1851
        %v1890 = vrot.slane %v1851, 4
        %v1891 = vsel %vm1332, %v1875, %v1890
        %v1892 = vrot.slane %v1271, 4
        %v1893 = vsel %vm1332, %v1892, %v1267
        %v1894 = vrot.slane %v1267, 4
        %v1895 = vsel %vm1332, %v1271, %v1894
        %v1897 = vunpack.c.l.s4 1983009808
        %v1898 = vunpack.c.0.s8 %v1897
        %v1899 = vperm.slane %v1893, %v1898
        %v1901 = vunpack.c.l.s4 1983009808
        %v1902 = vunpack.c.0.s8 %v1901
        %v1903 = vperm.slane %v1895, %v1902
        %v1904 = vrot.slane %v1273, 4
        %v1905 = vsel %vm1332, %v1904, %v1269
        %v1906 = vrot.slane %v1269, 4
        %v1907 = vsel %vm1332, %v1273, %v1906
        %v1909 = vunpack.c.l.s4 1983009808
        %v1910 = vunpack.c.0.s8 %v1909
        %v1911 = vperm.slane %v1905, %v1910
        %v1913 = vunpack.c.l.s4 1983009808
        %v1914 = vunpack.c.0.s8 %v1913
        %v1915 = vperm.slane %v1907, %v1914
        %v1916 = vrot.slane %v1279, 4
        %v1917 = vsel %vm1332, %v1916, %v1275
        %v1918 = vrot.slane %v1275, 4
        %v1919 = vsel %vm1332, %v1279, %v1918
        %v1921 = vunpack.c.l.s4 1983009808
        %v1922 = vunpack.c.0.s8 %v1921
        %v1923 = vperm.slane %v1917, %v1922
        %v1925 = vunpack.c.l.s4 1983009808
        %v1926 = vunpack.c.0.s8 %v1925
        %v1927 = vperm.slane %v1919, %v1926
        %v1928 = vrot.slane %v1281, 4
        %v1929 = vsel %vm1332, %v1928, %v1277
        %v1930 = vrot.slane %v1277, 4
        %v1931 = vsel %vm1332, %v1281, %v1930
        %v1933 = vunpack.c.l.s4 1983009808
        %v1934 = vunpack.c.0.s8 %v1933
        %v1935 = vperm.slane %v1929, %v1934
        %v1937 = vunpack.c.l.s4 1983009808
        %v1938 = vunpack.c.0.s8 %v1937
        %v1939 = vperm.slane %v1931, %v1938
        %v1940 = vrot.slane %v1911, 4
        %v1941 = vsel %vm1332, %v1940, %v1899
        %v1942 = vrot.slane %v1899, 4
        %v1943 = vsel %vm1332, %v1911, %v1942
        %v1945 = vunpack.c.l.s4 1934713408
        %v1946 = vunpack.c.0.s8 %v1945
        %v1947 = vperm.slane %v1941, %v1946
        %v1949 = vunpack.c.l.s4 1934713408
        %v1950 = vunpack.c.0.s8 %v1949
        %v1951 = vperm.slane %v1943, %v1950
        %v1952 = vrot.slane %v1915, 4
        %v1953 = vsel %vm1332, %v1952, %v1903
        %v1954 = vrot.slane %v1903, 4
        %v1955 = vsel %vm1332, %v1915, %v1954
        %v1957 = vunpack.c.l.s4 1934713408
        %v1958 = vunpack.c.0.s8 %v1957
        %v1959 = vperm.slane %v1953, %v1958
        %v1961 = vunpack.c.l.s4 1934713408
        %v1962 = vunpack.c.0.s8 %v1961
        %v1963 = vperm.slane %v1955, %v1962
        %v1964 = vrot.slane %v1935, 4
        %v1965 = vsel %vm1332, %v1964, %v1923
        %v1966 = vrot.slane %v1923, 4
        %v1967 = vsel %vm1332, %v1935, %v1966
        %v1969 = vunpack.c.l.s4 1934713408
        %v1970 = vunpack.c.0.s8 %v1969
        %v1971 = vperm.slane %v1965, %v1970
        %v1973 = vunpack.c.l.s4 1934713408
        %v1974 = vunpack.c.0.s8 %v1973
        %v1975 = vperm.slane %v1967, %v1974
        %v1976 = vrot.slane %v1939, 4
        %v1977 = vsel %vm1332, %v1976, %v1927
        %v1978 = vrot.slane %v1927, 4
        %v1979 = vsel %vm1332, %v1939, %v1978
        %v1981 = vunpack.c.l.s4 1934713408
        %v1982 = vunpack.c.0.s8 %v1981
        %v1983 = vperm.slane %v1977, %v1982
        %v1985 = vunpack.c.l.s4 1934713408
        %v1986 = vunpack.c.0.s8 %v1985
        %v1987 = vperm.slane %v1979, %v1986
        %v1988 = vrot.slane %v1971, 4
        %v1989 = vsel %vm1332, %v1988, %v1947
        %v1990 = vrot.slane %v1947, 4
        %v1991 = vsel %vm1332, %v1971, %v1990
        %v1992 = vrot.slane %v1975, 4
        %v1993 = vsel %vm1332, %v1992, %v1951
        %v1994 = vrot.slane %v1951, 4
        %v1995 = vsel %vm1332, %v1975, %v1994
        %v1996 = vrot.slane %v1983, 4
        %v1997 = vsel %vm1332, %v1996, %v1959
        %v1998 = vrot.slane %v1959, 4
        %v1999 = vsel %vm1332, %v1983, %v1998
        %v2000 = vrot.slane %v1987, 4
        %v2001 = vsel %vm1332, %v2000, %v1963
        %v2002 = vrot.slane %v1963, 4
        %v2003 = vsel %vm1332, %v1987, %v2002
        %v2004 = vrot.slane %v1287, 4
        %v2005 = vsel %vm1332, %v2004, %v1283
        %v2006 = vrot.slane %v1283, 4
        %v2007 = vsel %vm1332, %v1287, %v2006
        %v2009 = vunpack.c.l.s4 1983009808
        %v2010 = vunpack.c.0.s8 %v2009
        %v2011 = vperm.slane %v2005, %v2010
        %v2013 = vunpack.c.l.s4 1983009808
        %v2014 = vunpack.c.0.s8 %v2013
        %v2015 = vperm.slane %v2007, %v2014
        %v2016 = vrot.slane %v1289, 4
        %v2017 = vsel %vm1332, %v2016, %v1285
        %v2018 = vrot.slane %v1285, 4
        %v2019 = vsel %vm1332, %v1289, %v2018
        %v2021 = vunpack.c.l.s4 1983009808
        %v2022 = vunpack.c.0.s8 %v2021
        %v2023 = vperm.slane %v2017, %v2022
        %v2025 = vunpack.c.l.s4 1983009808
        %v2026 = vunpack.c.0.s8 %v2025
        %v2027 = vperm.slane %v2019, %v2026
        %v2028 = vrot.slane %v1295, 4
        %v2029 = vsel %vm1332, %v2028, %v1291
        %v2030 = vrot.slane %v1291, 4
        %v2031 = vsel %vm1332, %v1295, %v2030
        %v2033 = vunpack.c.l.s4 1983009808
        %v2034 = vunpack.c.0.s8 %v2033
        %v2035 = vperm.slane %v2029, %v2034
        %v2037 = vunpack.c.l.s4 1983009808
        %v2038 = vunpack.c.0.s8 %v2037
        %v2039 = vperm.slane %v2031, %v2038
        %v2040 = vrot.slane %v1297, 4
        %v2041 = vsel %vm1332, %v2040, %v1293
        %v2042 = vrot.slane %v1293, 4
        %v2043 = vsel %vm1332, %v1297, %v2042
        %v2045 = vunpack.c.l.s4 1983009808
        %v2046 = vunpack.c.0.s8 %v2045
        %v2047 = vperm.slane %v2041, %v2046
        %v2049 = vunpack.c.l.s4 1983009808
        %v2050 = vunpack.c.0.s8 %v2049
        %v2051 = vperm.slane %v2043, %v2050
        %v2052 = vrot.slane %v2023, 4
        %v2053 = vsel %vm1332, %v2052, %v2011
        %v2054 = vrot.slane %v2011, 4
        %v2055 = vsel %vm1332, %v2023, %v2054
        %v2057 = vunpack.c.l.s4 1934713408
        %v2058 = vunpack.c.0.s8 %v2057
        %v2059 = vperm.slane %v2053, %v2058
        %v2061 = vunpack.c.l.s4 1934713408
        %v2062 = vunpack.c.0.s8 %v2061
        %v2063 = vperm.slane %v2055, %v2062
        %v2064 = vrot.slane %v2027, 4
        %v2065 = vsel %vm1332, %v2064, %v2015
        %v2066 = vrot.slane %v2015, 4
        %v2067 = vsel %vm1332, %v2027, %v2066
        %v2069 = vunpack.c.l.s4 1934713408
        %v2070 = vunpack.c.0.s8 %v2069
        %v2071 = vperm.slane %v2065, %v2070
        %v2073 = vunpack.c.l.s4 1934713408
        %v2074 = vunpack.c.0.s8 %v2073
        %v2075 = vperm.slane %v2067, %v2074
        %v2076 = vrot.slane %v2047, 4
        %v2077 = vsel %vm1332, %v2076, %v2035
        %v2078 = vrot.slane %v2035, 4
        %v2079 = vsel %vm1332, %v2047, %v2078
        %v2081 = vunpack.c.l.s4 1934713408
        %v2082 = vunpack.c.0.s8 %v2081
        %v2083 = vperm.slane %v2077, %v2082
        %v2085 = vunpack.c.l.s4 1934713408
        %v2086 = vunpack.c.0.s8 %v2085
        %v2087 = vperm.slane %v2079, %v2086
        %v2088 = vrot.slane %v2051, 4
        %v2089 = vsel %vm1332, %v2088, %v2039
        %v2090 = vrot.slane %v2039, 4
        %v2091 = vsel %vm1332, %v2051, %v2090
        %v2093 = vunpack.c.l.s4 1934713408
        %v2094 = vunpack.c.0.s8 %v2093
        %v2095 = vperm.slane %v2089, %v2094
        %v2097 = vunpack.c.l.s4 1934713408
        %v2098 = vunpack.c.0.s8 %v2097
        %v2099 = vperm.slane %v2091, %v2098
        %v2100 = vrot.slane %v2083, 4
        %v2101 = vsel %vm1332, %v2100, %v2059
        %v2102 = vrot.slane %v2059, 4
        %v2103 = vsel %vm1332, %v2083, %v2102
        %v2104 = vrot.slane %v2087, 4
        %v2105 = vsel %vm1332, %v2104, %v2063
        %v2106 = vrot.slane %v2063, 4
        %v2107 = vsel %vm1332, %v2087, %v2106
        %v2108 = vrot.slane %v2095, 4
        %v2109 = vsel %vm1332, %v2108, %v2071
        %v2110 = vrot.slane %v2071, 4
        %v2111 = vsel %vm1332, %v2095, %v2110
        %v2112 = vrot.slane %v2099, 4
        %v2113 = vsel %vm1332, %v2112, %v2075
        %v2114 = vrot.slane %v2075, 4
        %v2115 = vsel %vm1332, %v2099, %v2114
        %v2116 = vrot.slane %v1303, 4
        %v2117 = vsel %vm1332, %v2116, %v1299
        %v2118 = vrot.slane %v1299, 4
        %v2119 = vsel %vm1332, %v1303, %v2118
        %v2121 = vunpack.c.l.s4 1983009808
        %v2122 = vunpack.c.0.s8 %v2121
        %v2123 = vperm.slane %v2117, %v2122
        %v2125 = vunpack.c.l.s4 1983009808
        %v2126 = vunpack.c.0.s8 %v2125
        %v2127 = vperm.slane %v2119, %v2126
        %v2128 = vrot.slane %v1305, 4
        %v2129 = vsel %vm1332, %v2128, %v1301
        %v2130 = vrot.slane %v1301, 4
        %v2131 = vsel %vm1332, %v1305, %v2130
        %v2133 = vunpack.c.l.s4 1983009808
        %v2134 = vunpack.c.0.s8 %v2133
        %v2135 = vperm.slane %v2129, %v2134
        %v2137 = vunpack.c.l.s4 1983009808
        %v2138 = vunpack.c.0.s8 %v2137
        %v2139 = vperm.slane %v2131, %v2138
        %v2140 = vrot.slane %v1311, 4
        %v2141 = vsel %vm1332, %v2140, %v1307
        %v2142 = vrot.slane %v1307, 4
        %v2143 = vsel %vm1332, %v1311, %v2142
        %v2145 = vunpack.c.l.s4 1983009808
        %v2146 = vunpack.c.0.s8 %v2145
        %v2147 = vperm.slane %v2141, %v2146
        %v2149 = vunpack.c.l.s4 1983009808
        %v2150 = vunpack.c.0.s8 %v2149
        %v2151 = vperm.slane %v2143, %v2150
        %v2152 = vrot.slane %v1313, 4
        %v2153 = vsel %vm1332, %v2152, %v1309
        %v2154 = vrot.slane %v1309, 4
        %v2155 = vsel %vm1332, %v1313, %v2154
        %v2157 = vunpack.c.l.s4 1983009808
        %v2158 = vunpack.c.0.s8 %v2157
        %v2159 = vperm.slane %v2153, %v2158
        %v2161 = vunpack.c.l.s4 1983009808
        %v2162 = vunpack.c.0.s8 %v2161
        %v2163 = vperm.slane %v2155, %v2162
        %v2164 = vrot.slane %v2135, 4
        %v2165 = vsel %vm1332, %v2164, %v2123
        %v2166 = vrot.slane %v2123, 4
        %v2167 = vsel %vm1332, %v2135, %v2166
        %v2169 = vunpack.c.l.s4 1934713408
        %v2170 = vunpack.c.0.s8 %v2169
        %v2171 = vperm.slane %v2165, %v2170
        %v2173 = vunpack.c.l.s4 1934713408
        %v2174 = vunpack.c.0.s8 %v2173
        %v2175 = vperm.slane %v2167, %v2174
        %v2176 = vrot.slane %v2139, 4
        %v2177 = vsel %vm1332, %v2176, %v2127
        %v2178 = vrot.slane %v2127, 4
        %v2179 = vsel %vm1332, %v2139, %v2178
        %v2181 = vunpack.c.l.s4 1934713408
        %v2182 = vunpack.c.0.s8 %v2181
        %v2183 = vperm.slane %v2177, %v2182
        %v2185 = vunpack.c.l.s4 1934713408
        %v2186 = vunpack.c.0.s8 %v2185
        %v2187 = vperm.slane %v2179, %v2186
        %v2188 = vrot.slane %v2159, 4
        %v2189 = vsel %vm1332, %v2188, %v2147
        %v2190 = vrot.slane %v2147, 4
        %v2191 = vsel %vm1332, %v2159, %v2190
        %v2193 = vunpack.c.l.s4 1934713408
        %v2194 = vunpack.c.0.s8 %v2193
        %v2195 = vperm.slane %v2189, %v2194
        %v2197 = vunpack.c.l.s4 1934713408
        %v2198 = vunpack.c.0.s8 %v2197
        %v2199 = vperm.slane %v2191, %v2198
        %v2200 = vrot.slane %v2163, 4
        %v2201 = vsel %vm1332, %v2200, %v2151
        %v2202 = vrot.slane %v2151, 4
        %v2203 = vsel %vm1332, %v2163, %v2202
        %v2205 = vunpack.c.l.s4 1934713408
        %v2206 = vunpack.c.0.s8 %v2205
        %v2207 = vperm.slane %v2201, %v2206
        %v2209 = vunpack.c.l.s4 1934713408
        %v2210 = vunpack.c.0.s8 %v2209
        %v2211 = vperm.slane %v2203, %v2210
        %v2212 = vrot.slane %v2195, 4
        %v2213 = vsel %vm1332, %v2212, %v2171
        %v2214 = vrot.slane %v2171, 4
        %v2215 = vsel %vm1332, %v2195, %v2214
        %v2216 = vrot.slane %v2199, 4
        %v2217 = vsel %vm1332, %v2216, %v2175
        %v2218 = vrot.slane %v2175, 4
        %v2219 = vsel %vm1332, %v2199, %v2218
        %v2220 = vrot.slane %v2207, 4
        %v2221 = vsel %vm1332, %v2220, %v2183
        %v2222 = vrot.slane %v2183, 4
        %v2223 = vsel %vm1332, %v2207, %v2222
        %v2224 = vrot.slane %v2211, 4
        %v2225 = vsel %vm1332, %v2224, %v2187
        %v2226 = vrot.slane %v2187, 4
        %v2227 = vsel %vm1332, %v2211, %v2226
        %v2228 = vrot.slane %v1319, 4
        %v2229 = vsel %vm1332, %v2228, %v1315
        %v2230 = vrot.slane %v1315, 4
        %v2231 = vsel %vm1332, %v1319, %v2230
        %v2233 = vunpack.c.l.s4 1983009808
        %v2234 = vunpack.c.0.s8 %v2233
        %v2235 = vperm.slane %v2229, %v2234
        %v2237 = vunpack.c.l.s4 1983009808
        %v2238 = vunpack.c.0.s8 %v2237
        %v2239 = vperm.slane %v2231, %v2238
        %v2240 = vrot.slane %v1321, 4
        %v2241 = vsel %vm1332, %v2240, %v1317
        %v2242 = vrot.slane %v1317, 4
        %v2243 = vsel %vm1332, %v1321, %v2242
        %v2245 = vunpack.c.l.s4 1983009808
        %v2246 = vunpack.c.0.s8 %v2245
        %v2247 = vperm.slane %v2241, %v2246
        %v2249 = vunpack.c.l.s4 1983009808
        %v2250 = vunpack.c.0.s8 %v2249
        %v2251 = vperm.slane %v2243, %v2250
        %v2252 = vrot.slane %v1327, 4
        %v2253 = vsel %vm1332, %v2252, %v1323
        %v2254 = vrot.slane %v1323, 4
        %v2255 = vsel %vm1332, %v1327, %v2254
        %v2257 = vunpack.c.l.s4 1983009808
        %v2258 = vunpack.c.0.s8 %v2257
        %v2259 = vperm.slane %v2253, %v2258
        %v2261 = vunpack.c.l.s4 1983009808
        %v2262 = vunpack.c.0.s8 %v2261
        %v2263 = vperm.slane %v2255, %v2262
        %v2264 = vrot.slane %v1329, 4
        %v2265 = vsel %vm1332, %v2264, %v1325
        %v2266 = vrot.slane %v1325, 4
        %v2267 = vsel %vm1332, %v1329, %v2266
        %v2269 = vunpack.c.l.s4 1983009808
        %v2270 = vunpack.c.0.s8 %v2269
        %v2271 = vperm.slane %v2265, %v2270
        %v2273 = vunpack.c.l.s4 1983009808
        %v2274 = vunpack.c.0.s8 %v2273
        %v2275 = vperm.slane %v2267, %v2274
        %v2276 = vrot.slane %v2247, 4
        %v2277 = vsel %vm1332, %v2276, %v2235
        %v2278 = vrot.slane %v2235, 4
        %v2279 = vsel %vm1332, %v2247, %v2278
        %v2281 = vunpack.c.l.s4 1934713408
        %v2282 = vunpack.c.0.s8 %v2281
        %v2283 = vperm.slane %v2277, %v2282
        %v2285 = vunpack.c.l.s4 1934713408
        %v2286 = vunpack.c.0.s8 %v2285
        %v2287 = vperm.slane %v2279, %v2286
        %v2288 = vrot.slane %v2251, 4
        %v2289 = vsel %vm1332, %v2288, %v2239
        %v2290 = vrot.slane %v2239, 4
        %v2291 = vsel %vm1332, %v2251, %v2290
        %v2293 = vunpack.c.l.s4 1934713408
        %v2294 = vunpack.c.0.s8 %v2293
        %v2295 = vperm.slane %v2289, %v2294
        %v2297 = vunpack.c.l.s4 1934713408
        %v2298 = vunpack.c.0.s8 %v2297
        %v2299 = vperm.slane %v2291, %v2298
        %v2300 = vrot.slane %v2271, 4
        %v2301 = vsel %vm1332, %v2300, %v2259
        %v2302 = vrot.slane %v2259, 4
        %v2303 = vsel %vm1332, %v2271, %v2302
        %v2305 = vunpack.c.l.s4 1934713408
        %v2306 = vunpack.c.0.s8 %v2305
        %v2307 = vperm.slane %v2301, %v2306
        %v2309 = vunpack.c.l.s4 1934713408
        %v2310 = vunpack.c.0.s8 %v2309
        %v2311 = vperm.slane %v2303, %v2310
        %v2312 = vrot.slane %v2275, 4
        %v2313 = vsel %vm1332, %v2312, %v2263
        %v2314 = vrot.slane %v2263, 4
        %v2315 = vsel %vm1332, %v2275, %v2314
        %v2317 = vunpack.c.l.s4 1934713408
        %v2318 = vunpack.c.0.s8 %v2317
        %v2319 = vperm.slane %v2313, %v2318
        %v2321 = vunpack.c.l.s4 1934713408
        %v2322 = vunpack.c.0.s8 %v2321
        %v2323 = vperm.slane %v2315, %v2322
        %v2324 = vrot.slane %v2307, 4
        %v2325 = vsel %vm1332, %v2324, %v2283
        %v2326 = vrot.slane %v2283, 4
        %v2327 = vsel %vm1332, %v2307, %v2326
        %v2328 = vrot.slane %v2311, 4
        %v2329 = vsel %vm1332, %v2328, %v2287
        %v2330 = vrot.slane %v2287, 4
        %v2331 = vsel %vm1332, %v2311, %v2330
        %v2332 = vrot.slane %v2319, 4
        %v2333 = vsel %vm1332, %v2332, %v2295
        %v2334 = vrot.slane %v2295, 4
        %v2335 = vsel %vm1332, %v2319, %v2334
        %v2336 = vrot.slane %v2323, 4
        %v2337 = vsel %vm1332, %v2336, %v2299
        %v2338 = vrot.slane %v2299, 4
        %v2339 = vsel %vm1332, %v2323, %v2338
        %v2340 = vrot.slane %v1192, 4
        %v2341 = vsel %vm1332, %v2340, %v1188
        %v2342 = vrot.slane %v1188, 4
        %v2343 = vsel %vm1332, %v1192, %v2342
        %v2345 = vunpack.c.l.s4 1983009808
        %v2346 = vunpack.c.0.s8 %v2345
        %v2347 = vperm.slane %v2341, %v2346
        %v2349 = vunpack.c.l.s4 1983009808
        %v2350 = vunpack.c.0.s8 %v2349
        %v2351 = vperm.slane %v2343, %v2350
        %v2352 = vrot.slane %v1194, 4
        %v2353 = vsel %vm1332, %v2352, %v1190
        %v2354 = vrot.slane %v1190, 4
        %v2355 = vsel %vm1332, %v1194, %v2354
        %v2357 = vunpack.c.l.s4 1983009808
        %v2358 = vunpack.c.0.s8 %v2357
        %v2359 = vperm.slane %v2353, %v2358
        %v2361 = vunpack.c.l.s4 1983009808
        %v2362 = vunpack.c.0.s8 %v2361
        %v2363 = vperm.slane %v2355, %v2362
        %v2364 = vrot.slane %v1200, 4
        %v2365 = vsel %vm1332, %v2364, %v1196
        %v2366 = vrot.slane %v1196, 4
        %v2367 = vsel %vm1332, %v1200, %v2366
        %v2369 = vunpack.c.l.s4 1983009808
        %v2370 = vunpack.c.0.s8 %v2369
        %v2371 = vperm.slane %v2365, %v2370
        %v2373 = vunpack.c.l.s4 1983009808
        %v2374 = vunpack.c.0.s8 %v2373
        %v2375 = vperm.slane %v2367, %v2374
        %v2376 = vrot.slane %v1202, 4
        %v2377 = vsel %vm1332, %v2376, %v1198
        %v2378 = vrot.slane %v1198, 4
        %v2379 = vsel %vm1332, %v1202, %v2378
        %v2381 = vunpack.c.l.s4 1983009808
        %v2382 = vunpack.c.0.s8 %v2381
        %v2383 = vperm.slane %v2377, %v2382
        %v2385 = vunpack.c.l.s4 1983009808
        %v2386 = vunpack.c.0.s8 %v2385
        %v2387 = vperm.slane %v2379, %v2386
        %v2388 = vrot.slane %v2359, 4
        %v2389 = vsel %vm1332, %v2388, %v2347
        %v2390 = vrot.slane %v2347, 4
        %v2391 = vsel %vm1332, %v2359, %v2390
        %v2393 = vunpack.c.l.s4 1934713408
        %v2394 = vunpack.c.0.s8 %v2393
        %v2395 = vperm.slane %v2389, %v2394
        %v2397 = vunpack.c.l.s4 1934713408
        %v2398 = vunpack.c.0.s8 %v2397
        %v2399 = vperm.slane %v2391, %v2398
        %v2400 = vrot.slane %v2363, 4
        %v2401 = vsel %vm1332, %v2400, %v2351
        %v2402 = vrot.slane %v2351, 4
        %v2403 = vsel %vm1332, %v2363, %v2402
        %v2405 = vunpack.c.l.s4 1934713408
        %v2406 = vunpack.c.0.s8 %v2405
        %v2407 = vperm.slane %v2401, %v2406
        %v2409 = vunpack.c.l.s4 1934713408
        %v2410 = vunpack.c.0.s8 %v2409
        %v2411 = vperm.slane %v2403, %v2410
        %v2412 = vrot.slane %v2383, 4
        %v2413 = vsel %vm1332, %v2412, %v2371
        %v2414 = vrot.slane %v2371, 4
        %v2415 = vsel %vm1332, %v2383, %v2414
        %v2417 = vunpack.c.l.s4 1934713408
        %v2418 = vunpack.c.0.s8 %v2417
        %v2419 = vperm.slane %v2413, %v2418
        %v2421 = vunpack.c.l.s4 1934713408
        %v2422 = vunpack.c.0.s8 %v2421
        %v2423 = vperm.slane %v2415, %v2422
        %v2424 = vrot.slane %v2387, 4
        %v2425 = vsel %vm1332, %v2424, %v2375
        %v2426 = vrot.slane %v2375, 4
        %v2427 = vsel %vm1332, %v2387, %v2426
        %v2429 = vunpack.c.l.s4 1934713408
        %v2430 = vunpack.c.0.s8 %v2429
        %v2431 = vperm.slane %v2425, %v2430
        %v2433 = vunpack.c.l.s4 1934713408
        %v2434 = vunpack.c.0.s8 %v2433
        %v2435 = vperm.slane %v2427, %v2434
        %v2436 = vrot.slane %v2419, 4
        %v2437 = vsel %vm1332, %v2436, %v2395
        %v2438 = vrot.slane %v2395, 4
        %v2439 = vsel %vm1332, %v2419, %v2438
        %v2440 = vrot.slane %v2423, 4
        %v2441 = vsel %vm1332, %v2440, %v2399
        %v2442 = vrot.slane %v2399, 4
        %v2443 = vsel %vm1332, %v2423, %v2442
        %v2444 = vrot.slane %v2431, 4
        %v2445 = vsel %vm1332, %v2444, %v2407
        %v2446 = vrot.slane %v2407, 4
        %v2447 = vsel %vm1332, %v2431, %v2446
        %v2448 = vrot.slane %v2435, 4
        %v2449 = vsel %vm1332, %v2448, %v2411
        %v2450 = vrot.slane %v2411, 4
        %v2451 = vsel %vm1332, %v2435, %v2450
        %v2452 = vrot.slane %v1208, 4
        %v2453 = vsel %vm1332, %v2452, %v1204
        %v2454 = vrot.slane %v1204, 4
        %v2455 = vsel %vm1332, %v1208, %v2454
        %v2457 = vunpack.c.l.s4 1983009808
        %v2458 = vunpack.c.0.s8 %v2457
        %v2459 = vperm.slane %v2453, %v2458
        %v2461 = vunpack.c.l.s4 1983009808
        %v2462 = vunpack.c.0.s8 %v2461
        %v2463 = vperm.slane %v2455, %v2462
        %v2464 = vrot.slane %v1210, 4
        %v2465 = vsel %vm1332, %v2464, %v1206
        %v2466 = vrot.slane %v1206, 4
        %v2467 = vsel %vm1332, %v1210, %v2466
        %v2469 = vunpack.c.l.s4 1983009808
        %v2470 = vunpack.c.0.s8 %v2469
        %v2471 = vperm.slane %v2465, %v2470
        %v2473 = vunpack.c.l.s4 1983009808
        %v2474 = vunpack.c.0.s8 %v2473
        %v2475 = vperm.slane %v2467, %v2474
        %v2476 = vrot.slane %v1216, 4
        %v2477 = vsel %vm1332, %v2476, %v1212
        %v2478 = vrot.slane %v1212, 4
        %v2479 = vsel %vm1332, %v1216, %v2478
        %v2481 = vunpack.c.l.s4 1983009808
        %v2482 = vunpack.c.0.s8 %v2481
        %v2483 = vperm.slane %v2477, %v2482
        %v2485 = vunpack.c.l.s4 1983009808
        %v2486 = vunpack.c.0.s8 %v2485
        %v2487 = vperm.slane %v2479, %v2486
        %v2488 = vrot.slane %v1218, 4
        %v2489 = vsel %vm1332, %v2488, %v1214
        %v2490 = vrot.slane %v1214, 4
        %v2491 = vsel %vm1332, %v1218, %v2490
        %v2493 = vunpack.c.l.s4 1983009808
        %v2494 = vunpack.c.0.s8 %v2493
        %v2495 = vperm.slane %v2489, %v2494
        %v2497 = vunpack.c.l.s4 1983009808
        %v2498 = vunpack.c.0.s8 %v2497
        %v2499 = vperm.slane %v2491, %v2498
        %v2500 = vrot.slane %v2471, 4
        %v2501 = vsel %vm1332, %v2500, %v2459
        %v2502 = vrot.slane %v2459, 4
        %v2503 = vsel %vm1332, %v2471, %v2502
        %v2505 = vunpack.c.l.s4 1934713408
        %v2506 = vunpack.c.0.s8 %v2505
        %v2507 = vperm.slane %v2501, %v2506
        %v2509 = vunpack.c.l.s4 1934713408
        %v2510 = vunpack.c.0.s8 %v2509
        %v2511 = vperm.slane %v2503, %v2510
        %v2512 = vrot.slane %v2475, 4
        %v2513 = vsel %vm1332, %v2512, %v2463
        %v2514 = vrot.slane %v2463, 4
        %v2515 = vsel %vm1332, %v2475, %v2514
        %v2517 = vunpack.c.l.s4 1934713408
        %v2518 = vunpack.c.0.s8 %v2517
        %v2519 = vperm.slane %v2513, %v2518
        %v2521 = vunpack.c.l.s4 1934713408
        %v2522 = vunpack.c.0.s8 %v2521
        %v2523 = vperm.slane %v2515, %v2522
        %v2524 = vrot.slane %v2495, 4
        %v2525 = vsel %vm1332, %v2524, %v2483
        %v2526 = vrot.slane %v2483, 4
        %v2527 = vsel %vm1332, %v2495, %v2526
        %v2529 = vunpack.c.l.s4 1934713408
        %v2530 = vunpack.c.0.s8 %v2529
        %v2531 = vperm.slane %v2525, %v2530
        %v2533 = vunpack.c.l.s4 1934713408
        %v2534 = vunpack.c.0.s8 %v2533
        %v2535 = vperm.slane %v2527, %v2534
        %v2536 = vrot.slane %v2499, 4
        %v2537 = vsel %vm1332, %v2536, %v2487
        %v2538 = vrot.slane %v2487, 4
        %v2539 = vsel %vm1332, %v2499, %v2538
        %v2541 = vunpack.c.l.s4 1934713408
        %v2542 = vunpack.c.0.s8 %v2541
        %v2543 = vperm.slane %v2537, %v2542
        %v2545 = vunpack.c.l.s4 1934713408
        %v2546 = vunpack.c.0.s8 %v2545
        %v2547 = vperm.slane %v2539, %v2546
        %v2548 = vrot.slane %v2531, 4
        %v2549 = vsel %vm1332, %v2548, %v2507
        %v2550 = vrot.slane %v2507, 4
        %v2551 = vsel %vm1332, %v2531, %v2550
        %v2552 = vrot.slane %v2535, 4
        %v2553 = vsel %vm1332, %v2552, %v2511
        %v2554 = vrot.slane %v2511, 4
        %v2555 = vsel %vm1332, %v2535, %v2554
        %v2556 = vrot.slane %v2543, 4
        %v2557 = vsel %vm1332, %v2556, %v2519
        %v2558 = vrot.slane %v2519, 4
        %v2559 = vsel %vm1332, %v2543, %v2558
        %v2560 = vrot.slane %v2547, 4
        %v2561 = vsel %vm1332, %v2560, %v2523
        %v2562 = vrot.slane %v2523, 4
        %v2563 = vsel %vm1332, %v2547, %v2562
        %v2564 = vrot.slane %v1224, 4
        %v2565 = vsel %vm1332, %v2564, %v1220
        %v2566 = vrot.slane %v1220, 4
        %v2567 = vsel %vm1332, %v1224, %v2566
        %v2569 = vunpack.c.l.s4 1983009808
        %v2570 = vunpack.c.0.s8 %v2569
        %v2571 = vperm.slane %v2565, %v2570
        %v2573 = vunpack.c.l.s4 1983009808
        %v2574 = vunpack.c.0.s8 %v2573
        %v2575 = vperm.slane %v2567, %v2574
        %v2576 = vrot.slane %v1226, 4
        %v2577 = vsel %vm1332, %v2576, %v1222
        %v2578 = vrot.slane %v1222, 4
        %v2579 = vsel %vm1332, %v1226, %v2578
        %v2581 = vunpack.c.l.s4 1983009808
        %v2582 = vunpack.c.0.s8 %v2581
        %v2583 = vperm.slane %v2577, %v2582
        %v2585 = vunpack.c.l.s4 1983009808
        %v2586 = vunpack.c.0.s8 %v2585
        %v2587 = vperm.slane %v2579, %v2586
        %v2588 = vrot.slane %v1232, 4
        %v2589 = vsel %vm1332, %v2588, %v1228
        %v2590 = vrot.slane %v1228, 4
        %v2591 = vsel %vm1332, %v1232, %v2590
        %v2593 = vunpack.c.l.s4 1983009808
        %v2594 = vunpack.c.0.s8 %v2593
        %v2595 = vperm.slane %v2589, %v2594
        %v2597 = vunpack.c.l.s4 1983009808
        %v2598 = vunpack.c.0.s8 %v2597
        %v2599 = vperm.slane %v2591, %v2598
        %v2600 = vrot.slane %v1234, 4
        %v2601 = vsel %vm1332, %v2600, %v1230
        %v2602 = vrot.slane %v1230, 4
        %v2603 = vsel %vm1332, %v1234, %v2602
        %v2605 = vunpack.c.l.s4 1983009808
        %v2606 = vunpack.c.0.s8 %v2605
        %v2607 = vperm.slane %v2601, %v2606
        %v2609 = vunpack.c.l.s4 1983009808
        %v2610 = vunpack.c.0.s8 %v2609
        %v2611 = vperm.slane %v2603, %v2610
        %v2612 = vrot.slane %v2583, 4
        %v2613 = vsel %vm1332, %v2612, %v2571
        %v2614 = vrot.slane %v2571, 4
        %v2615 = vsel %vm1332, %v2583, %v2614
        %v2617 = vunpack.c.l.s4 1934713408
        %v2618 = vunpack.c.0.s8 %v2617
        %v2619 = vperm.slane %v2613, %v2618
        %v2621 = vunpack.c.l.s4 1934713408
        %v2622 = vunpack.c.0.s8 %v2621
        %v2623 = vperm.slane %v2615, %v2622
        %v2624 = vrot.slane %v2587, 4
        %v2625 = vsel %vm1332, %v2624, %v2575
        %v2626 = vrot.slane %v2575, 4
        %v2627 = vsel %vm1332, %v2587, %v2626
        %v2629 = vunpack.c.l.s4 1934713408
        %v2630 = vunpack.c.0.s8 %v2629
        %v2631 = vperm.slane %v2625, %v2630
        %v2633 = vunpack.c.l.s4 1934713408
        %v2634 = vunpack.c.0.s8 %v2633
        %v2635 = vperm.slane %v2627, %v2634
        %v2636 = vrot.slane %v2607, 4
        %v2637 = vsel %vm1332, %v2636, %v2595
        %v2638 = vrot.slane %v2595, 4
        %v2639 = vsel %vm1332, %v2607, %v2638
        %v2641 = vunpack.c.l.s4 1934713408
        %v2642 = vunpack.c.0.s8 %v2641
        %v2643 = vperm.slane %v2637, %v2642
        %v2645 = vunpack.c.l.s4 1934713408
        %v2646 = vunpack.c.0.s8 %v2645
        %v2647 = vperm.slane %v2639, %v2646
        %v2648 = vrot.slane %v2611, 4
        %v2649 = vsel %vm1332, %v2648, %v2599
        %v2650 = vrot.slane %v2599, 4
        %v2651 = vsel %vm1332, %v2611, %v2650
        %v2653 = vunpack.c.l.s4 1934713408
        %v2654 = vunpack.c.0.s8 %v2653
        %v2655 = vperm.slane %v2649, %v2654
        %v2657 = vunpack.c.l.s4 1934713408
        %v2658 = vunpack.c.0.s8 %v2657
        %v2659 = vperm.slane %v2651, %v2658
        %v2660 = vrot.slane %v2643, 4
        %v2661 = vsel %vm1332, %v2660, %v2619
        %v2662 = vrot.slane %v2619, 4
        %v2663 = vsel %vm1332, %v2643, %v2662
        %v2664 = vrot.slane %v2647, 4
        %v2665 = vsel %vm1332, %v2664, %v2623
        %v2666 = vrot.slane %v2623, 4
        %v2667 = vsel %vm1332, %v2647, %v2666
        %v2668 = vrot.slane %v2655, 4
        %v2669 = vsel %vm1332, %v2668, %v2631
        %v2670 = vrot.slane %v2631, 4
        %v2671 = vsel %vm1332, %v2655, %v2670
        %v2672 = vrot.slane %v2659, 4
        %v2673 = vsel %vm1332, %v2672, %v2635
        %v2674 = vrot.slane %v2635, 4
        %v2675 = vsel %vm1332, %v2659, %v2674
        %v2676 = vrot.slane %v1240, 4
        %v2677 = vsel %vm1332, %v2676, %v1236
        %v2678 = vrot.slane %v1236, 4
        %v2679 = vsel %vm1332, %v1240, %v2678
        %v2681 = vunpack.c.l.s4 1983009808
        %v2682 = vunpack.c.0.s8 %v2681
        %v2683 = vperm.slane %v2677, %v2682
        %v2685 = vunpack.c.l.s4 1983009808
        %v2686 = vunpack.c.0.s8 %v2685
        %v2687 = vperm.slane %v2679, %v2686
        %v2688 = vrot.slane %v1242, 4
        %v2689 = vsel %vm1332, %v2688, %v1238
        %v2690 = vrot.slane %v1238, 4
        %v2691 = vsel %vm1332, %v1242, %v2690
        %v2693 = vunpack.c.l.s4 1983009808
        %v2694 = vunpack.c.0.s8 %v2693
        %v2695 = vperm.slane %v2689, %v2694
        %v2697 = vunpack.c.l.s4 1983009808
        %v2698 = vunpack.c.0.s8 %v2697
        %v2699 = vperm.slane %v2691, %v2698
        %v2700 = vrot.slane %v1248, 4
        %v2701 = vsel %vm1332, %v2700, %v1244
        %v2702 = vrot.slane %v1244, 4
        %v2703 = vsel %vm1332, %v1248, %v2702
        %v2705 = vunpack.c.l.s4 1983009808
        %v2706 = vunpack.c.0.s8 %v2705
        %v2707 = vperm.slane %v2701, %v2706
        %v2709 = vunpack.c.l.s4 1983009808
        %v2710 = vunpack.c.0.s8 %v2709
        %v2711 = vperm.slane %v2703, %v2710
        %v2712 = vrot.slane %v1250, 4
        %v2713 = vsel %vm1332, %v2712, %v1246
        %v2714 = vrot.slane %v1246, 4
        %v2715 = vsel %vm1332, %v1250, %v2714
        %v2717 = vunpack.c.l.s4 1983009808
        %v2718 = vunpack.c.0.s8 %v2717
        %v2719 = vperm.slane %v2713, %v2718
        %v2721 = vunpack.c.l.s4 1983009808
        %v2722 = vunpack.c.0.s8 %v2721
        %v2723 = vperm.slane %v2715, %v2722
        %v2724 = vrot.slane %v2695, 4
        %v2725 = vsel %vm1332, %v2724, %v2683
        %v2726 = vrot.slane %v2683, 4
        %v2727 = vsel %vm1332, %v2695, %v2726
        %v2729 = vunpack.c.l.s4 1934713408
        %v2730 = vunpack.c.0.s8 %v2729
        %v2731 = vperm.slane %v2725, %v2730
        %v2733 = vunpack.c.l.s4 1934713408
        %v2734 = vunpack.c.0.s8 %v2733
        %v2735 = vperm.slane %v2727, %v2734
        %v2736 = vrot.slane %v2699, 4
        %v2737 = vsel %vm1332, %v2736, %v2687
        %v2738 = vrot.slane %v2687, 4
        %v2739 = vsel %vm1332, %v2699, %v2738
        %v2741 = vunpack.c.l.s4 1934713408
        %v2742 = vunpack.c.0.s8 %v2741
        %v2743 = vperm.slane %v2737, %v2742
        %v2745 = vunpack.c.l.s4 1934713408
        %v2746 = vunpack.c.0.s8 %v2745
        %v2747 = vperm.slane %v2739, %v2746
        %v2748 = vrot.slane %v2719, 4
        %v2749 = vsel %vm1332, %v2748, %v2707
        %v2750 = vrot.slane %v2707, 4
        %v2751 = vsel %vm1332, %v2719, %v2750
        %v2753 = vunpack.c.l.s4 1934713408
        %v2754 = vunpack.c.0.s8 %v2753
        %v2755 = vperm.slane %v2749, %v2754
        %v2757 = vunpack.c.l.s4 1934713408
        %v2758 = vunpack.c.0.s8 %v2757
        %v2759 = vperm.slane %v2751, %v2758
        %v2760 = vrot.slane %v2723, 4
        %v2761 = vsel %vm1332, %v2760, %v2711
        %v2762 = vrot.slane %v2711, 4
        %v2763 = vsel %vm1332, %v2723, %v2762
        %v2765 = vunpack.c.l.s4 1934713408
        %v2766 = vunpack.c.0.s8 %v2765
        %v2767 = vperm.slane %v2761, %v2766
        %v2769 = vunpack.c.l.s4 1934713408
        %v2770 = vunpack.c.0.s8 %v2769
        %v2771 = vperm.slane %v2763, %v2770
        %v2772 = vrot.slane %v2755, 4
        %v2773 = vsel %vm1332, %v2772, %v2731
        %v2774 = vrot.slane %v2731, 4
        %v2775 = vsel %vm1332, %v2755, %v2774
        %v2776 = vrot.slane %v2759, 4
        %v2777 = vsel %vm1332, %v2776, %v2735
        %v2778 = vrot.slane %v2735, 4
        %v2779 = vsel %vm1332, %v2759, %v2778
        %v2780 = vrot.slane %v2767, 4
        %v2781 = vsel %vm1332, %v2780, %v2743
        %v2782 = vrot.slane %v2743, 4
        %v2783 = vsel %vm1332, %v2767, %v2782
        %v2784 = vrot.slane %v2771, 4
        %v2785 = vsel %vm1332, %v2784, %v2747
        %v2786 = vrot.slane %v2747, 4
        %v2787 = vsel %vm1332, %v2771, %v2786
        %v2788 = vrot.slane %v1256, 4
        %v2789 = vsel %vm1332, %v2788, %v1252
        %v2790 = vrot.slane %v1252, 4
        %v2791 = vsel %vm1332, %v1256, %v2790
        %v2793 = vunpack.c.l.s4 1983009808
        %v2794 = vunpack.c.0.s8 %v2793
        %v2795 = vperm.slane %v2789, %v2794
        %v2797 = vunpack.c.l.s4 1983009808
        %v2798 = vunpack.c.0.s8 %v2797
        %v2799 = vperm.slane %v2791, %v2798
        %v2800 = vrot.slane %v1258, 4
        %v2801 = vsel %vm1332, %v2800, %v1254
        %v2802 = vrot.slane %v1254, 4
        %v2803 = vsel %vm1332, %v1258, %v2802
        %v2805 = vunpack.c.l.s4 1983009808
        %v2806 = vunpack.c.0.s8 %v2805
        %v2807 = vperm.slane %v2801, %v2806
        %v2809 = vunpack.c.l.s4 1983009808
        %v2810 = vunpack.c.0.s8 %v2809
        %v2811 = vperm.slane %v2803, %v2810
        %v2812 = vrot.slane %v1264, 4
        %v2813 = vsel %vm1332, %v2812, %v1260
        %v2814 = vrot.slane %v1260, 4
        %v2815 = vsel %vm1332, %v1264, %v2814
        %v2817 = vunpack.c.l.s4 1983009808
        %v2818 = vunpack.c.0.s8 %v2817
        %v2819 = vperm.slane %v2813, %v2818
        %v2821 = vunpack.c.l.s4 1983009808
        %v2822 = vunpack.c.0.s8 %v2821
        %v2823 = vperm.slane %v2815, %v2822
        %v2824 = vrot.slane %v1266, 4
        %v2825 = vsel %vm1332, %v2824, %v1262
        %v2826 = vrot.slane %v1262, 4
        %v2827 = vsel %vm1332, %v1266, %v2826
        %v2829 = vunpack.c.l.s4 1983009808
        %v2830 = vunpack.c.0.s8 %v2829
        %v2831 = vperm.slane %v2825, %v2830
        %v2833 = vunpack.c.l.s4 1983009808
        %v2834 = vunpack.c.0.s8 %v2833
        %v2835 = vperm.slane %v2827, %v2834
        %v2836 = vrot.slane %v2807, 4
        %v2837 = vsel %vm1332, %v2836, %v2795
        %v2838 = vrot.slane %v2795, 4
        %v2839 = vsel %vm1332, %v2807, %v2838
        %v2841 = vunpack.c.l.s4 1934713408
        %v2842 = vunpack.c.0.s8 %v2841
        %v2843 = vperm.slane %v2837, %v2842
        %v2845 = vunpack.c.l.s4 1934713408
        %v2846 = vunpack.c.0.s8 %v2845
        %v2847 = vperm.slane %v2839, %v2846
        %v2848 = vrot.slane %v2811, 4
        %v2849 = vsel %vm1332, %v2848, %v2799
        %v2850 = vrot.slane %v2799, 4
        %v2851 = vsel %vm1332, %v2811, %v2850
        %v2853 = vunpack.c.l.s4 1934713408
        %v2854 = vunpack.c.0.s8 %v2853
        %v2855 = vperm.slane %v2849, %v2854
        %v2857 = vunpack.c.l.s4 1934713408
        %v2858 = vunpack.c.0.s8 %v2857
        %v2859 = vperm.slane %v2851, %v2858
        %v2860 = vrot.slane %v2831, 4
        %v2861 = vsel %vm1332, %v2860, %v2819
        %v2862 = vrot.slane %v2819, 4
        %v2863 = vsel %vm1332, %v2831, %v2862
        %v2865 = vunpack.c.l.s4 1934713408
        %v2866 = vunpack.c.0.s8 %v2865
        %v2867 = vperm.slane %v2861, %v2866
        %v2869 = vunpack.c.l.s4 1934713408
        %v2870 = vunpack.c.0.s8 %v2869
        %v2871 = vperm.slane %v2863, %v2870
        %v2872 = vrot.slane %v2835, 4
        %v2873 = vsel %vm1332, %v2872, %v2823
        %v2874 = vrot.slane %v2823, 4
        %v2875 = vsel %vm1332, %v2835, %v2874
        %v2877 = vunpack.c.l.s4 1934713408
        %v2878 = vunpack.c.0.s8 %v2877
        %v2879 = vperm.slane %v2873, %v2878
        %v2881 = vunpack.c.l.s4 1934713408
        %v2882 = vunpack.c.0.s8 %v2881
        %v2883 = vperm.slane %v2875, %v2882
        %v2884 = vrot.slane %v2867, 4
        %v2885 = vsel %vm1332, %v2884, %v2843
        %v2886 = vrot.slane %v2843, 4
        %v2887 = vsel %vm1332, %v2867, %v2886
        %v2888 = vrot.slane %v2871, 4
        %v2889 = vsel %vm1332, %v2888, %v2847
        %v2890 = vrot.slane %v2847, 4
        %v2891 = vsel %vm1332, %v2871, %v2890
        %v2892 = vrot.slane %v2879, 4
        %v2893 = vsel %vm1332, %v2892, %v2855
        %v2894 = vrot.slane %v2855, 4
        %v2895 = vsel %vm1332, %v2879, %v2894
        %v2896 = vrot.slane %v2883, 4
        %v2897 = vsel %vm1332, %v2896, %v2859
        %v2898 = vrot.slane %v2859, 4
        %v2899 = vsel %vm1332, %v2883, %v2898
        %v2900 = vrot.slane %v1272, 4
        %v2901 = vsel %vm1332, %v2900, %v1268
        %v2902 = vrot.slane %v1268, 4
        %v2903 = vsel %vm1332, %v1272, %v2902
        %v2905 = vunpack.c.l.s4 1983009808
        %v2906 = vunpack.c.0.s8 %v2905
        %v2907 = vperm.slane %v2901, %v2906
        %v2909 = vunpack.c.l.s4 1983009808
        %v2910 = vunpack.c.0.s8 %v2909
        %v2911 = vperm.slane %v2903, %v2910
        %v2912 = vrot.slane %v1274, 4
        %v2913 = vsel %vm1332, %v2912, %v1270
        %v2914 = vrot.slane %v1270, 4
        %v2915 = vsel %vm1332, %v1274, %v2914
        %v2917 = vunpack.c.l.s4 1983009808
        %v2918 = vunpack.c.0.s8 %v2917
        %v2919 = vperm.slane %v2913, %v2918
        %v2921 = vunpack.c.l.s4 1983009808
        %v2922 = vunpack.c.0.s8 %v2921
        %v2923 = vperm.slane %v2915, %v2922
        %v2924 = vrot.slane %v1280, 4
        %v2925 = vsel %vm1332, %v2924, %v1276
        %v2926 = vrot.slane %v1276, 4
        %v2927 = vsel %vm1332, %v1280, %v2926
        %v2929 = vunpack.c.l.s4 1983009808
        %v2930 = vunpack.c.0.s8 %v2929
        %v2931 = vperm.slane %v2925, %v2930
        %v2933 = vunpack.c.l.s4 1983009808
        %v2934 = vunpack.c.0.s8 %v2933
        %v2935 = vperm.slane %v2927, %v2934
        %v2936 = vrot.slane %v1282, 4
        %v2937 = vsel %vm1332, %v2936, %v1278
        %v2938 = vrot.slane %v1278, 4
        %v2939 = vsel %vm1332, %v1282, %v2938
        %v2941 = vunpack.c.l.s4 1983009808
        %v2942 = vunpack.c.0.s8 %v2941
        %v2943 = vperm.slane %v2937, %v2942
        %v2945 = vunpack.c.l.s4 1983009808
        %v2946 = vunpack.c.0.s8 %v2945
        %v2947 = vperm.slane %v2939, %v2946
        %v2948 = vrot.slane %v2919, 4
        %v2949 = vsel %vm1332, %v2948, %v2907
        %v2950 = vrot.slane %v2907, 4
        %v2951 = vsel %vm1332, %v2919, %v2950
        %v2953 = vunpack.c.l.s4 1934713408
        %v2954 = vunpack.c.0.s8 %v2953
        %v2955 = vperm.slane %v2949, %v2954
        %v2957 = vunpack.c.l.s4 1934713408
        %v2958 = vunpack.c.0.s8 %v2957
        %v2959 = vperm.slane %v2951, %v2958
        %v2960 = vrot.slane %v2923, 4
        %v2961 = vsel %vm1332, %v2960, %v2911
        %v2962 = vrot.slane %v2911, 4
        %v2963 = vsel %vm1332, %v2923, %v2962
        %v2965 = vunpack.c.l.s4 1934713408
        %v2966 = vunpack.c.0.s8 %v2965
        %v2967 = vperm.slane %v2961, %v2966
        %v2969 = vunpack.c.l.s4 1934713408
        %v2970 = vunpack.c.0.s8 %v2969
        %v2971 = vperm.slane %v2963, %v2970
        %v2972 = vrot.slane %v2943, 4
        %v2973 = vsel %vm1332, %v2972, %v2931
        %v2974 = vrot.slane %v2931, 4
        %v2975 = vsel %vm1332, %v2943, %v2974
        %v2977 = vunpack.c.l.s4 1934713408
        %v2978 = vunpack.c.0.s8 %v2977
        %v2979 = vperm.slane %v2973, %v2978
        %v2981 = vunpack.c.l.s4 1934713408
        %v2982 = vunpack.c.0.s8 %v2981
        %v2983 = vperm.slane %v2975, %v2982
        %v2984 = vrot.slane %v2947, 4
        %v2985 = vsel %vm1332, %v2984, %v2935
        %v2986 = vrot.slane %v2935, 4
        %v2987 = vsel %vm1332, %v2947, %v2986
        %v2989 = vunpack.c.l.s4 1934713408
        %v2990 = vunpack.c.0.s8 %v2989
        %v2991 = vperm.slane %v2985, %v2990
        %v2993 = vunpack.c.l.s4 1934713408
        %v2994 = vunpack.c.0.s8 %v2993
        %v2995 = vperm.slane %v2987, %v2994
        %v2996 = vrot.slane %v2979, 4
        %v2997 = vsel %vm1332, %v2996, %v2955
        %v2998 = vrot.slane %v2955, 4
        %v2999 = vsel %vm1332, %v2979, %v2998
        %v3000 = vrot.slane %v2983, 4
        %v3001 = vsel %vm1332, %v3000, %v2959
        %v3002 = vrot.slane %v2959, 4
        %v3003 = vsel %vm1332, %v2983, %v3002
        %v3004 = vrot.slane %v2991, 4
        %v3005 = vsel %vm1332, %v3004, %v2967
        %v3006 = vrot.slane %v2967, 4
        %v3007 = vsel %vm1332, %v2991, %v3006
        %v3008 = vrot.slane %v2995, 4
        %v3009 = vsel %vm1332, %v3008, %v2971
        %v3010 = vrot.slane %v2971, 4
        %v3011 = vsel %vm1332, %v2995, %v3010
        %v3012 = vrot.slane %v1288, 4
        %v3013 = vsel %vm1332, %v3012, %v1284
        %v3014 = vrot.slane %v1284, 4
        %v3015 = vsel %vm1332, %v1288, %v3014
        %v3017 = vunpack.c.l.s4 1983009808
        %v3018 = vunpack.c.0.s8 %v3017
        %v3019 = vperm.slane %v3013, %v3018
        %v3021 = vunpack.c.l.s4 1983009808
        %v3022 = vunpack.c.0.s8 %v3021
        %v3023 = vperm.slane %v3015, %v3022
        %v3024 = vrot.slane %v1290, 4
        %v3025 = vsel %vm1332, %v3024, %v1286
        %v3026 = vrot.slane %v1286, 4
        %v3027 = vsel %vm1332, %v1290, %v3026
        %v3029 = vunpack.c.l.s4 1983009808
        %v3030 = vunpack.c.0.s8 %v3029
        %v3031 = vperm.slane %v3025, %v3030
        %v3033 = vunpack.c.l.s4 1983009808
        %v3034 = vunpack.c.0.s8 %v3033
        %v3035 = vperm.slane %v3027, %v3034
        %v3036 = vrot.slane %v1296, 4
        %v3037 = vsel %vm1332, %v3036, %v1292
        %v3038 = vrot.slane %v1292, 4
        %v3039 = vsel %vm1332, %v1296, %v3038
        %v3041 = vunpack.c.l.s4 1983009808
        %v3042 = vunpack.c.0.s8 %v3041
        %v3043 = vperm.slane %v3037, %v3042
        %v3045 = vunpack.c.l.s4 1983009808
        %v3046 = vunpack.c.0.s8 %v3045
        %v3047 = vperm.slane %v3039, %v3046
        %v3048 = vrot.slane %v1298, 4
        %v3049 = vsel %vm1332, %v3048, %v1294
        %v3050 = vrot.slane %v1294, 4
        %v3051 = vsel %vm1332, %v1298, %v3050
        %v3053 = vunpack.c.l.s4 1983009808
        %v3054 = vunpack.c.0.s8 %v3053
        %v3055 = vperm.slane %v3049, %v3054
        %v3057 = vunpack.c.l.s4 1983009808
        %v3058 = vunpack.c.0.s8 %v3057
        %v3059 = vperm.slane %v3051, %v3058
        %v3060 = vrot.slane %v3031, 4
        %v3061 = vsel %vm1332, %v3060, %v3019
        %v3062 = vrot.slane %v3019, 4
        %v3063 = vsel %vm1332, %v3031, %v3062
        %v3065 = vunpack.c.l.s4 1934713408
        %v3066 = vunpack.c.0.s8 %v3065
        %v3067 = vperm.slane %v3061, %v3066
        %v3069 = vunpack.c.l.s4 1934713408
        %v3070 = vunpack.c.0.s8 %v3069
        %v3071 = vperm.slane %v3063, %v3070
        %v3072 = vrot.slane %v3035, 4
        %v3073 = vsel %vm1332, %v3072, %v3023
        %v3074 = vrot.slane %v3023, 4
        %v3075 = vsel %vm1332, %v3035, %v3074
        %v3077 = vunpack.c.l.s4 1934713408
        %v3078 = vunpack.c.0.s8 %v3077
        %v3079 = vperm.slane %v3073, %v3078
        %v3081 = vunpack.c.l.s4 1934713408
        %v3082 = vunpack.c.0.s8 %v3081
        %v3083 = vperm.slane %v3075, %v3082
        %v3084 = vrot.slane %v3055, 4
        %v3085 = vsel %vm1332, %v3084, %v3043
        %v3086 = vrot.slane %v3043, 4
        %v3087 = vsel %vm1332, %v3055, %v3086
        %v3089 = vunpack.c.l.s4 1934713408
        %v3090 = vunpack.c.0.s8 %v3089
        %v3091 = vperm.slane %v3085, %v3090
        %v3093 = vunpack.c.l.s4 1934713408
        %v3094 = vunpack.c.0.s8 %v3093
        %v3095 = vperm.slane %v3087, %v3094
        %v3096 = vrot.slane %v3059, 4
        %v3097 = vsel %vm1332, %v3096, %v3047
        %v3098 = vrot.slane %v3047, 4
        %v3099 = vsel %vm1332, %v3059, %v3098
        %v3101 = vunpack.c.l.s4 1934713408
        %v3102 = vunpack.c.0.s8 %v3101
        %v3103 = vperm.slane %v3097, %v3102
        %v3105 = vunpack.c.l.s4 1934713408
        %v3106 = vunpack.c.0.s8 %v3105
        %v3107 = vperm.slane %v3099, %v3106
        %v3108 = vrot.slane %v3091, 4
        %v3109 = vsel %vm1332, %v3108, %v3067
        %v3110 = vrot.slane %v3067, 4
        %v3111 = vsel %vm1332, %v3091, %v3110
        %v3112 = vrot.slane %v3095, 4
        %v3113 = vsel %vm1332, %v3112, %v3071
        %v3114 = vrot.slane %v3071, 4
        %v3115 = vsel %vm1332, %v3095, %v3114
        %v3116 = vrot.slane %v3103, 4
        %v3117 = vsel %vm1332, %v3116, %v3079
        %v3118 = vrot.slane %v3079, 4
        %v3119 = vsel %vm1332, %v3103, %v3118
        %v3120 = vrot.slane %v3107, 4
        %v3121 = vsel %vm1332, %v3120, %v3083
        %v3122 = vrot.slane %v3083, 4
        %v3123 = vsel %vm1332, %v3107, %v3122
        %v3124 = vrot.slane %v1304, 4
        %v3125 = vsel %vm1332, %v3124, %v1300
        %v3126 = vrot.slane %v1300, 4
        %v3127 = vsel %vm1332, %v1304, %v3126
        %v3129 = vunpack.c.l.s4 1983009808
        %v3130 = vunpack.c.0.s8 %v3129
        %v3131 = vperm.slane %v3125, %v3130
        %v3133 = vunpack.c.l.s4 1983009808
        %v3134 = vunpack.c.0.s8 %v3133
        %v3135 = vperm.slane %v3127, %v3134
        %v3136 = vrot.slane %v1306, 4
        %v3137 = vsel %vm1332, %v3136, %v1302
        %v3138 = vrot.slane %v1302, 4
        %v3139 = vsel %vm1332, %v1306, %v3138
        %v3141 = vunpack.c.l.s4 1983009808
        %v3142 = vunpack.c.0.s8 %v3141
        %v3143 = vperm.slane %v3137, %v3142
        %v3145 = vunpack.c.l.s4 1983009808
        %v3146 = vunpack.c.0.s8 %v3145
        %v3147 = vperm.slane %v3139, %v3146
        %v3148 = vrot.slane %v1312, 4
        %v3149 = vsel %vm1332, %v3148, %v1308
        %v3150 = vrot.slane %v1308, 4
        %v3151 = vsel %vm1332, %v1312, %v3150
        %v3153 = vunpack.c.l.s4 1983009808
        %v3154 = vunpack.c.0.s8 %v3153
        %v3155 = vperm.slane %v3149, %v3154
        %v3157 = vunpack.c.l.s4 1983009808
        %v3158 = vunpack.c.0.s8 %v3157
        %v3159 = vperm.slane %v3151, %v3158
        %v3160 = vrot.slane %v1314, 4
        %v3161 = vsel %vm1332, %v3160, %v1310
        %v3162 = vrot.slane %v1310, 4
        %v3163 = vsel %vm1332, %v1314, %v3162
        %v3165 = vunpack.c.l.s4 1983009808
        %v3166 = vunpack.c.0.s8 %v3165
        %v3167 = vperm.slane %v3161, %v3166
        %v3169 = vunpack.c.l.s4 1983009808
        %v3170 = vunpack.c.0.s8 %v3169
        %v3171 = vperm.slane %v3163, %v3170
        %v3172 = vrot.slane %v3143, 4
        %v3173 = vsel %vm1332, %v3172, %v3131
        %v3174 = vrot.slane %v3131, 4
        %v3175 = vsel %vm1332, %v3143, %v3174
        %v3177 = vunpack.c.l.s4 1934713408
        %v3178 = vunpack.c.0.s8 %v3177
        %v3179 = vperm.slane %v3173, %v3178
        %v3181 = vunpack.c.l.s4 1934713408
        %v3182 = vunpack.c.0.s8 %v3181
        %v3183 = vperm.slane %v3175, %v3182
        %v3184 = vrot.slane %v3147, 4
        %v3185 = vsel %vm1332, %v3184, %v3135
        %v3186 = vrot.slane %v3135, 4
        %v3187 = vsel %vm1332, %v3147, %v3186
        %v3189 = vunpack.c.l.s4 1934713408
        %v3190 = vunpack.c.0.s8 %v3189
        %v3191 = vperm.slane %v3185, %v3190
        %v3193 = vunpack.c.l.s4 1934713408
        %v3194 = vunpack.c.0.s8 %v3193
        %v3195 = vperm.slane %v3187, %v3194
        %v3196 = vrot.slane %v3167, 4
        %v3197 = vsel %vm1332, %v3196, %v3155
        %v3198 = vrot.slane %v3155, 4
        %v3199 = vsel %vm1332, %v3167, %v3198
        %v3201 = vunpack.c.l.s4 1934713408
        %v3202 = vunpack.c.0.s8 %v3201
        %v3203 = vperm.slane %v3197, %v3202
        %v3205 = vunpack.c.l.s4 1934713408
        %v3206 = vunpack.c.0.s8 %v3205
        %v3207 = vperm.slane %v3199, %v3206
        %v3208 = vrot.slane %v3171, 4
        %v3209 = vsel %vm1332, %v3208, %v3159
        %v3210 = vrot.slane %v3159, 4
        %v3211 = vsel %vm1332, %v3171, %v3210
        %v3213 = vunpack.c.l.s4 1934713408
        %v3214 = vunpack.c.0.s8 %v3213
        %v3215 = vperm.slane %v3209, %v3214
        %v3217 = vunpack.c.l.s4 1934713408
        %v3218 = vunpack.c.0.s8 %v3217
        %v3219 = vperm.slane %v3211, %v3218
        %v3220 = vrot.slane %v3203, 4
        %v3221 = vsel %vm1332, %v3220, %v3179
        %v3222 = vrot.slane %v3179, 4
        %v3223 = vsel %vm1332, %v3203, %v3222
        %v3224 = vrot.slane %v3207, 4
        %v3225 = vsel %vm1332, %v3224, %v3183
        %v3226 = vrot.slane %v3183, 4
        %v3227 = vsel %vm1332, %v3207, %v3226
        %v3228 = vrot.slane %v3215, 4
        %v3229 = vsel %vm1332, %v3228, %v3191
        %v3230 = vrot.slane %v3191, 4
        %v3231 = vsel %vm1332, %v3215, %v3230
        %v3232 = vrot.slane %v3219, 4
        %v3233 = vsel %vm1332, %v3232, %v3195
        %v3234 = vrot.slane %v3195, 4
        %v3235 = vsel %vm1332, %v3219, %v3234
        %v3236 = vrot.slane %v1320, 4
        %v3237 = vsel %vm1332, %v3236, %v1316
        %v3238 = vrot.slane %v1316, 4
        %v3239 = vsel %vm1332, %v1320, %v3238
        %v3241 = vunpack.c.l.s4 1983009808
        %v3242 = vunpack.c.0.s8 %v3241
        %v3243 = vperm.slane %v3237, %v3242
        %v3245 = vunpack.c.l.s4 1983009808
        %v3246 = vunpack.c.0.s8 %v3245
        %v3247 = vperm.slane %v3239, %v3246
        %v3248 = vrot.slane %v1322, 4
        %v3249 = vsel %vm1332, %v3248, %v1318
        %v3250 = vrot.slane %v1318, 4
        %v3251 = vsel %vm1332, %v1322, %v3250
        %v3253 = vunpack.c.l.s4 1983009808
        %v3254 = vunpack.c.0.s8 %v3253
        %v3255 = vperm.slane %v3249, %v3254
        %v3257 = vunpack.c.l.s4 1983009808
        %v3258 = vunpack.c.0.s8 %v3257
        %v3259 = vperm.slane %v3251, %v3258
        %v3260 = vrot.slane %v1328, 4
        %v3261 = vsel %vm1332, %v3260, %v1324
        %v3262 = vrot.slane %v1324, 4
        %v3263 = vsel %vm1332, %v1328, %v3262
        %v3265 = vunpack.c.l.s4 1983009808
        %v3266 = vunpack.c.0.s8 %v3265
        %v3267 = vperm.slane %v3261, %v3266
        %v3269 = vunpack.c.l.s4 1983009808
        %v3270 = vunpack.c.0.s8 %v3269
        %v3271 = vperm.slane %v3263, %v3270
        %v3272 = vrot.slane %v1330, 4
        %v3273 = vsel %vm1332, %v3272, %v1326
        %v3274 = vrot.slane %v1326, 4
        %v3275 = vsel %vm1332, %v1330, %v3274
        %v3277 = vunpack.c.l.s4 1983009808
        %v3278 = vunpack.c.0.s8 %v3277
        %v3279 = vperm.slane %v3273, %v3278
        %v3281 = vunpack.c.l.s4 1983009808
        %v3282 = vunpack.c.0.s8 %v3281
        %v3283 = vperm.slane %v3275, %v3282
        %v3284 = vrot.slane %v3255, 4
        %v3285 = vsel %vm1332, %v3284, %v3243
        %v3286 = vrot.slane %v3243, 4
        %v3287 = vsel %vm1332, %v3255, %v3286
        %v3289 = vunpack.c.l.s4 1934713408
        %v3290 = vunpack.c.0.s8 %v3289
        %v3291 = vperm.slane %v3285, %v3290
        %v3293 = vunpack.c.l.s4 1934713408
        %v3294 = vunpack.c.0.s8 %v3293
        %v3295 = vperm.slane %v3287, %v3294
        %v3296 = vrot.slane %v3259, 4
        %v3297 = vsel %vm1332, %v3296, %v3247
        %v3298 = vrot.slane %v3247, 4
        %v3299 = vsel %vm1332, %v3259, %v3298
        %v3301 = vunpack.c.l.s4 1934713408
        %v3302 = vunpack.c.0.s8 %v3301
        %v3303 = vperm.slane %v3297, %v3302
        %v3305 = vunpack.c.l.s4 1934713408
        %v3306 = vunpack.c.0.s8 %v3305
        %v3307 = vperm.slane %v3299, %v3306
        %v3308 = vrot.slane %v3279, 4
        %v3309 = vsel %vm1332, %v3308, %v3267
        %v3310 = vrot.slane %v3267, 4
        %v3311 = vsel %vm1332, %v3279, %v3310
        %v3313 = vunpack.c.l.s4 1934713408
        %v3314 = vunpack.c.0.s8 %v3313
        %v3315 = vperm.slane %v3309, %v3314
        %v3317 = vunpack.c.l.s4 1934713408
        %v3318 = vunpack.c.0.s8 %v3317
        %v3319 = vperm.slane %v3311, %v3318
        %v3320 = vrot.slane %v3283, 4
        %v3321 = vsel %vm1332, %v3320, %v3271
        %v3322 = vrot.slane %v3271, 4
        %v3323 = vsel %vm1332, %v3283, %v3322
        %v3325 = vunpack.c.l.s4 1934713408
        %v3326 = vunpack.c.0.s8 %v3325
        %v3327 = vperm.slane %v3321, %v3326
        %v3329 = vunpack.c.l.s4 1934713408
        %v3330 = vunpack.c.0.s8 %v3329
        %v3331 = vperm.slane %v3323, %v3330
        %v3332 = vrot.slane %v3315, 4
        %v3333 = vsel %vm1332, %v3332, %v3291
        %v3334 = vrot.slane %v3291, 4
        %v3335 = vsel %vm1332, %v3315, %v3334
        %v3336 = vrot.slane %v3319, 4
        %v3337 = vsel %vm1332, %v3336, %v3295
        %v3338 = vrot.slane %v3295, 4
        %v3339 = vsel %vm1332, %v3319, %v3338
        %v3340 = vrot.slane %v3327, 4
        %v3341 = vsel %vm1332, %v3340, %v3303
        %v3342 = vrot.slane %v3303, 4
        %v3343 = vsel %vm1332, %v3327, %v3342
        %v3344 = vrot.slane %v3331, 4
        %v3345 = vsel %vm1332, %v3344, %v3307
        %v3346 = vrot.slane %v3307, 4
        %v3347 = vsel %vm1332, %v3331, %v3346
        %3357 = vrot.lane.b32.xlu0 %v1431, 16
        %v3358 = vpop.permute.xlu0 %3357
        %3359 = vrot.lane.b32.xlu0 %v1543, 16
        %v3360 = vpop.permute.xlu0 %3359
        %3361 = vrot.lane.b32.xlu0 %v1655, 16
        %v3362 = vpop.permute.xlu0 %3361
        %3363 = vrot.lane.b32.xlu0 %v1767, 16
        %v3364 = vpop.permute.xlu0 %3363
        %3365 = vrot.lane.b32.xlu0 %v1879, 16
        %v3366 = vpop.permute.xlu0 %3365
        %3367 = vrot.lane.b32.xlu0 %v1991, 16
        %v3368 = vpop.permute.xlu0 %3367
        %3369 = vrot.lane.b32.xlu0 %v2103, 16
        %v3370 = vpop.permute.xlu0 %3369
        %3371 = vrot.lane.b32.xlu0 %v2215, 16
        %v3372 = vpop.permute.xlu0 %3371
        %3373 = vrot.lane.b32.xlu0 %v2327, 16
        %v3374 = vpop.permute.xlu0 %3373
        %3393 = vrot.lane.b32.xlu0 %v1433, 32
        %v3394 = vpop.permute.xlu0 %3393
        %3395 = vrot.lane.b32.xlu0 %v1545, 32
        %v3396 = vpop.permute.xlu0 %3395
        %3397 = vrot.lane.b32.xlu0 %v1657, 32
        %v3398 = vpop.permute.xlu0 %3397
        %3399 = vrot.lane.b32.xlu0 %v1769, 32
        %v3400 = vpop.permute.xlu0 %3399
        %3401 = vrot.lane.b32.xlu0 %v1881, 32
        %v3402 = vpop.permute.xlu0 %3401
        %3403 = vrot.lane.b32.xlu0 %v1993, 32
        %v3404 = vpop.permute.xlu0 %3403
        %3405 = vrot.lane.b32.xlu0 %v2105, 32
        %v3406 = vpop.permute.xlu0 %3405
        %3407 = vrot.lane.b32.xlu0 %v2217, 32
        %v3408 = vpop.permute.xlu0 %3407
        %3409 = vrot.lane.b32.xlu0 %v2329, 32
        %v3410 = vpop.permute.xlu0 %3409
        %3429 = vrot.lane.b32.xlu0 %v1435, 48
        %v3430 = vpop.permute.xlu0 %3429
        %3431 = vrot.lane.b32.xlu0 %v1547, 48
        %v3432 = vpop.permute.xlu0 %3431
        %3433 = vrot.lane.b32.xlu0 %v1659, 48
        %v3434 = vpop.permute.xlu0 %3433
        %3435 = vrot.lane.b32.xlu0 %v1771, 48
        %v3436 = vpop.permute.xlu0 %3435
        %3437 = vrot.lane.b32.xlu0 %v1883, 48
        %v3438 = vpop.permute.xlu0 %3437
        %3439 = vrot.lane.b32.xlu0 %v1995, 48
        %v3440 = vpop.permute.xlu0 %3439
        %3441 = vrot.lane.b32.xlu0 %v2107, 48
        %v3442 = vpop.permute.xlu0 %3441
        %3443 = vrot.lane.b32.xlu0 %v2219, 48
        %v3444 = vpop.permute.xlu0 %3443
        %3445 = vrot.lane.b32.xlu0 %v2331, 48
        %v3446 = vpop.permute.xlu0 %3445
        %3465 = vrot.lane.b32.xlu0 %v1437, 64
        %v3466 = vpop.permute.xlu0 %3465
        %3467 = vrot.lane.b32.xlu0 %v1549, 64
        %v3468 = vpop.permute.xlu0 %3467
        %3469 = vrot.lane.b32.xlu0 %v1661, 64
        %v3470 = vpop.permute.xlu0 %3469
        %3471 = vrot.lane.b32.xlu0 %v1773, 64
        %v3472 = vpop.permute.xlu0 %3471
        %3473 = vrot.lane.b32.xlu0 %v1885, 64
        %v3474 = vpop.permute.xlu0 %3473
        %3475 = vrot.lane.b32.xlu0 %v1997, 64
        %v3476 = vpop.permute.xlu0 %3475
        %3477 = vrot.lane.b32.xlu0 %v2109, 64
        %v3478 = vpop.permute.xlu0 %3477
        %3479 = vrot.lane.b32.xlu0 %v2221, 64
        %v3480 = vpop.permute.xlu0 %3479
        %3481 = vrot.lane.b32.xlu0 %v2333, 64
        %v3482 = vpop.permute.xlu0 %3481
        %3501 = vrot.lane.b32.xlu0 %v1439, 80
        %v3502 = vpop.permute.xlu0 %3501
        %3503 = vrot.lane.b32.xlu0 %v1551, 80
        %v3504 = vpop.permute.xlu0 %3503
        %3505 = vrot.lane.b32.xlu0 %v1663, 80
        %v3506 = vpop.permute.xlu0 %3505
        %3507 = vrot.lane.b32.xlu0 %v1775, 80
        %v3508 = vpop.permute.xlu0 %3507
        %3509 = vrot.lane.b32.xlu0 %v1887, 80
        %v3510 = vpop.permute.xlu0 %3509
        %3511 = vrot.lane.b32.xlu0 %v1999, 80
        %v3512 = vpop.permute.xlu0 %3511
        %3513 = vrot.lane.b32.xlu0 %v2111, 80
        %v3514 = vpop.permute.xlu0 %3513
        %3515 = vrot.lane.b32.xlu0 %v2223, 80
        %v3516 = vpop.permute.xlu0 %3515
        %3517 = vrot.lane.b32.xlu0 %v2335, 80
        %v3518 = vpop.permute.xlu0 %3517
        %3537 = vrot.lane.b32.xlu0 %v1441, 96
        %v3538 = vpop.permute.xlu0 %3537
        %3539 = vrot.lane.b32.xlu0 %v1553, 96
        %v3540 = vpop.permute.xlu0 %3539
        %3541 = vrot.lane.b32.xlu0 %v1665, 96
        %v3542 = vpop.permute.xlu0 %3541
        %3543 = vrot.lane.b32.xlu0 %v1777, 96
        %v3544 = vpop.permute.xlu0 %3543
        %3545 = vrot.lane.b32.xlu0 %v1889, 96
        %v3546 = vpop.permute.xlu0 %3545
        %3547 = vrot.lane.b32.xlu0 %v2001, 96
        %v3548 = vpop.permute.xlu0 %3547
        %3549 = vrot.lane.b32.xlu0 %v2113, 96
        %v3550 = vpop.permute.xlu0 %3549
        %3551 = vrot.lane.b32.xlu0 %v2225, 96
        %v3552 = vpop.permute.xlu0 %3551
        %3553 = vrot.lane.b32.xlu0 %v2337, 96
        %v3554 = vpop.permute.xlu0 %3553
        %3573 = vrot.lane.b32.xlu0 %v1443, 112
        %v3574 = vpop.permute.xlu0 %3573
        %3575 = vrot.lane.b32.xlu0 %v1555, 112
        %v3576 = vpop.permute.xlu0 %3575
        %3577 = vrot.lane.b32.xlu0 %v1667, 112
        %v3578 = vpop.permute.xlu0 %3577
        %3579 = vrot.lane.b32.xlu0 %v1779, 112
        %v3580 = vpop.permute.xlu0 %3579
        %3581 = vrot.lane.b32.xlu0 %v1891, 112
        %v3582 = vpop.permute.xlu0 %3581
        %3583 = vrot.lane.b32.xlu0 %v2003, 112
        %v3584 = vpop.permute.xlu0 %3583
        %3585 = vrot.lane.b32.xlu0 %v2115, 112
        %v3586 = vpop.permute.xlu0 %3585
        %3587 = vrot.lane.b32.xlu0 %v2227, 112
        %v3588 = vpop.permute.xlu0 %3587
        %3589 = vrot.lane.b32.xlu0 %v2339, 112
        %v3590 = vpop.permute.xlu0 %3589
        %3609 = vrot.lane.b32.xlu0 %v2439, 16
        %v3610 = vpop.permute.xlu0 %3609
        %3611 = vrot.lane.b32.xlu0 %v2551, 16
        %v3612 = vpop.permute.xlu0 %3611
        %3613 = vrot.lane.b32.xlu0 %v2663, 16
        %v3614 = vpop.permute.xlu0 %3613
        %3615 = vrot.lane.b32.xlu0 %v2775, 16
        %v3616 = vpop.permute.xlu0 %3615
        %3617 = vrot.lane.b32.xlu0 %v2887, 16
        %v3618 = vpop.permute.xlu0 %3617
        %3619 = vrot.lane.b32.xlu0 %v2999, 16
        %v3620 = vpop.permute.xlu0 %3619
        %3621 = vrot.lane.b32.xlu0 %v3111, 16
        %v3622 = vpop.permute.xlu0 %3621
        %3623 = vrot.lane.b32.xlu0 %v3223, 16
        %v3624 = vpop.permute.xlu0 %3623
        %3625 = vrot.lane.b32.xlu0 %v3335, 16
        %v3626 = vpop.permute.xlu0 %3625
        %3645 = vrot.lane.b32.xlu0 %v2441, 32
        %v3646 = vpop.permute.xlu0 %3645
        %3647 = vrot.lane.b32.xlu0 %v2553, 32
        %v3648 = vpop.permute.xlu0 %3647
        %3649 = vrot.lane.b32.xlu0 %v2665, 32
        %v3650 = vpop.permute.xlu0 %3649
        %3651 = vrot.lane.b32.xlu0 %v2777, 32
        %v3652 = vpop.permute.xlu0 %3651
        %3653 = vrot.lane.b32.xlu0 %v2889, 32
        %v3654 = vpop.permute.xlu0 %3653
        %3655 = vrot.lane.b32.xlu0 %v3001, 32
        %v3656 = vpop.permute.xlu0 %3655
        %3657 = vrot.lane.b32.xlu0 %v3113, 32
        %v3658 = vpop.permute.xlu0 %3657
        %3659 = vrot.lane.b32.xlu0 %v3225, 32
        %v3660 = vpop.permute.xlu0 %3659
        %3661 = vrot.lane.b32.xlu0 %v3337, 32
        %v3662 = vpop.permute.xlu0 %3661
        %3681 = vrot.lane.b32.xlu0 %v2443, 48
        %v3682 = vpop.permute.xlu0 %3681
        %3683 = vrot.lane.b32.xlu0 %v2555, 48
        %v3684 = vpop.permute.xlu0 %3683
        %3685 = vrot.lane.b32.xlu0 %v2667, 48
        %v3686 = vpop.permute.xlu0 %3685
        %3687 = vrot.lane.b32.xlu0 %v2779, 48
        %v3688 = vpop.permute.xlu0 %3687
        %3689 = vrot.lane.b32.xlu0 %v2891, 48
        %v3690 = vpop.permute.xlu0 %3689
        %3691 = vrot.lane.b32.xlu0 %v3003, 48
        %v3692 = vpop.permute.xlu0 %3691
        %3693 = vrot.lane.b32.xlu0 %v3115, 48
        %v3694 = vpop.permute.xlu0 %3693
        %3695 = vrot.lane.b32.xlu0 %v3227, 48
        %v3696 = vpop.permute.xlu0 %3695
        %3697 = vrot.lane.b32.xlu0 %v3339, 48
        %v3698 = vpop.permute.xlu0 %3697
        %3717 = vrot.lane.b32.xlu0 %v2445, 64
        %v3718 = vpop.permute.xlu0 %3717
        %3719 = vrot.lane.b32.xlu0 %v2557, 64
        %v3720 = vpop.permute.xlu0 %3719
        %3721 = vrot.lane.b32.xlu0 %v2669, 64
        %v3722 = vpop.permute.xlu0 %3721
        %3723 = vrot.lane.b32.xlu0 %v2781, 64
        %v3724 = vpop.permute.xlu0 %3723
        %3725 = vrot.lane.b32.xlu0 %v2893, 64
        %v3726 = vpop.permute.xlu0 %3725
        %3727 = vrot.lane.b32.xlu0 %v3005, 64
        %v3728 = vpop.permute.xlu0 %3727
        %3729 = vrot.lane.b32.xlu0 %v3117, 64
        %v3730 = vpop.permute.xlu0 %3729
        %3731 = vrot.lane.b32.xlu0 %v3229, 64
        %v3732 = vpop.permute.xlu0 %3731
        %3733 = vrot.lane.b32.xlu0 %v3341, 64
        %v3734 = vpop.permute.xlu0 %3733
        %3753 = vrot.lane.b32.xlu0 %v2447, 80
        %v3754 = vpop.permute.xlu0 %3753
        %3755 = vrot.lane.b32.xlu0 %v2559, 80
        %v3756 = vpop.permute.xlu0 %3755
        %3757 = vrot.lane.b32.xlu0 %v2671, 80
        %v3758 = vpop.permute.xlu0 %3757
        %3759 = vrot.lane.b32.xlu0 %v2783, 80
        %v3760 = vpop.permute.xlu0 %3759
        %3761 = vrot.lane.b32.xlu0 %v2895, 80
        %v3762 = vpop.permute.xlu0 %3761
        %3763 = vrot.lane.b32.xlu0 %v3007, 80
        %v3764 = vpop.permute.xlu0 %3763
        %3765 = vrot.lane.b32.xlu0 %v3119, 80
        %v3766 = vpop.permute.xlu0 %3765
        %3767 = vrot.lane.b32.xlu0 %v3231, 80
        %v3768 = vpop.permute.xlu0 %3767
        %3769 = vrot.lane.b32.xlu0 %v3343, 80
        %v3770 = vpop.permute.xlu0 %3769
        %3789 = vrot.lane.b32.xlu0 %v2449, 96
        %v3790 = vpop.permute.xlu0 %3789
        %3791 = vrot.lane.b32.xlu0 %v2561, 96
        %v3792 = vpop.permute.xlu0 %3791
        %3793 = vrot.lane.b32.xlu0 %v2673, 96
        %v3794 = vpop.permute.xlu0 %3793
        %3795 = vrot.lane.b32.xlu0 %v2785, 96
        %v3796 = vpop.permute.xlu0 %3795
        %3797 = vrot.lane.b32.xlu0 %v2897, 96
        %v3798 = vpop.permute.xlu0 %3797
        %3799 = vrot.lane.b32.xlu0 %v3009, 96
        %v3800 = vpop.permute.xlu0 %3799
        %3801 = vrot.lane.b32.xlu0 %v3121, 96
        %v3802 = vpop.permute.xlu0 %3801
        %3803 = vrot.lane.b32.xlu0 %v3233, 96
        %v3804 = vpop.permute.xlu0 %3803
        %3805 = vrot.lane.b32.xlu0 %v3345, 96
        %v3806 = vpop.permute.xlu0 %3805
        %3825 = vrot.lane.b32.xlu0 %v2451, 112
        %v3826 = vpop.permute.xlu0 %3825
        %3827 = vrot.lane.b32.xlu0 %v2563, 112
        %v3828 = vpop.permute.xlu0 %3827
        %3829 = vrot.lane.b32.xlu0 %v2675, 112
        %v3830 = vpop.permute.xlu0 %3829
        %3831 = vrot.lane.b32.xlu0 %v2787, 112
        %v3832 = vpop.permute.xlu0 %3831
        %3833 = vrot.lane.b32.xlu0 %v2899, 112
        %v3834 = vpop.permute.xlu0 %3833
        %3835 = vrot.lane.b32.xlu0 %v3011, 112
        %v3836 = vpop.permute.xlu0 %3835
        %3837 = vrot.lane.b32.xlu0 %v3123, 112
        %v3838 = vpop.permute.xlu0 %3837
        %3839 = vrot.lane.b32.xlu0 %v3235, 112
        %v3840 = vpop.permute.xlu0 %3839
        %3841 = vrot.lane.b32.xlu0 %v3347, 112
        %v3842 = vpop.permute.xlu0 %3841
        %v3852 = vsel %vm354, %v1429, %v3358
        %v3853 = vsel %vm354, %v1541, %v3360
        %v3854 = vsel %vm354, %v1653, %v3362
        %v3855 = vsel %vm354, %v1765, %v3364
        %v3856 = vsel %vm354, %v1877, %v3366
        %v3857 = vsel %vm354, %v1989, %v3368
        %v3858 = vsel %vm354, %v2101, %v3370
        %v3859 = vsel %vm354, %v2213, %v3372
        %v3860 = vsel %vm354, %v2325, %v3374
        %vm3861 = vcmask 261120
        %v3862 = vsel %vm3861, %v3852, %v3394
        %v3863 = vsel %vm3861, %v3853, %v3396
        %v3864 = vsel %vm3861, %v3854, %v3398
        %v3865 = vsel %vm3861, %v3855, %v3400
        %v3866 = vsel %vm3861, %v3856, %v3402
        %v3867 = vsel %vm3861, %v3857, %v3404
        %v3868 = vsel %vm3861, %v3858, %v3406
        %v3869 = vsel %vm3861, %v3859, %v3408
        %v3870 = vsel %vm3861, %v3860, %v3410
        %vm3871 = vcmask 392192
        %v3872 = vsel %vm3871, %v3862, %v3430
        %v3873 = vsel %vm3871, %v3863, %v3432
        %v3874 = vsel %vm3871, %v3864, %v3434
        %v3875 = vsel %vm3871, %v3865, %v3436
        %v3876 = vsel %vm3871, %v3866, %v3438
        %v3877 = vsel %vm3871, %v3867, %v3440
        %v3878 = vsel %vm3871, %v3868, %v3442
        %v3879 = vsel %vm3871, %v3869, %v3444
        %v3880 = vsel %vm3871, %v3870, %v3446
        %vm3881 = vcmask 523264
        %v3882 = vsel %vm3881, %v3872, %v3466
        %v3883 = vsel %vm3881, %v3873, %v3468
        %v3884 = vsel %vm3881, %v3874, %v3470
        %v3885 = vsel %vm3881, %v3875, %v3472
        %v3886 = vsel %vm3881, %v3876, %v3474
        %v3887 = vsel %vm3881, %v3877, %v3476
        %v3888 = vsel %vm3881, %v3878, %v3478
        %v3889 = vsel %vm3881, %v3879, %v3480
        %v3890 = vsel %vm3881, %v3880, %v3482
        %vm3891 = vcmask 654336
        %v3892 = vsel %vm3891, %v3882, %v3502
        %v3893 = vsel %vm3891, %v3883, %v3504
        %v3894 = vsel %vm3891, %v3884, %v3506
        %v3895 = vsel %vm3891, %v3885, %v3508
        %v3896 = vsel %vm3891, %v3886, %v3510
        %v3897 = vsel %vm3891, %v3887, %v3512
        %v3898 = vsel %vm3891, %v3888, %v3514
        %v3899 = vsel %vm3891, %v3889, %v3516
        %v3900 = vsel %vm3891, %v3890, %v3518
        %vm3901 = vcmask 785408
        %v3902 = vsel %vm3901, %v3892, %v3538
        %v3903 = vsel %vm3901, %v3893, %v3540
        %v3904 = vsel %vm3901, %v3894, %v3542
        %v3905 = vsel %vm3901, %v3895, %v3544
        %v3906 = vsel %vm3901, %v3896, %v3546
        %v3907 = vsel %vm3901, %v3897, %v3548
        %v3908 = vsel %vm3901, %v3898, %v3550
        %v3909 = vsel %vm3901, %v3899, %v3552
        %v3910 = vsel %vm3901, %v3900, %v3554
        %vm3911 = vcmask 916480
        %v3912 = vsel %vm3911, %v3902, %v3574
        %v3913 = vsel %vm3911, %v3903, %v3576
        %v3914 = vsel %vm3911, %v3904, %v3578
        %v3915 = vsel %vm3911, %v3905, %v3580
        %v3916 = vsel %vm3911, %v3906, %v3582
        %v3917 = vsel %vm3911, %v3907, %v3584
        %v3918 = vsel %vm3911, %v3908, %v3586
        %v3919 = vsel %vm3911, %v3909, %v3588
        %v3920 = vsel %vm3911, %v3910, %v3590
        %v3921 = vsel %vm354, %v2437, %v3610
        %v3922 = vsel %vm354, %v2549, %v3612
        %v3923 = vsel %vm354, %v2661, %v3614
        %v3924 = vsel %vm354, %v2773, %v3616
        %v3925 = vsel %vm354, %v2885, %v3618
        %v3926 = vsel %vm354, %v2997, %v3620
        %v3927 = vsel %vm354, %v3109, %v3622
        %v3928 = vsel %vm354, %v3221, %v3624
        %v3929 = vsel %vm354, %v3333, %v3626
        %v3930 = vsel %vm3861, %v3921, %v3646
        %v3931 = vsel %vm3861, %v3922, %v3648
        %v3932 = vsel %vm3861, %v3923, %v3650
        %v3933 = vsel %vm3861, %v3924, %v3652
        %v3934 = vsel %vm3861, %v3925, %v3654
        %v3935 = vsel %vm3861, %v3926, %v3656
        %v3936 = vsel %vm3861, %v3927, %v3658
        %v3937 = vsel %vm3861, %v3928, %v3660
        %v3938 = vsel %vm3861, %v3929, %v3662
        %v3939 = vsel %vm3871, %v3930, %v3682
        %v3940 = vsel %vm3871, %v3931, %v3684
        %v3941 = vsel %vm3871, %v3932, %v3686
        %v3942 = vsel %vm3871, %v3933, %v3688
        %v3943 = vsel %vm3871, %v3934, %v3690
        %v3944 = vsel %vm3871, %v3935, %v3692
        %v3945 = vsel %vm3871, %v3936, %v3694
        %v3946 = vsel %vm3871, %v3937, %v3696
        %v3947 = vsel %vm3871, %v3938, %v3698
        %v3948 = vsel %vm3881, %v3939, %v3718
        %v3949 = vsel %vm3881, %v3940, %v3720
        %v3950 = vsel %vm3881, %v3941, %v3722
        %v3951 = vsel %vm3881, %v3942, %v3724
        %v3952 = vsel %vm3881, %v3943, %v3726
        %v3953 = vsel %vm3881, %v3944, %v3728
        %v3954 = vsel %vm3881, %v3945, %v3730
        %v3955 = vsel %vm3881, %v3946, %v3732
        %v3956 = vsel %vm3881, %v3947, %v3734
        %v3957 = vsel %vm3891, %v3948, %v3754
        %v3958 = vsel %vm3891, %v3949, %v3756
        %v3959 = vsel %vm3891, %v3950, %v3758
        %v3960 = vsel %vm3891, %v3951, %v3760
        %v3961 = vsel %vm3891, %v3952, %v3762
        %v3962 = vsel %vm3891, %v3953, %v3764
        %v3963 = vsel %vm3891, %v3954, %v3766
        %v3964 = vsel %vm3891, %v3955, %v3768
        %v3965 = vsel %vm3891, %v3956, %v3770
        %v3966 = vsel %vm3901, %v3957, %v3790
        %v3967 = vsel %vm3901, %v3958, %v3792
        %v3968 = vsel %vm3901, %v3959, %v3794
        %v3969 = vsel %vm3901, %v3960, %v3796
        %v3970 = vsel %vm3901, %v3961, %v3798
        %v3971 = vsel %vm3901, %v3962, %v3800
        %v3972 = vsel %vm3901, %v3963, %v3802
        %v3973 = vsel %vm3901, %v3964, %v3804
        %v3974 = vsel %vm3901, %v3965, %v3806
        %v3975 = vsel %vm3911, %v3966, %v3826
        %v3976 = vsel %vm3911, %v3967, %v3828
        %v3977 = vsel %vm3911, %v3968, %v3830
        %v3978 = vsel %vm3911, %v3969, %v3832
        %v3979 = vsel %vm3911, %v3970, %v3834
        %v3980 = vsel %vm3911, %v3971, %v3836
        %v3981 = vsel %vm3911, %v3972, %v3838
        %v3982 = vsel %vm3911, %v3973, %v3840
        %v3983 = vsel %vm3911, %v3974, %v3842
        %v3984 = vld [vmem:[%s0] sm:$0xff]
        %v3985 = vld [vmem:[%s1] sm:$0xff]
        %3987 = vset.pattern.permute.xlu0 0
        %3988 = vperm.xlu0 %3987, %v3985
        %v3989 = vpop.permute.xlu0 %3988
        %vm3991 = vcmask 588800
        %v3993 = vsel %vm3991, %v3984, 0
        %3995 = vmatpush.msra.mxu0 0.0
        %3996 = vmatpush.msra.mxu0 0.0
        %3997 = vmatpush.msra.mxu0 0.0
        %3998 = vmatpush.msra.mxu0 0.0
        %3999 = vmatpush.msra.mxu0 0.0
        %4000 = vmatpush.msra.mxu0 0.0
        %4001 = vmatpush.msra.mxu0 0.0
        %4002 = vmatpush.msra.mxu0 %v3920
        %4003 = vmatpush.msra.mxu0 %v3919
        %4004 = vmatpush.msra.mxu0 %v3918
        %4005 = vmatpush.msra.mxu0 %v3917
        %4006 = vmatpush.msra.mxu0 %v3916
        %4007 = vmatpush.msra.mxu0 %v3915
        %4008 = vmatpush.msra.mxu0 %v3914
        %4009 = vmatpush.msra.mxu0 %v3913
        %4010 = vmatpush.msra.mxu0 %v3912
        %4011 = vmatmul.f32.gmra.mxu0 %v3993
        %v4012 = vpop.f32.mrf.mxu0
        %v4013 = vadd.f32 %v3989, %v4012
        %4014 = vdwg.mxu0
        %4015 = vmatpush.msra.mxu0 0.0
        %4016 = vmatpush.msra.mxu0 0.0
        %4017 = vmatpush.msra.mxu0 0.0
        %4018 = vmatpush.msra.mxu0 0.0
        %4019 = vmatpush.msra.mxu0 0.0
        %4020 = vmatpush.msra.mxu0 0.0
        %4021 = vmatpush.msra.mxu0 0.0
        %4022 = vmatpush.msra.mxu0 %v3983
        %4023 = vmatpush.msra.mxu0 %v3982
        %4024 = vmatpush.msra.mxu0 %v3981
        %4025 = vmatpush.msra.mxu0 %v3980
        %4026 = vmatpush.msra.mxu0 %v3979
        %4027 = vmatpush.msra.mxu0 %v3978
        %4028 = vmatpush.msra.mxu0 %v3977
        %4029 = vmatpush.msra.mxu0 %v3976
        %4030 = vmatpush.msra.mxu0 %v3975
        %4031 = vmatmul.f32.gmra.mxu0 %v3993
        %v4032 = vpop.f32.mrf.mxu0
        %v4033 = vadd.f32 %v3989, %v4032
        %4034 = vdwg.mxu0
        %4036 = vrot.lane.b32.xlu0 %v4013, 112
        %v4037 = vpop.permute.xlu0 %4036
        %4039 = vrot.lane.b32.xlu0 %v4013, 96
        %v4040 = vpop.permute.xlu0 %4039
        %4042 = vrot.lane.b32.xlu0 %v4013, 80
        %v4043 = vpop.permute.xlu0 %4042
        %4045 = vrot.lane.b32.xlu0 %v4013, 64
        %v4046 = vpop.permute.xlu0 %4045
        %4048 = vrot.lane.b32.xlu0 %v4013, 48
        %v4049 = vpop.permute.xlu0 %4048
        %4051 = vrot.lane.b32.xlu0 %v4013, 32
        %v4052 = vpop.permute.xlu0 %4051
        %4054 = vrot.lane.b32.xlu0 %v4013, 16
        %v4055 = vpop.permute.xlu0 %4054
        %4058 = vrot.lane.b32.xlu0 %v4033, 112
        %v4059 = vpop.permute.xlu0 %4058
        %4061 = vrot.lane.b32.xlu0 %v4033, 96
        %v4062 = vpop.permute.xlu0 %4061
        %4064 = vrot.lane.b32.xlu0 %v4033, 80
        %v4065 = vpop.permute.xlu0 %4064
        %4067 = vrot.lane.b32.xlu0 %v4033, 64
        %v4068 = vpop.permute.xlu0 %4067
        %4070 = vrot.lane.b32.xlu0 %v4033, 48
        %v4071 = vpop.permute.xlu0 %4070
        %4073 = vrot.lane.b32.xlu0 %v4033, 32
        %v4074 = vpop.permute.xlu0 %4073
        %4076 = vrot.lane.b32.xlu0 %v4033, 16
        %v4077 = vpop.permute.xlu0 %4076
        %v4079 = vrot.slane %v4040, 4
        %v4080 = vsel %vm1332, %v4079, %v4013
        %v4081 = vrot.slane %v4013, 4
        %v4082 = vsel %vm1332, %v4040, %v4081
        %v4084 = vunpack.c.l.s4 1983009808
        %v4085 = vunpack.c.0.s8 %v4084
        %v4086 = vperm.slane %v4080, %v4085
        %v4088 = vunpack.c.l.s4 1983009808
        %v4089 = vunpack.c.0.s8 %v4088
        %v4090 = vperm.slane %v4082, %v4089
        %v4091 = vrot.slane %v4043, 4
        %v4092 = vsel %vm1332, %v4091, %v4037
        %v4093 = vrot.slane %v4037, 4
        %v4094 = vsel %vm1332, %v4043, %v4093
        %v4096 = vunpack.c.l.s4 1983009808
        %v4097 = vunpack.c.0.s8 %v4096
        %v4098 = vperm.slane %v4092, %v4097
        %v4100 = vunpack.c.l.s4 1983009808
        %v4101 = vunpack.c.0.s8 %v4100
        %v4102 = vperm.slane %v4094, %v4101
        %v4103 = vrot.slane %v4052, 4
        %v4104 = vsel %vm1332, %v4103, %v4046
        %v4105 = vrot.slane %v4046, 4
        %v4106 = vsel %vm1332, %v4052, %v4105
        %v4108 = vunpack.c.l.s4 1983009808
        %v4109 = vunpack.c.0.s8 %v4108
        %v4110 = vperm.slane %v4104, %v4109
        %v4112 = vunpack.c.l.s4 1983009808
        %v4113 = vunpack.c.0.s8 %v4112
        %v4114 = vperm.slane %v4106, %v4113
        %v4115 = vrot.slane %v4055, 4
        %v4116 = vsel %vm1332, %v4115, %v4049
        %v4117 = vrot.slane %v4049, 4
        %v4118 = vsel %vm1332, %v4055, %v4117
        %v4120 = vunpack.c.l.s4 1983009808
        %v4121 = vunpack.c.0.s8 %v4120
        %v4122 = vperm.slane %v4116, %v4121
        %v4124 = vunpack.c.l.s4 1983009808
        %v4125 = vunpack.c.0.s8 %v4124
        %v4126 = vperm.slane %v4118, %v4125
        %v4127 = vrot.slane %v4098, 4
        %v4128 = vsel %vm1332, %v4127, %v4086
        %v4129 = vrot.slane %v4086, 4
        %v4130 = vsel %vm1332, %v4098, %v4129
        %v4132 = vunpack.c.l.s4 1934713408
        %v4133 = vunpack.c.0.s8 %v4132
        %v4134 = vperm.slane %v4128, %v4133
        %v4136 = vunpack.c.l.s4 1934713408
        %v4137 = vunpack.c.0.s8 %v4136
        %v4138 = vperm.slane %v4130, %v4137
        %v4139 = vrot.slane %v4102, 4
        %v4140 = vsel %vm1332, %v4139, %v4090
        %v4141 = vrot.slane %v4090, 4
        %v4142 = vsel %vm1332, %v4102, %v4141
        %v4144 = vunpack.c.l.s4 1934713408
        %v4145 = vunpack.c.0.s8 %v4144
        %v4146 = vperm.slane %v4140, %v4145
        %v4148 = vunpack.c.l.s4 1934713408
        %v4149 = vunpack.c.0.s8 %v4148
        %v4150 = vperm.slane %v4142, %v4149
        %v4151 = vrot.slane %v4122, 4
        %v4152 = vsel %vm1332, %v4151, %v4110
        %v4153 = vrot.slane %v4110, 4
        %v4154 = vsel %vm1332, %v4122, %v4153
        %v4156 = vunpack.c.l.s4 1934713408
        %v4157 = vunpack.c.0.s8 %v4156
        %v4158 = vperm.slane %v4152, %v4157
        %v4160 = vunpack.c.l.s4 1934713408
        %v4161 = vunpack.c.0.s8 %v4160
        %v4162 = vperm.slane %v4154, %v4161
        %v4163 = vrot.slane %v4126, 4
        %v4164 = vsel %vm1332, %v4163, %v4114
        %v4165 = vrot.slane %v4114, 4
        %v4166 = vsel %vm1332, %v4126, %v4165
        %v4168 = vunpack.c.l.s4 1934713408
        %v4169 = vunpack.c.0.s8 %v4168
        %v4170 = vperm.slane %v4164, %v4169
        %v4172 = vunpack.c.l.s4 1934713408
        %v4173 = vunpack.c.0.s8 %v4172
        %v4174 = vperm.slane %v4166, %v4173
        %v4175 = vrot.slane %v4158, 4
        %v4176 = vsel %vm1332, %v4175, %v4134
        %v4177 = vrot.slane %v4134, 4
        %v4178 = vsel %vm1332, %v4158, %v4177
        %v4179 = vrot.slane %v4162, 4
        %v4180 = vsel %vm1332, %v4179, %v4138
        %v4181 = vrot.slane %v4138, 4
        %v4182 = vsel %vm1332, %v4162, %v4181
        %v4183 = vrot.slane %v4170, 4
        %v4184 = vsel %vm1332, %v4183, %v4146
        %v4185 = vrot.slane %v4146, 4
        %v4186 = vsel %vm1332, %v4170, %v4185
        %v4187 = vrot.slane %v4174, 4
        %v4188 = vsel %vm1332, %v4187, %v4150
        %v4189 = vrot.slane %v4150, 4
        %v4190 = vsel %vm1332, %v4174, %v4189
        %v4191 = vrot.slane %v4062, 4
        %v4192 = vsel %vm1332, %v4191, %v4033
        %v4193 = vrot.slane %v4033, 4
        %v4194 = vsel %vm1332, %v4062, %v4193
        %v4196 = vunpack.c.l.s4 1983009808
        %v4197 = vunpack.c.0.s8 %v4196
        %v4198 = vperm.slane %v4192, %v4197
        %v4200 = vunpack.c.l.s4 1983009808
        %v4201 = vunpack.c.0.s8 %v4200
        %v4202 = vperm.slane %v4194, %v4201
        %v4203 = vrot.slane %v4065, 4
        %v4204 = vsel %vm1332, %v4203, %v4059
        %v4205 = vrot.slane %v4059, 4
        %v4206 = vsel %vm1332, %v4065, %v4205
        %v4208 = vunpack.c.l.s4 1983009808
        %v4209 = vunpack.c.0.s8 %v4208
        %v4210 = vperm.slane %v4204, %v4209
        %v4212 = vunpack.c.l.s4 1983009808
        %v4213 = vunpack.c.0.s8 %v4212
        %v4214 = vperm.slane %v4206, %v4213
        %v4215 = vrot.slane %v4074, 4
        %v4216 = vsel %vm1332, %v4215, %v4068
        %v4217 = vrot.slane %v4068, 4
        %v4218 = vsel %vm1332, %v4074, %v4217
        %v4220 = vunpack.c.l.s4 1983009808
        %v4221 = vunpack.c.0.s8 %v4220
        %v4222 = vperm.slane %v4216, %v4221
        %v4224 = vunpack.c.l.s4 1983009808
        %v4225 = vunpack.c.0.s8 %v4224
        %v4226 = vperm.slane %v4218, %v4225
        %v4227 = vrot.slane %v4077, 4
        %v4228 = vsel %vm1332, %v4227, %v4071
        %v4229 = vrot.slane %v4071, 4
        %v4230 = vsel %vm1332, %v4077, %v4229
        %v4232 = vunpack.c.l.s4 1983009808
        %v4233 = vunpack.c.0.s8 %v4232
        %v4234 = vperm.slane %v4228, %v4233
        %v4236 = vunpack.c.l.s4 1983009808
        %v4237 = vunpack.c.0.s8 %v4236
        %v4238 = vperm.slane %v4230, %v4237
        %v4239 = vrot.slane %v4210, 4
        %v4240 = vsel %vm1332, %v4239, %v4198
        %v4241 = vrot.slane %v4198, 4
        %v4242 = vsel %vm1332, %v4210, %v4241
        %v4244 = vunpack.c.l.s4 1934713408
        %v4245 = vunpack.c.0.s8 %v4244
        %v4246 = vperm.slane %v4240, %v4245
        %v4248 = vunpack.c.l.s4 1934713408
        %v4249 = vunpack.c.0.s8 %v4248
        %v4250 = vperm.slane %v4242, %v4249
        %v4251 = vrot.slane %v4214, 4
        %v4252 = vsel %vm1332, %v4251, %v4202
        %v4253 = vrot.slane %v4202, 4
        %v4254 = vsel %vm1332, %v4214, %v4253
        %v4256 = vunpack.c.l.s4 1934713408
        %v4257 = vunpack.c.0.s8 %v4256
        %v4258 = vperm.slane %v4252, %v4257
        %v4260 = vunpack.c.l.s4 1934713408
        %v4261 = vunpack.c.0.s8 %v4260
        %v4262 = vperm.slane %v4254, %v4261
        %v4263 = vrot.slane %v4234, 4
        %v4264 = vsel %vm1332, %v4263, %v4222
        %v4265 = vrot.slane %v4222, 4
        %v4266 = vsel %vm1332, %v4234, %v4265
        %v4268 = vunpack.c.l.s4 1934713408
        %v4269 = vunpack.c.0.s8 %v4268
        %v4270 = vperm.slane %v4264, %v4269
        %v4272 = vunpack.c.l.s4 1934713408
        %v4273 = vunpack.c.0.s8 %v4272
        %v4274 = vperm.slane %v4266, %v4273
        %v4275 = vrot.slane %v4238, 4
        %v4276 = vsel %vm1332, %v4275, %v4226
        %v4277 = vrot.slane %v4226, 4
        %v4278 = vsel %vm1332, %v4238, %v4277
        %v4280 = vunpack.c.l.s4 1934713408
        %v4281 = vunpack.c.0.s8 %v4280
        %v4282 = vperm.slane %v4276, %v4281
        %v4284 = vunpack.c.l.s4 1934713408
        %v4285 = vunpack.c.0.s8 %v4284
        %v4286 = vperm.slane %v4278, %v4285
        %v4287 = vrot.slane %v4270, 4
        %v4288 = vsel %vm1332, %v4287, %v4246
        %v4289 = vrot.slane %v4246, 4
        %v4290 = vsel %vm1332, %v4270, %v4289
        %v4291 = vrot.slane %v4274, 4
        %v4292 = vsel %vm1332, %v4291, %v4250
        %v4293 = vrot.slane %v4250, 4
        %v4294 = vsel %vm1332, %v4274, %v4293
        %v4295 = vrot.slane %v4282, 4
        %v4296 = vsel %vm1332, %v4295, %v4258
        %v4297 = vrot.slane %v4258, 4
        %v4298 = vsel %vm1332, %v4282, %v4297
        %v4299 = vrot.slane %v4286, 4
        %v4300 = vsel %vm1332, %v4299, %v4262
        %v4301 = vrot.slane %v4262, 4
        %v4302 = vsel %vm1332, %v4286, %v4301
        %vm4303 = vcmp.gt.f32.partialorder %v4176, 0.0
        %vm4304 = vcmp.gt.f32.partialorder %v4288, 0.0
        %v4305 = vmul.f32 %v4176, 0.2
        %v4306 = vmul.f32 %v4288, 0.2
        %v4307 = vsel %vm4303, %v4176, %v4305
        %v4308 = vsel %vm4304, %v4288, %v4306
        %vm4309 = vcmp.gt.f32.partialorder %v4184, 0.0
        %vm4310 = vcmp.gt.f32.partialorder %v4296, 0.0
        %v4311 = vmul.f32 %v4184, 0.2
        %v4312 = vmul.f32 %v4296, 0.2
        %v4313 = vsel %vm4309, %v4184, %v4311
        %v4314 = vsel %vm4310, %v4296, %v4312
        %v4315 = vsub.f32 %v4307, %v4313
        %v4316 = vsub.f32 %v4308, %v4314
        %v4317 = vand.u32 2147483647, %v4315
        %v4318 = vand.u32 2147483647, %v4316
        %v4319 = vsub.f32 0.0, %v4317
        %v4320 = vsub.f32 0.0, %v4318
        %v4321 = vmul.f32 %v4319, 1.442695
        %v4322 = vpow.pop %v4321
        %v4323 = vmul.f32 %v4320, 1.442695
        %v4324 = vpow.pop %v4323
        %v4325 = vadd.f32 %v4322, 1.0
        %v4326 = vadd.f32 %v4324, 1.0
        %v4327 = vrcp.pop %v4325
        %v4328 = vmul.f32 %v4325, %v4327
        %v4329 = vsub.f32 1.0, %v4328
        %v4330 = vmul.f32 %v4327, %v4329
        %v4331 = vadd.f32 %v4327, %v4330
        %vm4332 = vweird.f32 %v4325
        %vm4333 = vweird.f32 %v4327
        %vm4334 = vmor %vm4332, %vm4333
        %v4335 = vsel %vm4334, %v4327, %v4331
        %v4336 = vand.u32 2147483647, %v4325
        %vm4337 = vcmp.eq.f32.partialorder %v4336, 8.507059e+37
        %v4338 = vand.u32 %v4325, 2147483648
        %v4339 = vor.u32 1.1754944e-38, %v4338
        %v4340 = vsel %vm4337, %v4339, %v4335
        %v4341 = vmul.f32 1.0, %v4340
        %v4342 = vrcp.pop %v4326
        %v4343 = vmul.f32 %v4326, %v4342
        %v4344 = vsub.f32 1.0, %v4343
        %v4345 = vmul.f32 %v4342, %v4344
        %v4346 = vadd.f32 %v4342, %v4345
        %vm4347 = vweird.f32 %v4326
        %vm4348 = vweird.f32 %v4342
        %vm4349 = vmor %vm4347, %vm4348
        %v4350 = vsel %vm4349, %v4342, %v4346
        %v4351 = vand.u32 2147483647, %v4326
        %vm4352 = vcmp.eq.f32.partialorder %v4351, 8.507059e+37
        %v4353 = vand.u32 %v4326, 2147483648
        %v4354 = vor.u32 1.1754944e-38, %v4353
        %v4355 = vsel %vm4352, %v4354, %v4350
        %v4356 = vmul.f32 1.0, %v4355
        %4357 = vst.msk [vmem:[%s248] sm:$0xff] %vm354, %v4341
        %4358 = vst.msk [vmem:[%s248 + $0x8] sm:$0xff] %vm354, %v4356
        %v4359 = vmul.f32 %v4341, %v268
        %v4360 = vmul.f32 %v4356, %v269
        %4361 = vst.msk [vmem:[%s255] sm:$0xff] %vm354, %v4359
        %4362 = vst.msk [vmem:[%s255 + $0x8] sm:$0xff] %vm354, %v4360
        %v4363 = vsub.f32 1.0, %v4341
        %v4364 = vsub.f32 1.0, %v4356
        %v4365 = vmul.f32 %v4363, %v268
        %v4366 = vmul.f32 %v4364, %v269
        %v4367 = vsel %vm354, %v4365, -inf
        %v4368 = vrot.slane %v4367, 4
        %v4369 = vmax.f32 %v4367, %v4368
        %v4370 = vrot.slane %v4369, 2
        %v4371 = vmax.f32 %v4369, %v4370
        %v4372 = vrot.slane %v4371, 1
        %v4373 = vmax.f32 %v4371, %v4372
        %v4374 = vsel %vm354, %v4366, -inf
        %v4375 = vrot.slane %v4374, 4
        %v4376 = vmax.f32 %v4374, %v4375
        %v4377 = vrot.slane %v4376, 2
        %v4378 = vmax.f32 %v4376, %v4377
        %v4379 = vrot.slane %v4378, 1
        %v4380 = vmax.f32 %v4378, %v4379
        %4383 = vrot.lane.b32.xlu0 %v4373, 120
        %v4384 = vpop.permute.xlu0 %4383
        %4385 = vrot.lane.b32.xlu0 %v4380, 120
        %v4386 = vpop.permute.xlu0 %4385
        %v4387 = vrot.slane %v4380, 7
        %vm4388 = vcmask 1041409
        %v4389 = vsel %vm4388, %v4387, %v4373
        %v4390 = vrot.slane %v4386, 7
        %v4391 = vsel %vm4388, %v4390, %v4384
        %v4394 = vrot.slane %v4391, 4
        %v4395 = vsel %vm1332, %v4394, %v4389
        %v4397 = vunpack.c.l.s4 1934713408
        %v4398 = vunpack.c.0.s8 %v4397
        %v4399 = vperm.slane %v4395, %v4398
        %v4400 = vrot.slane %v4399, 4
        %v4401 = vsel %vm1332, 0.0, %v4400
        %vm4402 = vcmask 58368
        %v4403 = vsel %vm4402, %v4399, -inf
        %4404 = vmax.xlane.f32.xlu0 %v4403
        %v4405 = vpop.xlane.xlu0 %4404
        %v4406 = vsel %vm4402, %v4401, -inf
        %4407 = vmax.xlane.f32.xlu0 %v4406
        %v4408 = vpop.xlane.xlu0 %4407
        %v4411 = vlaneseq
        %v4412 = vand.u32 %v4411, 127
        %v4413 = vperm.slane %v4405, %v4412
        %v4414 = vperm.slane %v4408, %v4412
        %v4415 = vsel %vm4388, %v4414, %v4413
        %vm4417 = vcmask 9216
        %4418 = vst.msk [vmem:[%s267] sm:$0x3] %vm4417, %v4415
        %vm4419 = vcmp.gt.f32.partialorder %v4178, 0.0
        %vm4420 = vcmp.gt.f32.partialorder %v4290, 0.0
        %v4421 = vmul.f32 %v4178, 0.2
        %v4422 = vmul.f32 %v4290, 0.2
        %v4423 = vsel %vm4419, %v4178, %v4421
        %v4424 = vsel %vm4420, %v4290, %v4422
        %vm4425 = vcmp.gt.f32.partialorder %v4186, 0.0
        %vm4426 = vcmp.gt.f32.partialorder %v4298, 0.0
        %v4427 = vmul.f32 %v4186, 0.2
        %v4428 = vmul.f32 %v4298, 0.2
        %v4429 = vsel %vm4425, %v4186, %v4427
        %v4430 = vsel %vm4426, %v4298, %v4428
        %v4431 = vsub.f32 %v4423, %v4429
        %v4432 = vsub.f32 %v4424, %v4430
        %v4433 = vand.u32 2147483647, %v4431
        %v4434 = vand.u32 2147483647, %v4432
        %v4435 = vsub.f32 0.0, %v4433
        %v4436 = vsub.f32 0.0, %v4434
        %v4437 = vmul.f32 %v4435, 1.442695
        %v4438 = vpow.pop %v4437
        %v4439 = vmul.f32 %v4436, 1.442695
        %v4440 = vpow.pop %v4439
        %v4441 = vadd.f32 %v4438, 1.0
        %v4442 = vadd.f32 %v4440, 1.0
        %v4443 = vrcp.pop %v4441
        %v4444 = vmul.f32 %v4441, %v4443
        %v4445 = vsub.f32 1.0, %v4444
        %v4446 = vmul.f32 %v4443, %v4445
        %v4447 = vadd.f32 %v4443, %v4446
        %vm4448 = vweird.f32 %v4441
        %vm4449 = vweird.f32 %v4443
        %vm4450 = vmor %vm4448, %vm4449
        %v4451 = vsel %vm4450, %v4443, %v4447
        %v4452 = vand.u32 2147483647, %v4441
        %vm4453 = vcmp.eq.f32.partialorder %v4452, 8.507059e+37
        %v4454 = vand.u32 %v4441, 2147483648
        %v4455 = vor.u32 1.1754944e-38, %v4454
        %v4456 = vsel %vm4453, %v4455, %v4451
        %v4457 = vmul.f32 1.0, %v4456
        %v4458 = vrcp.pop %v4442
        %v4459 = vmul.f32 %v4442, %v4458
        %v4460 = vsub.f32 1.0, %v4459
        %v4461 = vmul.f32 %v4458, %v4460
        %v4462 = vadd.f32 %v4458, %v4461
        %vm4463 = vweird.f32 %v4442
        %vm4464 = vweird.f32 %v4458
        %vm4465 = vmor %vm4463, %vm4464
        %v4466 = vsel %vm4465, %v4458, %v4462
        %v4467 = vand.u32 2147483647, %v4442
        %vm4468 = vcmp.eq.f32.partialorder %v4467, 8.507059e+37
        %v4469 = vand.u32 %v4442, 2147483648
        %v4470 = vor.u32 1.1754944e-38, %v4469
        %v4471 = vsel %vm4468, %v4470, %v4466
        %v4472 = vmul.f32 1.0, %v4471
        %s4473 = scalar_lea.vmem %s248, 16 [#allocation7]
        %4474 = vst.msk [vmem:[%s4473] sm:$0xff] %vm354, %v4457
        %4475 = vst.msk [vmem:[%s4473 + $0x8] sm:$0xff] %vm354, %v4472
        %v4476 = vmul.f32 %v4457, %v270
        %v4477 = vmul.f32 %v4472, %v271
        %s4478 = scalar_lea.vmem %s255, 16 [#allocation8]
        %4479 = vst.msk [vmem:[%s4478] sm:$0xff] %vm354, %v4476
        %4480 = vst.msk [vmem:[%s4478 + $0x8] sm:$0xff] %vm354, %v4477
        %v4481 = vsub.f32 1.0, %v4457
        %v4482 = vsub.f32 1.0, %v4472
        %v4483 = vmul.f32 %v4481, %v270
        %v4484 = vmul.f32 %v4482, %v271
        %v4485 = vsel %vm354, %v4483, -inf
        %v4486 = vrot.slane %v4485, 4
        %v4487 = vmax.f32 %v4485, %v4486
        %v4488 = vrot.slane %v4487, 2
        %v4489 = vmax.f32 %v4487, %v4488
        %v4490 = vrot.slane %v4489, 1
        %v4491 = vmax.f32 %v4489, %v4490
        %v4492 = vsel %vm354, %v4484, -inf
        %v4493 = vrot.slane %v4492, 4
        %v4494 = vmax.f32 %v4492, %v4493
        %v4495 = vrot.slane %v4494, 2
        %v4496 = vmax.f32 %v4494, %v4495
        %v4497 = vrot.slane %v4496, 1
        %v4498 = vmax.f32 %v4496, %v4497
        %4501 = vrot.lane.b32.xlu0 %v4491, 120
        %v4502 = vpop.permute.xlu0 %4501
        %4503 = vrot.lane.b32.xlu0 %v4498, 120
        %v4504 = vpop.permute.xlu0 %4503
        %v4505 = vrot.slane %v4498, 7
        %v4506 = vsel %vm4388, %v4505, %v4491
        %v4507 = vrot.slane %v4504, 7
        %v4508 = vsel %vm4388, %v4507, %v4502
        %v4511 = vrot.slane %v4508, 4
        %v4512 = vsel %vm1332, %v4511, %v4506
        %v4514 = vunpack.c.l.s4 1934713408
        %v4515 = vunpack.c.0.s8 %v4514
        %v4516 = vperm.slane %v4512, %v4515
        %v4517 = vrot.slane %v4516, 4
        %v4518 = vsel %vm1332, 0.0, %v4517
        %v4519 = vsel %vm4402, %v4516, -inf
        %4520 = vmax.xlane.f32.xlu0 %v4519
        %v4521 = vpop.xlane.xlu0 %4520
        %v4522 = vsel %vm4402, %v4518, -inf
        %4523 = vmax.xlane.f32.xlu0 %v4522
        %v4524 = vpop.xlane.xlu0 %4523
        %v4527 = vperm.slane %v4521, %v4412
        %v4528 = vperm.slane %v4524, %v4412
        %v4529 = vsel %vm4388, %v4528, %v4527
        %s4531 = scalar_lea.vmem %s267, 2
        %4532 = vst.msk [vmem:[%s4531] sm:$0x3] %vm4417, %v4529
        %vm4533 = vcmp.gt.f32.partialorder %v4180, 0.0
        %vm4534 = vcmp.gt.f32.partialorder %v4292, 0.0
        %v4535 = vmul.f32 %v4180, 0.2
        %v4536 = vmul.f32 %v4292, 0.2
        %v4537 = vsel %vm4533, %v4180, %v4535
        %v4538 = vsel %vm4534, %v4292, %v4536
        %vm4539 = vcmp.gt.f32.partialorder %v4188, 0.0
        %vm4540 = vcmp.gt.f32.partialorder %v4300, 0.0
        %v4541 = vmul.f32 %v4188, 0.2
        %v4542 = vmul.f32 %v4300, 0.2
        %v4543 = vsel %vm4539, %v4188, %v4541
        %v4544 = vsel %vm4540, %v4300, %v4542
        %v4545 = vsub.f32 %v4537, %v4543
        %v4546 = vsub.f32 %v4538, %v4544
        %v4547 = vand.u32 2147483647, %v4545
        %v4548 = vand.u32 2147483647, %v4546
        %v4549 = vsub.f32 0.0, %v4547
        %v4550 = vsub.f32 0.0, %v4548
        %v4551 = vmul.f32 %v4549, 1.442695
        %v4552 = vpow.pop %v4551
        %v4553 = vmul.f32 %v4550, 1.442695
        %v4554 = vpow.pop %v4553
        %v4555 = vadd.f32 %v4552, 1.0
        %v4556 = vadd.f32 %v4554, 1.0
        %v4557 = vrcp.pop %v4555
        %v4558 = vmul.f32 %v4555, %v4557
        %v4559 = vsub.f32 1.0, %v4558
        %v4560 = vmul.f32 %v4557, %v4559
        %v4561 = vadd.f32 %v4557, %v4560
        %vm4562 = vweird.f32 %v4555
        %vm4563 = vweird.f32 %v4557
        %vm4564 = vmor %vm4562, %vm4563
        %v4565 = vsel %vm4564, %v4557, %v4561
        %v4566 = vand.u32 2147483647, %v4555
        %vm4567 = vcmp.eq.f32.partialorder %v4566, 8.507059e+37
        %v4568 = vand.u32 %v4555, 2147483648
        %v4569 = vor.u32 1.1754944e-38, %v4568
        %v4570 = vsel %vm4567, %v4569, %v4565
        %v4571 = vmul.f32 1.0, %v4570
        %v4572 = vrcp.pop %v4556
        %v4573 = vmul.f32 %v4556, %v4572
        %v4574 = vsub.f32 1.0, %v4573
        %v4575 = vmul.f32 %v4572, %v4574
        %v4576 = vadd.f32 %v4572, %v4575
        %vm4577 = vweird.f32 %v4556
        %vm4578 = vweird.f32 %v4572
        %vm4579 = vmor %vm4577, %vm4578
        %v4580 = vsel %vm4579, %v4572, %v4576
        %v4581 = vand.u32 2147483647, %v4556
        %vm4582 = vcmp.eq.f32.partialorder %v4581, 8.507059e+37
        %v4583 = vand.u32 %v4556, 2147483648
        %v4584 = vor.u32 1.1754944e-38, %v4583
        %v4585 = vsel %vm4582, %v4584, %v4580
        %v4586 = vmul.f32 1.0, %v4585
        %s4587 = scalar_lea.vmem %s248, 32 [#allocation7]
        %4588 = vst.msk [vmem:[%s4587] sm:$0xff] %vm354, %v4571
        %4589 = vst.msk [vmem:[%s4587 + $0x8] sm:$0xff] %vm354, %v4586
        %v4590 = vmul.f32 %v4571, %v272
        %v4591 = vmul.f32 %v4586, %v273
        %s4592 = scalar_lea.vmem %s255, 32 [#allocation8]
        %4593 = vst.msk [vmem:[%s4592] sm:$0xff] %vm354, %v4590
        %4594 = vst.msk [vmem:[%s4592 + $0x8] sm:$0xff] %vm354, %v4591
        %v4595 = vsub.f32 1.0, %v4571
        %v4596 = vsub.f32 1.0, %v4586
        %v4597 = vmul.f32 %v4595, %v272
        %v4598 = vmul.f32 %v4596, %v273
        %v4599 = vsel %vm354, %v4597, -inf
        %v4600 = vrot.slane %v4599, 4
        %v4601 = vmax.f32 %v4599, %v4600
        %v4602 = vrot.slane %v4601, 2
        %v4603 = vmax.f32 %v4601, %v4602
        %v4604 = vrot.slane %v4603, 1
        %v4605 = vmax.f32 %v4603, %v4604
        %v4606 = vsel %vm354, %v4598, -inf
        %v4607 = vrot.slane %v4606, 4
        %v4608 = vmax.f32 %v4606, %v4607
        %v4609 = vrot.slane %v4608, 2
        %v4610 = vmax.f32 %v4608, %v4609
        %v4611 = vrot.slane %v4610, 1
        %v4612 = vmax.f32 %v4610, %v4611
        %4615 = vrot.lane.b32.xlu0 %v4605, 120
        %v4616 = vpop.permute.xlu0 %4615
        %4617 = vrot.lane.b32.xlu0 %v4612, 120
        %v4618 = vpop.permute.xlu0 %4617
        %v4619 = vrot.slane %v4612, 7
        %v4620 = vsel %vm4388, %v4619, %v4605
        %v4621 = vrot.slane %v4618, 7
        %v4622 = vsel %vm4388, %v4621, %v4616
        %v4625 = vrot.slane %v4622, 4
        %v4626 = vsel %vm1332, %v4625, %v4620
        %v4628 = vunpack.c.l.s4 1934713408
        %v4629 = vunpack.c.0.s8 %v4628
        %v4630 = vperm.slane %v4626, %v4629
        %v4631 = vrot.slane %v4630, 4
        %v4632 = vsel %vm1332, 0.0, %v4631
        %v4633 = vsel %vm4402, %v4630, -inf
        %4634 = vmax.xlane.f32.xlu0 %v4633
        %v4635 = vpop.xlane.xlu0 %4634
        %v4636 = vsel %vm4402, %v4632, -inf
        %4637 = vmax.xlane.f32.xlu0 %v4636
        %v4638 = vpop.xlane.xlu0 %4637
        %v4641 = vperm.slane %v4635, %v4412
        %v4642 = vperm.slane %v4638, %v4412
        %v4643 = vsel %vm4388, %v4642, %v4641
        %s4645 = scalar_lea.vmem %s267, 4
        %4646 = vst.msk [vmem:[%s4645] sm:$0x3] %vm4417, %v4643
        %vm4647 = vcmp.gt.f32.partialorder %v4182, 0.0
        %vm4648 = vcmp.gt.f32.partialorder %v4294, 0.0
        %v4649 = vmul.f32 %v4182, 0.2
        %v4650 = vmul.f32 %v4294, 0.2
        %v4651 = vsel %vm4647, %v4182, %v4649
        %v4652 = vsel %vm4648, %v4294, %v4650
        %vm4653 = vcmp.gt.f32.partialorder %v4190, 0.0
        %vm4654 = vcmp.gt.f32.partialorder %v4302, 0.0
        %v4655 = vmul.f32 %v4190, 0.2
        %v4656 = vmul.f32 %v4302, 0.2
        %v4657 = vsel %vm4653, %v4190, %v4655
        %v4658 = vsel %vm4654, %v4302, %v4656
        %v4659 = vsub.f32 %v4651, %v4657
        %v4660 = vsub.f32 %v4652, %v4658
        %v4661 = vand.u32 2147483647, %v4659
        %v4662 = vand.u32 2147483647, %v4660
        %v4663 = vsub.f32 0.0, %v4661
        %v4664 = vsub.f32 0.0, %v4662
        %v4665 = vmul.f32 %v4663, 1.442695
        %v4666 = vpow.pop %v4665
        %v4667 = vmul.f32 %v4664, 1.442695
        %v4668 = vpow.pop %v4667
        %v4669 = vadd.f32 %v4666, 1.0
        %v4670 = vadd.f32 %v4668, 1.0
        %v4671 = vrcp.pop %v4669
        %v4672 = vmul.f32 %v4669, %v4671
        %v4673 = vsub.f32 1.0, %v4672
        %v4674 = vmul.f32 %v4671, %v4673
        %v4675 = vadd.f32 %v4671, %v4674
        %vm4676 = vweird.f32 %v4669
        %vm4677 = vweird.f32 %v4671
        %vm4678 = vmor %vm4676, %vm4677
        %v4679 = vsel %vm4678, %v4671, %v4675
        %v4680 = vand.u32 2147483647, %v4669
        %vm4681 = vcmp.eq.f32.partialorder %v4680, 8.507059e+37
        %v4682 = vand.u32 %v4669, 2147483648
        %v4683 = vor.u32 1.1754944e-38, %v4682
        %v4684 = vsel %vm4681, %v4683, %v4679
        %v4685 = vmul.f32 1.0, %v4684
        %v4686 = vrcp.pop %v4670
        %v4687 = vmul.f32 %v4670, %v4686
        %v4688 = vsub.f32 1.0, %v4687
        %v4689 = vmul.f32 %v4686, %v4688
        %v4690 = vadd.f32 %v4686, %v4689
        %vm4691 = vweird.f32 %v4670
        %vm4692 = vweird.f32 %v4686
        %vm4693 = vmor %vm4691, %vm4692
        %v4694 = vsel %vm4693, %v4686, %v4690
        %v4695 = vand.u32 2147483647, %v4670
        %vm4696 = vcmp.eq.f32.partialorder %v4695, 8.507059e+37
        %v4697 = vand.u32 %v4670, 2147483648
        %v4698 = vor.u32 1.1754944e-38, %v4697
        %v4699 = vsel %vm4696, %v4698, %v4694
        %v4700 = vmul.f32 1.0, %v4699
        %s4701 = scalar_lea.vmem %s248, 48 [#allocation7]
        %4702 = vst.msk [vmem:[%s4701] sm:$0xff] %vm354, %v4685
        %4703 = vst.msk [vmem:[%s4701 + $0x8] sm:$0xff] %vm354, %v4700
        %v4704 = vmul.f32 %v4685, %v274
        %v4705 = vmul.f32 %v4700, %v275
        %s4706 = scalar_lea.vmem %s255, 48 [#allocation8]
        %4707 = vst.msk [vmem:[%s4706] sm:$0xff] %vm354, %v4704
        %4708 = vst.msk [vmem:[%s4706 + $0x8] sm:$0xff] %vm354, %v4705
        %v4709 = vsub.f32 1.0, %v4685
        %v4710 = vsub.f32 1.0, %v4700
        %v4711 = vmul.f32 %v4709, %v274
        %v4712 = vmul.f32 %v4710, %v275
        %v4713 = vsel %vm354, %v4711, -inf
        %v4714 = vrot.slane %v4713, 4
        %v4715 = vmax.f32 %v4713, %v4714
        %v4716 = vrot.slane %v4715, 2
        %v4717 = vmax.f32 %v4715, %v4716
        %v4718 = vrot.slane %v4717, 1
        %v4719 = vmax.f32 %v4717, %v4718
        %v4720 = vsel %vm354, %v4712, -inf
        %v4721 = vrot.slane %v4720, 4
        %v4722 = vmax.f32 %v4720, %v4721
        %v4723 = vrot.slane %v4722, 2
        %v4724 = vmax.f32 %v4722, %v4723
        %v4725 = vrot.slane %v4724, 1
        %v4726 = vmax.f32 %v4724, %v4725
        %4729 = vrot.lane.b32.xlu0 %v4719, 120
        %v4730 = vpop.permute.xlu0 %4729
        %4731 = vrot.lane.b32.xlu0 %v4726, 120
        %v4732 = vpop.permute.xlu0 %4731
        %v4733 = vrot.slane %v4726, 7
        %v4734 = vsel %vm4388, %v4733, %v4719
        %v4735 = vrot.slane %v4732, 7
        %v4736 = vsel %vm4388, %v4735, %v4730
        %v4739 = vrot.slane %v4736, 4
        %v4740 = vsel %vm1332, %v4739, %v4734
        %v4742 = vunpack.c.l.s4 1934713408
        %v4743 = vunpack.c.0.s8 %v4742
        %v4744 = vperm.slane %v4740, %v4743
        %v4745 = vrot.slane %v4744, 4
        %v4746 = vsel %vm1332, 0.0, %v4745
        %v4747 = vsel %vm4402, %v4744, -inf
        %4748 = vmax.xlane.f32.xlu0 %v4747
        %v4749 = vpop.xlane.xlu0 %4748
        %v4750 = vsel %vm4402, %v4746, -inf
        %4751 = vmax.xlane.f32.xlu0 %v4750
        %v4752 = vpop.xlane.xlu0 %4751
        %v4755 = vperm.slane %v4749, %v4412
        %v4756 = vperm.slane %v4752, %v4412
        %v4757 = vsel %vm4388, %v4756, %v4755
        %s4759 = scalar_lea.vmem %s267, 6
        %4760 = vst.msk [vmem:[%s4759] sm:$0x3] %vm4417, %v4757
        %s4761 = sand.u32 %s102, 1
        %s4762 = scalar_lea.sflag [#allocation6], %s4761
        %s4763 = sand.u32 %s102, 1
        %s4764 = smul.addr %s4763, 64
        %s4765 = scalar_lea.vmem [#allocation7], %s4764
        %s4766 = sand.u32 %s128, 1
        %s4767 = scalar_lea.sflag [#allocation9], %s4766
        %s4768 = sand.u32 %s128, 1
        %s4769 = smul.addr %s4768, 64
        %s4770 = scalar_lea.vmem [#allocation8], %s4769
        %p4771 = scmp.lt.s32.totalorder %s26, 1
        %s4772 = scalar_select %p4771, %s26, 1
        %s4773 = smul.addr %s4772, 4
        %s4774 = smul.addr %s4773, 2
        %s4775 = scalar_lea.vmem %s5, %s4774
        // Predicated region
        $region37: #{en_block_forward.3} parent=31 // pred_check
          %p4776 = pneg %p112
        $region38: #{en_block_forward.3} parent=31 // pred_check_branch
          %4778 = sbr.rel (%p4776) target = $region40
        $region39: #{en_block_forward.3} parent=31 // pred_region
          %4780 = vsyncadd %s4762, 0
          %s4781 = smul.addr %s26, 8
          %s4782 = smul.addr %s4781, 8
          %s4783 = scalar_lea.hbm %s3, %s4782
          %s4784 = sshll.u32 %s4765, 4
          %s4785 = int_to_ptr.vmem [resolvable:$true] %s4784
          %s4786 = sshll.u32 %s4783, 4
          %s4787 = int_to_ptr.hbm [resolvable:$true] %s4786
          %4792 = dma.vmem_to_hbm [thread:$0]  %s4785, 1024, %s4787, %s4762, 128, 128, 8
        $region40: #{en_block_forward.3} parent=31 // pred_fallthru
          _
        // Predicated region
        $region41: #{en_block_forward.3} parent=31 // pred_check
          %p4793 = pneg %p138
        $region42: #{en_block_forward.3} parent=31 // pred_check_branch
          %4795 = sbr.rel (%p4793) target = $region44
        $region43: #{en_block_forward.3} parent=31 // pred_region
          %4797 = vsyncadd %s4767, 0
          %s4798 = smul.addr %s26, 8
          %s4799 = smul.addr %s4798, 8
          %s4800 = scalar_lea.hbm %s4, %s4799
          %s4801 = sshll.u32 %s4770, 4
          %s4802 = int_to_ptr.vmem [resolvable:$true] %s4801
          %s4803 = sshll.u32 %s4800, 4
          %s4804 = int_to_ptr.hbm [resolvable:$true] %s4803
          %4809 = dma.vmem_to_hbm [thread:$0]  %s4802, 1024, %s4804, %s4767, 128, 128, 8
        $region44: #{en_block_forward.3} parent=31 // pred_fallthru
          _
        // Predicated region
        $region45: #{en_block_forward.3} parent=31 // pred_check
          %p4810 = pneg %p164
        $region46: #{en_block_forward.3} parent=31 // pred_check_branch
          %4812 = sbr.rel (%p4810) target = $region48
        $region47: #{en_block_forward.3} parent=31 // pred_region
          _
        $region48: #{en_block_forward.3} parent=31 // pred_fallthru
          _
      $region32: #{en_block_forward.3} parent=5 // pred_fallthru
        _
      %p4813 = scmp.le.s32.totalorder 2, %s21
      // Predicated region
      $region49: #{en_block_forward.3} parent=5 // pred_check
        %p4814 = pneg %p4813
      $region50: #{en_block_forward.3} parent=5 // pred_check_branch
        %4816 = sbr.rel (%p4814) target = $region52
      $region51: #{en_block_forward.3} parent=5 // pred_region
        %s4817 = ssub.s32 %s21, 2
        // Predicated region
        $region53: #{en_block_forward.3} parent=51 // pred_check
          %p4818 = pneg %p118
        $region54: #{en_block_forward.3} parent=51 // pred_check_branch
          %4820 = sbr.rel (%p4818) target = $region56
        $region55: #{en_block_forward.3} parent=51 // pred_region
          %s4821 = sand.u32 %s103, 1
          %s4822 = scalar_lea.sflag [#allocation6], %s4821
          %s4823 = sand.u32 %s103, 1
          %s4824 = smul.addr %s4823, 64
          %s4825 = scalar_lea.vmem [#allocation7], %s4824
          %4827 = dma.done %s4822, 1024
        $region56: #{en_block_forward.3} parent=51 // pred_fallthru
          _
        // Predicated region
        $region57: #{en_block_forward.3} parent=51 // pred_check
          %p4828 = pneg %p144
        $region58: #{en_block_forward.3} parent=51 // pred_check_branch
          %4830 = sbr.rel (%p4828) target = $region60
        $region59: #{en_block_forward.3} parent=51 // pred_region
          %s4831 = sand.u32 %s129, 1
          %s4832 = scalar_lea.sflag [#allocation9], %s4831
          %s4833 = sand.u32 %s129, 1
          %s4834 = smul.addr %s4833, 64
          %s4835 = scalar_lea.vmem [#allocation8], %s4834
          %4837 = dma.done %s4832, 1024
        $region60: #{en_block_forward.3} parent=51 // pred_fallthru
          _
        // Predicated region
        $region61: #{en_block_forward.3} parent=51 // pred_check
          %p4838 = pneg %p170
        $region62: #{en_block_forward.3} parent=51 // pred_check_branch
          %4840 = sbr.rel (%p4838) target = $region64
        $region63: #{en_block_forward.3} parent=51 // pred_region
          %p4841 = scmp.lt.s32.totalorder %s27, 1
          %s4842 = scalar_select %p4841, %s27, 1
          %s4843 = smul.addr %s4842, 4
          %s4844 = smul.addr %s4843, 2
          %s4845 = scalar_lea.vmem %s5, %s4844
        $region64: #{en_block_forward.3} parent=51 // pred_fallthru
          _
      $region52: #{en_block_forward.3} parent=5 // pred_fallthru
        _
    $region6: #{en_block_forward.3} parent=1 // loop_footer
      %s25 = sadd.s32 1, %s21
    $region7: #{en_block_forward.3} parent=1 // loop_footer_branch
      %20 = sbr.rel target = $region3
    $region8: #{en_block_forward.3} parent=1 // loop_exit
      _
    %4846 = vsyncpa [#allocation5], 1
    %s4847 = scalar_lea.sflag [#allocation5], 1
    %4848 = vsyncpa %s4847, 1
    %4849 = vsyncpa [#allocation6], 1
    %s4850 = scalar_lea.sflag [#allocation6], 1
    %4851 = vsyncpa %s4850, 1
    %4852 = vsyncpa [#allocation9], 1
    %s4853 = scalar_lea.sflag [#allocation9], 1
    %4854 = vsyncpa %s4853, 1

</llo_original>
